<compile_context>
chip_gen: v7x
topology: tpu7x:2x2x1
jax: 0.10.0
libtpu: 0.0.40
codegen_flags: <defaults>
</compile_context>

<pallas_src>
import math

import numpy as np
import jax
import jax.numpy as jnp
from jax.experimental import pallas as pl
from jax.experimental.pallas import tpu as pltpu

# ----------------------------- configuration -------------------------------
EMB = 32            # encoder.emb_size
HEADS = 4
HEAD_DIM = EMB // HEADS
MLP_RATIO = 2
HID = MLP_RATIO * EMB
N_LAYERS = 3
TSS = 2             # encoder.embedding.temporal_segment_size
AVG_TOP_K = 2       # average_top_k_layers
NORMALIZE_TARGETS = True
LN_EPS = 1e-5       # matches F.layer_norm / nn.LayerNorm default

# ---- packed-parameter slab layout (all offsets are static Python ints) -----
# "vec" slab: (VEC_ROWS, 3*EMB) f32 holding every tiny vector parameter.
VEC_EMBED_B = 0
VEC_MASK_TOK = 1
VEC_LNF_G = 2
VEC_LNF_B = 3
VEC_HEAD_B = 4
VEC_LAYER0 = 8          # first per-layer row (8-aligned)
VEC_PER_LAYER = 8       # ln1_g, ln1_b, qkv_b, proj_b, ln2_g, ln2_b, fc1_b, fc2_b
VEC_ROWS = VEC_LAYER0 + VEC_PER_LAYER * N_LAYERS    # 32


def _round_up(x, m):
    return ((x + m - 1) // m) * m


def glob_offsets(in_dim, n_tokens):
    """Row offsets of embed_w / pos_emb / head_w inside the (rows, EMB) glob slab."""
    pos_off = _round_up(in_dim, 8)
    head_off = pos_off + _round_up(n_tokens, 8)
    total = head_off + EMB
    return pos_off, head_off, total


# ------------------------------ fused kernel --------------------------------
def _fused_kernel(tok_ref, mask_ref, vec_ref, glob_ref,
                  qkv_w_ref, proj_w_ref, fc1_w_ref, fc2_w_ref,
                  x_out_ref, y_out_ref):
    n_tok = tok_ref.shape[1]
    din = tok_ref.shape[2]
    scale = 1.0 / math.sqrt(HEAD_DIM)

    def dot(a, b):
        return jnp.dot(a, b, preferred_element_type=jnp.float32)

    def ln(x, g, b):
        mu = jnp.mean(x, axis=-1, keepdims=True)
        var = jnp.mean(jnp.square(x - mu), axis=-1, keepdims=True)
        return (x - mu) * jax.lax.rsqrt(var + LN_EPS) * g + b

    def ln_plain(x):  # F.layer_norm(x, (D,)) with no affine params
        mu = jnp.mean(x, axis=-1, keepdims=True)
        var = jnp.mean(jnp.square(x - mu), axis=-1, keepdims=True)
        return (x - mu) * jax.lax.rsqrt(var + LN_EPS)

    def gelu(y):
        # TODO(synk): tanh-approximate GELU; nn.GELU default is the exact erf
        # form (~1e-3 level difference vs the PyTorch reference).
        return 0.5 * y * (1.0 + jnp.tanh(0.7978845608028654 *
                                         (y + 0.044715 * y * y * y)))

    # ---- unpack parameter slabs (all static slices, no data movement) ----
    vecs = vec_ref[...]                                   # (VEC_ROWS, 3*EMB)
    glob = glob_ref[...]                                  # (glob_rows, EMB)
    pos_off, head_off, _ = glob_offsets(din, n_tok)
    embed_w = glob[0:din, :]                              # (Din, EMB)
    pos = glob[pos_off:pos_off + n_tok, :]                # (N, EMB)
    head_w = glob[head_off:head_off + EMB, :]             # (EMB, EMB)

    def vrow(r, w=EMB):
        return vecs[r:r + 1, 0:w]                         # (1, w) broadcast row

    # ---- shared embedding ----
    tok = tok_ref[0].astype(jnp.float32)                  # (N, Din)
    m = mask_ref[0]                                       # (N, 1) float
    emb = dot(tok, embed_w) + vrow(VEC_EMBED_B)           # (N, EMB)

    x_s = emb * (1.0 - m) + vrow(VEC_MASK_TOK) * m + pos  # student (masked)
    x_t = emb + pos                                       # teacher (unmasked)
    # student rows 0..N-1, teacher rows N..2N-1 : both streams share every matmul
    x = jnp.concatenate([x_s, x_t], axis=0)               # (2N, EMB)

    # block-diagonal additive mask keeping attention within its own stream
    r_id = jax.lax.broadcasted_iota(jnp.int32, (2 * n_tok, 2 * n_tok), 0)
    c_id = jax.lax.broadcasted_iota(jnp.int32, (2 * n_tok, 2 * n_tok), 1)
    stream_mask = jnp.where((r_id < n_tok) == (c_id < n_tok),
                            jnp.float32(0.0), jnp.float32(-1e30))

    y_acc = jnp.zeros((n_tok, EMB), jnp.float32)

    for l in range(N_LAYERS):
        base = VEC_LAYER0 + l * VEC_PER_LAYER
        # --- pre-LN multi-head self-attention (one fused QKV + one fused proj) ---
        h = ln(x, vrow(base + 0), vrow(base + 1))
        qkv = dot(h, qkv_w_ref[l]) + vecs[base + 2:base + 3, :]     # (2N, 3*EMB)
        head_outs = []
        for hd in range(HEADS):
            c0 = hd * HEAD_DIM
            q = qkv[:, c0:c0 + HEAD_DIM]                            # (2N, dh)
            k = qkv[:, EMB + c0:EMB + c0 + HEAD_DIM]                # (2N, dh)
            v = qkv[:, 2 * EMB + c0:2 * EMB + c0 + HEAD_DIM]        # (2N, dh)
            s = dot(q, k.T) * scale + stream_mask                   # (2N, 2N)
            s = s - jnp.max(s, axis=-1, keepdims=True)
            p = jnp.exp(s)
            p = p / jnp.sum(p, axis=-1, keepdims=True)
            head_outs.append(dot(p, v))                             # (2N, dh)
        attn = jnp.concatenate(head_outs, axis=-1)                  # (2N, EMB)
        x = x + dot(attn, proj_w_ref[l]) + vrow(base + 3)
        # --- pre-LN MLP ---
        h = ln(x, vrow(base + 4), vrow(base + 5))
        h = gelu(dot(h, fc1_w_ref[l]) + vecs[base + 6:base + 7, 0:HID])
        x = x + dot(h, fc2_w_ref[l]) + vrow(base + 7)
        # --- teacher target accumulation (top-K layers) ---
        if l >= N_LAYERS - AVG_TOP_K:
            y_acc = y_acc + ln_plain(x[n_tok:, :])

    # student: final LN + regression head (row-wise, applied to all tokens)
    x_fin = ln(x[0:n_tok, :], vrow(VEC_LNF_G), vrow(VEC_LNF_B))
    x_out_ref[0] = dot(x_fin, head_w) + vrow(VEC_HEAD_B)

    # teacher targets: mean of top-K layer-normed hidden states, then normalize
    y = y_acc * (1.0 / AVG_TOP_K)
    if NORMALIZE_TARGETS:
        y = ln_plain(y)
    y_out_ref[0] = y


def fused_encoder_call(params, tokens, mask):
    """tokens: (BM, N, Din) f32 ; mask: (BM, N, 1) f32 -> (x_head, y) both (BM,N,EMB)."""
    BM, N, Din = tokens.shape

    def whole(a):
        nd = a.ndim
        return pl.BlockSpec(a.shape, lambda i, _n=nd: (0,) * _n)

    weights = [params["vec"], params["glob"],
               params["qkv_w"], params["proj_w"], params["fc1_w"], params["fc2_w"]]

    in_specs = ([pl.BlockSpec((1, N, Din), lambda i: (i, 0, 0)),
                 pl.BlockSpec((1, N, 1), lambda i: (i, 0, 0))]
                + [whole(w) for w in weights])
    out_spec = pl.BlockSpec((1, N, EMB), lambda i: (i, 0, 0))
    out_shape = jax.ShapeDtypeStruct((BM, N, EMB), jnp.float32)

    x_full, y_full = pl.pallas_call(
        _fused_kernel,
        grid=(BM,),
        out_shape=(out_shape, out_shape),
        in_specs=in_specs,
        out_specs=(out_spec, out_spec),
        compiler_params=pltpu.CompilerParams(
            dimension_semantics=("parallel",)),   # shards the 2 samples across TCs on v7x
    )(tokens, mask, *weights)
    return x_full, y_full


# ------------------------------- parameters ---------------------------------
def _trunc_normal(key, shape, std=0.02):
    return std * jax.random.truncated_normal(key, -2.0, 2.0, shape, jnp.float32)


def init_params(key, in_dim, n_tokens):
    """Init mirroring _init_weights + fix_init_weight, packed into kernel slabs."""
    keys = iter(jax.random.split(key, 4 + 4 * N_LAYERS))

    embed_w = _trunc_normal(next(keys), (in_dim, EMB))
    pos_emb = _trunc_normal(next(keys), (n_tokens, EMB))
    mask_token = _trunc_normal(next(keys), (1, EMB))

    # global weight slab: embed_w | pos_emb | head_w (8-aligned row offsets)
    pos_off, head_off, tot_rows = glob_offsets(in_dim, n_tokens)

    # vector slab: every tiny (1,EMB)/(1,HID)/(1,3EMB) parameter in one array
    vec = jnp.zeros((VEC_ROWS, 3 * EMB), jnp.float32)
    vec = vec.at[VEC_MASK_TOK, 0:EMB].set(mask_token[0])
    vec = vec.at[VEC_LNF_G, 0:EMB].set(1.0)
    for l in range(N_LAYERS):
        base = VEC_LAYER0 + l * VEC_PER_LAYER
        vec = vec.at[base + 0, 0:EMB].set(1.0)   # ln1 gamma
        vec = vec.at[base + 4, 0:EMB].set(1.0)   # ln2 gamma
    # all Linear / LN biases are zero-init (nn.init.constant_(bias, 0)) -> stay 0.

    qkv_w, proj_w, fc1_w, fc2_w = [], [], [], []
    for lid in range(1, N_LAYERS + 1):
        rescale = 1.0 / math.sqrt(2.0 * lid)      # fix_init_weight
        qkv_w.append(_trunc_normal(next(keys), (EMB, 3 * EMB)))
        proj_w.append(_trunc_normal(next(keys), (EMB, EMB)) * rescale)
        fc1_w.append(_trunc_normal(next(keys), (EMB, HID)))
        fc2_w.append(_trunc_normal(next(keys), (HID, EMB)) * rescale)
    head_w = _trunc_normal(next(keys), (EMB, EMB))      # regression_head

    glob = jnp.zeros((tot_rows, EMB), jnp.float32)
    glob = glob.at[0:in_dim].set(embed_w)
    glob = glob.at[pos_off:pos_off + n_tokens].set(pos_emb)
    glob = glob.at[head_off:head_off + EMB].set(head_w)

    return dict(
        vec=vec, glob=glob,
        qkv_w=jnp.stack(qkv_w), proj_w=jnp.stack(proj_w),
        fc1_w=jnp.stack(fc1_w), fc2_w=jnp.stack(fc2_w),
    )


# ---------------------------- Skeleton2Vec forward ---------------------------
def skeleton2vec_forward(params, src, bool_masked_pos, mask_indices):
    """src: [B, C, T, V, M]; bool_masked_pos: [B, M, T, V, 1] (bool);
    mask_indices: int32[K] flat indices of masked tokens (precomputed on host,
    static shape, so the whole forward stays jit-able)."""
    if mask_indices is None:
        raise ValueError("mask_indices must be precomputed (host-side) and passed in; "
                         "a traced-array fallback is not jit-compatible.")
    B, C, T, V, M = src.shape
    Tp = T // TSS
    N = Tp * V
    BM = B * M

    # bool_masked_pos[:, :, ::TSS, :, :]  ->  '(B M) (T V) 1'
    bmp = bool_masked_pos[:, :, ::TSS, :, :].reshape(BM, N, 1).astype(jnp.float32)

    # tokenization (temporal segments of size TSS, all coord channels per joint)
    tok = jnp.transpose(src, (0, 4, 2, 3, 1))                       # [B, M, T, V, C]
    tok = tok.reshape(BM, Tp, TSS, V, C)
    tok = jnp.transpose(tok, (0, 1, 3, 2, 4)).reshape(BM, N, TSS * C)

    # one fused kernel: student pass + teacher pass + targets + regression head
    x_full, y_full = fused_encoder_call(params, tok, bmp)

    x_flat = x_full.reshape(BM * N, EMB)
    y_flat = y_full.reshape(BM * N, EMB)

    x = jnp.take(x_flat, mask_indices, axis=0)
    y = jnp.take(y_flat, mask_indices, axis=0)
    return x, y


# ----------------------------------- main ------------------------------------
if __name__ == "__main__":
    B, C, T, V, M = 2, 3, 8, 4, 1
    key = jax.random.PRNGKey(0)
    k_src, k_mask, k_par = jax.random.split(key, 3)

    src = jax.random.normal(k_src, (B, C, T, V, M), jnp.float32)
    bool_masked_pos = jax.random.uniform(k_mask, (B, M, T, V, 1)) < 0.4
    bool_masked_pos = bool_masked_pos.at[0, 0, 0, 0, 0].set(True)   # ensure >=1 masked

    n_tokens = (T // TSS) * V
    params = init_params(k_par, TSS * C, n_tokens)

    # Gather indices computed once from the input mask (host-side), BEFORE any
    # device compute; the forward itself is pure, jit-able JAX.
    bmp_np = np.asarray(bool_masked_pos)[:, :, ::TSS, :, :].reshape(-1)
    mask_idx = jnp.asarray(np.flatnonzero(bmp_np), dtype=jnp.int32)

    # TODO(synk): EMA decay annealing / ema_step is a training-time weight update,
    # not part of the forward pass; the teacher reuses the student weights here.
    fwd = jax.jit(skeleton2vec_forward)
    x_out, y_out = fwd(params, src, bool_masked_pos, mask_idx)
    jax.block_until_ready((x_out, y_out))

    assert x_out.shape == y_out.shape and x_out.shape[1] == EMB
    print("KERNEL_OK")
</pallas_src>

<mosaic_0001>
module attributes {stable_mosaic.version = 11 : i64} {
  func.func @_fused_kernel(%arg0: i32, %arg1: memref<1x16x6xf32, #tpu.memory_space<vmem>>, %arg2: memref<1x16x1xf32, #tpu.memory_space<vmem>>, %arg3: memref<32x96xf32, #tpu.memory_space<vmem>>, %arg4: memref<56x32xf32, #tpu.memory_space<vmem>>, %arg5: memref<3x32x96xf32, #tpu.memory_space<vmem>>, %arg6: memref<3x32x32xf32, #tpu.memory_space<vmem>>, %arg7: memref<3x32x64xf32, #tpu.memory_space<vmem>>, %arg8: memref<3x64x32xf32, #tpu.memory_space<vmem>>, %arg9: memref<1x16x32xf32, #tpu.memory_space<vmem>>, %arg10: memref<1x16x32xf32, #tpu.memory_space<vmem>>) attributes {dimension_semantics = [#tpu.dimension_semantics<parallel>], iteration_bounds = array<i64: 2>, scalar_prefetch = 0 : i64, scratch_operands = 0 : i64, tpu.core_type = #tpu.core_type<tc>, window_params = [{transform_indices = @transform_0, window_bounds = array<i64: 1, 16, 6>}, {transform_indices = @transform_1, window_bounds = array<i64: 1, 16, 1>}, {pipeline_mode = #tpu.pipeline_mode<synchronous>, transform_indices = @transform_2, window_bounds = array<i64: 32, 96>}, {pipeline_mode = #tpu.pipeline_mode<synchronous>, transform_indices = @transform_3, window_bounds = array<i64: 56, 32>}, {pipeline_mode = #tpu.pipeline_mode<synchronous>, transform_indices = @transform_4, window_bounds = array<i64: 3, 32, 96>}, {pipeline_mode = #tpu.pipeline_mode<synchronous>, transform_indices = @transform_5, window_bounds = array<i64: 3, 32, 32>}, {pipeline_mode = #tpu.pipeline_mode<synchronous>, transform_indices = @transform_6, window_bounds = array<i64: 3, 32, 64>}, {pipeline_mode = #tpu.pipeline_mode<synchronous>, transform_indices = @transform_7, window_bounds = array<i64: 3, 64, 32>}, {transform_indices = @transform_8, window_bounds = array<i64: 1, 16, 32>}, {transform_indices = @transform_9, window_bounds = array<i64: 1, 16, 32>}]} {
    %c0 = arith.constant 0 : index
    %c0_0 = arith.constant 0 : index
    %0 = vector.load %arg3[%c0, %c0_0] : memref<32x96xf32, #tpu.memory_space<vmem>>, vector<32x96xf32>
    %c0_1 = arith.constant 0 : index
    %c0_2 = arith.constant 0 : index
    %1 = vector.load %arg4[%c0_1, %c0_2] : memref<56x32xf32, #tpu.memory_space<vmem>>, vector<56x32xf32>
    %2 = vector.extract_strided_slice %1 {offsets = [0, 0], sizes = [6, 32], strides = [1, 1]} : vector<56x32xf32> to vector<6x32xf32>
    %3 = vector.extract_strided_slice %1 {offsets = [8, 0], sizes = [16, 32], strides = [1, 1]} : vector<56x32xf32> to vector<16x32xf32>
    %4 = vector.extract_strided_slice %1 {offsets = [24, 0], sizes = [32, 32], strides = [1, 1]} : vector<56x32xf32> to vector<32x32xf32>
    %c0_3 = arith.constant 0 : index
    %c0_4 = arith.constant 0 : index
    %c0_5 = arith.constant 0 : index
    %5 = vector.load %arg1[%c0_3, %c0_4, %c0_5] : memref<1x16x6xf32, #tpu.memory_space<vmem>>, vector<1x16x6xf32>
    %6 = vector.shape_cast %5 : vector<1x16x6xf32> to vector<16x6xf32>
    %c0_6 = arith.constant 0 : index
    %c0_7 = arith.constant 0 : index
    %c0_8 = arith.constant 0 : index
    %7 = vector.load %arg2[%c0_6, %c0_7, %c0_8] : memref<1x16x1xf32, #tpu.memory_space<vmem>>, vector<1x16x1xf32>
    %8 = vector.shape_cast %7 : vector<1x16x1xf32> to vector<16x1xf32>
    %cst = arith.constant dense<0.000000e+00> : vector<16x32xf32>
    %9 = tpu.matmul %6, %2, %cst {dimension_numbers = #tpu.dot_dimension_numbers<[1], [0], [0], [1], [0, 0, 1, 1], [], []>} : vector<16x6xf32>, vector<6x32xf32>, vector<16x32xf32> -> vector<16x32xf32>
    %10 = vector.extract_strided_slice %0 {offsets = [0, 0], sizes = [1, 32], strides = [1, 1]} : vector<32x96xf32> to vector<1x32xf32>
    %11 = vector.broadcast %10 : vector<1x32xf32> to vector<16x32xf32>
    %12 = arith.addf %9, %11 : vector<16x32xf32>
    %cst_9 = arith.constant 1.000000e+00 : f32
    %13 = vector.broadcast %cst_9 : f32 to vector<16x1xf32>
    %14 = arith.subf %13, %8 : vector<16x1xf32>
    %15 = vector.broadcast %14 : vector<16x1xf32> to vector<16x32xf32>
    %16 = arith.mulf %12, %15 : vector<16x32xf32>
    %17 = vector.extract_strided_slice %0 {offsets = [1, 0], sizes = [1, 32], strides = [1, 1]} : vector<32x96xf32> to vector<1x32xf32>
    %18 = vector.broadcast %17 : vector<1x32xf32> to vector<16x32xf32>
    %19 = vector.broadcast %8 : vector<16x1xf32> to vector<16x32xf32>
    %20 = arith.mulf %18, %19 : vector<16x32xf32>
    %21 = arith.addf %16, %20 : vector<16x32xf32>
    %22 = arith.addf %21, %3 : vector<16x32xf32>
    %23 = arith.addf %12, %3 : vector<16x32xf32>
    %24 = tpu.concatenate %22, %23 in 0 : vector<16x32xf32>, vector<16x32xf32> -> vector<32x32xf32>
    %25 = tpu.iota {dimensions = array<i32: 0>} : vector<32x32xi32>
    %26 = tpu.iota {dimensions = array<i32: 1>} : vector<32x32xi32>
    %c16_i32 = arith.constant 16 : i32
    %27 = vector.broadcast %c16_i32 : i32 to vector<32x32xi32>
    %28 = arith.cmpi slt, %25, %27 : vector<32x32xi32>
    %c16_i32_10 = arith.constant 16 : i32
    %29 = vector.broadcast %c16_i32_10 : i32 to vector<32x32xi32>
    %30 = arith.cmpi slt, %26, %29 : vector<32x32xi32>
    %31 = arith.xori %28, %30 : vector<32x32xi1>
    %cst_11 = arith.constant dense<true> : vector<32x32xi1>
    %32 = arith.xori %31, %cst_11 : vector<32x32xi1>
    %cst_12 = arith.constant 0.000000e+00 : f32
    %cst_13 = arith.constant -1.000000e+30 : f32
    %33 = vector.broadcast %cst_12 : f32 to vector<32x32xf32>
    %34 = vector.broadcast %cst_13 : f32 to vector<32x32xf32>
    %35 = arith.select %32, %33, %34 : vector<32x32xi1>, vector<32x32xf32>
    %cst_14 = arith.constant 0.000000e+00 : f32
    %36 = vector.broadcast %cst_14 : f32 to vector<16x32xf32>
    %37 = vector.extract_strided_slice %0 {offsets = [8, 0], sizes = [1, 32], strides = [1, 1]} : vector<32x96xf32> to vector<1x32xf32>
    %38 = vector.extract_strided_slice %0 {offsets = [9, 0], sizes = [1, 32], strides = [1, 1]} : vector<32x96xf32> to vector<1x32xf32>
    %cst_15 = arith.constant dense<0.000000e+00> : vector<32xf32>
    %39 = vector.multi_reduction <add>, %24, %cst_15 [1] : vector<32x32xf32> to vector<32xf32>
    %40 = vector.shape_cast %39 : vector<32xf32> to vector<32x1xf32>
    %cst_16 = arith.constant 3.200000e+01 : f32
    %41 = vector.broadcast %cst_16 : f32 to vector<32x1xf32>
    %42 = arith.divf %40, %41 : vector<32x1xf32>
    %43 = vector.broadcast %42 : vector<32x1xf32> to vector<32x32xf32>
    %44 = arith.subf %24, %43 : vector<32x32xf32>
    %45 = arith.mulf %44, %44 : vector<32x32xf32>
    %cst_17 = arith.constant dense<0.000000e+00> : vector<32xf32>
    %46 = vector.multi_reduction <add>, %45, %cst_17 [1] : vector<32x32xf32> to vector<32xf32>
    %47 = vector.shape_cast %46 : vector<32xf32> to vector<32x1xf32>
    %cst_18 = arith.constant 3.200000e+01 : f32
    %48 = vector.broadcast %cst_18 : f32 to vector<32x1xf32>
    %49 = arith.divf %47, %48 : vector<32x1xf32>
    %50 = vector.broadcast %42 : vector<32x1xf32> to vector<32x32xf32>
    %51 = arith.subf %24, %50 : vector<32x32xf32>
    %cst_19 = arith.constant 9.99999974E-6 : f32
    %52 = vector.broadcast %cst_19 : f32 to vector<32x1xf32>
    %53 = arith.addf %49, %52 : vector<32x1xf32>
    %54 = math.rsqrt %53 : vector<32x1xf32>
    %55 = vector.broadcast %54 : vector<32x1xf32> to vector<32x32xf32>
    %56 = arith.mulf %51, %55 : vector<32x32xf32>
    %57 = vector.broadcast %37 : vector<1x32xf32> to vector<32x32xf32>
    %58 = arith.mulf %56, %57 : vector<32x32xf32>
    %59 = vector.broadcast %38 : vector<1x32xf32> to vector<32x32xf32>
    %60 = arith.addf %58, %59 : vector<32x32xf32>
    %c0_20 = arith.constant 0 : index
    %c0_21 = arith.constant 0 : index
    %c0_22 = arith.constant 0 : index
    %61 = vector.load %arg5[%c0_20, %c0_21, %c0_22] : memref<3x32x96xf32, #tpu.memory_space<vmem>>, vector<1x32x96xf32>
    %62 = vector.shape_cast %61 : vector<1x32x96xf32> to vector<32x96xf32>
    %cst_23 = arith.constant dense<0.000000e+00> : vector<32x96xf32>
    %63 = tpu.matmul %60, %62, %cst_23 {dimension_numbers = #tpu.dot_dimension_numbers<[1], [0], [0], [1], [0, 0, 1, 1], [], []>} : vector<32x32xf32>, vector<32x96xf32>, vector<32x96xf32> -> vector<32x96xf32>
    %64 = vector.extract_strided_slice %0 {offsets = [10, 0], sizes = [1, 96], strides = [1, 1]} : vector<32x96xf32> to vector<1x96xf32>
    %65 = vector.broadcast %64 : vector<1x96xf32> to vector<32x96xf32>
    %66 = arith.addf %63, %65 : vector<32x96xf32>
    %67 = vector.extract_strided_slice %66 {offsets = [0, 0], sizes = [32, 8], strides = [1, 1]} : vector<32x96xf32> to vector<32x8xf32>
    %68 = vector.extract_strided_slice %66 {offsets = [0, 32], sizes = [32, 8], strides = [1, 1]} : vector<32x96xf32> to vector<32x8xf32>
    %69 = vector.extract_strided_slice %66 {offsets = [0, 64], sizes = [32, 8], strides = [1, 1]} : vector<32x96xf32> to vector<32x8xf32>
    %70 = tpu.transpose %68, [1, 0] : vector<32x8xf32> -> vector<8x32xf32>
    %cst_24 = arith.constant dense<0.000000e+00> : vector<32x32xf32>
    %71 = tpu.matmul %67, %70, %cst_24 {dimension_numbers = #tpu.dot_dimension_numbers<[1], [0], [0], [1], [0, 0, 1, 1], [], []>} : vector<32x8xf32>, vector<8x32xf32>, vector<32x32xf32> -> vector<32x32xf32>
    %cst_25 = arith.constant 0.353553385 : f32
    %72 = vector.broadcast %cst_25 : f32 to vector<32x32xf32>
    %73 = arith.mulf %71, %72 : vector<32x32xf32>
    %74 = arith.addf %73, %35 : vector<32x32xf32>
    %cst_26 = arith.constant dense<0xFF800000> : vector<32xf32>
    %75 = vector.multi_reduction <maximumf>, %74, %cst_26 [1] : vector<32x32xf32> to vector<32xf32>
    %76 = vector.shape_cast %75 : vector<32xf32> to vector<32x1xf32>
    %77 = vector.broadcast %76 : vector<32x1xf32> to vector<32x32xf32>
    %78 = arith.subf %74, %77 : vector<32x32xf32>
    %79 = math.exp %78 : vector<32x32xf32>
    %cst_27 = arith.constant dense<0.000000e+00> : vector<32xf32>
    %80 = vector.multi_reduction <add>, %79, %cst_27 [1] : vector<32x32xf32> to vector<32xf32>
    %81 = vector.shape_cast %80 : vector<32xf32> to vector<32x1xf32>
    %82 = vector.broadcast %81 : vector<32x1xf32> to vector<32x32xf32>
    %83 = arith.divf %79, %82 : vector<32x32xf32>
    %cst_28 = arith.constant dense<0.000000e+00> : vector<32x8xf32>
    %84 = tpu.matmul %83, %69, %cst_28 {dimension_numbers = #tpu.dot_dimension_numbers<[1], [0], [0], [1], [0, 0, 1, 1], [], []>} : vector<32x32xf32>, vector<32x8xf32>, vector<32x8xf32> -> vector<32x8xf32>
    %85 = vector.extract_strided_slice %66 {offsets = [0, 8], sizes = [32, 8], strides = [1, 1]} : vector<32x96xf32> to vector<32x8xf32>
    %86 = vector.extract_strided_slice %66 {offsets = [0, 40], sizes = [32, 8], strides = [1, 1]} : vector<32x96xf32> to vector<32x8xf32>
    %87 = vector.extract_strided_slice %66 {offsets = [0, 72], sizes = [32, 8], strides = [1, 1]} : vector<32x96xf32> to vector<32x8xf32>
    %88 = tpu.transpose %86, [1, 0] : vector<32x8xf32> -> vector<8x32xf32>
    %cst_29 = arith.constant dense<0.000000e+00> : vector<32x32xf32>
    %89 = tpu.matmul %85, %88, %cst_29 {dimension_numbers = #tpu.dot_dimension_numbers<[1], [0], [0], [1], [0, 0, 1, 1], [], []>} : vector<32x8xf32>, vector<8x32xf32>, vector<32x32xf32> -> vector<32x32xf32>
    %cst_30 = arith.constant 0.353553385 : f32
    %90 = vector.broadcast %cst_30 : f32 to vector<32x32xf32>
    %91 = arith.mulf %89, %90 : vector<32x32xf32>
    %92 = arith.addf %91, %35 : vector<32x32xf32>
    %cst_31 = arith.constant dense<0xFF800000> : vector<32xf32>
    %93 = vector.multi_reduction <maximumf>, %92, %cst_31 [1] : vector<32x32xf32> to vector<32xf32>
    %94 = vector.shape_cast %93 : vector<32xf32> to vector<32x1xf32>
    %95 = vector.broadcast %94 : vector<32x1xf32> to vector<32x32xf32>
    %96 = arith.subf %92, %95 : vector<32x32xf32>
    %97 = math.exp %96 : vector<32x32xf32>
    %cst_32 = arith.constant dense<0.000000e+00> : vector<32xf32>
    %98 = vector.multi_reduction <add>, %97, %cst_32 [1] : vector<32x32xf32> to vector<32xf32>
    %99 = vector.shape_cast %98 : vector<32xf32> to vector<32x1xf32>
    %100 = vector.broadcast %99 : vector<32x1xf32> to vector<32x32xf32>
    %101 = arith.divf %97, %100 : vector<32x32xf32>
    %cst_33 = arith.constant dense<0.000000e+00> : vector<32x8xf32>
    %102 = tpu.matmul %101, %87, %cst_33 {dimension_numbers = #tpu.dot_dimension_numbers<[1], [0], [0], [1], [0, 0, 1, 1], [], []>} : vector<32x32xf32>, vector<32x8xf32>, vector<32x8xf32> -> vector<32x8xf32>
    %103 = vector.extract_strided_slice %66 {offsets = [0, 16], sizes = [32, 8], strides = [1, 1]} : vector<32x96xf32> to vector<32x8xf32>
    %104 = vector.extract_strided_slice %66 {offsets = [0, 48], sizes = [32, 8], strides = [1, 1]} : vector<32x96xf32> to vector<32x8xf32>
    %105 = vector.extract_strided_slice %66 {offsets = [0, 80], sizes = [32, 8], strides = [1, 1]} : vector<32x96xf32> to vector<32x8xf32>
    %106 = tpu.transpose %104, [1, 0] : vector<32x8xf32> -> vector<8x32xf32>
    %cst_34 = arith.constant dense<0.000000e+00> : vector<32x32xf32>
    %107 = tpu.matmul %103, %106, %cst_34 {dimension_numbers = #tpu.dot_dimension_numbers<[1], [0], [0], [1], [0, 0, 1, 1], [], []>} : vector<32x8xf32>, vector<8x32xf32>, vector<32x32xf32> -> vector<32x32xf32>
    %cst_35 = arith.constant 0.353553385 : f32
    %108 = vector.broadcast %cst_35 : f32 to vector<32x32xf32>
    %109 = arith.mulf %107, %108 : vector<32x32xf32>
    %110 = arith.addf %109, %35 : vector<32x32xf32>
    %cst_36 = arith.constant dense<0xFF800000> : vector<32xf32>
    %111 = vector.multi_reduction <maximumf>, %110, %cst_36 [1] : vector<32x32xf32> to vector<32xf32>
    %112 = vector.shape_cast %111 : vector<32xf32> to vector<32x1xf32>
    %113 = vector.broadcast %112 : vector<32x1xf32> to vector<32x32xf32>
    %114 = arith.subf %110, %113 : vector<32x32xf32>
    %115 = math.exp %114 : vector<32x32xf32>
    %cst_37 = arith.constant dense<0.000000e+00> : vector<32xf32>
    %116 = vector.multi_reduction <add>, %115, %cst_37 [1] : vector<32x32xf32> to vector<32xf32>
    %117 = vector.shape_cast %116 : vector<32xf32> to vector<32x1xf32>
    %118 = vector.broadcast %117 : vector<32x1xf32> to vector<32x32xf32>
    %119 = arith.divf %115, %118 : vector<32x32xf32>
    %cst_38 = arith.constant dense<0.000000e+00> : vector<32x8xf32>
    %120 = tpu.matmul %119, %105, %cst_38 {dimension_numbers = #tpu.dot_dimension_numbers<[1], [0], [0], [1], [0, 0, 1, 1], [], []>} : vector<32x32xf32>, vector<32x8xf32>, vector<32x8xf32> -> vector<32x8xf32>
    %121 = vector.extract_strided_slice %66 {offsets = [0, 24], sizes = [32, 8], strides = [1, 1]} : vector<32x96xf32> to vector<32x8xf32>
    %122 = vector.extract_strided_slice %66 {offsets = [0, 56], sizes = [32, 8], strides = [1, 1]} : vector<32x96xf32> to vector<32x8xf32>
    %123 = vector.extract_strided_slice %66 {offsets = [0, 88], sizes = [32, 8], strides = [1, 1]} : vector<32x96xf32> to vector<32x8xf32>
    %124 = tpu.transpose %122, [1, 0] : vector<32x8xf32> -> vector<8x32xf32>
    %cst_39 = arith.constant dense<0.000000e+00> : vector<32x32xf32>
    %125 = tpu.matmul %121, %124, %cst_39 {dimension_numbers = #tpu.dot_dimension_numbers<[1], [0], [0], [1], [0, 0, 1, 1], [], []>} : vector<32x8xf32>, vector<8x32xf32>, vector<32x32xf32> -> vector<32x32xf32>
    %cst_40 = arith.constant 0.353553385 : f32
    %126 = vector.broadcast %cst_40 : f32 to vector<32x32xf32>
    %127 = arith.mulf %125, %126 : vector<32x32xf32>
    %128 = arith.addf %127, %35 : vector<32x32xf32>
    %cst_41 = arith.constant dense<0xFF800000> : vector<32xf32>
    %129 = vector.multi_reduction <maximumf>, %128, %cst_41 [1] : vector<32x32xf32> to vector<32xf32>
    %130 = vector.shape_cast %129 : vector<32xf32> to vector<32x1xf32>
    %131 = vector.broadcast %130 : vector<32x1xf32> to vector<32x32xf32>
    %132 = arith.subf %128, %131 : vector<32x32xf32>
    %133 = math.exp %132 : vector<32x32xf32>
    %cst_42 = arith.constant dense<0.000000e+00> : vector<32xf32>
    %134 = vector.multi_reduction <add>, %133, %cst_42 [1] : vector<32x32xf32> to vector<32xf32>
    %135 = vector.shape_cast %134 : vector<32xf32> to vector<32x1xf32>
    %136 = vector.broadcast %135 : vector<32x1xf32> to vector<32x32xf32>
    %137 = arith.divf %133, %136 : vector<32x32xf32>
    %cst_43 = arith.constant dense<0.000000e+00> : vector<32x8xf32>
    %138 = tpu.matmul %137, %123, %cst_43 {dimension_numbers = #tpu.dot_dimension_numbers<[1], [0], [0], [1], [0, 0, 1, 1], [], []>} : vector<32x32xf32>, vector<32x8xf32>, vector<32x8xf32> -> vector<32x8xf32>
    %139 = tpu.concatenate %84, %102, %120, %138 in 1 : vector<32x8xf32>, vector<32x8xf32>, vector<32x8xf32>, vector<32x8xf32> -> vector<32x32xf32>
    %c0_44 = arith.constant 0 : index
    %c0_45 = arith.constant 0 : index
    %c0_46 = arith.constant 0 : index
    %140 = vector.load %arg6[%c0_44, %c0_45, %c0_46] : memref<3x32x32xf32, #tpu.memory_space<vmem>>, vector<1x32x32xf32>
    %141 = vector.shape_cast %140 : vector<1x32x32xf32> to vector<32x32xf32>
    %cst_47 = arith.constant dense<0.000000e+00> : vector<32x32xf32>
    %142 = tpu.matmul %139, %141, %cst_47 {dimension_numbers = #tpu.dot_dimension_numbers<[1], [0], [0], [1], [0, 0, 1, 1], [], []>} : vector<32x32xf32>, vector<32x32xf32>, vector<32x32xf32> -> vector<32x32xf32>
    %143 = arith.addf %24, %142 : vector<32x32xf32>
    %144 = vector.extract_strided_slice %0 {offsets = [11, 0], sizes = [1, 32], strides = [1, 1]} : vector<32x96xf32> to vector<1x32xf32>
    %145 = vector.broadcast %144 : vector<1x32xf32> to vector<32x32xf32>
    %146 = arith.addf %143, %145 : vector<32x32xf32>
    %147 = vector.extract_strided_slice %0 {offsets = [12, 0], sizes = [1, 32], strides = [1, 1]} : vector<32x96xf32> to vector<1x32xf32>
    %148 = vector.extract_strided_slice %0 {offsets = [13, 0], sizes = [1, 32], strides = [1, 1]} : vector<32x96xf32> to vector<1x32xf32>
    %cst_48 = arith.constant dense<0.000000e+00> : vector<32xf32>
    %149 = vector.multi_reduction <add>, %146, %cst_48 [1] : vector<32x32xf32> to vector<32xf32>
    %150 = vector.shape_cast %149 : vector<32xf32> to vector<32x1xf32>
    %cst_49 = arith.constant 3.200000e+01 : f32
    %151 = vector.broadcast %cst_49 : f32 to vector<32x1xf32>
    %152 = arith.divf %150, %151 : vector<32x1xf32>
    %153 = vector.broadcast %152 : vector<32x1xf32> to vector<32x32xf32>
    %154 = arith.subf %146, %153 : vector<32x32xf32>
    %155 = arith.mulf %154, %154 : vector<32x32xf32>
    %cst_50 = arith.constant dense<0.000000e+00> : vector<32xf32>
    %156 = vector.multi_reduction <add>, %155, %cst_50 [1] : vector<32x32xf32> to vector<32xf32>
    %157 = vector.shape_cast %156 : vector<32xf32> to vector<32x1xf32>
    %cst_51 = arith.constant 3.200000e+01 : f32
    %158 = vector.broadcast %cst_51 : f32 to vector<32x1xf32>
    %159 = arith.divf %157, %158 : vector<32x1xf32>
    %160 = vector.broadcast %152 : vector<32x1xf32> to vector<32x32xf32>
    %161 = arith.subf %146, %160 : vector<32x32xf32>
    %cst_52 = arith.constant 9.99999974E-6 : f32
    %162 = vector.broadcast %cst_52 : f32 to vector<32x1xf32>
    %163 = arith.addf %159, %162 : vector<32x1xf32>
    %164 = math.rsqrt %163 : vector<32x1xf32>
    %165 = vector.broadcast %164 : vector<32x1xf32> to vector<32x32xf32>
    %166 = arith.mulf %161, %165 : vector<32x32xf32>
    %167 = vector.broadcast %147 : vector<1x32xf32> to vector<32x32xf32>
    %168 = arith.mulf %166, %167 : vector<32x32xf32>
    %169 = vector.broadcast %148 : vector<1x32xf32> to vector<32x32xf32>
    %170 = arith.addf %168, %169 : vector<32x32xf32>
    %c0_53 = arith.constant 0 : index
    %c0_54 = arith.constant 0 : index
    %c0_55 = arith.constant 0 : index
    %171 = vector.load %arg7[%c0_53, %c0_54, %c0_55] : memref<3x32x64xf32, #tpu.memory_space<vmem>>, vector<1x32x64xf32>
    %172 = vector.shape_cast %171 : vector<1x32x64xf32> to vector<32x64xf32>
    %cst_56 = arith.constant dense<0.000000e+00> : vector<32x64xf32>
    %173 = tpu.matmul %170, %172, %cst_56 {dimension_numbers = #tpu.dot_dimension_numbers<[1], [0], [0], [1], [0, 0, 1, 1], [], []>} : vector<32x32xf32>, vector<32x64xf32>, vector<32x64xf32> -> vector<32x64xf32>
    %174 = vector.extract_strided_slice %0 {offsets = [14, 0], sizes = [1, 64], strides = [1, 1]} : vector<32x96xf32> to vector<1x64xf32>
    %175 = vector.broadcast %174 : vector<1x64xf32> to vector<32x64xf32>
    %176 = arith.addf %173, %175 : vector<32x64xf32>
    %cst_57 = arith.constant 5.000000e-01 : f32
    %177 = vector.broadcast %cst_57 : f32 to vector<32x64xf32>
    %178 = arith.mulf %177, %176 : vector<32x64xf32>
    %cst_58 = arith.constant 4.471500e-02 : f32
    %179 = vector.broadcast %cst_58 : f32 to vector<32x64xf32>
    %180 = arith.mulf %179, %176 : vector<32x64xf32>
    %181 = arith.mulf %180, %176 : vector<32x64xf32>
    %182 = arith.mulf %181, %176 : vector<32x64xf32>
    %183 = arith.addf %176, %182 : vector<32x64xf32>
    %cst_59 = arith.constant 0.797884583 : f32
    %184 = vector.broadcast %cst_59 : f32 to vector<32x64xf32>
    %185 = arith.mulf %184, %183 : vector<32x64xf32>
    %186 = math.tanh %185 : vector<32x64xf32>
    %cst_60 = arith.constant 1.000000e+00 : f32
    %187 = vector.broadcast %cst_60 : f32 to vector<32x64xf32>
    %188 = arith.addf %187, %186 : vector<32x64xf32>
    %189 = arith.mulf %178, %188 : vector<32x64xf32>
    %c0_61 = arith.constant 0 : index
    %c0_62 = arith.constant 0 : index
    %c0_63 = arith.constant 0 : index
    %190 = vector.load %arg8[%c0_61, %c0_62, %c0_63] : memref<3x64x32xf32, #tpu.memory_space<vmem>>, vector<1x64x32xf32>
    %191 = vector.shape_cast %190 : vector<1x64x32xf32> to vector<64x32xf32>
    %cst_64 = arith.constant dense<0.000000e+00> : vector<32x32xf32>
    %192 = tpu.matmul %189, %191, %cst_64 {dimension_numbers = #tpu.dot_dimension_numbers<[1], [0], [0], [1], [0, 0, 1, 1], [], []>} : vector<32x64xf32>, vector<64x32xf32>, vector<32x32xf32> -> vector<32x32xf32>
    %193 = arith.addf %146, %192 : vector<32x32xf32>
    %194 = vector.extract_strided_slice %0 {offsets = [15, 0], sizes = [1, 32], strides = [1, 1]} : vector<32x96xf32> to vector<1x32xf32>
    %195 = vector.broadcast %194 : vector<1x32xf32> to vector<32x32xf32>
    %196 = arith.addf %193, %195 : vector<32x32xf32>
    %197 = vector.extract_strided_slice %0 {offsets = [16, 0], sizes = [1, 32], strides = [1, 1]} : vector<32x96xf32> to vector<1x32xf32>
    %198 = vector.extract_strided_slice %0 {offsets = [17, 0], sizes = [1, 32], strides = [1, 1]} : vector<32x96xf32> to vector<1x32xf32>
    %cst_65 = arith.constant dense<0.000000e+00> : vector<32xf32>
    %199 = vector.multi_reduction <add>, %196, %cst_65 [1] : vector<32x32xf32> to vector<32xf32>
    %200 = vector.shape_cast %199 : vector<32xf32> to vector<32x1xf32>
    %cst_66 = arith.constant 3.200000e+01 : f32
    %201 = vector.broadcast %cst_66 : f32 to vector<32x1xf32>
    %202 = arith.divf %200, %201 : vector<32x1xf32>
    %203 = vector.broadcast %202 : vector<32x1xf32> to vector<32x32xf32>
    %204 = arith.subf %196, %203 : vector<32x32xf32>
    %205 = arith.mulf %204, %204 : vector<32x32xf32>
    %cst_67 = arith.constant dense<0.000000e+00> : vector<32xf32>
    %206 = vector.multi_reduction <add>, %205, %cst_67 [1] : vector<32x32xf32> to vector<32xf32>
    %207 = vector.shape_cast %206 : vector<32xf32> to vector<32x1xf32>
    %cst_68 = arith.constant 3.200000e+01 : f32
    %208 = vector.broadcast %cst_68 : f32 to vector<32x1xf32>
    %209 = arith.divf %207, %208 : vector<32x1xf32>
    %210 = vector.broadcast %202 : vector<32x1xf32> to vector<32x32xf32>
    %211 = arith.subf %196, %210 : vector<32x32xf32>
    %cst_69 = arith.constant 9.99999974E-6 : f32
    %212 = vector.broadcast %cst_69 : f32 to vector<32x1xf32>
    %213 = arith.addf %209, %212 : vector<32x1xf32>
    %214 = math.rsqrt %213 : vector<32x1xf32>
    %215 = vector.broadcast %214 : vector<32x1xf32> to vector<32x32xf32>
    %216 = arith.mulf %211, %215 : vector<32x32xf32>
    %217 = vector.broadcast %197 : vector<1x32xf32> to vector<32x32xf32>
    %218 = arith.mulf %216, %217 : vector<32x32xf32>
    %219 = vector.broadcast %198 : vector<1x32xf32> to vector<32x32xf32>
    %220 = arith.addf %218, %219 : vector<32x32xf32>
    %c1 = arith.constant 1 : index
    %c0_70 = arith.constant 0 : index
    %c0_71 = arith.constant 0 : index
    %221 = vector.load %arg5[%c1, %c0_70, %c0_71] : memref<3x32x96xf32, #tpu.memory_space<vmem>>, vector<1x32x96xf32>
    %222 = vector.shape_cast %221 : vector<1x32x96xf32> to vector<32x96xf32>
    %cst_72 = arith.constant dense<0.000000e+00> : vector<32x96xf32>
    %223 = tpu.matmul %220, %222, %cst_72 {dimension_numbers = #tpu.dot_dimension_numbers<[1], [0], [0], [1], [0, 0, 1, 1], [], []>} : vector<32x32xf32>, vector<32x96xf32>, vector<32x96xf32> -> vector<32x96xf32>
    %224 = vector.extract_strided_slice %0 {offsets = [18, 0], sizes = [1, 96], strides = [1, 1]} : vector<32x96xf32> to vector<1x96xf32>
    %225 = vector.broadcast %224 : vector<1x96xf32> to vector<32x96xf32>
    %226 = arith.addf %223, %225 : vector<32x96xf32>
    %227 = vector.extract_strided_slice %226 {offsets = [0, 0], sizes = [32, 8], strides = [1, 1]} : vector<32x96xf32> to vector<32x8xf32>
    %228 = vector.extract_strided_slice %226 {offsets = [0, 32], sizes = [32, 8], strides = [1, 1]} : vector<32x96xf32> to vector<32x8xf32>
    %229 = vector.extract_strided_slice %226 {offsets = [0, 64], sizes = [32, 8], strides = [1, 1]} : vector<32x96xf32> to vector<32x8xf32>
    %230 = tpu.transpose %228, [1, 0] : vector<32x8xf32> -> vector<8x32xf32>
    %cst_73 = arith.constant dense<0.000000e+00> : vector<32x32xf32>
    %231 = tpu.matmul %227, %230, %cst_73 {dimension_numbers = #tpu.dot_dimension_numbers<[1], [0], [0], [1], [0, 0, 1, 1], [], []>} : vector<32x8xf32>, vector<8x32xf32>, vector<32x32xf32> -> vector<32x32xf32>
    %cst_74 = arith.constant 0.353553385 : f32
    %232 = vector.broadcast %cst_74 : f32 to vector<32x32xf32>
    %233 = arith.mulf %231, %232 : vector<32x32xf32>
    %234 = arith.addf %233, %35 : vector<32x32xf32>
    %cst_75 = arith.constant dense<0xFF800000> : vector<32xf32>
    %235 = vector.multi_reduction <maximumf>, %234, %cst_75 [1] : vector<32x32xf32> to vector<32xf32>
    %236 = vector.shape_cast %235 : vector<32xf32> to vector<32x1xf32>
    %237 = vector.broadcast %236 : vector<32x1xf32> to vector<32x32xf32>
    %238 = arith.subf %234, %237 : vector<32x32xf32>
    %239 = math.exp %238 : vector<32x32xf32>
    %cst_76 = arith.constant dense<0.000000e+00> : vector<32xf32>
    %240 = vector.multi_reduction <add>, %239, %cst_76 [1] : vector<32x32xf32> to vector<32xf32>
    %241 = vector.shape_cast %240 : vector<32xf32> to vector<32x1xf32>
    %242 = vector.broadcast %241 : vector<32x1xf32> to vector<32x32xf32>
    %243 = arith.divf %239, %242 : vector<32x32xf32>
    %cst_77 = arith.constant dense<0.000000e+00> : vector<32x8xf32>
    %244 = tpu.matmul %243, %229, %cst_77 {dimension_numbers = #tpu.dot_dimension_numbers<[1], [0], [0], [1], [0, 0, 1, 1], [], []>} : vector<32x32xf32>, vector<32x8xf32>, vector<32x8xf32> -> vector<32x8xf32>
    %245 = vector.extract_strided_slice %226 {offsets = [0, 8], sizes = [32, 8], strides = [1, 1]} : vector<32x96xf32> to vector<32x8xf32>
    %246 = vector.extract_strided_slice %226 {offsets = [0, 40], sizes = [32, 8], strides = [1, 1]} : vector<32x96xf32> to vector<32x8xf32>
    %247 = vector.extract_strided_slice %226 {offsets = [0, 72], sizes = [32, 8], strides = [1, 1]} : vector<32x96xf32> to vector<32x8xf32>
    %248 = tpu.transpose %246, [1, 0] : vector<32x8xf32> -> vector<8x32xf32>
    %cst_78 = arith.constant dense<0.000000e+00> : vector<32x32xf32>
    %249 = tpu.matmul %245, %248, %cst_78 {dimension_numbers = #tpu.dot_dimension_numbers<[1], [0], [0], [1], [0, 0, 1, 1], [], []>} : vector<32x8xf32>, vector<8x32xf32>, vector<32x32xf32> -> vector<32x32xf32>
    %cst_79 = arith.constant 0.353553385 : f32
    %250 = vector.broadcast %cst_79 : f32 to vector<32x32xf32>
    %251 = arith.mulf %249, %250 : vector<32x32xf32>
    %252 = arith.addf %251, %35 : vector<32x32xf32>
    %cst_80 = arith.constant dense<0xFF800000> : vector<32xf32>
    %253 = vector.multi_reduction <maximumf>, %252, %cst_80 [1] : vector<32x32xf32> to vector<32xf32>
    %254 = vector.shape_cast %253 : vector<32xf32> to vector<32x1xf32>
    %255 = vector.broadcast %254 : vector<32x1xf32> to vector<32x32xf32>
    %256 = arith.subf %252, %255 : vector<32x32xf32>
    %257 = math.exp %256 : vector<32x32xf32>
    %cst_81 = arith.constant dense<0.000000e+00> : vector<32xf32>
    %258 = vector.multi_reduction <add>, %257, %cst_81 [1] : vector<32x32xf32> to vector<32xf32>
    %259 = vector.shape_cast %258 : vector<32xf32> to vector<32x1xf32>
    %260 = vector.broadcast %259 : vector<32x1xf32> to vector<32x32xf32>
    %261 = arith.divf %257, %260 : vector<32x32xf32>
    %cst_82 = arith.constant dense<0.000000e+00> : vector<32x8xf32>
    %262 = tpu.matmul %261, %247, %cst_82 {dimension_numbers = #tpu.dot_dimension_numbers<[1], [0], [0], [1], [0, 0, 1, 1], [], []>} : vector<32x32xf32>, vector<32x8xf32>, vector<32x8xf32> -> vector<32x8xf32>
    %263 = vector.extract_strided_slice %226 {offsets = [0, 16], sizes = [32, 8], strides = [1, 1]} : vector<32x96xf32> to vector<32x8xf32>
    %264 = vector.extract_strided_slice %226 {offsets = [0, 48], sizes = [32, 8], strides = [1, 1]} : vector<32x96xf32> to vector<32x8xf32>
    %265 = vector.extract_strided_slice %226 {offsets = [0, 80], sizes = [32, 8], strides = [1, 1]} : vector<32x96xf32> to vector<32x8xf32>
    %266 = tpu.transpose %264, [1, 0] : vector<32x8xf32> -> vector<8x32xf32>
    %cst_83 = arith.constant dense<0.000000e+00> : vector<32x32xf32>
    %267 = tpu.matmul %263, %266, %cst_83 {dimension_numbers = #tpu.dot_dimension_numbers<[1], [0], [0], [1], [0, 0, 1, 1], [], []>} : vector<32x8xf32>, vector<8x32xf32>, vector<32x32xf32> -> vector<32x32xf32>
    %cst_84 = arith.constant 0.353553385 : f32
    %268 = vector.broadcast %cst_84 : f32 to vector<32x32xf32>
    %269 = arith.mulf %267, %268 : vector<32x32xf32>
    %270 = arith.addf %269, %35 : vector<32x32xf32>
    %cst_85 = arith.constant dense<0xFF800000> : vector<32xf32>
    %271 = vector.multi_reduction <maximumf>, %270, %cst_85 [1] : vector<32x32xf32> to vector<32xf32>
    %272 = vector.shape_cast %271 : vector<32xf32> to vector<32x1xf32>
    %273 = vector.broadcast %272 : vector<32x1xf32> to vector<32x32xf32>
    %274 = arith.subf %270, %273 : vector<32x32xf32>
    %275 = math.exp %274 : vector<32x32xf32>
    %cst_86 = arith.constant dense<0.000000e+00> : vector<32xf32>
    %276 = vector.multi_reduction <add>, %275, %cst_86 [1] : vector<32x32xf32> to vector<32xf32>
    %277 = vector.shape_cast %276 : vector<32xf32> to vector<32x1xf32>
    %278 = vector.broadcast %277 : vector<32x1xf32> to vector<32x32xf32>
    %279 = arith.divf %275, %278 : vector<32x32xf32>
    %cst_87 = arith.constant dense<0.000000e+00> : vector<32x8xf32>
    %280 = tpu.matmul %279, %265, %cst_87 {dimension_numbers = #tpu.dot_dimension_numbers<[1], [0], [0], [1], [0, 0, 1, 1], [], []>} : vector<32x32xf32>, vector<32x8xf32>, vector<32x8xf32> -> vector<32x8xf32>
    %281 = vector.extract_strided_slice %226 {offsets = [0, 24], sizes = [32, 8], strides = [1, 1]} : vector<32x96xf32> to vector<32x8xf32>
    %282 = vector.extract_strided_slice %226 {offsets = [0, 56], sizes = [32, 8], strides = [1, 1]} : vector<32x96xf32> to vector<32x8xf32>
    %283 = vector.extract_strided_slice %226 {offsets = [0, 88], sizes = [32, 8], strides = [1, 1]} : vector<32x96xf32> to vector<32x8xf32>
    %284 = tpu.transpose %282, [1, 0] : vector<32x8xf32> -> vector<8x32xf32>
    %cst_88 = arith.constant dense<0.000000e+00> : vector<32x32xf32>
    %285 = tpu.matmul %281, %284, %cst_88 {dimension_numbers = #tpu.dot_dimension_numbers<[1], [0], [0], [1], [0, 0, 1, 1], [], []>} : vector<32x8xf32>, vector<8x32xf32>, vector<32x32xf32> -> vector<32x32xf32>
    %cst_89 = arith.constant 0.353553385 : f32
    %286 = vector.broadcast %cst_89 : f32 to vector<32x32xf32>
    %287 = arith.mulf %285, %286 : vector<32x32xf32>
    %288 = arith.addf %287, %35 : vector<32x32xf32>
    %cst_90 = arith.constant dense<0xFF800000> : vector<32xf32>
    %289 = vector.multi_reduction <maximumf>, %288, %cst_90 [1] : vector<32x32xf32> to vector<32xf32>
    %290 = vector.shape_cast %289 : vector<32xf32> to vector<32x1xf32>
    %291 = vector.broadcast %290 : vector<32x1xf32> to vector<32x32xf32>
    %292 = arith.subf %288, %291 : vector<32x32xf32>
    %293 = math.exp %292 : vector<32x32xf32>
    %cst_91 = arith.constant dense<0.000000e+00> : vector<32xf32>
    %294 = vector.multi_reduction <add>, %293, %cst_91 [1] : vector<32x32xf32> to vector<32xf32>
    %295 = vector.shape_cast %294 : vector<32xf32> to vector<32x1xf32>
    %296 = vector.broadcast %295 : vector<32x1xf32> to vector<32x32xf32>
    %297 = arith.divf %293, %296 : vector<32x32xf32>
    %cst_92 = arith.constant dense<0.000000e+00> : vector<32x8xf32>
    %298 = tpu.matmul %297, %283, %cst_92 {dimension_numbers = #tpu.dot_dimension_numbers<[1], [0], [0], [1], [0, 0, 1, 1], [], []>} : vector<32x32xf32>, vector<32x8xf32>, vector<32x8xf32> -> vector<32x8xf32>
    %299 = tpu.concatenate %244, %262, %280, %298 in 1 : vector<32x8xf32>, vector<32x8xf32>, vector<32x8xf32>, vector<32x8xf32> -> vector<32x32xf32>
    %c1_93 = arith.constant 1 : index
    %c0_94 = arith.constant 0 : index
    %c0_95 = arith.constant 0 : index
    %300 = vector.load %arg6[%c1_93, %c0_94, %c0_95] : memref<3x32x32xf32, #tpu.memory_space<vmem>>, vector<1x32x32xf32>
    %301 = vector.shape_cast %300 : vector<1x32x32xf32> to vector<32x32xf32>
    %cst_96 = arith.constant dense<0.000000e+00> : vector<32x32xf32>
    %302 = tpu.matmul %299, %301, %cst_96 {dimension_numbers = #tpu.dot_dimension_numbers<[1], [0], [0], [1], [0, 0, 1, 1], [], []>} : vector<32x32xf32>, vector<32x32xf32>, vector<32x32xf32> -> vector<32x32xf32>
    %303 = arith.addf %196, %302 : vector<32x32xf32>
    %304 = vector.extract_strided_slice %0 {offsets = [19, 0], sizes = [1, 32], strides = [1, 1]} : vector<32x96xf32> to vector<1x32xf32>
    %305 = vector.broadcast %304 : vector<1x32xf32> to vector<32x32xf32>
    %306 = arith.addf %303, %305 : vector<32x32xf32>
    %307 = vector.extract_strided_slice %0 {offsets = [20, 0], sizes = [1, 32], strides = [1, 1]} : vector<32x96xf32> to vector<1x32xf32>
    %308 = vector.extract_strided_slice %0 {offsets = [21, 0], sizes = [1, 32], strides = [1, 1]} : vector<32x96xf32> to vector<1x32xf32>
    %cst_97 = arith.constant dense<0.000000e+00> : vector<32xf32>
    %309 = vector.multi_reduction <add>, %306, %cst_97 [1] : vector<32x32xf32> to vector<32xf32>
    %310 = vector.shape_cast %309 : vector<32xf32> to vector<32x1xf32>
    %cst_98 = arith.constant 3.200000e+01 : f32
    %311 = vector.broadcast %cst_98 : f32 to vector<32x1xf32>
    %312 = arith.divf %310, %311 : vector<32x1xf32>
    %313 = vector.broadcast %312 : vector<32x1xf32> to vector<32x32xf32>
    %314 = arith.subf %306, %313 : vector<32x32xf32>
    %315 = arith.mulf %314, %314 : vector<32x32xf32>
    %cst_99 = arith.constant dense<0.000000e+00> : vector<32xf32>
    %316 = vector.multi_reduction <add>, %315, %cst_99 [1] : vector<32x32xf32> to vector<32xf32>
    %317 = vector.shape_cast %316 : vector<32xf32> to vector<32x1xf32>
    %cst_100 = arith.constant 3.200000e+01 : f32
    %318 = vector.broadcast %cst_100 : f32 to vector<32x1xf32>
    %319 = arith.divf %317, %318 : vector<32x1xf32>
    %320 = vector.broadcast %312 : vector<32x1xf32> to vector<32x32xf32>
    %321 = arith.subf %306, %320 : vector<32x32xf32>
    %cst_101 = arith.constant 9.99999974E-6 : f32
    %322 = vector.broadcast %cst_101 : f32 to vector<32x1xf32>
    %323 = arith.addf %319, %322 : vector<32x1xf32>
    %324 = math.rsqrt %323 : vector<32x1xf32>
    %325 = vector.broadcast %324 : vector<32x1xf32> to vector<32x32xf32>
    %326 = arith.mulf %321, %325 : vector<32x32xf32>
    %327 = vector.broadcast %307 : vector<1x32xf32> to vector<32x32xf32>
    %328 = arith.mulf %326, %327 : vector<32x32xf32>
    %329 = vector.broadcast %308 : vector<1x32xf32> to vector<32x32xf32>
    %330 = arith.addf %328, %329 : vector<32x32xf32>
    %c1_102 = arith.constant 1 : index
    %c0_103 = arith.constant 0 : index
    %c0_104 = arith.constant 0 : index
    %331 = vector.load %arg7[%c1_102, %c0_103, %c0_104] : memref<3x32x64xf32, #tpu.memory_space<vmem>>, vector<1x32x64xf32>
    %332 = vector.shape_cast %331 : vector<1x32x64xf32> to vector<32x64xf32>
    %cst_105 = arith.constant dense<0.000000e+00> : vector<32x64xf32>
    %333 = tpu.matmul %330, %332, %cst_105 {dimension_numbers = #tpu.dot_dimension_numbers<[1], [0], [0], [1], [0, 0, 1, 1], [], []>} : vector<32x32xf32>, vector<32x64xf32>, vector<32x64xf32> -> vector<32x64xf32>
    %334 = vector.extract_strided_slice %0 {offsets = [22, 0], sizes = [1, 64], strides = [1, 1]} : vector<32x96xf32> to vector<1x64xf32>
    %335 = vector.broadcast %334 : vector<1x64xf32> to vector<32x64xf32>
    %336 = arith.addf %333, %335 : vector<32x64xf32>
    %cst_106 = arith.constant 5.000000e-01 : f32
    %337 = vector.broadcast %cst_106 : f32 to vector<32x64xf32>
    %338 = arith.mulf %337, %336 : vector<32x64xf32>
    %cst_107 = arith.constant 4.471500e-02 : f32
    %339 = vector.broadcast %cst_107 : f32 to vector<32x64xf32>
    %340 = arith.mulf %339, %336 : vector<32x64xf32>
    %341 = arith.mulf %340, %336 : vector<32x64xf32>
    %342 = arith.mulf %341, %336 : vector<32x64xf32>
    %343 = arith.addf %336, %342 : vector<32x64xf32>
    %cst_108 = arith.constant 0.797884583 : f32
    %344 = vector.broadcast %cst_108 : f32 to vector<32x64xf32>
    %345 = arith.mulf %344, %343 : vector<32x64xf32>
    %346 = math.tanh %345 : vector<32x64xf32>
    %cst_109 = arith.constant 1.000000e+00 : f32
    %347 = vector.broadcast %cst_109 : f32 to vector<32x64xf32>
    %348 = arith.addf %347, %346 : vector<32x64xf32>
    %349 = arith.mulf %338, %348 : vector<32x64xf32>
    %c1_110 = arith.constant 1 : index
    %c0_111 = arith.constant 0 : index
    %c0_112 = arith.constant 0 : index
    %350 = vector.load %arg8[%c1_110, %c0_111, %c0_112] : memref<3x64x32xf32, #tpu.memory_space<vmem>>, vector<1x64x32xf32>
    %351 = vector.shape_cast %350 : vector<1x64x32xf32> to vector<64x32xf32>
    %cst_113 = arith.constant dense<0.000000e+00> : vector<32x32xf32>
    %352 = tpu.matmul %349, %351, %cst_113 {dimension_numbers = #tpu.dot_dimension_numbers<[1], [0], [0], [1], [0, 0, 1, 1], [], []>} : vector<32x64xf32>, vector<64x32xf32>, vector<32x32xf32> -> vector<32x32xf32>
    %353 = arith.addf %306, %352 : vector<32x32xf32>
    %354 = vector.extract_strided_slice %0 {offsets = [23, 0], sizes = [1, 32], strides = [1, 1]} : vector<32x96xf32> to vector<1x32xf32>
    %355 = vector.broadcast %354 : vector<1x32xf32> to vector<32x32xf32>
    %356 = arith.addf %353, %355 : vector<32x32xf32>
    %357 = vector.extract_strided_slice %356 {offsets = [16, 0], sizes = [16, 32], strides = [1, 1]} : vector<32x32xf32> to vector<16x32xf32>
    %cst_114 = arith.constant dense<0.000000e+00> : vector<16xf32>
    %358 = vector.multi_reduction <add>, %357, %cst_114 [1] : vector<16x32xf32> to vector<16xf32>
    %359 = vector.shape_cast %358 : vector<16xf32> to vector<16x1xf32>
    %cst_115 = arith.constant 3.200000e+01 : f32
    %360 = vector.broadcast %cst_115 : f32 to vector<16x1xf32>
    %361 = arith.divf %359, %360 : vector<16x1xf32>
    %362 = vector.broadcast %361 : vector<16x1xf32> to vector<16x32xf32>
    %363 = arith.subf %357, %362 : vector<16x32xf32>
    %364 = arith.mulf %363, %363 : vector<16x32xf32>
    %cst_116 = arith.constant dense<0.000000e+00> : vector<16xf32>
    %365 = vector.multi_reduction <add>, %364, %cst_116 [1] : vector<16x32xf32> to vector<16xf32>
    %366 = vector.shape_cast %365 : vector<16xf32> to vector<16x1xf32>
    %cst_117 = arith.constant 3.200000e+01 : f32
    %367 = vector.broadcast %cst_117 : f32 to vector<16x1xf32>
    %368 = arith.divf %366, %367 : vector<16x1xf32>
    %369 = vector.broadcast %361 : vector<16x1xf32> to vector<16x32xf32>
    %370 = arith.subf %357, %369 : vector<16x32xf32>
    %cst_118 = arith.constant 9.99999974E-6 : f32
    %371 = vector.broadcast %cst_118 : f32 to vector<16x1xf32>
    %372 = arith.addf %368, %371 : vector<16x1xf32>
    %373 = math.rsqrt %372 : vector<16x1xf32>
    %374 = vector.broadcast %373 : vector<16x1xf32> to vector<16x32xf32>
    %375 = arith.mulf %370, %374 : vector<16x32xf32>
    %376 = arith.addf %36, %375 : vector<16x32xf32>
    %377 = vector.extract_strided_slice %0 {offsets = [24, 0], sizes = [1, 32], strides = [1, 1]} : vector<32x96xf32> to vector<1x32xf32>
    %378 = vector.extract_strided_slice %0 {offsets = [25, 0], sizes = [1, 32], strides = [1, 1]} : vector<32x96xf32> to vector<1x32xf32>
    %cst_119 = arith.constant dense<0.000000e+00> : vector<32xf32>
    %379 = vector.multi_reduction <add>, %356, %cst_119 [1] : vector<32x32xf32> to vector<32xf32>
    %380 = vector.shape_cast %379 : vector<32xf32> to vector<32x1xf32>
    %cst_120 = arith.constant 3.200000e+01 : f32
    %381 = vector.broadcast %cst_120 : f32 to vector<32x1xf32>
    %382 = arith.divf %380, %381 : vector<32x1xf32>
    %383 = vector.broadcast %382 : vector<32x1xf32> to vector<32x32xf32>
    %384 = arith.subf %356, %383 : vector<32x32xf32>
    %385 = arith.mulf %384, %384 : vector<32x32xf32>
    %cst_121 = arith.constant dense<0.000000e+00> : vector<32xf32>
    %386 = vector.multi_reduction <add>, %385, %cst_121 [1] : vector<32x32xf32> to vector<32xf32>
    %387 = vector.shape_cast %386 : vector<32xf32> to vector<32x1xf32>
    %cst_122 = arith.constant 3.200000e+01 : f32
    %388 = vector.broadcast %cst_122 : f32 to vector<32x1xf32>
    %389 = arith.divf %387, %388 : vector<32x1xf32>
    %390 = vector.broadcast %382 : vector<32x1xf32> to vector<32x32xf32>
    %391 = arith.subf %356, %390 : vector<32x32xf32>
    %cst_123 = arith.constant 9.99999974E-6 : f32
    %392 = vector.broadcast %cst_123 : f32 to vector<32x1xf32>
    %393 = arith.addf %389, %392 : vector<32x1xf32>
    %394 = math.rsqrt %393 : vector<32x1xf32>
    %395 = vector.broadcast %394 : vector<32x1xf32> to vector<32x32xf32>
    %396 = arith.mulf %391, %395 : vector<32x32xf32>
    %397 = vector.broadcast %377 : vector<1x32xf32> to vector<32x32xf32>
    %398 = arith.mulf %396, %397 : vector<32x32xf32>
    %399 = vector.broadcast %378 : vector<1x32xf32> to vector<32x32xf32>
    %400 = arith.addf %398, %399 : vector<32x32xf32>
    %c2 = arith.constant 2 : index
    %c0_124 = arith.constant 0 : index
    %c0_125 = arith.constant 0 : index
    %401 = vector.load %arg5[%c2, %c0_124, %c0_125] : memref<3x32x96xf32, #tpu.memory_space<vmem>>, vector<1x32x96xf32>
    %402 = vector.shape_cast %401 : vector<1x32x96xf32> to vector<32x96xf32>
    %cst_126 = arith.constant dense<0.000000e+00> : vector<32x96xf32>
    %403 = tpu.matmul %400, %402, %cst_126 {dimension_numbers = #tpu.dot_dimension_numbers<[1], [0], [0], [1], [0, 0, 1, 1], [], []>} : vector<32x32xf32>, vector<32x96xf32>, vector<32x96xf32> -> vector<32x96xf32>
    %404 = vector.extract_strided_slice %0 {offsets = [26, 0], sizes = [1, 96], strides = [1, 1]} : vector<32x96xf32> to vector<1x96xf32>
    %405 = vector.broadcast %404 : vector<1x96xf32> to vector<32x96xf32>
    %406 = arith.addf %403, %405 : vector<32x96xf32>
    %407 = vector.extract_strided_slice %406 {offsets = [0, 0], sizes = [32, 8], strides = [1, 1]} : vector<32x96xf32> to vector<32x8xf32>
    %408 = vector.extract_strided_slice %406 {offsets = [0, 32], sizes = [32, 8], strides = [1, 1]} : vector<32x96xf32> to vector<32x8xf32>
    %409 = vector.extract_strided_slice %406 {offsets = [0, 64], sizes = [32, 8], strides = [1, 1]} : vector<32x96xf32> to vector<32x8xf32>
    %410 = tpu.transpose %408, [1, 0] : vector<32x8xf32> -> vector<8x32xf32>
    %cst_127 = arith.constant dense<0.000000e+00> : vector<32x32xf32>
    %411 = tpu.matmul %407, %410, %cst_127 {dimension_numbers = #tpu.dot_dimension_numbers<[1], [0], [0], [1], [0, 0, 1, 1], [], []>} : vector<32x8xf32>, vector<8x32xf32>, vector<32x32xf32> -> vector<32x32xf32>
    %cst_128 = arith.constant 0.353553385 : f32
    %412 = vector.broadcast %cst_128 : f32 to vector<32x32xf32>
    %413 = arith.mulf %411, %412 : vector<32x32xf32>
    %414 = arith.addf %413, %35 : vector<32x32xf32>
    %cst_129 = arith.constant dense<0xFF800000> : vector<32xf32>
    %415 = vector.multi_reduction <maximumf>, %414, %cst_129 [1] : vector<32x32xf32> to vector<32xf32>
    %416 = vector.shape_cast %415 : vector<32xf32> to vector<32x1xf32>
    %417 = vector.broadcast %416 : vector<32x1xf32> to vector<32x32xf32>
    %418 = arith.subf %414, %417 : vector<32x32xf32>
    %419 = math.exp %418 : vector<32x32xf32>
    %cst_130 = arith.constant dense<0.000000e+00> : vector<32xf32>
    %420 = vector.multi_reduction <add>, %419, %cst_130 [1] : vector<32x32xf32> to vector<32xf32>
    %421 = vector.shape_cast %420 : vector<32xf32> to vector<32x1xf32>
    %422 = vector.broadcast %421 : vector<32x1xf32> to vector<32x32xf32>
    %423 = arith.divf %419, %422 : vector<32x32xf32>
    %cst_131 = arith.constant dense<0.000000e+00> : vector<32x8xf32>
    %424 = tpu.matmul %423, %409, %cst_131 {dimension_numbers = #tpu.dot_dimension_numbers<[1], [0], [0], [1], [0, 0, 1, 1], [], []>} : vector<32x32xf32>, vector<32x8xf32>, vector<32x8xf32> -> vector<32x8xf32>
    %425 = vector.extract_strided_slice %406 {offsets = [0, 8], sizes = [32, 8], strides = [1, 1]} : vector<32x96xf32> to vector<32x8xf32>
    %426 = vector.extract_strided_slice %406 {offsets = [0, 40], sizes = [32, 8], strides = [1, 1]} : vector<32x96xf32> to vector<32x8xf32>
    %427 = vector.extract_strided_slice %406 {offsets = [0, 72], sizes = [32, 8], strides = [1, 1]} : vector<32x96xf32> to vector<32x8xf32>
    %428 = tpu.transpose %426, [1, 0] : vector<32x8xf32> -> vector<8x32xf32>
    %cst_132 = arith.constant dense<0.000000e+00> : vector<32x32xf32>
    %429 = tpu.matmul %425, %428, %cst_132 {dimension_numbers = #tpu.dot_dimension_numbers<[1], [0], [0], [1], [0, 0, 1, 1], [], []>} : vector<32x8xf32>, vector<8x32xf32>, vector<32x32xf32> -> vector<32x32xf32>
    %cst_133 = arith.constant 0.353553385 : f32
    %430 = vector.broadcast %cst_133 : f32 to vector<32x32xf32>
    %431 = arith.mulf %429, %430 : vector<32x32xf32>
    %432 = arith.addf %431, %35 : vector<32x32xf32>
    %cst_134 = arith.constant dense<0xFF800000> : vector<32xf32>
    %433 = vector.multi_reduction <maximumf>, %432, %cst_134 [1] : vector<32x32xf32> to vector<32xf32>
    %434 = vector.shape_cast %433 : vector<32xf32> to vector<32x1xf32>
    %435 = vector.broadcast %434 : vector<32x1xf32> to vector<32x32xf32>
    %436 = arith.subf %432, %435 : vector<32x32xf32>
    %437 = math.exp %436 : vector<32x32xf32>
    %cst_135 = arith.constant dense<0.000000e+00> : vector<32xf32>
    %438 = vector.multi_reduction <add>, %437, %cst_135 [1] : vector<32x32xf32> to vector<32xf32>
    %439 = vector.shape_cast %438 : vector<32xf32> to vector<32x1xf32>
    %440 = vector.broadcast %439 : vector<32x1xf32> to vector<32x32xf32>
    %441 = arith.divf %437, %440 : vector<32x32xf32>
    %cst_136 = arith.constant dense<0.000000e+00> : vector<32x8xf32>
    %442 = tpu.matmul %441, %427, %cst_136 {dimension_numbers = #tpu.dot_dimension_numbers<[1], [0], [0], [1], [0, 0, 1, 1], [], []>} : vector<32x32xf32>, vector<32x8xf32>, vector<32x8xf32> -> vector<32x8xf32>
    %443 = vector.extract_strided_slice %406 {offsets = [0, 16], sizes = [32, 8], strides = [1, 1]} : vector<32x96xf32> to vector<32x8xf32>
    %444 = vector.extract_strided_slice %406 {offsets = [0, 48], sizes = [32, 8], strides = [1, 1]} : vector<32x96xf32> to vector<32x8xf32>
    %445 = vector.extract_strided_slice %406 {offsets = [0, 80], sizes = [32, 8], strides = [1, 1]} : vector<32x96xf32> to vector<32x8xf32>
    %446 = tpu.transpose %444, [1, 0] : vector<32x8xf32> -> vector<8x32xf32>
    %cst_137 = arith.constant dense<0.000000e+00> : vector<32x32xf32>
    %447 = tpu.matmul %443, %446, %cst_137 {dimension_numbers = #tpu.dot_dimension_numbers<[1], [0], [0], [1], [0, 0, 1, 1], [], []>} : vector<32x8xf32>, vector<8x32xf32>, vector<32x32xf32> -> vector<32x32xf32>
    %cst_138 = arith.constant 0.353553385 : f32
    %448 = vector.broadcast %cst_138 : f32 to vector<32x32xf32>
    %449 = arith.mulf %447, %448 : vector<32x32xf32>
    %450 = arith.addf %449, %35 : vector<32x32xf32>
    %cst_139 = arith.constant dense<0xFF800000> : vector<32xf32>
    %451 = vector.multi_reduction <maximumf>, %450, %cst_139 [1] : vector<32x32xf32> to vector<32xf32>
    %452 = vector.shape_cast %451 : vector<32xf32> to vector<32x1xf32>
    %453 = vector.broadcast %452 : vector<32x1xf32> to vector<32x32xf32>
    %454 = arith.subf %450, %453 : vector<32x32xf32>
    %455 = math.exp %454 : vector<32x32xf32>
    %cst_140 = arith.constant dense<0.000000e+00> : vector<32xf32>
    %456 = vector.multi_reduction <add>, %455, %cst_140 [1] : vector<32x32xf32> to vector<32xf32>
    %457 = vector.shape_cast %456 : vector<32xf32> to vector<32x1xf32>
    %458 = vector.broadcast %457 : vector<32x1xf32> to vector<32x32xf32>
    %459 = arith.divf %455, %458 : vector<32x32xf32>
    %cst_141 = arith.constant dense<0.000000e+00> : vector<32x8xf32>
    %460 = tpu.matmul %459, %445, %cst_141 {dimension_numbers = #tpu.dot_dimension_numbers<[1], [0], [0], [1], [0, 0, 1, 1], [], []>} : vector<32x32xf32>, vector<32x8xf32>, vector<32x8xf32> -> vector<32x8xf32>
    %461 = vector.extract_strided_slice %406 {offsets = [0, 24], sizes = [32, 8], strides = [1, 1]} : vector<32x96xf32> to vector<32x8xf32>
    %462 = vector.extract_strided_slice %406 {offsets = [0, 56], sizes = [32, 8], strides = [1, 1]} : vector<32x96xf32> to vector<32x8xf32>
    %463 = vector.extract_strided_slice %406 {offsets = [0, 88], sizes = [32, 8], strides = [1, 1]} : vector<32x96xf32> to vector<32x8xf32>
    %464 = tpu.transpose %462, [1, 0] : vector<32x8xf32> -> vector<8x32xf32>
    %cst_142 = arith.constant dense<0.000000e+00> : vector<32x32xf32>
    %465 = tpu.matmul %461, %464, %cst_142 {dimension_numbers = #tpu.dot_dimension_numbers<[1], [0], [0], [1], [0, 0, 1, 1], [], []>} : vector<32x8xf32>, vector<8x32xf32>, vector<32x32xf32> -> vector<32x32xf32>
    %cst_143 = arith.constant 0.353553385 : f32
    %466 = vector.broadcast %cst_143 : f32 to vector<32x32xf32>
    %467 = arith.mulf %465, %466 : vector<32x32xf32>
    %468 = arith.addf %467, %35 : vector<32x32xf32>
    %cst_144 = arith.constant dense<0xFF800000> : vector<32xf32>
    %469 = vector.multi_reduction <maximumf>, %468, %cst_144 [1] : vector<32x32xf32> to vector<32xf32>
    %470 = vector.shape_cast %469 : vector<32xf32> to vector<32x1xf32>
    %471 = vector.broadcast %470 : vector<32x1xf32> to vector<32x32xf32>
    %472 = arith.subf %468, %471 : vector<32x32xf32>
    %473 = math.exp %472 : vector<32x32xf32>
    %cst_145 = arith.constant dense<0.000000e+00> : vector<32xf32>
    %474 = vector.multi_reduction <add>, %473, %cst_145 [1] : vector<32x32xf32> to vector<32xf32>
    %475 = vector.shape_cast %474 : vector<32xf32> to vector<32x1xf32>
    %476 = vector.broadcast %475 : vector<32x1xf32> to vector<32x32xf32>
    %477 = arith.divf %473, %476 : vector<32x32xf32>
    %cst_146 = arith.constant dense<0.000000e+00> : vector<32x8xf32>
    %478 = tpu.matmul %477, %463, %cst_146 {dimension_numbers = #tpu.dot_dimension_numbers<[1], [0], [0], [1], [0, 0, 1, 1], [], []>} : vector<32x32xf32>, vector<32x8xf32>, vector<32x8xf32> -> vector<32x8xf32>
    %479 = tpu.concatenate %424, %442, %460, %478 in 1 : vector<32x8xf32>, vector<32x8xf32>, vector<32x8xf32>, vector<32x8xf32> -> vector<32x32xf32>
    %c2_147 = arith.constant 2 : index
    %c0_148 = arith.constant 0 : index
    %c0_149 = arith.constant 0 : index
    %480 = vector.load %arg6[%c2_147, %c0_148, %c0_149] : memref<3x32x32xf32, #tpu.memory_space<vmem>>, vector<1x32x32xf32>
    %481 = vector.shape_cast %480 : vector<1x32x32xf32> to vector<32x32xf32>
    %cst_150 = arith.constant dense<0.000000e+00> : vector<32x32xf32>
    %482 = tpu.matmul %479, %481, %cst_150 {dimension_numbers = #tpu.dot_dimension_numbers<[1], [0], [0], [1], [0, 0, 1, 1], [], []>} : vector<32x32xf32>, vector<32x32xf32>, vector<32x32xf32> -> vector<32x32xf32>
    %483 = arith.addf %356, %482 : vector<32x32xf32>
    %484 = vector.extract_strided_slice %0 {offsets = [27, 0], sizes = [1, 32], strides = [1, 1]} : vector<32x96xf32> to vector<1x32xf32>
    %485 = vector.broadcast %484 : vector<1x32xf32> to vector<32x32xf32>
    %486 = arith.addf %483, %485 : vector<32x32xf32>
    %487 = vector.extract_strided_slice %0 {offsets = [28, 0], sizes = [1, 32], strides = [1, 1]} : vector<32x96xf32> to vector<1x32xf32>
    %488 = vector.extract_strided_slice %0 {offsets = [29, 0], sizes = [1, 32], strides = [1, 1]} : vector<32x96xf32> to vector<1x32xf32>
    %cst_151 = arith.constant dense<0.000000e+00> : vector<32xf32>
    %489 = vector.multi_reduction <add>, %486, %cst_151 [1] : vector<32x32xf32> to vector<32xf32>
    %490 = vector.shape_cast %489 : vector<32xf32> to vector<32x1xf32>
    %cst_152 = arith.constant 3.200000e+01 : f32
    %491 = vector.broadcast %cst_152 : f32 to vector<32x1xf32>
    %492 = arith.divf %490, %491 : vector<32x1xf32>
    %493 = vector.broadcast %492 : vector<32x1xf32> to vector<32x32xf32>
    %494 = arith.subf %486, %493 : vector<32x32xf32>
    %495 = arith.mulf %494, %494 : vector<32x32xf32>
    %cst_153 = arith.constant dense<0.000000e+00> : vector<32xf32>
    %496 = vector.multi_reduction <add>, %495, %cst_153 [1] : vector<32x32xf32> to vector<32xf32>
    %497 = vector.shape_cast %496 : vector<32xf32> to vector<32x1xf32>
    %cst_154 = arith.constant 3.200000e+01 : f32
    %498 = vector.broadcast %cst_154 : f32 to vector<32x1xf32>
    %499 = arith.divf %497, %498 : vector<32x1xf32>
    %500 = vector.broadcast %492 : vector<32x1xf32> to vector<32x32xf32>
    %501 = arith.subf %486, %500 : vector<32x32xf32>
    %cst_155 = arith.constant 9.99999974E-6 : f32
    %502 = vector.broadcast %cst_155 : f32 to vector<32x1xf32>
    %503 = arith.addf %499, %502 : vector<32x1xf32>
    %504 = math.rsqrt %503 : vector<32x1xf32>
    %505 = vector.broadcast %504 : vector<32x1xf32> to vector<32x32xf32>
    %506 = arith.mulf %501, %505 : vector<32x32xf32>
    %507 = vector.broadcast %487 : vector<1x32xf32> to vector<32x32xf32>
    %508 = arith.mulf %506, %507 : vector<32x32xf32>
    %509 = vector.broadcast %488 : vector<1x32xf32> to vector<32x32xf32>
    %510 = arith.addf %508, %509 : vector<32x32xf32>
    %c2_156 = arith.constant 2 : index
    %c0_157 = arith.constant 0 : index
    %c0_158 = arith.constant 0 : index
    %511 = vector.load %arg7[%c2_156, %c0_157, %c0_158] : memref<3x32x64xf32, #tpu.memory_space<vmem>>, vector<1x32x64xf32>
    %512 = vector.shape_cast %511 : vector<1x32x64xf32> to vector<32x64xf32>
    %cst_159 = arith.constant dense<0.000000e+00> : vector<32x64xf32>
    %513 = tpu.matmul %510, %512, %cst_159 {dimension_numbers = #tpu.dot_dimension_numbers<[1], [0], [0], [1], [0, 0, 1, 1], [], []>} : vector<32x32xf32>, vector<32x64xf32>, vector<32x64xf32> -> vector<32x64xf32>
    %514 = vector.extract_strided_slice %0 {offsets = [30, 0], sizes = [1, 64], strides = [1, 1]} : vector<32x96xf32> to vector<1x64xf32>
    %515 = vector.broadcast %514 : vector<1x64xf32> to vector<32x64xf32>
    %516 = arith.addf %513, %515 : vector<32x64xf32>
    %cst_160 = arith.constant 5.000000e-01 : f32
    %517 = vector.broadcast %cst_160 : f32 to vector<32x64xf32>
    %518 = arith.mulf %517, %516 : vector<32x64xf32>
    %cst_161 = arith.constant 4.471500e-02 : f32
    %519 = vector.broadcast %cst_161 : f32 to vector<32x64xf32>
    %520 = arith.mulf %519, %516 : vector<32x64xf32>
    %521 = arith.mulf %520, %516 : vector<32x64xf32>
    %522 = arith.mulf %521, %516 : vector<32x64xf32>
    %523 = arith.addf %516, %522 : vector<32x64xf32>
    %cst_162 = arith.constant 0.797884583 : f32
    %524 = vector.broadcast %cst_162 : f32 to vector<32x64xf32>
    %525 = arith.mulf %524, %523 : vector<32x64xf32>
    %526 = math.tanh %525 : vector<32x64xf32>
    %cst_163 = arith.constant 1.000000e+00 : f32
    %527 = vector.broadcast %cst_163 : f32 to vector<32x64xf32>
    %528 = arith.addf %527, %526 : vector<32x64xf32>
    %529 = arith.mulf %518, %528 : vector<32x64xf32>
    %c2_164 = arith.constant 2 : index
    %c0_165 = arith.constant 0 : index
    %c0_166 = arith.constant 0 : index
    %530 = vector.load %arg8[%c2_164, %c0_165, %c0_166] : memref<3x64x32xf32, #tpu.memory_space<vmem>>, vector<1x64x32xf32>
    %531 = vector.shape_cast %530 : vector<1x64x32xf32> to vector<64x32xf32>
    %cst_167 = arith.constant dense<0.000000e+00> : vector<32x32xf32>
    %532 = tpu.matmul %529, %531, %cst_167 {dimension_numbers = #tpu.dot_dimension_numbers<[1], [0], [0], [1], [0, 0, 1, 1], [], []>} : vector<32x64xf32>, vector<64x32xf32>, vector<32x32xf32> -> vector<32x32xf32>
    %533 = arith.addf %486, %532 : vector<32x32xf32>
    %534 = vector.extract_strided_slice %0 {offsets = [31, 0], sizes = [1, 32], strides = [1, 1]} : vector<32x96xf32> to vector<1x32xf32>
    %535 = vector.broadcast %534 : vector<1x32xf32> to vector<32x32xf32>
    %536 = arith.addf %533, %535 : vector<32x32xf32>
    %537 = vector.extract_strided_slice %536 {offsets = [16, 0], sizes = [16, 32], strides = [1, 1]} : vector<32x32xf32> to vector<16x32xf32>
    %cst_168 = arith.constant dense<0.000000e+00> : vector<16xf32>
    %538 = vector.multi_reduction <add>, %537, %cst_168 [1] : vector<16x32xf32> to vector<16xf32>
    %539 = vector.shape_cast %538 : vector<16xf32> to vector<16x1xf32>
    %cst_169 = arith.constant 3.200000e+01 : f32
    %540 = vector.broadcast %cst_169 : f32 to vector<16x1xf32>
    %541 = arith.divf %539, %540 : vector<16x1xf32>
    %542 = vector.broadcast %541 : vector<16x1xf32> to vector<16x32xf32>
    %543 = arith.subf %537, %542 : vector<16x32xf32>
    %544 = arith.mulf %543, %543 : vector<16x32xf32>
    %cst_170 = arith.constant dense<0.000000e+00> : vector<16xf32>
    %545 = vector.multi_reduction <add>, %544, %cst_170 [1] : vector<16x32xf32> to vector<16xf32>
    %546 = vector.shape_cast %545 : vector<16xf32> to vector<16x1xf32>
    %cst_171 = arith.constant 3.200000e+01 : f32
    %547 = vector.broadcast %cst_171 : f32 to vector<16x1xf32>
    %548 = arith.divf %546, %547 : vector<16x1xf32>
    %549 = vector.broadcast %541 : vector<16x1xf32> to vector<16x32xf32>
    %550 = arith.subf %537, %549 : vector<16x32xf32>
    %cst_172 = arith.constant 9.99999974E-6 : f32
    %551 = vector.broadcast %cst_172 : f32 to vector<16x1xf32>
    %552 = arith.addf %548, %551 : vector<16x1xf32>
    %553 = math.rsqrt %552 : vector<16x1xf32>
    %554 = vector.broadcast %553 : vector<16x1xf32> to vector<16x32xf32>
    %555 = arith.mulf %550, %554 : vector<16x32xf32>
    %556 = arith.addf %376, %555 : vector<16x32xf32>
    %557 = vector.extract_strided_slice %536 {offsets = [0, 0], sizes = [16, 32], strides = [1, 1]} : vector<32x32xf32> to vector<16x32xf32>
    %558 = vector.extract_strided_slice %0 {offsets = [2, 0], sizes = [1, 32], strides = [1, 1]} : vector<32x96xf32> to vector<1x32xf32>
    %559 = vector.extract_strided_slice %0 {offsets = [3, 0], sizes = [1, 32], strides = [1, 1]} : vector<32x96xf32> to vector<1x32xf32>
    %cst_173 = arith.constant dense<0.000000e+00> : vector<16xf32>
    %560 = vector.multi_reduction <add>, %557, %cst_173 [1] : vector<16x32xf32> to vector<16xf32>
    %561 = vector.shape_cast %560 : vector<16xf32> to vector<16x1xf32>
    %cst_174 = arith.constant 3.200000e+01 : f32
    %562 = vector.broadcast %cst_174 : f32 to vector<16x1xf32>
    %563 = arith.divf %561, %562 : vector<16x1xf32>
    %564 = vector.broadcast %563 : vector<16x1xf32> to vector<16x32xf32>
    %565 = arith.subf %557, %564 : vector<16x32xf32>
    %566 = arith.mulf %565, %565 : vector<16x32xf32>
    %cst_175 = arith.constant dense<0.000000e+00> : vector<16xf32>
    %567 = vector.multi_reduction <add>, %566, %cst_175 [1] : vector<16x32xf32> to vector<16xf32>
    %568 = vector.shape_cast %567 : vector<16xf32> to vector<16x1xf32>
    %cst_176 = arith.constant 3.200000e+01 : f32
    %569 = vector.broadcast %cst_176 : f32 to vector<16x1xf32>
    %570 = arith.divf %568, %569 : vector<16x1xf32>
    %571 = vector.broadcast %563 : vector<16x1xf32> to vector<16x32xf32>
    %572 = arith.subf %557, %571 : vector<16x32xf32>
    %cst_177 = arith.constant 9.99999974E-6 : f32
    %573 = vector.broadcast %cst_177 : f32 to vector<16x1xf32>
    %574 = arith.addf %570, %573 : vector<16x1xf32>
    %575 = math.rsqrt %574 : vector<16x1xf32>
    %576 = vector.broadcast %575 : vector<16x1xf32> to vector<16x32xf32>
    %577 = arith.mulf %572, %576 : vector<16x32xf32>
    %578 = vector.broadcast %558 : vector<1x32xf32> to vector<16x32xf32>
    %579 = arith.mulf %577, %578 : vector<16x32xf32>
    %580 = vector.broadcast %559 : vector<1x32xf32> to vector<16x32xf32>
    %581 = arith.addf %579, %580 : vector<16x32xf32>
    %cst_178 = arith.constant dense<0.000000e+00> : vector<16x32xf32>
    %582 = tpu.matmul %581, %4, %cst_178 {dimension_numbers = #tpu.dot_dimension_numbers<[1], [0], [0], [1], [0, 0, 1, 1], [], []>} : vector<16x32xf32>, vector<32x32xf32>, vector<16x32xf32> -> vector<16x32xf32>
    %583 = vector.extract_strided_slice %0 {offsets = [4, 0], sizes = [1, 32], strides = [1, 1]} : vector<32x96xf32> to vector<1x32xf32>
    %584 = vector.broadcast %583 : vector<1x32xf32> to vector<16x32xf32>
    %585 = arith.addf %582, %584 : vector<16x32xf32>
    %c0_179 = arith.constant 0 : index
    %c0_180 = arith.constant 0 : index
    %c0_181 = arith.constant 0 : index
    %586 = vector.load %arg9[%c0_179, %c0_180, %c0_181] : memref<1x16x32xf32, #tpu.memory_space<vmem>>, vector<1x16x32xf32>
    %587 = vector.shape_cast %586 : vector<1x16x32xf32> to vector<16x32xf32>
    %588 = vector.shape_cast %585 : vector<16x32xf32> to vector<1x16x32xf32>
    tpu.vector_store %arg9[%c0_179, %c0_180, %c0_181], %588 {strides = array<i32>} : memref<1x16x32xf32, #tpu.memory_space<vmem>>, vector<1x16x32xf32>,
    %cst_182 = arith.constant 5.000000e-01 : f32
    %589 = vector.broadcast %cst_182 : f32 to vector<16x32xf32>
    %590 = arith.mulf %556, %589 : vector<16x32xf32>
    %cst_183 = arith.constant dense<0.000000e+00> : vector<16xf32>
    %591 = vector.multi_reduction <add>, %590, %cst_183 [1] : vector<16x32xf32> to vector<16xf32>
    %592 = vector.shape_cast %591 : vector<16xf32> to vector<16x1xf32>
    %cst_184 = arith.constant 3.200000e+01 : f32
    %593 = vector.broadcast %cst_184 : f32 to vector<16x1xf32>
    %594 = arith.divf %592, %593 : vector<16x1xf32>
    %595 = vector.broadcast %594 : vector<16x1xf32> to vector<16x32xf32>
    %596 = arith.subf %590, %595 : vector<16x32xf32>
    %597 = arith.mulf %596, %596 : vector<16x32xf32>
    %cst_185 = arith.constant dense<0.000000e+00> : vector<16xf32>
    %598 = vector.multi_reduction <add>, %597, %cst_185 [1] : vector<16x32xf32> to vector<16xf32>
    %599 = vector.shape_cast %598 : vector<16xf32> to vector<16x1xf32>
    %cst_186 = arith.constant 3.200000e+01 : f32
    %600 = vector.broadcast %cst_186 : f32 to vector<16x1xf32>
    %601 = arith.divf %599, %600 : vector<16x1xf32>
    %602 = vector.broadcast %594 : vector<16x1xf32> to vector<16x32xf32>
    %603 = arith.subf %590, %602 : vector<16x32xf32>
    %cst_187 = arith.constant 9.99999974E-6 : f32
    %604 = vector.broadcast %cst_187 : f32 to vector<16x1xf32>
    %605 = arith.addf %601, %604 : vector<16x1xf32>
    %606 = math.rsqrt %605 : vector<16x1xf32>
    %607 = vector.broadcast %606 : vector<16x1xf32> to vector<16x32xf32>
    %608 = arith.mulf %603, %607 : vector<16x32xf32>
    %c0_188 = arith.constant 0 : index
    %c0_189 = arith.constant 0 : index
    %c0_190 = arith.constant 0 : index
    %609 = vector.load %arg10[%c0_188, %c0_189, %c0_190] : memref<1x16x32xf32, #tpu.memory_space<vmem>>, vector<1x16x32xf32>
    %610 = vector.shape_cast %609 : vector<1x16x32xf32> to vector<16x32xf32>
    %611 = vector.shape_cast %608 : vector<16x32xf32> to vector<1x16x32xf32>
    tpu.vector_store %arg10[%c0_188, %c0_189, %c0_190], %611 {strides = array<i32>} : memref<1x16x32xf32, #tpu.memory_space<vmem>>, vector<1x16x32xf32>,
    return
  }
  func.func @transform_0(%arg0: i32) -> (i32, i32, i32) {
    %c0_i32 = arith.constant 0 : i32
    %c0_i32_0 = arith.constant 0 : i32
    %c0_i32_1 = arith.constant 0 : i32
    return %arg0, %c0_i32, %c0_i32_0 : i32, i32, i32
  }
  func.func @transform_1(%arg0: i32) -> (i32, i32, i32) {
    %c0_i32 = arith.constant 0 : i32
    %c0_i32_0 = arith.constant 0 : i32
    %c0_i32_1 = arith.constant 0 : i32
    return %arg0, %c0_i32, %c0_i32_0 : i32, i32, i32
  }
  func.func @transform_2(%arg0: i32) -> (i32, i32) {
    %c0_i32 = arith.constant 0 : i32
    %c0_i32_0 = arith.constant 0 : i32
    %c0_i32_1 = arith.constant 0 : i32
    return %c0_i32, %c0_i32_0 : i32, i32
  }
  func.func @transform_3(%arg0: i32) -> (i32, i32) {
    %c0_i32 = arith.constant 0 : i32
    %c0_i32_0 = arith.constant 0 : i32
    %c0_i32_1 = arith.constant 0 : i32
    return %c0_i32, %c0_i32_0 : i32, i32
  }
  func.func @transform_4(%arg0: i32) -> (i32, i32, i32) {
    %c0_i32 = arith.constant 0 : i32
    %c0_i32_0 = arith.constant 0 : i32
    %c0_i32_1 = arith.constant 0 : i32
    %c0_i32_2 = arith.constant 0 : i32
    return %c0_i32, %c0_i32_0, %c0_i32_1 : i32, i32, i32
  }
  func.func @transform_5(%arg0: i32) -> (i32, i32, i32) {
    %c0_i32 = arith.constant 0 : i32
    %c0_i32_0 = arith.constant 0 : i32
    %c0_i32_1 = arith.constant 0 : i32
    %c0_i32_2 = arith.constant 0 : i32
    return %c0_i32, %c0_i32_0, %c0_i32_1 : i32, i32, i32
  }
  func.func @transform_6(%arg0: i32) -> (i32, i32, i32) {
    %c0_i32 = arith.constant 0 : i32
    %c0_i32_0 = arith.constant 0 : i32
    %c0_i32_1 = arith.constant 0 : i32
    %c0_i32_2 = arith.constant 0 : i32
    return %c0_i32, %c0_i32_0, %c0_i32_1 : i32, i32, i32
  }
  func.func @transform_7(%arg0: i32) -> (i32, i32, i32) {
    %c0_i32 = arith.constant 0 : i32
    %c0_i32_0 = arith.constant 0 : i32
    %c0_i32_1 = arith.constant 0 : i32
    %c0_i32_2 = arith.constant 0 : i32
    return %c0_i32, %c0_i32_0, %c0_i32_1 : i32, i32, i32
  }
  func.func @transform_8(%arg0: i32) -> (i32, i32, i32) {
    %c0_i32 = arith.constant 0 : i32
    %c0_i32_0 = arith.constant 0 : i32
    %c0_i32_1 = arith.constant 0 : i32
    return %arg0, %c0_i32, %c0_i32_0 : i32, i32, i32
  }
  func.func @transform_9(%arg0: i32) -> (i32, i32, i32) {
    %c0_i32 = arith.constant 0 : i32
    %c0_i32_0 = arith.constant 0 : i32
    %c0_i32_1 = arith.constant 0 : i32
    return %arg0, %c0_i32, %c0_i32_0 : i32, i32, i32
  }
}

</mosaic_0001>

<llo_original>
// kernel: skeleton2vec_forward.1
$region0: #{skeleton2vec_forward.1}
  #allocation0 [shape = 'u32[]', space=smem, size = 0x4, offset = 0x4, fixed_abs, tag = 'smem constant byte address 0x4 - core index']
  #allocation1 [shape = 'u32[144,128]{1,0:T(1,128)}', space=vmem, size = 0x12000, scoped, tag = 'internal scratch']
  %s0 = inlined_call_operand.vmem [shape: f32[2,16,6], index: 0, kind: input, shape index: {}]
  %s1 = inlined_call_operand.vmem [shape: f32[2,16,1], index: 1, kind: input, shape index: {}]
  %s2 = inlined_call_operand.vmem [shape: f32[32,96], index: 2, kind: input, shape index: {}]
  %s3 = inlined_call_operand.vmem [shape: f32[56,32], index: 3, kind: input, shape index: {}]
  %s4 = inlined_call_operand.vmem [shape: f32[3,32,96], index: 4, kind: input, shape index: {}]
  %s5 = inlined_call_operand.vmem [shape: f32[3,32,32], index: 5, kind: input, shape index: {}]
  %s6 = inlined_call_operand.vmem [shape: f32[3,32,64], index: 6, kind: input, shape index: {}]
  %s7 = inlined_call_operand.vmem [shape: f32[3,64,32], index: 7, kind: input, shape index: {}]
  %s8 = inlined_call_operand.vmem [shape: f32[2,16,32], index: 8, kind: output, shape index: {0}]
  %s9 = inlined_call_operand.vmem [shape: f32[2,16,32], index: 9, kind: output, shape index: {1}]
  %10 = xla_tuple %s8, %s9
  %s11 = sld [smem:[#allocation0]]
  $region73: #{skeleton2vec_forward.1} parent=0
    _
  %s13 = ssub.s32 1, %s11
  %s14 = scalar_select 0, %s13, %s11
  loop: start=0, step=1, limit=4
  $region2: #{skeleton2vec_forward.1} parent=0 // loop_pre_header
    _
  $region3: #{skeleton2vec_forward.1} parent=0 // loop_header
    %s16 = sphi 0, %s20
    %p17 = scmp.ge.s32.totalorder %s16, 4
    %s26 = sphi 0, %s28
    %s29 = sphi 0, %s26
    %s30 = sphi 0, %s29
    %s46 = sphi 0, %s30
    %s52 = sphi 0, %s54
    %s55 = sphi 0, %s52
    %s56 = sphi 0, %s55
    %s72 = sphi 0, %s56
    %s76 = sphi 0, %s76
    %s78 = sphi 0, %s76
    %s79 = sphi 0, %s78
    %s93 = sphi 0, %s79
    %s97 = sphi 0, %s97
    %s99 = sphi 0, %s97
    %s100 = sphi 0, %s99
    %s114 = sphi 0, %s100
    %s118 = sphi 0, %s118
    %s120 = sphi 0, %s118
    %s121 = sphi 0, %s120
    %s135 = sphi 0, %s121
    %s139 = sphi 0, %s139
    %s141 = sphi 0, %s139
    %s142 = sphi 0, %s141
    %s156 = sphi 0, %s142
    %s160 = sphi 0, %s160
    %s162 = sphi 0, %s160
    %s163 = sphi 0, %s162
    %s177 = sphi 0, %s163
    %s181 = sphi 0, %s181
    %s183 = sphi 0, %s181
    %s184 = sphi 0, %s183
    %s198 = sphi 0, %s184
    %s204 = sphi 0, %s206
    %s207 = sphi 0, %s204
    %s208 = sphi 0, %s207
    %s224 = sphi 0, %s208
    %s230 = sphi 0, %s232
    %s233 = sphi 0, %s230
    %s234 = sphi 0, %s233
    %s250 = sphi 0, %s234
  $region4: #{skeleton2vec_forward.1} parent=0 // loop_header_branch
    %19 = sbr.rel (%p17) target = $region8
  $region5: #{skeleton2vec_forward.1} parent=0 // loop_body
    %s21 = ssub.s32 %s16, 1
    %s22 = ssub.s32 %s16, 2
    %s23 = sadd.s32 %s16, 1
    %s24 = ssub.s32 %s16, %s23
    %p25 = scmp.eq.s32.totalorder %s24, 0
    %s27 = sadd.s32 %s26, 1
    %s28 = scalar_select %p25, %s26, %s27
    %p31 = pneg %p25
    %p32 = scmp.eq.s32.totalorder %s16, 1
    %p33 = por %p31, %p32
    %p34 = scmp.ne.s32.totalorder %s26, %s29
    %p35 = scmp.eq.s32.totalorder %s16, 0
    %p36 = por %p34, %p35
    %p37 = scmp.ne.s32.totalorder %s26, %s29
    %p38 = scmp.eq.s32.totalorder %s21, 1
    %p39 = por %p37, %p38
    %p40 = scmp.ne.s32.totalorder %s29, %s30
    %p41 = scmp.eq.s32.totalorder %s21, 0
    %p42 = por %p40, %p41
    %p43 = scmp.ne.s32.totalorder %s29, %s30
    %p44 = scmp.eq.s32.totalorder %s22, 1
    %p45 = por %p43, %p44
    %p47 = scmp.ne.s32.totalorder %s30, %s46
    %p48 = scmp.eq.s32.totalorder %s22, 0
    %p49 = por %p47, %p48
    %s50 = ssub.s32 %s16, %s23
    %p51 = scmp.eq.s32.totalorder %s50, 0
    %s53 = sadd.s32 %s52, 1
    %s54 = scalar_select %p51, %s52, %s53
    %p57 = pneg %p51
    %p58 = scmp.eq.s32.totalorder %s16, 1
    %p59 = por %p57, %p58
    %p60 = scmp.ne.s32.totalorder %s52, %s55
    %p61 = scmp.eq.s32.totalorder %s16, 0
    %p62 = por %p60, %p61
    %p63 = scmp.ne.s32.totalorder %s52, %s55
    %p64 = scmp.eq.s32.totalorder %s21, 1
    %p65 = por %p63, %p64
    %p66 = scmp.ne.s32.totalorder %s55, %s56
    %p67 = scmp.eq.s32.totalorder %s21, 0
    %p68 = por %p66, %p67
    %p69 = scmp.ne.s32.totalorder %s55, %s56
    %p70 = scmp.eq.s32.totalorder %s22, 1
    %p71 = por %p69, %p70
    %p73 = scmp.ne.s32.totalorder %s56, %s72
    %p74 = scmp.eq.s32.totalorder %s22, 0
    %p75 = por %p73, %p74
    %s77 = sadd.s32 %s76, 1
    %p80 = scmp.eq.s32.totalorder %s16, 1
    %p81 = scmp.ne.s32.totalorder %s76, %s78
    %p82 = scmp.eq.s32.totalorder %s16, 0
    %p83 = por %p81, %p82
    %p84 = scmp.ne.s32.totalorder %s76, %s78
    %p85 = scmp.eq.s32.totalorder %s21, 1
    %p86 = por %p84, %p85
    %p87 = scmp.ne.s32.totalorder %s78, %s79
    %p88 = scmp.eq.s32.totalorder %s21, 0
    %p89 = por %p87, %p88
    %p90 = scmp.ne.s32.totalorder %s78, %s79
    %p91 = scmp.eq.s32.totalorder %s22, 1
    %p92 = por %p90, %p91
    %p94 = scmp.ne.s32.totalorder %s79, %s93
    %p95 = scmp.eq.s32.totalorder %s22, 0
    %p96 = por %p94, %p95
    %s98 = sadd.s32 %s97, 1
    %p101 = scmp.eq.s32.totalorder %s16, 1
    %p102 = scmp.ne.s32.totalorder %s97, %s99
    %p103 = scmp.eq.s32.totalorder %s16, 0
    %p104 = por %p102, %p103
    %p105 = scmp.ne.s32.totalorder %s97, %s99
    %p106 = scmp.eq.s32.totalorder %s21, 1
    %p107 = por %p105, %p106
    %p108 = scmp.ne.s32.totalorder %s99, %s100
    %p109 = scmp.eq.s32.totalorder %s21, 0
    %p110 = por %p108, %p109
    %p111 = scmp.ne.s32.totalorder %s99, %s100
    %p112 = scmp.eq.s32.totalorder %s22, 1
    %p113 = por %p111, %p112
    %p115 = scmp.ne.s32.totalorder %s100, %s114
    %p116 = scmp.eq.s32.totalorder %s22, 0
    %p117 = por %p115, %p116
    %s119 = sadd.s32 %s118, 1
    %p122 = scmp.eq.s32.totalorder %s16, 1
    %p123 = scmp.ne.s32.totalorder %s118, %s120
    %p124 = scmp.eq.s32.totalorder %s16, 0
    %p125 = por %p123, %p124
    %p126 = scmp.ne.s32.totalorder %s118, %s120
    %p127 = scmp.eq.s32.totalorder %s21, 1
    %p128 = por %p126, %p127
    %p129 = scmp.ne.s32.totalorder %s120, %s121
    %p130 = scmp.eq.s32.totalorder %s21, 0
    %p131 = por %p129, %p130
    %p132 = scmp.ne.s32.totalorder %s120, %s121
    %p133 = scmp.eq.s32.totalorder %s22, 1
    %p134 = por %p132, %p133
    %p136 = scmp.ne.s32.totalorder %s121, %s135
    %p137 = scmp.eq.s32.totalorder %s22, 0
    %p138 = por %p136, %p137
    %s140 = sadd.s32 %s139, 1
    %p143 = scmp.eq.s32.totalorder %s16, 1
    %p144 = scmp.ne.s32.totalorder %s139, %s141
    %p145 = scmp.eq.s32.totalorder %s16, 0
    %p146 = por %p144, %p145
    %p147 = scmp.ne.s32.totalorder %s139, %s141
    %p148 = scmp.eq.s32.totalorder %s21, 1
    %p149 = por %p147, %p148
    %p150 = scmp.ne.s32.totalorder %s141, %s142
    %p151 = scmp.eq.s32.totalorder %s21, 0
    %p152 = por %p150, %p151
    %p153 = scmp.ne.s32.totalorder %s141, %s142
    %p154 = scmp.eq.s32.totalorder %s22, 1
    %p155 = por %p153, %p154
    %p157 = scmp.ne.s32.totalorder %s142, %s156
    %p158 = scmp.eq.s32.totalorder %s22, 0
    %p159 = por %p157, %p158
    %s161 = sadd.s32 %s160, 1
    %p164 = scmp.eq.s32.totalorder %s16, 1
    %p165 = scmp.ne.s32.totalorder %s160, %s162
    %p166 = scmp.eq.s32.totalorder %s16, 0
    %p167 = por %p165, %p166
    %p168 = scmp.ne.s32.totalorder %s160, %s162
    %p169 = scmp.eq.s32.totalorder %s21, 1
    %p170 = por %p168, %p169
    %p171 = scmp.ne.s32.totalorder %s162, %s163
    %p172 = scmp.eq.s32.totalorder %s21, 0
    %p173 = por %p171, %p172
    %p174 = scmp.ne.s32.totalorder %s162, %s163
    %p175 = scmp.eq.s32.totalorder %s22, 1
    %p176 = por %p174, %p175
    %p178 = scmp.ne.s32.totalorder %s163, %s177
    %p179 = scmp.eq.s32.totalorder %s22, 0
    %p180 = por %p178, %p179
    %s182 = sadd.s32 %s181, 1
    %p185 = scmp.eq.s32.totalorder %s16, 1
    %p186 = scmp.ne.s32.totalorder %s181, %s183
    %p187 = scmp.eq.s32.totalorder %s16, 0
    %p188 = por %p186, %p187
    %p189 = scmp.ne.s32.totalorder %s181, %s183
    %p190 = scmp.eq.s32.totalorder %s21, 1
    %p191 = por %p189, %p190
    %p192 = scmp.ne.s32.totalorder %s183, %s184
    %p193 = scmp.eq.s32.totalorder %s21, 0
    %p194 = por %p192, %p193
    %p195 = scmp.ne.s32.totalorder %s183, %s184
    %p196 = scmp.eq.s32.totalorder %s22, 1
    %p197 = por %p195, %p196
    %p199 = scmp.ne.s32.totalorder %s184, %s198
    %p200 = scmp.eq.s32.totalorder %s22, 0
    %p201 = por %p199, %p200
    %s202 = ssub.s32 %s16, %s23
    %p203 = scmp.eq.s32.totalorder %s202, 0
    %s205 = sadd.s32 %s204, 1
    %s206 = scalar_select %p203, %s204, %s205
    %p209 = pneg %p203
    %p210 = scmp.eq.s32.totalorder %s16, 1
    %p211 = por %p209, %p210
    %p212 = scmp.ne.s32.totalorder %s204, %s207
    %p213 = scmp.eq.s32.totalorder %s16, 0
    %p214 = por %p212, %p213
    %p215 = scmp.ne.s32.totalorder %s204, %s207
    %p216 = scmp.eq.s32.totalorder %s21, 1
    %p217 = por %p215, %p216
    %p218 = scmp.ne.s32.totalorder %s207, %s208
    %p219 = scmp.eq.s32.totalorder %s21, 0
    %p220 = por %p218, %p219
    %p221 = scmp.ne.s32.totalorder %s207, %s208
    %p222 = scmp.eq.s32.totalorder %s22, 1
    %p223 = por %p221, %p222
    %p225 = scmp.ne.s32.totalorder %s208, %s224
    %p226 = scmp.eq.s32.totalorder %s22, 0
    %p227 = por %p225, %p226
    %s228 = ssub.s32 %s16, %s23
    %p229 = scmp.eq.s32.totalorder %s228, 0
    %s231 = sadd.s32 %s230, 1
    %s232 = scalar_select %p229, %s230, %s231
    %p235 = pneg %p229
    %p236 = scmp.eq.s32.totalorder %s16, 1
    %p237 = por %p235, %p236
    %p238 = scmp.ne.s32.totalorder %s230, %s233
    %p239 = scmp.eq.s32.totalorder %s16, 0
    %p240 = por %p238, %p239
    %p241 = scmp.ne.s32.totalorder %s230, %s233
    %p242 = scmp.eq.s32.totalorder %s21, 1
    %p243 = por %p241, %p242
    %p244 = scmp.ne.s32.totalorder %s233, %s234
    %p245 = scmp.eq.s32.totalorder %s21, 0
    %p246 = por %p244, %p245
    %p247 = scmp.ne.s32.totalorder %s233, %s234
    %p248 = scmp.eq.s32.totalorder %s22, 1
    %p249 = por %p247, %p248
    %p251 = scmp.ne.s32.totalorder %s234, %s250
    %p252 = scmp.eq.s32.totalorder %s22, 0
    %p253 = por %p251, %p252
    %p254 = scmp.le.s32.totalorder 1, %s16
    %p255 = scmp.lt.s32.totalorder %s16, 3
    %p256 = pnand %p254, %p255
    %p257 = pneg %p256
    // Predicated region
    $region9: #{skeleton2vec_forward.1} parent=5 // pred_check
      _
    $region10: #{skeleton2vec_forward.1} parent=5 // pred_check_branch
      %259 = sbr.rel (%p256) target = $region12
    $region11: #{skeleton2vec_forward.1} parent=5 // pred_region
      %s260 = ssub.s32 %s16, 1
      // Predicated region
      $region13: #{skeleton2vec_forward.1} parent=11 // pred_check
        %p261 = pneg %p89
      $region14: #{skeleton2vec_forward.1} parent=11 // pred_check_branch
        %263 = sbr.rel (%p261) target = $region16
      $region15: #{skeleton2vec_forward.1} parent=11 // pred_region
        _
      $region16: #{skeleton2vec_forward.1} parent=11 // pred_fallthru
        _
      // Predicated region
      $region17: #{skeleton2vec_forward.1} parent=11 // pred_check
        %p264 = pneg %p110
      $region18: #{skeleton2vec_forward.1} parent=11 // pred_check_branch
        %266 = sbr.rel (%p264) target = $region20
      $region19: #{skeleton2vec_forward.1} parent=11 // pred_region
        _
      $region20: #{skeleton2vec_forward.1} parent=11 // pred_fallthru
        _
      // Predicated region
      $region21: #{skeleton2vec_forward.1} parent=11 // pred_check
        %p267 = pneg %p131
      $region22: #{skeleton2vec_forward.1} parent=11 // pred_check_branch
        %269 = sbr.rel (%p267) target = $region24
      $region23: #{skeleton2vec_forward.1} parent=11 // pred_region
        _
      $region24: #{skeleton2vec_forward.1} parent=11 // pred_fallthru
        _
      // Predicated region
      $region25: #{skeleton2vec_forward.1} parent=11 // pred_check
        %p270 = pneg %p152
      $region26: #{skeleton2vec_forward.1} parent=11 // pred_check_branch
        %272 = sbr.rel (%p270) target = $region28
      $region27: #{skeleton2vec_forward.1} parent=11 // pred_region
        _
      $region28: #{skeleton2vec_forward.1} parent=11 // pred_fallthru
        _
      // Predicated region
      $region29: #{skeleton2vec_forward.1} parent=11 // pred_check
        %p273 = pneg %p173
      $region30: #{skeleton2vec_forward.1} parent=11 // pred_check_branch
        %275 = sbr.rel (%p273) target = $region32
      $region31: #{skeleton2vec_forward.1} parent=11 // pred_region
        _
      $region32: #{skeleton2vec_forward.1} parent=11 // pred_fallthru
        _
      // Predicated region
      $region33: #{skeleton2vec_forward.1} parent=11 // pred_check
        %p276 = pneg %p194
      $region34: #{skeleton2vec_forward.1} parent=11 // pred_check_branch
        %278 = sbr.rel (%p276) target = $region36
      $region35: #{skeleton2vec_forward.1} parent=11 // pred_region
        _
      $region36: #{skeleton2vec_forward.1} parent=11 // pred_fallthru
        _
    $region12: #{skeleton2vec_forward.1} parent=5 // pred_fallthru
      _
    %p279 = scmp.lt.s32.totalorder %s16, 2
    // Predicated region
    $region37: #{skeleton2vec_forward.1} parent=5 // pred_check
      %p280 = pneg %p279
    $region38: #{skeleton2vec_forward.1} parent=5 // pred_check_branch
      %282 = sbr.rel (%p280) target = $region40
    $region39: #{skeleton2vec_forward.1} parent=5 // pred_region
      // Predicated region
      $region41: #{skeleton2vec_forward.1} parent=39 // pred_check
        %p283 = pneg %p36
      $region42: #{skeleton2vec_forward.1} parent=39 // pred_check_branch
        %285 = sbr.rel (%p283) target = $region44
      $region43: #{skeleton2vec_forward.1} parent=39 // pred_region
        %p286 = scmp.lt.s32.totalorder %s16, 1
        %s287 = scalar_select %p286, %s16, 1
        %s288 = smul.addr %s287, 2
        %s289 = smul.addr %s288, 8
        %s290 = scalar_lea.vmem %s0, %s289
      $region44: #{skeleton2vec_forward.1} parent=39 // pred_fallthru
        _
      // Predicated region
      $region45: #{skeleton2vec_forward.1} parent=39 // pred_check
        %p291 = pneg %p62
      $region46: #{skeleton2vec_forward.1} parent=39 // pred_check_branch
        %293 = sbr.rel (%p291) target = $region48
      $region47: #{skeleton2vec_forward.1} parent=39 // pred_region
        %p294 = scmp.lt.s32.totalorder %s16, 1
        %s295 = scalar_select %p294, %s16, 1
        %s296 = smul.addr %s295, 2
        %s297 = smul.addr %s296, 8
        %s298 = scalar_lea.vmem %s1, %s297
      $region48: #{skeleton2vec_forward.1} parent=39 // pred_fallthru
        _
    $region40: #{skeleton2vec_forward.1} parent=5 // pred_fallthru
      _
    %p299 = scmp.le.s32.totalorder 1, %s16
    %p300 = scmp.lt.s32.totalorder %s16, 3
    %p301 = pnand %p299, %p300
    %p302 = pneg %p301
    // Predicated region
    $region49: #{skeleton2vec_forward.1} parent=5 // pred_check
      _
    $region50: #{skeleton2vec_forward.1} parent=5 // pred_check_branch
      %304 = sbr.rel (%p301) target = $region52
    $region51: #{skeleton2vec_forward.1} parent=5 // pred_region
      %s305 = ssub.s32 %s16, 1
      %p306 = scmp.lt.s32.totalorder %s21, 1
      %s307 = scalar_select %p306, %s21, 1
      %s308 = smul.addr %s307, 2
      %s309 = smul.addr %s308, 8
      %s310 = scalar_lea.vmem %s0, %s309
      %p311 = pneg %p42
      %p312 = pneg %p39
      %p313 = scmp.lt.s32.totalorder %s21, 1
      %s314 = scalar_select %p313, %s21, 1
      %s315 = smul.addr %s314, 2
      %s316 = smul.addr %s315, 8
      %s317 = scalar_lea.vmem %s1, %s316
      %p318 = pneg %p68
      %p319 = pneg %p65
      %p320 = pneg %p89
      %p321 = pneg %p86
      %p322 = pneg %p110
      %p323 = pneg %p107
      %p324 = pneg %p131
      %p325 = pneg %p128
      %p326 = pneg %p152
      %p327 = pneg %p149
      %p328 = pneg %p173
      %p329 = pneg %p170
      %p330 = pneg %p194
      %p331 = pneg %p191
      %p332 = pneg %p220
      %p333 = pneg %p217
      %p334 = scmp.lt.s32.totalorder %s21, 1
      %s335 = scalar_select %p334, %s21, 1
      %s336 = smul.addr %s335, 2
      %s337 = smul.addr %s336, 8
      %s338 = scalar_lea.vmem %s8, %s337
      %p339 = pneg %p246
      %p340 = pneg %p243
      %p341 = scmp.lt.s32.totalorder %s21, 1
      %s342 = scalar_select %p341, %s21, 1
      %s343 = smul.addr %s342, 2
      %s344 = smul.addr %s343, 8
      %s345 = scalar_lea.vmem %s9, %s344
      %p346 = scmp.lt.s32.totalorder %s21, 1
      %s347 = scalar_select %p346, %s21, 1
      %s348 = smul.addr %s347, 2
      %s349 = smul.addr %s348, 8
      %s350 = scalar_lea.vmem %s0, %s349
      %p351 = scmp.lt.s32.totalorder %s21, 1
      %s352 = scalar_select %p351, %s21, 1
      %s353 = smul.addr %s352, 2
      %s354 = smul.addr %s353, 8
      %s355 = scalar_lea.vmem %s1, %s354
      %p356 = scmp.lt.s32.totalorder %s21, 1
      %s357 = scalar_select %p356, %s21, 1
      %s358 = smul.addr %s357, 2
      %s359 = smul.addr %s358, 8
      %s360 = scalar_lea.vmem %s8, %s359
      %p361 = scmp.lt.s32.totalorder %s21, 1
      %s362 = scalar_select %p361, %s21, 1
      %s363 = smul.addr %s362, 2
      %s364 = smul.addr %s363, 8
      %s365 = scalar_lea.vmem %s9, %s364
      %v366 = vld [vmem:[%s2] sm:$0xff]
      %v367 = vld [vmem:[%s2 + $0x8] sm:$0xff]
      %v368 = vld [vmem:[%s2 + $0x10] sm:$0xff]
      %v369 = vld [vmem:[%s2 + $0x18] sm:$0xff]
      %v370 = vld [vmem:[%s3] sm:$0xff]
      %v371 = vld [vmem:[%s3 + $0x8] sm:$0xff]
      %v372 = vld [vmem:[%s3 + $0x10] sm:$0xff]
      %v373 = vld [vmem:[%s3 + $0x18] sm:$0xff]
      %v374 = vld [vmem:[%s3 + $0x20] sm:$0xff]
      %v375 = vld [vmem:[%s3 + $0x28] sm:$0xff]
      %v376 = vld [vmem:[%s3 + $0x30] sm:$0xff]
      %v377 = vld [vmem:[%s350] sm:$0xff]
      %v378 = vld [vmem:[%s350 + $0x8] sm:$0xff]
      %v379 = vld [vmem:[%s355] sm:$0xff]
      %v380 = vld [vmem:[%s355 + $0x8] sm:$0xff]
      %v381 = vlaneseq
      %v382 = vshrl.u32 %v381, 7
      %v383 = vsub.s32 0, %v382
      %v384 = vrot.slane %v366, %v383
      %vm385 = vcmask 48128
      %v387 = vsel %vm385, %v377, 0
      %v390 = vsel %vm385, %v378, 0
      %vm392 = vcmask 1045504
      %v394 = vsel %vm392, %v370, 0
      %396 = vmatprep.subr.mxu0 0.0
      %397 = vmatpush1.msra.mxu0 %v394
      %398 = vmatprep.subr.mxu0 0.0
      %399 = vmatpush1.msra.mxu0 0.0
      %400 = vmatprep.subr.mxu0 0.0
      %401 = vmatpush1.msra.mxu0 0.0
      %402 = vmatprep.subr.mxu0 0.0
      %403 = vmatpush1.msra.mxu0 0.0
      %404 = vmatprep.subr.mxu0 0.0
      %405 = vmatpush1.msra.mxu0 0.0
      %406 = vmatprep.subr.mxu0 0.0
      %407 = vmatpush1.msra.mxu0 0.0
      %408 = vmatprep.subr.mxu0 0.0
      %409 = vmatpush1.msra.mxu0 0.0
      %410 = vmatprep.subr.mxu0 0.0
      %411 = vmatpush1.msra.mxu0 0.0
      %412 = vmatprep.subr.mxu0 0.0
      %413 = vmatpush1.msra.mxu0 0.0
      %414 = vmatprep.subr.mxu0 0.0
      %415 = vmatpush1.msra.mxu0 0.0
      %416 = vmatprep.subr.mxu0 0.0
      %417 = vmatpush1.msra.mxu0 0.0
      %418 = vmatprep.subr.mxu0 0.0
      %419 = vmatpush1.msra.mxu0 0.0
      %420 = vmatprep.subr.mxu0 0.0
      %421 = vmatpush1.msra.mxu0 0.0
      %422 = vmatprep.subr.mxu0 0.0
      %423 = vmatpush1.msra.mxu0 0.0
      %424 = vmatprep.subr.mxu0 0.0
      %425 = vmatpush1.msra.mxu0 0.0
      %426 = vmatprep.subr.mxu0 0.0
      %427 = vmatpush1.msra.mxu0 0.0
      %428 = vmatprep.subr.mxu0 0.0
      %429 = vmatpush1.msra.mxu0 0.0
      %430 = vmatprep.subr.mxu0 0.0
      %431 = vmatpush1.msra.mxu0 0.0
      %432 = vmatprep.subr.mxu0 0.0
      %433 = vmatpush1.msra.mxu0 0.0
      %434 = vmatprep.subr.mxu0 0.0
      %435 = vmatpush1.msra.mxu0 0.0
      %436 = vmatprep.subr.mxu0 0.0
      %437 = vmatpush1.msra.mxu0 0.0
      %438 = vmatprep.subr.mxu0 0.0
      %439 = vmatpush1.msra.mxu0 0.0
      %440 = vmatprep.subr.mxu0 0.0
      %441 = vmatpush1.msra.mxu0 0.0
      %442 = vmatprep.subr.mxu0 0.0
      %443 = vmatpush1.msra.mxu0 0.0
      %444 = vmatprep.subr.mxu0 0.0
      %445 = vmatpush1.msra.mxu0 0.0
      %446 = vmatprep.subr.mxu0 0.0
      %447 = vmatpush1.msra.mxu0 0.0
      %448 = vmatprep.subr.mxu0 0.0
      %449 = vmatpush1.msra.mxu0 0.0
      %450 = vmatprep.subr.mxu0 0.0
      %451 = vmatpush1.msra.mxu0 0.0
      %452 = vmatprep.subr.mxu0 0.0
      %453 = vmatpush1.msra.mxu0 0.0
      %454 = vmatprep.subr.mxu0 0.0
      %455 = vmatpush1.msra.mxu0 0.0
      %456 = vmatprep.subr.mxu0 0.0
      %457 = vmatpush1.msra.mxu0 0.0
      %458 = vmatprep.subr.mxu0 0.0
      %459 = vmatpush1.msra.mxu0 0.0
      %460 = vmatprep.mubr.f32.mxu0 0.0
      %461 = vmatmul.mubr.f32.gmra.mrb[0].mxu0 %v387
      %v462 = vpop.f32.mrb[0].mxu0
      %v463 = vadd.f32 %v384, %v462
      %v464 = vpop.f32.mrb[0].mxu0
      %465 = vmatprep.mubr.f32.mxu0 0.0
      %466 = vmatmul.mubr.f32.gmra.mrb[0].mxu0 %v390
      %v467 = vpop.f32.mrb[0].mxu0
      %v468 = vadd.f32 %v384, %v467
      %v469 = vpop.f32.mrb[0].mxu0
      %470 = vdwg.mxu0
      %v471 = vsub.f32 1.0, %v379
      %v472 = vsub.f32 1.0, %v380
      %474 = vset.pattern.permute.xlu0 0
      %475 = vperm.xlu0 %474, %v471
      %v476 = vpop.permute.xlu0 %475
      %479 = vset.pattern.permute.xlu0 0
      %480 = vperm.xlu0 %479, %v472
      %v481 = vpop.permute.xlu0 %480
      %v483 = vmul.f32 %v463, %v476
      %v484 = vmul.f32 %v468, %v481
      %v485 = vlaneseq
      %v486 = vshrl.u32 %v485, 7
      %v487 = vsub.s32 1, %v486
      %v488 = vrot.slane %v366, %v487
      %490 = vset.pattern.permute.xlu0 0
      %491 = vperm.xlu0 %490, %v379
      %v492 = vpop.permute.xlu0 %491
      %495 = vset.pattern.permute.xlu0 0
      %496 = vperm.xlu0 %495, %v380
      %v497 = vpop.permute.xlu0 %496
      %v499 = vmul.f32 %v488, %v492
      %v500 = vmul.f32 %v488, %v497
      %v501 = vadd.f32 %v483, %v499
      %v502 = vadd.f32 %v484, %v500
      %v503 = vadd.f32 %v501, %v371
      %v504 = vadd.f32 %v502, %v372
      %v505 = vadd.f32 %v463, %v371
      %v506 = vadd.f32 %v468, %v372
      %v507 = vlaneseq
      %v508 = vshrl.u32 %v507, 7
      %v509 = vadd.s32 %v508, 8
      %v510 = vadd.s32 %v508, 16
      %v511 = vadd.s32 %v508, 24
      %v512 = vlaneseq
      %v513 = vand.u32 %v512, 127
      %vm514 = vcmp.lt.s32.totalorder %v508, 16
      %vm515 = vcmp.lt.s32.totalorder %v509, 16
      %vm516 = vcmp.lt.s32.totalorder %v510, 16
      %vm517 = vcmp.lt.s32.totalorder %v511, 16
      %vm518 = vcmp.lt.s32.totalorder %v513, 16
      %vm519 = vmxor %vm514, %vm518
      %vm520 = vmxor %vm515, %vm518
      %vm521 = vmxor %vm516, %vm518
      %vm522 = vmxor %vm517, %vm518
      %vm523 = vmxor %vm519, 1
      %vm524 = vmxor %vm520, 1
      %vm525 = vmxor %vm521, 1
      %vm526 = vmxor %vm522, 1
      %v527 = vsel %vm523, 0.0, -1e+30
      %v528 = vsel %vm524, 0.0, -1e+30
      %v529 = vsel %vm525, 0.0, -1e+30
      %v530 = vsel %vm526, 0.0, -1e+30
      %vm531 = vcmask 261120
      %v532 = vsel %vm531, %v503, 0.0
      %533 = vadd.xlane.f32.xlu0 %v532
      %v534 = vpop.xlane.xlu0 %533
      %v535 = vsel %vm531, %v504, 0.0
      %536 = vadd.xlane.f32.xlu0 %v535
      %v537 = vpop.xlane.xlu0 %536
      %v538 = vsel %vm531, %v505, 0.0
      %539 = vadd.xlane.f32.xlu0 %v538
      %v540 = vpop.xlane.xlu0 %539
      %v541 = vsel %vm531, %v506, 0.0
      %542 = vadd.xlane.f32.xlu0 %v541
      %v543 = vpop.xlane.xlu0 %542
      %v544 = vrcp.pop 32.0
      %v545 = vmul.f32 %v534, %v544
      %v546 = vmul.f32 %v537, %v544
      %v547 = vmul.f32 %v540, %v544
      %v548 = vmul.f32 %v543, %v544
      %v549 = vsub.f32 %v503, %v545
      %v550 = vsub.f32 %v504, %v546
      %v551 = vsub.f32 %v505, %v547
      %v552 = vsub.f32 %v506, %v548
      %v553 = vmul.f32 %v549, %v549
      %v554 = vmul.f32 %v550, %v550
      %v555 = vmul.f32 %v551, %v551
      %v556 = vmul.f32 %v552, %v552
      %v557 = vsel %vm531, %v553, 0.0
      %558 = vadd.xlane.f32.xlu0 %v557
      %v559 = vpop.xlane.xlu0 %558
      %v560 = vsel %vm531, %v554, 0.0
      %561 = vadd.xlane.f32.xlu0 %v560
      %v562 = vpop.xlane.xlu0 %561
      %v563 = vsel %vm531, %v555, 0.0
      %564 = vadd.xlane.f32.xlu0 %v563
      %v565 = vpop.xlane.xlu0 %564
      %v566 = vsel %vm531, %v556, 0.0
      %567 = vadd.xlane.f32.xlu0 %v566
      %v568 = vpop.xlane.xlu0 %567
      %v569 = vmul.f32 %v559, %v544
      %v570 = vmul.f32 %v562, %v544
      %v571 = vmul.f32 %v565, %v544
      %v572 = vmul.f32 %v568, %v544
      %v573 = vadd.f32 %v569, 1e-05
      %v574 = vadd.f32 %v570, 1e-05
      %v575 = vadd.f32 %v571, 1e-05
      %v576 = vadd.f32 %v572, 1e-05
      %v577 = vrsqrt.pop %v573
      %v578 = vrsqrt.pop %v574
      %v579 = vrsqrt.pop %v575
      %v580 = vrsqrt.pop %v576
      %v581 = vmul.f32 %v549, %v577
      %v582 = vmul.f32 %v550, %v578
      %v583 = vmul.f32 %v551, %v579
      %v584 = vmul.f32 %v552, %v580
      %v585 = vlaneseq
      %v586 = vshrl.u32 %v585, 7
      %v587 = vsub.s32 0, %v586
      %v588 = vrot.slane %v367, %v587
      %v589 = vmul.f32 %v581, %v588
      %v590 = vmul.f32 %v582, %v588
      %v591 = vmul.f32 %v583, %v588
      %v592 = vmul.f32 %v584, %v588
      %v593 = vlaneseq
      %v594 = vshrl.u32 %v593, 7
      %v595 = vsub.s32 1, %v594
      %v596 = vrot.slane %v367, %v595
      %v597 = vadd.f32 %v589, %v596
      %v598 = vadd.f32 %v590, %v596
      %v599 = vadd.f32 %v591, %v596
      %v600 = vadd.f32 %v592, %v596
      %v601 = vld [vmem:[%s4] sm:$0xff]
      %v602 = vld [vmem:[%s4 + $0x8] sm:$0xff]
      %v603 = vld [vmem:[%s4 + $0x10] sm:$0xff]
      %v604 = vld [vmem:[%s4 + $0x18] sm:$0xff]
      %v605 = vlaneseq
      %v606 = vshrl.u32 %v605, 7
      %v607 = vsub.s32 2, %v606
      %v608 = vrot.slane %v367, %v607
      %v610 = vsel %vm531, %v597, 0
      %v613 = vsel %vm531, %v598, 0
      %v616 = vsel %vm531, %v599, 0
      %v619 = vsel %vm531, %v600, 0
      %621 = vmatprep.subr.mxu0 0.0
      %622 = vmatpush1.msra.mxu0 %v601
      %623 = vmatprep.subr.mxu0 0.0
      %624 = vmatpush1.msra.mxu0 %v602
      %625 = vmatprep.subr.mxu0 0.0
      %626 = vmatpush1.msra.mxu0 %v603
      %627 = vmatprep.subr.mxu0 0.0
      %628 = vmatpush1.msra.mxu0 %v604
      %629 = vmatprep.subr.mxu0 0.0
      %630 = vmatpush1.msra.mxu0 0.0
      %631 = vmatprep.subr.mxu0 0.0
      %632 = vmatpush1.msra.mxu0 0.0
      %633 = vmatprep.subr.mxu0 0.0
      %634 = vmatpush1.msra.mxu0 0.0
      %635 = vmatprep.subr.mxu0 0.0
      %636 = vmatpush1.msra.mxu0 0.0
      %637 = vmatprep.subr.mxu0 0.0
      %638 = vmatpush1.msra.mxu0 0.0
      %639 = vmatprep.subr.mxu0 0.0
      %640 = vmatpush1.msra.mxu0 0.0
      %641 = vmatprep.subr.mxu0 0.0
      %642 = vmatpush1.msra.mxu0 0.0
      %643 = vmatprep.subr.mxu0 0.0
      %644 = vmatpush1.msra.mxu0 0.0
      %645 = vmatprep.subr.mxu0 0.0
      %646 = vmatpush1.msra.mxu0 0.0
      %647 = vmatprep.subr.mxu0 0.0
      %648 = vmatpush1.msra.mxu0 0.0
      %649 = vmatprep.subr.mxu0 0.0
      %650 = vmatpush1.msra.mxu0 0.0
      %651 = vmatprep.subr.mxu0 0.0
      %652 = vmatpush1.msra.mxu0 0.0
      %653 = vmatprep.subr.mxu0 0.0
      %654 = vmatpush1.msra.mxu0 0.0
      %655 = vmatprep.subr.mxu0 0.0
      %656 = vmatpush1.msra.mxu0 0.0
      %657 = vmatprep.subr.mxu0 0.0
      %658 = vmatpush1.msra.mxu0 0.0
      %659 = vmatprep.subr.mxu0 0.0
      %660 = vmatpush1.msra.mxu0 0.0
      %661 = vmatprep.subr.mxu0 0.0
      %662 = vmatpush1.msra.mxu0 0.0
      %663 = vmatprep.subr.mxu0 0.0
      %664 = vmatpush1.msra.mxu0 0.0
      %665 = vmatprep.subr.mxu0 0.0
      %666 = vmatpush1.msra.mxu0 0.0
      %667 = vmatprep.subr.mxu0 0.0
      %668 = vmatpush1.msra.mxu0 0.0
      %669 = vmatprep.subr.mxu0 0.0
      %670 = vmatpush1.msra.mxu0 0.0
      %671 = vmatprep.subr.mxu0 0.0
      %672 = vmatpush1.msra.mxu0 0.0
      %673 = vmatprep.subr.mxu0 0.0
      %674 = vmatpush1.msra.mxu0 0.0
      %675 = vmatprep.subr.mxu0 0.0
      %676 = vmatpush1.msra.mxu0 0.0
      %677 = vmatprep.subr.mxu0 0.0
      %678 = vmatpush1.msra.mxu0 0.0
      %679 = vmatprep.subr.mxu0 0.0
      %680 = vmatpush1.msra.mxu0 0.0
      %681 = vmatprep.subr.mxu0 0.0
      %682 = vmatpush1.msra.mxu0 0.0
      %683 = vmatprep.subr.mxu0 0.0
      %684 = vmatpush1.msra.mxu0 0.0
      %685 = vmatprep.mubr.f32.mxu0 0.0
      %686 = vmatmul.mubr.f32.gmra.mrb[0].mxu0 %v610
      %v687 = vpop.f32.mrb[0].mxu0
      %v688 = vadd.f32 %v608, %v687
      %v689 = vpop.f32.mrb[0].mxu0
      %690 = vmatprep.mubr.f32.mxu0 0.0
      %691 = vmatmul.mubr.f32.gmra.mrb[0].mxu0 %v613
      %v692 = vpop.f32.mrb[0].mxu0
      %v693 = vadd.f32 %v608, %v692
      %v694 = vpop.f32.mrb[0].mxu0
      %695 = vmatprep.mubr.f32.mxu0 0.0
      %696 = vmatmul.mubr.f32.gmra.mrb[0].mxu0 %v616
      %v697 = vpop.f32.mrb[0].mxu0
      %v698 = vadd.f32 %v608, %v697
      %v699 = vpop.f32.mrb[0].mxu0
      %700 = vmatprep.mubr.f32.mxu0 0.0
      %701 = vmatmul.mubr.f32.gmra.mrb[0].mxu0 %v619
      %v702 = vpop.f32.mrb[0].mxu0
      %v703 = vadd.f32 %v608, %v702
      %v704 = vpop.f32.mrb[0].mxu0
      %705 = vdwg.mxu0
      %710 = vrot.lane.b32.xlu0 %v688, 96
      %v711 = vpop.permute.xlu0 %710
      %712 = vrot.lane.b32.xlu0 %v693, 96
      %v713 = vpop.permute.xlu0 %712
      %714 = vrot.lane.b32.xlu0 %v698, 96
      %v715 = vpop.permute.xlu0 %714
      %716 = vrot.lane.b32.xlu0 %v703, 96
      %v717 = vpop.permute.xlu0 %716
      %vm718 = vcmask 64512
      %v719 = vsel %vm718, %v688, 0
      %v721 = vsel %vm718, %v693, 0
      %v723 = vsel %vm718, %v698, 0
      %v725 = vsel %vm718, %v703, 0
      %v727 = vsel %vm718, %v711, 0
      %v729 = vsel %vm718, %v713, 0
      %v731 = vsel %vm718, %v715, 0
      %v733 = vsel %vm718, %v717, 0
      %735 = vmatprep.subr.mxu0 0.0
      %736 = vmatpush1.xpose.msra.mxu0 %v727
      %737 = vmatprep.subr.mxu0 0.0
      %738 = vmatpush1.xpose.msra.mxu0 %v729
      %739 = vmatprep.subr.mxu0 0.0
      %740 = vmatpush1.xpose.msra.mxu0 %v731
      %741 = vmatprep.subr.mxu0 0.0
      %742 = vmatpush1.xpose.msra.mxu0 %v733
      %743 = vmatprep.subr.mxu0 0.0
      %744 = vmatpush1.xpose.msra.mxu0 0.0
      %745 = vmatprep.subr.mxu0 0.0
      %746 = vmatpush1.xpose.msra.mxu0 0.0
      %747 = vmatprep.subr.mxu0 0.0
      %748 = vmatpush1.xpose.msra.mxu0 0.0
      %749 = vmatprep.subr.mxu0 0.0
      %750 = vmatpush1.xpose.msra.mxu0 0.0
      %751 = vmatprep.subr.mxu0 0.0
      %752 = vmatpush1.xpose.msra.mxu0 0.0
      %753 = vmatprep.subr.mxu0 0.0
      %754 = vmatpush1.xpose.msra.mxu0 0.0
      %755 = vmatprep.subr.mxu0 0.0
      %756 = vmatpush1.xpose.msra.mxu0 0.0
      %757 = vmatprep.subr.mxu0 0.0
      %758 = vmatpush1.xpose.msra.mxu0 0.0
      %759 = vmatprep.subr.mxu0 0.0
      %760 = vmatpush1.xpose.msra.mxu0 0.0
      %761 = vmatprep.subr.mxu0 0.0
      %762 = vmatpush1.xpose.msra.mxu0 0.0
      %763 = vmatprep.subr.mxu0 0.0
      %764 = vmatpush1.xpose.msra.mxu0 0.0
      %765 = vmatprep.subr.mxu0 0.0
      %766 = vmatpush1.xpose.msra.mxu0 0.0
      %767 = vmatprep.subr.mxu0 0.0
      %768 = vmatpush1.xpose.msra.mxu0 0.0
      %769 = vmatprep.subr.mxu0 0.0
      %770 = vmatpush1.xpose.msra.mxu0 0.0
      %771 = vmatprep.subr.mxu0 0.0
      %772 = vmatpush1.xpose.msra.mxu0 0.0
      %773 = vmatprep.subr.mxu0 0.0
      %774 = vmatpush1.xpose.msra.mxu0 0.0
      %775 = vmatprep.subr.mxu0 0.0
      %776 = vmatpush1.xpose.msra.mxu0 0.0
      %777 = vmatprep.subr.mxu0 0.0
      %778 = vmatpush1.xpose.msra.mxu0 0.0
      %779 = vmatprep.subr.mxu0 0.0
      %780 = vmatpush1.xpose.msra.mxu0 0.0
      %781 = vmatprep.subr.mxu0 0.0
      %782 = vmatpush1.xpose.msra.mxu0 0.0
      %783 = vmatprep.subr.mxu0 0.0
      %784 = vmatpush1.xpose.msra.mxu0 0.0
      %785 = vmatprep.subr.mxu0 0.0
      %786 = vmatpush1.xpose.msra.mxu0 0.0
      %787 = vmatprep.subr.mxu0 0.0
      %788 = vmatpush1.xpose.msra.mxu0 0.0
      %789 = vmatprep.subr.mxu0 0.0
      %790 = vmatpush1.xpose.msra.mxu0 0.0
      %791 = vmatprep.subr.mxu0 0.0
      %792 = vmatpush1.xpose.msra.mxu0 0.0
      %793 = vmatprep.subr.mxu0 0.0
      %794 = vmatpush1.xpose.msra.mxu0 0.0
      %795 = vmatprep.subr.mxu0 0.0
      %796 = vmatpush1.xpose.msra.mxu0 0.0
      %797 = vmatprep.subr.mxu0 0.0
      %798 = vmatpush1.xpose.msra.mxu0 0.0
      %799 = vmatprep.mubr.f32.mxu0 0.0
      %800 = vmatmul.mubr.f32.gmra.mrb[0].mxu0 %v719
      %v801 = vpop.f32.mrb[0].mxu0
      %v802 = vadd.f32 0.0, %v801
      %v803 = vpop.f32.mrb[0].mxu0
      %804 = vmatprep.mubr.f32.mxu0 0.0
      %805 = vmatmul.mubr.f32.gmra.mrb[0].mxu0 %v721
      %v806 = vpop.f32.mrb[0].mxu0
      %v807 = vadd.f32 0.0, %v806
      %v808 = vpop.f32.mrb[0].mxu0
      %809 = vmatprep.mubr.f32.mxu0 0.0
      %810 = vmatmul.mubr.f32.gmra.mrb[0].mxu0 %v723
      %v811 = vpop.f32.mrb[0].mxu0
      %v812 = vadd.f32 0.0, %v811
      %v813 = vpop.f32.mrb[0].mxu0
      %814 = vmatprep.mubr.f32.mxu0 0.0
      %815 = vmatmul.mubr.f32.gmra.mrb[0].mxu0 %v725
      %v816 = vpop.f32.mrb[0].mxu0
      %v817 = vadd.f32 0.0, %v816
      %v818 = vpop.f32.mrb[0].mxu0
      %819 = vdwg.mxu0
      %v820 = vmul.f32 %v802, 0.35355338
      %v821 = vmul.f32 %v807, 0.35355338
      %v822 = vmul.f32 %v812, 0.35355338
      %v823 = vmul.f32 %v817, 0.35355338
      %v824 = vadd.f32 %v820, %v527
      %v825 = vadd.f32 %v821, %v528
      %v826 = vadd.f32 %v822, %v529
      %v827 = vadd.f32 %v823, %v530
      %v828 = vsel %vm531, %v824, -inf
      %829 = vmax.xlane.f32.xlu0 %v828
      %v830 = vpop.xlane.xlu0 %829
      %v831 = vsel %vm531, %v825, -inf
      %832 = vmax.xlane.f32.xlu0 %v831
      %v833 = vpop.xlane.xlu0 %832
      %v834 = vsel %vm531, %v826, -inf
      %835 = vmax.xlane.f32.xlu0 %v834
      %v836 = vpop.xlane.xlu0 %835
      %v837 = vsel %vm531, %v827, -inf
      %838 = vmax.xlane.f32.xlu0 %v837
      %v839 = vpop.xlane.xlu0 %838
      %v840 = vsub.f32 %v824, %v830
      %v841 = vsub.f32 %v825, %v833
      %v842 = vsub.f32 %v826, %v836
      %v843 = vsub.f32 %v827, %v839
      %v844 = vmul.f32 %v840, 1.442695
      %v845 = vpow.pop %v844
      %v846 = vmul.f32 %v841, 1.442695
      %v847 = vpow.pop %v846
      %v848 = vmul.f32 %v842, 1.442695
      %v849 = vpow.pop %v848
      %v850 = vmul.f32 %v843, 1.442695
      %v851 = vpow.pop %v850
      %v852 = vsel %vm531, %v845, 0.0
      %853 = vadd.xlane.f32.xlu0 %v852
      %v854 = vpop.xlane.xlu0 %853
      %v855 = vsel %vm531, %v847, 0.0
      %856 = vadd.xlane.f32.xlu0 %v855
      %v857 = vpop.xlane.xlu0 %856
      %v858 = vsel %vm531, %v849, 0.0
      %859 = vadd.xlane.f32.xlu0 %v858
      %v860 = vpop.xlane.xlu0 %859
      %v861 = vsel %vm531, %v851, 0.0
      %862 = vadd.xlane.f32.xlu0 %v861
      %v863 = vpop.xlane.xlu0 %862
      %v864 = vrcp.pop %v854
      %v865 = vmul.f32 %v845, %v864
      %v866 = vrcp.pop %v857
      %v867 = vmul.f32 %v847, %v866
      %v868 = vrcp.pop %v860
      %v869 = vmul.f32 %v849, %v868
      %v870 = vrcp.pop %v863
      %v871 = vmul.f32 %v851, %v870
      %872 = vrot.lane.b32.xlu0 %v688, 64
      %v873 = vpop.permute.xlu0 %872
      %874 = vrot.lane.b32.xlu0 %v693, 64
      %v875 = vpop.permute.xlu0 %874
      %876 = vrot.lane.b32.xlu0 %v698, 64
      %v877 = vpop.permute.xlu0 %876
      %878 = vrot.lane.b32.xlu0 %v703, 64
      %v879 = vpop.permute.xlu0 %878
      %v885 = vsel %vm531, %v865, 0
      %v888 = vsel %vm531, %v867, 0
      %v891 = vsel %vm531, %v869, 0
      %v894 = vsel %vm531, %v871, 0
      %896 = vmatprep.subr.mxu0 0.0
      %897 = vmatpush1.msra.mxu0 %v873
      %898 = vmatprep.subr.mxu0 0.0
      %899 = vmatpush1.msra.mxu0 %v875
      %900 = vmatprep.subr.mxu0 0.0
      %901 = vmatpush1.msra.mxu0 %v877
      %902 = vmatprep.subr.mxu0 0.0
      %903 = vmatpush1.msra.mxu0 %v879
      %904 = vmatprep.subr.mxu0 0.0
      %905 = vmatpush1.msra.mxu0 0.0
      %906 = vmatprep.subr.mxu0 0.0
      %907 = vmatpush1.msra.mxu0 0.0
      %908 = vmatprep.subr.mxu0 0.0
      %909 = vmatpush1.msra.mxu0 0.0
      %910 = vmatprep.subr.mxu0 0.0
      %911 = vmatpush1.msra.mxu0 0.0
      %912 = vmatprep.subr.mxu0 0.0
      %913 = vmatpush1.msra.mxu0 0.0
      %914 = vmatprep.subr.mxu0 0.0
      %915 = vmatpush1.msra.mxu0 0.0
      %916 = vmatprep.subr.mxu0 0.0
      %917 = vmatpush1.msra.mxu0 0.0
      %918 = vmatprep.subr.mxu0 0.0
      %919 = vmatpush1.msra.mxu0 0.0
      %920 = vmatprep.subr.mxu0 0.0
      %921 = vmatpush1.msra.mxu0 0.0
      %922 = vmatprep.subr.mxu0 0.0
      %923 = vmatpush1.msra.mxu0 0.0
      %924 = vmatprep.subr.mxu0 0.0
      %925 = vmatpush1.msra.mxu0 0.0
      %926 = vmatprep.subr.mxu0 0.0
      %927 = vmatpush1.msra.mxu0 0.0
      %928 = vmatprep.subr.mxu0 0.0
      %929 = vmatpush1.msra.mxu0 0.0
      %930 = vmatprep.subr.mxu0 0.0
      %931 = vmatpush1.msra.mxu0 0.0
      %932 = vmatprep.subr.mxu0 0.0
      %933 = vmatpush1.msra.mxu0 0.0
      %934 = vmatprep.subr.mxu0 0.0
      %935 = vmatpush1.msra.mxu0 0.0
      %936 = vmatprep.subr.mxu0 0.0
      %937 = vmatpush1.msra.mxu0 0.0
      %938 = vmatprep.subr.mxu0 0.0
      %939 = vmatpush1.msra.mxu0 0.0
      %940 = vmatprep.subr.mxu0 0.0
      %941 = vmatpush1.msra.mxu0 0.0
      %942 = vmatprep.subr.mxu0 0.0
      %943 = vmatpush1.msra.mxu0 0.0
      %944 = vmatprep.subr.mxu0 0.0
      %945 = vmatpush1.msra.mxu0 0.0
      %946 = vmatprep.subr.mxu0 0.0
      %947 = vmatpush1.msra.mxu0 0.0
      %948 = vmatprep.subr.mxu0 0.0
      %949 = vmatpush1.msra.mxu0 0.0
      %950 = vmatprep.subr.mxu0 0.0
      %951 = vmatpush1.msra.mxu0 0.0
      %952 = vmatprep.subr.mxu0 0.0
      %953 = vmatpush1.msra.mxu0 0.0
      %954 = vmatprep.subr.mxu0 0.0
      %955 = vmatpush1.msra.mxu0 0.0
      %956 = vmatprep.subr.mxu0 0.0
      %957 = vmatpush1.msra.mxu0 0.0
      %958 = vmatprep.subr.mxu0 0.0
      %959 = vmatpush1.msra.mxu0 0.0
      %960 = vmatprep.mubr.f32.mxu0 0.0
      %961 = vmatmul.mubr.f32.gmra.mrb[0].mxu0 %v885
      %v962 = vpop.f32.mrb[0].mxu0
      %v963 = vadd.f32 0.0, %v962
      %v964 = vpop.f32.mrb[0].mxu0
      %965 = vmatprep.mubr.f32.mxu0 0.0
      %966 = vmatmul.mubr.f32.gmra.mrb[0].mxu0 %v888
      %v967 = vpop.f32.mrb[0].mxu0
      %v968 = vadd.f32 0.0, %v967
      %v969 = vpop.f32.mrb[0].mxu0
      %970 = vmatprep.mubr.f32.mxu0 0.0
      %971 = vmatmul.mubr.f32.gmra.mrb[0].mxu0 %v891
      %v972 = vpop.f32.mrb[0].mxu0
      %v973 = vadd.f32 0.0, %v972
      %v974 = vpop.f32.mrb[0].mxu0
      %975 = vmatprep.mubr.f32.mxu0 0.0
      %976 = vmatmul.mubr.f32.gmra.mrb[0].mxu0 %v894
      %v977 = vpop.f32.mrb[0].mxu0
      %v978 = vadd.f32 0.0, %v977
      %v979 = vpop.f32.mrb[0].mxu0
      %980 = vdwg.mxu0
      %981 = vrot.lane.b32.xlu0 %v688, 120
      %v982 = vpop.permute.xlu0 %981
      %983 = vrot.lane.b32.xlu0 %v693, 120
      %v984 = vpop.permute.xlu0 %983
      %985 = vrot.lane.b32.xlu0 %v698, 120
      %v986 = vpop.permute.xlu0 %985
      %987 = vrot.lane.b32.xlu0 %v703, 120
      %v988 = vpop.permute.xlu0 %987
      %989 = vrot.lane.b32.xlu0 %v688, 88
      %v990 = vpop.permute.xlu0 %989
      %991 = vrot.lane.b32.xlu0 %v693, 88
      %v992 = vpop.permute.xlu0 %991
      %993 = vrot.lane.b32.xlu0 %v698, 88
      %v994 = vpop.permute.xlu0 %993
      %995 = vrot.lane.b32.xlu0 %v703, 88
      %v996 = vpop.permute.xlu0 %995
      %v997 = vsel %vm718, %v982, 0
      %v999 = vsel %vm718, %v984, 0
      %v1001 = vsel %vm718, %v986, 0
      %v1003 = vsel %vm718, %v988, 0
      %v1005 = vsel %vm718, %v990, 0
      %v1007 = vsel %vm718, %v992, 0
      %v1009 = vsel %vm718, %v994, 0
      %v1011 = vsel %vm718, %v996, 0
      %1013 = vmatprep.subr.mxu0 0.0
      %1014 = vmatpush1.xpose.msra.mxu0 %v1005
      %1015 = vmatprep.subr.mxu0 0.0
      %1016 = vmatpush1.xpose.msra.mxu0 %v1007
      %1017 = vmatprep.subr.mxu0 0.0
      %1018 = vmatpush1.xpose.msra.mxu0 %v1009
      %1019 = vmatprep.subr.mxu0 0.0
      %1020 = vmatpush1.xpose.msra.mxu0 %v1011
      %1021 = vmatprep.subr.mxu0 0.0
      %1022 = vmatpush1.xpose.msra.mxu0 0.0
      %1023 = vmatprep.subr.mxu0 0.0
      %1024 = vmatpush1.xpose.msra.mxu0 0.0
      %1025 = vmatprep.subr.mxu0 0.0
      %1026 = vmatpush1.xpose.msra.mxu0 0.0
      %1027 = vmatprep.subr.mxu0 0.0
      %1028 = vmatpush1.xpose.msra.mxu0 0.0
      %1029 = vmatprep.subr.mxu0 0.0
      %1030 = vmatpush1.xpose.msra.mxu0 0.0
      %1031 = vmatprep.subr.mxu0 0.0
      %1032 = vmatpush1.xpose.msra.mxu0 0.0
      %1033 = vmatprep.subr.mxu0 0.0
      %1034 = vmatpush1.xpose.msra.mxu0 0.0
      %1035 = vmatprep.subr.mxu0 0.0
      %1036 = vmatpush1.xpose.msra.mxu0 0.0
      %1037 = vmatprep.subr.mxu0 0.0
      %1038 = vmatpush1.xpose.msra.mxu0 0.0
      %1039 = vmatprep.subr.mxu0 0.0
      %1040 = vmatpush1.xpose.msra.mxu0 0.0
      %1041 = vmatprep.subr.mxu0 0.0
      %1042 = vmatpush1.xpose.msra.mxu0 0.0
      %1043 = vmatprep.subr.mxu0 0.0
      %1044 = vmatpush1.xpose.msra.mxu0 0.0
      %1045 = vmatprep.subr.mxu0 0.0
      %1046 = vmatpush1.xpose.msra.mxu0 0.0
      %1047 = vmatprep.subr.mxu0 0.0
      %1048 = vmatpush1.xpose.msra.mxu0 0.0
      %1049 = vmatprep.subr.mxu0 0.0
      %1050 = vmatpush1.xpose.msra.mxu0 0.0
      %1051 = vmatprep.subr.mxu0 0.0
      %1052 = vmatpush1.xpose.msra.mxu0 0.0
      %1053 = vmatprep.subr.mxu0 0.0
      %1054 = vmatpush1.xpose.msra.mxu0 0.0
      %1055 = vmatprep.subr.mxu0 0.0
      %1056 = vmatpush1.xpose.msra.mxu0 0.0
      %1057 = vmatprep.subr.mxu0 0.0
      %1058 = vmatpush1.xpose.msra.mxu0 0.0
      %1059 = vmatprep.subr.mxu0 0.0
      %1060 = vmatpush1.xpose.msra.mxu0 0.0
      %1061 = vmatprep.subr.mxu0 0.0
      %1062 = vmatpush1.xpose.msra.mxu0 0.0
      %1063 = vmatprep.subr.mxu0 0.0
      %1064 = vmatpush1.xpose.msra.mxu0 0.0
      %1065 = vmatprep.subr.mxu0 0.0
      %1066 = vmatpush1.xpose.msra.mxu0 0.0
      %1067 = vmatprep.subr.mxu0 0.0
      %1068 = vmatpush1.xpose.msra.mxu0 0.0
      %1069 = vmatprep.subr.mxu0 0.0
      %1070 = vmatpush1.xpose.msra.mxu0 0.0
      %1071 = vmatprep.subr.mxu0 0.0
      %1072 = vmatpush1.xpose.msra.mxu0 0.0
      %1073 = vmatprep.subr.mxu0 0.0
      %1074 = vmatpush1.xpose.msra.mxu0 0.0
      %1075 = vmatprep.subr.mxu0 0.0
      %1076 = vmatpush1.xpose.msra.mxu0 0.0
      %1077 = vmatprep.mubr.f32.mxu0 0.0
      %1078 = vmatmul.mubr.f32.gmra.mrb[0].mxu0 %v997
      %v1079 = vpop.f32.mrb[0].mxu0
      %v1080 = vadd.f32 0.0, %v1079
      %v1081 = vpop.f32.mrb[0].mxu0
      %1082 = vmatprep.mubr.f32.mxu0 0.0
      %1083 = vmatmul.mubr.f32.gmra.mrb[0].mxu0 %v999
      %v1084 = vpop.f32.mrb[0].mxu0
      %v1085 = vadd.f32 0.0, %v1084
      %v1086 = vpop.f32.mrb[0].mxu0
      %1087 = vmatprep.mubr.f32.mxu0 0.0
      %1088 = vmatmul.mubr.f32.gmra.mrb[0].mxu0 %v1001
      %v1089 = vpop.f32.mrb[0].mxu0
      %v1090 = vadd.f32 0.0, %v1089
      %v1091 = vpop.f32.mrb[0].mxu0
      %1092 = vmatprep.mubr.f32.mxu0 0.0
      %1093 = vmatmul.mubr.f32.gmra.mrb[0].mxu0 %v1003
      %v1094 = vpop.f32.mrb[0].mxu0
      %v1095 = vadd.f32 0.0, %v1094
      %v1096 = vpop.f32.mrb[0].mxu0
      %1097 = vdwg.mxu0
      %v1098 = vmul.f32 %v1080, 0.35355338
      %v1099 = vmul.f32 %v1085, 0.35355338
      %v1100 = vmul.f32 %v1090, 0.35355338
      %v1101 = vmul.f32 %v1095, 0.35355338
      %v1102 = vadd.f32 %v1098, %v527
      %v1103 = vadd.f32 %v1099, %v528
      %v1104 = vadd.f32 %v1100, %v529
      %v1105 = vadd.f32 %v1101, %v530
      %v1106 = vsel %vm531, %v1102, -inf
      %1107 = vmax.xlane.f32.xlu0 %v1106
      %v1108 = vpop.xlane.xlu0 %1107
      %v1109 = vsel %vm531, %v1103, -inf
      %1110 = vmax.xlane.f32.xlu0 %v1109
      %v1111 = vpop.xlane.xlu0 %1110
      %v1112 = vsel %vm531, %v1104, -inf
      %1113 = vmax.xlane.f32.xlu0 %v1112
      %v1114 = vpop.xlane.xlu0 %1113
      %v1115 = vsel %vm531, %v1105, -inf
      %1116 = vmax.xlane.f32.xlu0 %v1115
      %v1117 = vpop.xlane.xlu0 %1116
      %v1118 = vsub.f32 %v1102, %v1108
      %v1119 = vsub.f32 %v1103, %v1111
      %v1120 = vsub.f32 %v1104, %v1114
      %v1121 = vsub.f32 %v1105, %v1117
      %v1122 = vmul.f32 %v1118, 1.442695
      %v1123 = vpow.pop %v1122
      %v1124 = vmul.f32 %v1119, 1.442695
      %v1125 = vpow.pop %v1124
      %v1126 = vmul.f32 %v1120, 1.442695
      %v1127 = vpow.pop %v1126
      %v1128 = vmul.f32 %v1121, 1.442695
      %v1129 = vpow.pop %v1128
      %v1130 = vsel %vm531, %v1123, 0.0
      %1131 = vadd.xlane.f32.xlu0 %v1130
      %v1132 = vpop.xlane.xlu0 %1131
      %v1133 = vsel %vm531, %v1125, 0.0
      %1134 = vadd.xlane.f32.xlu0 %v1133
      %v1135 = vpop.xlane.xlu0 %1134
      %v1136 = vsel %vm531, %v1127, 0.0
      %1137 = vadd.xlane.f32.xlu0 %v1136
      %v1138 = vpop.xlane.xlu0 %1137
      %v1139 = vsel %vm531, %v1129, 0.0
      %1140 = vadd.xlane.f32.xlu0 %v1139
      %v1141 = vpop.xlane.xlu0 %1140
      %v1142 = vrcp.pop %v1132
      %v1143 = vmul.f32 %v1123, %v1142
      %v1144 = vrcp.pop %v1135
      %v1145 = vmul.f32 %v1125, %v1144
      %v1146 = vrcp.pop %v1138
      %v1147 = vmul.f32 %v1127, %v1146
      %v1148 = vrcp.pop %v1141
      %v1149 = vmul.f32 %v1129, %v1148
      %1150 = vrot.lane.b32.xlu0 %v688, 56
      %v1151 = vpop.permute.xlu0 %1150
      %1152 = vrot.lane.b32.xlu0 %v693, 56
      %v1153 = vpop.permute.xlu0 %1152
      %1154 = vrot.lane.b32.xlu0 %v698, 56
      %v1155 = vpop.permute.xlu0 %1154
      %1156 = vrot.lane.b32.xlu0 %v703, 56
      %v1157 = vpop.permute.xlu0 %1156
      %v1163 = vsel %vm531, %v1143, 0
      %v1166 = vsel %vm531, %v1145, 0
      %v1169 = vsel %vm531, %v1147, 0
      %v1172 = vsel %vm531, %v1149, 0
      %1174 = vmatprep.subr.mxu0 0.0
      %1175 = vmatpush1.msra.mxu0 %v1151
      %1176 = vmatprep.subr.mxu0 0.0
      %1177 = vmatpush1.msra.mxu0 %v1153
      %1178 = vmatprep.subr.mxu0 0.0
      %1179 = vmatpush1.msra.mxu0 %v1155
      %1180 = vmatprep.subr.mxu0 0.0
      %1181 = vmatpush1.msra.mxu0 %v1157
      %1182 = vmatprep.subr.mxu0 0.0
      %1183 = vmatpush1.msra.mxu0 0.0
      %1184 = vmatprep.subr.mxu0 0.0
      %1185 = vmatpush1.msra.mxu0 0.0
      %1186 = vmatprep.subr.mxu0 0.0
      %1187 = vmatpush1.msra.mxu0 0.0
      %1188 = vmatprep.subr.mxu0 0.0
      %1189 = vmatpush1.msra.mxu0 0.0
      %1190 = vmatprep.subr.mxu0 0.0
      %1191 = vmatpush1.msra.mxu0 0.0
      %1192 = vmatprep.subr.mxu0 0.0
      %1193 = vmatpush1.msra.mxu0 0.0
      %1194 = vmatprep.subr.mxu0 0.0
      %1195 = vmatpush1.msra.mxu0 0.0
      %1196 = vmatprep.subr.mxu0 0.0
      %1197 = vmatpush1.msra.mxu0 0.0
      %1198 = vmatprep.subr.mxu0 0.0
      %1199 = vmatpush1.msra.mxu0 0.0
      %1200 = vmatprep.subr.mxu0 0.0
      %1201 = vmatpush1.msra.mxu0 0.0
      %1202 = vmatprep.subr.mxu0 0.0
      %1203 = vmatpush1.msra.mxu0 0.0
      %1204 = vmatprep.subr.mxu0 0.0
      %1205 = vmatpush1.msra.mxu0 0.0
      %1206 = vmatprep.subr.mxu0 0.0
      %1207 = vmatpush1.msra.mxu0 0.0
      %1208 = vmatprep.subr.mxu0 0.0
      %1209 = vmatpush1.msra.mxu0 0.0
      %1210 = vmatprep.subr.mxu0 0.0
      %1211 = vmatpush1.msra.mxu0 0.0
      %1212 = vmatprep.subr.mxu0 0.0
      %1213 = vmatpush1.msra.mxu0 0.0
      %1214 = vmatprep.subr.mxu0 0.0
      %1215 = vmatpush1.msra.mxu0 0.0
      %1216 = vmatprep.subr.mxu0 0.0
      %1217 = vmatpush1.msra.mxu0 0.0
      %1218 = vmatprep.subr.mxu0 0.0
      %1219 = vmatpush1.msra.mxu0 0.0
      %1220 = vmatprep.subr.mxu0 0.0
      %1221 = vmatpush1.msra.mxu0 0.0
      %1222 = vmatprep.subr.mxu0 0.0
      %1223 = vmatpush1.msra.mxu0 0.0
      %1224 = vmatprep.subr.mxu0 0.0
      %1225 = vmatpush1.msra.mxu0 0.0
      %1226 = vmatprep.subr.mxu0 0.0
      %1227 = vmatpush1.msra.mxu0 0.0
      %1228 = vmatprep.subr.mxu0 0.0
      %1229 = vmatpush1.msra.mxu0 0.0
      %1230 = vmatprep.subr.mxu0 0.0
      %1231 = vmatpush1.msra.mxu0 0.0
      %1232 = vmatprep.subr.mxu0 0.0
      %1233 = vmatpush1.msra.mxu0 0.0
      %1234 = vmatprep.subr.mxu0 0.0
      %1235 = vmatpush1.msra.mxu0 0.0
      %1236 = vmatprep.subr.mxu0 0.0
      %1237 = vmatpush1.msra.mxu0 0.0
      %1238 = vmatprep.mubr.f32.mxu0 0.0
      %1239 = vmatmul.mubr.f32.gmra.mrb[0].mxu0 %v1163
      %v1240 = vpop.f32.mrb[0].mxu0
      %v1241 = vadd.f32 0.0, %v1240
      %v1242 = vpop.f32.mrb[0].mxu0
      %1243 = vmatprep.mubr.f32.mxu0 0.0
      %1244 = vmatmul.mubr.f32.gmra.mrb[0].mxu0 %v1166
      %v1245 = vpop.f32.mrb[0].mxu0
      %v1246 = vadd.f32 0.0, %v1245
      %v1247 = vpop.f32.mrb[0].mxu0
      %1248 = vmatprep.mubr.f32.mxu0 0.0
      %1249 = vmatmul.mubr.f32.gmra.mrb[0].mxu0 %v1169
      %v1250 = vpop.f32.mrb[0].mxu0
      %v1251 = vadd.f32 0.0, %v1250
      %v1252 = vpop.f32.mrb[0].mxu0
      %1253 = vmatprep.mubr.f32.mxu0 0.0
      %1254 = vmatmul.mubr.f32.gmra.mrb[0].mxu0 %v1172
      %v1255 = vpop.f32.mrb[0].mxu0
      %v1256 = vadd.f32 0.0, %v1255
      %v1257 = vpop.f32.mrb[0].mxu0
      %1258 = vdwg.mxu0
      %1259 = vrot.lane.b32.xlu0 %v688, 112
      %v1260 = vpop.permute.xlu0 %1259
      %1261 = vrot.lane.b32.xlu0 %v693, 112
      %v1262 = vpop.permute.xlu0 %1261
      %1263 = vrot.lane.b32.xlu0 %v698, 112
      %v1264 = vpop.permute.xlu0 %1263
      %1265 = vrot.lane.b32.xlu0 %v703, 112
      %v1266 = vpop.permute.xlu0 %1265
      %1267 = vrot.lane.b32.xlu0 %v688, 80
      %v1268 = vpop.permute.xlu0 %1267
      %1269 = vrot.lane.b32.xlu0 %v693, 80
      %v1270 = vpop.permute.xlu0 %1269
      %1271 = vrot.lane.b32.xlu0 %v698, 80
      %v1272 = vpop.permute.xlu0 %1271
      %1273 = vrot.lane.b32.xlu0 %v703, 80
      %v1274 = vpop.permute.xlu0 %1273
      %v1275 = vsel %vm718, %v1260, 0
      %v1277 = vsel %vm718, %v1262, 0
      %v1279 = vsel %vm718, %v1264, 0
      %v1281 = vsel %vm718, %v1266, 0
      %v1283 = vsel %vm718, %v1268, 0
      %v1285 = vsel %vm718, %v1270, 0
      %v1287 = vsel %vm718, %v1272, 0
      %v1289 = vsel %vm718, %v1274, 0
      %1291 = vmatprep.subr.mxu0 0.0
      %1292 = vmatpush1.xpose.msra.mxu0 %v1283
      %1293 = vmatprep.subr.mxu0 0.0
      %1294 = vmatpush1.xpose.msra.mxu0 %v1285
      %1295 = vmatprep.subr.mxu0 0.0
      %1296 = vmatpush1.xpose.msra.mxu0 %v1287
      %1297 = vmatprep.subr.mxu0 0.0
      %1298 = vmatpush1.xpose.msra.mxu0 %v1289
      %1299 = vmatprep.subr.mxu0 0.0
      %1300 = vmatpush1.xpose.msra.mxu0 0.0
      %1301 = vmatprep.subr.mxu0 0.0
      %1302 = vmatpush1.xpose.msra.mxu0 0.0
      %1303 = vmatprep.subr.mxu0 0.0
      %1304 = vmatpush1.xpose.msra.mxu0 0.0
      %1305 = vmatprep.subr.mxu0 0.0
      %1306 = vmatpush1.xpose.msra.mxu0 0.0
      %1307 = vmatprep.subr.mxu0 0.0
      %1308 = vmatpush1.xpose.msra.mxu0 0.0
      %1309 = vmatprep.subr.mxu0 0.0
      %1310 = vmatpush1.xpose.msra.mxu0 0.0
      %1311 = vmatprep.subr.mxu0 0.0
      %1312 = vmatpush1.xpose.msra.mxu0 0.0
      %1313 = vmatprep.subr.mxu0 0.0
      %1314 = vmatpush1.xpose.msra.mxu0 0.0
      %1315 = vmatprep.subr.mxu0 0.0
      %1316 = vmatpush1.xpose.msra.mxu0 0.0
      %1317 = vmatprep.subr.mxu0 0.0
      %1318 = vmatpush1.xpose.msra.mxu0 0.0
      %1319 = vmatprep.subr.mxu0 0.0
      %1320 = vmatpush1.xpose.msra.mxu0 0.0
      %1321 = vmatprep.subr.mxu0 0.0
      %1322 = vmatpush1.xpose.msra.mxu0 0.0
      %1323 = vmatprep.subr.mxu0 0.0
      %1324 = vmatpush1.xpose.msra.mxu0 0.0
      %1325 = vmatprep.subr.mxu0 0.0
      %1326 = vmatpush1.xpose.msra.mxu0 0.0
      %1327 = vmatprep.subr.mxu0 0.0
      %1328 = vmatpush1.xpose.msra.mxu0 0.0
      %1329 = vmatprep.subr.mxu0 0.0
      %1330 = vmatpush1.xpose.msra.mxu0 0.0
      %1331 = vmatprep.subr.mxu0 0.0
      %1332 = vmatpush1.xpose.msra.mxu0 0.0
      %1333 = vmatprep.subr.mxu0 0.0
      %1334 = vmatpush1.xpose.msra.mxu0 0.0
      %1335 = vmatprep.subr.mxu0 0.0
      %1336 = vmatpush1.xpose.msra.mxu0 0.0
      %1337 = vmatprep.subr.mxu0 0.0
      %1338 = vmatpush1.xpose.msra.mxu0 0.0
      %1339 = vmatprep.subr.mxu0 0.0
      %1340 = vmatpush1.xpose.msra.mxu0 0.0
      %1341 = vmatprep.subr.mxu0 0.0
      %1342 = vmatpush1.xpose.msra.mxu0 0.0
      %1343 = vmatprep.subr.mxu0 0.0
      %1344 = vmatpush1.xpose.msra.mxu0 0.0
      %1345 = vmatprep.subr.mxu0 0.0
      %1346 = vmatpush1.xpose.msra.mxu0 0.0
      %1347 = vmatprep.subr.mxu0 0.0
      %1348 = vmatpush1.xpose.msra.mxu0 0.0
      %1349 = vmatprep.subr.mxu0 0.0
      %1350 = vmatpush1.xpose.msra.mxu0 0.0
      %1351 = vmatprep.subr.mxu0 0.0
      %1352 = vmatpush1.xpose.msra.mxu0 0.0
      %1353 = vmatprep.subr.mxu0 0.0
      %1354 = vmatpush1.xpose.msra.mxu0 0.0
      %1355 = vmatprep.mubr.f32.mxu0 0.0
      %1356 = vmatmul.mubr.f32.gmra.mrb[0].mxu0 %v1275
      %v1357 = vpop.f32.mrb[0].mxu0
      %v1358 = vadd.f32 0.0, %v1357
      %v1359 = vpop.f32.mrb[0].mxu0
      %1360 = vmatprep.mubr.f32.mxu0 0.0
      %1361 = vmatmul.mubr.f32.gmra.mrb[0].mxu0 %v1277
      %v1362 = vpop.f32.mrb[0].mxu0
      %v1363 = vadd.f32 0.0, %v1362
      %v1364 = vpop.f32.mrb[0].mxu0
      %1365 = vmatprep.mubr.f32.mxu0 0.0
      %1366 = vmatmul.mubr.f32.gmra.mrb[0].mxu0 %v1279
      %v1367 = vpop.f32.mrb[0].mxu0
      %v1368 = vadd.f32 0.0, %v1367
      %v1369 = vpop.f32.mrb[0].mxu0
      %1370 = vmatprep.mubr.f32.mxu0 0.0
      %1371 = vmatmul.mubr.f32.gmra.mrb[0].mxu0 %v1281
      %v1372 = vpop.f32.mrb[0].mxu0
      %v1373 = vadd.f32 0.0, %v1372
      %v1374 = vpop.f32.mrb[0].mxu0
      %1375 = vdwg.mxu0
      %v1376 = vmul.f32 %v1358, 0.35355338
      %v1377 = vmul.f32 %v1363, 0.35355338
      %v1378 = vmul.f32 %v1368, 0.35355338
      %v1379 = vmul.f32 %v1373, 0.35355338
      %v1380 = vadd.f32 %v1376, %v527
      %v1381 = vadd.f32 %v1377, %v528
      %v1382 = vadd.f32 %v1378, %v529
      %v1383 = vadd.f32 %v1379, %v530
      %v1384 = vsel %vm531, %v1380, -inf
      %1385 = vmax.xlane.f32.xlu0 %v1384
      %v1386 = vpop.xlane.xlu0 %1385
      %v1387 = vsel %vm531, %v1381, -inf
      %1388 = vmax.xlane.f32.xlu0 %v1387
      %v1389 = vpop.xlane.xlu0 %1388
      %v1390 = vsel %vm531, %v1382, -inf
      %1391 = vmax.xlane.f32.xlu0 %v1390
      %v1392 = vpop.xlane.xlu0 %1391
      %v1393 = vsel %vm531, %v1383, -inf
      %1394 = vmax.xlane.f32.xlu0 %v1393
      %v1395 = vpop.xlane.xlu0 %1394
      %v1396 = vsub.f32 %v1380, %v1386
      %v1397 = vsub.f32 %v1381, %v1389
      %v1398 = vsub.f32 %v1382, %v1392
      %v1399 = vsub.f32 %v1383, %v1395
      %v1400 = vmul.f32 %v1396, 1.442695
      %v1401 = vpow.pop %v1400
      %v1402 = vmul.f32 %v1397, 1.442695
      %v1403 = vpow.pop %v1402
      %v1404 = vmul.f32 %v1398, 1.442695
      %v1405 = vpow.pop %v1404
      %v1406 = vmul.f32 %v1399, 1.442695
      %v1407 = vpow.pop %v1406
      %v1408 = vsel %vm531, %v1401, 0.0
      %1409 = vadd.xlane.f32.xlu0 %v1408
      %v1410 = vpop.xlane.xlu0 %1409
      %v1411 = vsel %vm531, %v1403, 0.0
      %1412 = vadd.xlane.f32.xlu0 %v1411
      %v1413 = vpop.xlane.xlu0 %1412
      %v1414 = vsel %vm531, %v1405, 0.0
      %1415 = vadd.xlane.f32.xlu0 %v1414
      %v1416 = vpop.xlane.xlu0 %1415
      %v1417 = vsel %vm531, %v1407, 0.0
      %1418 = vadd.xlane.f32.xlu0 %v1417
      %v1419 = vpop.xlane.xlu0 %1418
      %v1420 = vrcp.pop %v1410
      %v1421 = vmul.f32 %v1401, %v1420
      %v1422 = vrcp.pop %v1413
      %v1423 = vmul.f32 %v1403, %v1422
      %v1424 = vrcp.pop %v1416
      %v1425 = vmul.f32 %v1405, %v1424
      %v1426 = vrcp.pop %v1419
      %v1427 = vmul.f32 %v1407, %v1426
      %1428 = vrot.lane.b32.xlu0 %v688, 48
      %v1429 = vpop.permute.xlu0 %1428
      %1430 = vrot.lane.b32.xlu0 %v693, 48
      %v1431 = vpop.permute.xlu0 %1430
      %1432 = vrot.lane.b32.xlu0 %v698, 48
      %v1433 = vpop.permute.xlu0 %1432
      %1434 = vrot.lane.b32.xlu0 %v703, 48
      %v1435 = vpop.permute.xlu0 %1434
      %v1441 = vsel %vm531, %v1421, 0
      %v1444 = vsel %vm531, %v1423, 0
      %v1447 = vsel %vm531, %v1425, 0
      %v1450 = vsel %vm531, %v1427, 0
      %1452 = vmatprep.subr.mxu0 0.0
      %1453 = vmatpush1.msra.mxu0 %v1429
      %1454 = vmatprep.subr.mxu0 0.0
      %1455 = vmatpush1.msra.mxu0 %v1431
      %1456 = vmatprep.subr.mxu0 0.0
      %1457 = vmatpush1.msra.mxu0 %v1433
      %1458 = vmatprep.subr.mxu0 0.0
      %1459 = vmatpush1.msra.mxu0 %v1435
      %1460 = vmatprep.subr.mxu0 0.0
      %1461 = vmatpush1.msra.mxu0 0.0
      %1462 = vmatprep.subr.mxu0 0.0
      %1463 = vmatpush1.msra.mxu0 0.0
      %1464 = vmatprep.subr.mxu0 0.0
      %1465 = vmatpush1.msra.mxu0 0.0
      %1466 = vmatprep.subr.mxu0 0.0
      %1467 = vmatpush1.msra.mxu0 0.0
      %1468 = vmatprep.subr.mxu0 0.0
      %1469 = vmatpush1.msra.mxu0 0.0
      %1470 = vmatprep.subr.mxu0 0.0
      %1471 = vmatpush1.msra.mxu0 0.0
      %1472 = vmatprep.subr.mxu0 0.0
      %1473 = vmatpush1.msra.mxu0 0.0
      %1474 = vmatprep.subr.mxu0 0.0
      %1475 = vmatpush1.msra.mxu0 0.0
      %1476 = vmatprep.subr.mxu0 0.0
      %1477 = vmatpush1.msra.mxu0 0.0
      %1478 = vmatprep.subr.mxu0 0.0
      %1479 = vmatpush1.msra.mxu0 0.0
      %1480 = vmatprep.subr.mxu0 0.0
      %1481 = vmatpush1.msra.mxu0 0.0
      %1482 = vmatprep.subr.mxu0 0.0
      %1483 = vmatpush1.msra.mxu0 0.0
      %1484 = vmatprep.subr.mxu0 0.0
      %1485 = vmatpush1.msra.mxu0 0.0
      %1486 = vmatprep.subr.mxu0 0.0
      %1487 = vmatpush1.msra.mxu0 0.0
      %1488 = vmatprep.subr.mxu0 0.0
      %1489 = vmatpush1.msra.mxu0 0.0
      %1490 = vmatprep.subr.mxu0 0.0
      %1491 = vmatpush1.msra.mxu0 0.0
      %1492 = vmatprep.subr.mxu0 0.0
      %1493 = vmatpush1.msra.mxu0 0.0
      %1494 = vmatprep.subr.mxu0 0.0
      %1495 = vmatpush1.msra.mxu0 0.0
      %1496 = vmatprep.subr.mxu0 0.0
      %1497 = vmatpush1.msra.mxu0 0.0
      %1498 = vmatprep.subr.mxu0 0.0
      %1499 = vmatpush1.msra.mxu0 0.0
      %1500 = vmatprep.subr.mxu0 0.0
      %1501 = vmatpush1.msra.mxu0 0.0
      %1502 = vmatprep.subr.mxu0 0.0
      %1503 = vmatpush1.msra.mxu0 0.0
      %1504 = vmatprep.subr.mxu0 0.0
      %1505 = vmatpush1.msra.mxu0 0.0
      %1506 = vmatprep.subr.mxu0 0.0
      %1507 = vmatpush1.msra.mxu0 0.0
      %1508 = vmatprep.subr.mxu0 0.0
      %1509 = vmatpush1.msra.mxu0 0.0
      %1510 = vmatprep.subr.mxu0 0.0
      %1511 = vmatpush1.msra.mxu0 0.0
      %1512 = vmatprep.subr.mxu0 0.0
      %1513 = vmatpush1.msra.mxu0 0.0
      %1514 = vmatprep.subr.mxu0 0.0
      %1515 = vmatpush1.msra.mxu0 0.0
      %1516 = vmatprep.mubr.f32.mxu0 0.0
      %1517 = vmatmul.mubr.f32.gmra.mrb[0].mxu0 %v1441
      %v1518 = vpop.f32.mrb[0].mxu0
      %v1519 = vadd.f32 0.0, %v1518
      %v1520 = vpop.f32.mrb[0].mxu0
      %1521 = vmatprep.mubr.f32.mxu0 0.0
      %1522 = vmatmul.mubr.f32.gmra.mrb[0].mxu0 %v1444
      %v1523 = vpop.f32.mrb[0].mxu0
      %v1524 = vadd.f32 0.0, %v1523
      %v1525 = vpop.f32.mrb[0].mxu0
      %1526 = vmatprep.mubr.f32.mxu0 0.0
      %1527 = vmatmul.mubr.f32.gmra.mrb[0].mxu0 %v1447
      %v1528 = vpop.f32.mrb[0].mxu0
      %v1529 = vadd.f32 0.0, %v1528
      %v1530 = vpop.f32.mrb[0].mxu0
      %1531 = vmatprep.mubr.f32.mxu0 0.0
      %1532 = vmatmul.mubr.f32.gmra.mrb[0].mxu0 %v1450
      %v1533 = vpop.f32.mrb[0].mxu0
      %v1534 = vadd.f32 0.0, %v1533
      %v1535 = vpop.f32.mrb[0].mxu0
      %1536 = vdwg.mxu0
      %1537 = vrot.lane.b32.xlu0 %v688, 104
      %v1538 = vpop.permute.xlu0 %1537
      %1539 = vrot.lane.b32.xlu0 %v693, 104
      %v1540 = vpop.permute.xlu0 %1539
      %1541 = vrot.lane.b32.xlu0 %v698, 104
      %v1542 = vpop.permute.xlu0 %1541
      %1543 = vrot.lane.b32.xlu0 %v703, 104
      %v1544 = vpop.permute.xlu0 %1543
      %1545 = vrot.lane.b32.xlu0 %v688, 72
      %v1546 = vpop.permute.xlu0 %1545
      %1547 = vrot.lane.b32.xlu0 %v693, 72
      %v1548 = vpop.permute.xlu0 %1547
      %1549 = vrot.lane.b32.xlu0 %v698, 72
      %v1550 = vpop.permute.xlu0 %1549
      %1551 = vrot.lane.b32.xlu0 %v703, 72
      %v1552 = vpop.permute.xlu0 %1551
      %v1553 = vsel %vm718, %v1538, 0
      %v1555 = vsel %vm718, %v1540, 0
      %v1557 = vsel %vm718, %v1542, 0
      %v1559 = vsel %vm718, %v1544, 0
      %v1561 = vsel %vm718, %v1546, 0
      %v1563 = vsel %vm718, %v1548, 0
      %v1565 = vsel %vm718, %v1550, 0
      %v1567 = vsel %vm718, %v1552, 0
      %1569 = vmatprep.subr.mxu0 0.0
      %1570 = vmatpush1.xpose.msra.mxu0 %v1561
      %1571 = vmatprep.subr.mxu0 0.0
      %1572 = vmatpush1.xpose.msra.mxu0 %v1563
      %1573 = vmatprep.subr.mxu0 0.0
      %1574 = vmatpush1.xpose.msra.mxu0 %v1565
      %1575 = vmatprep.subr.mxu0 0.0
      %1576 = vmatpush1.xpose.msra.mxu0 %v1567
      %1577 = vmatprep.subr.mxu0 0.0
      %1578 = vmatpush1.xpose.msra.mxu0 0.0
      %1579 = vmatprep.subr.mxu0 0.0
      %1580 = vmatpush1.xpose.msra.mxu0 0.0
      %1581 = vmatprep.subr.mxu0 0.0
      %1582 = vmatpush1.xpose.msra.mxu0 0.0
      %1583 = vmatprep.subr.mxu0 0.0
      %1584 = vmatpush1.xpose.msra.mxu0 0.0
      %1585 = vmatprep.subr.mxu0 0.0
      %1586 = vmatpush1.xpose.msra.mxu0 0.0
      %1587 = vmatprep.subr.mxu0 0.0
      %1588 = vmatpush1.xpose.msra.mxu0 0.0
      %1589 = vmatprep.subr.mxu0 0.0
      %1590 = vmatpush1.xpose.msra.mxu0 0.0
      %1591 = vmatprep.subr.mxu0 0.0
      %1592 = vmatpush1.xpose.msra.mxu0 0.0
      %1593 = vmatprep.subr.mxu0 0.0
      %1594 = vmatpush1.xpose.msra.mxu0 0.0
      %1595 = vmatprep.subr.mxu0 0.0
      %1596 = vmatpush1.xpose.msra.mxu0 0.0
      %1597 = vmatprep.subr.mxu0 0.0
      %1598 = vmatpush1.xpose.msra.mxu0 0.0
      %1599 = vmatprep.subr.mxu0 0.0
      %1600 = vmatpush1.xpose.msra.mxu0 0.0
      %1601 = vmatprep.subr.mxu0 0.0
      %1602 = vmatpush1.xpose.msra.mxu0 0.0
      %1603 = vmatprep.subr.mxu0 0.0
      %1604 = vmatpush1.xpose.msra.mxu0 0.0
      %1605 = vmatprep.subr.mxu0 0.0
      %1606 = vmatpush1.xpose.msra.mxu0 0.0
      %1607 = vmatprep.subr.mxu0 0.0
      %1608 = vmatpush1.xpose.msra.mxu0 0.0
      %1609 = vmatprep.subr.mxu0 0.0
      %1610 = vmatpush1.xpose.msra.mxu0 0.0
      %1611 = vmatprep.subr.mxu0 0.0
      %1612 = vmatpush1.xpose.msra.mxu0 0.0
      %1613 = vmatprep.subr.mxu0 0.0
      %1614 = vmatpush1.xpose.msra.mxu0 0.0
      %1615 = vmatprep.subr.mxu0 0.0
      %1616 = vmatpush1.xpose.msra.mxu0 0.0
      %1617 = vmatprep.subr.mxu0 0.0
      %1618 = vmatpush1.xpose.msra.mxu0 0.0
      %1619 = vmatprep.subr.mxu0 0.0
      %1620 = vmatpush1.xpose.msra.mxu0 0.0
      %1621 = vmatprep.subr.mxu0 0.0
      %1622 = vmatpush1.xpose.msra.mxu0 0.0
      %1623 = vmatprep.subr.mxu0 0.0
      %1624 = vmatpush1.xpose.msra.mxu0 0.0
      %1625 = vmatprep.subr.mxu0 0.0
      %1626 = vmatpush1.xpose.msra.mxu0 0.0
      %1627 = vmatprep.subr.mxu0 0.0
      %1628 = vmatpush1.xpose.msra.mxu0 0.0
      %1629 = vmatprep.subr.mxu0 0.0
      %1630 = vmatpush1.xpose.msra.mxu0 0.0
      %1631 = vmatprep.subr.mxu0 0.0
      %1632 = vmatpush1.xpose.msra.mxu0 0.0
      %1633 = vmatprep.mubr.f32.mxu0 0.0
      %1634 = vmatmul.mubr.f32.gmra.mrb[0].mxu0 %v1553
      %v1635 = vpop.f32.mrb[0].mxu0
      %v1636 = vadd.f32 0.0, %v1635
      %v1637 = vpop.f32.mrb[0].mxu0
      %1638 = vmatprep.mubr.f32.mxu0 0.0
      %1639 = vmatmul.mubr.f32.gmra.mrb[0].mxu0 %v1555
      %v1640 = vpop.f32.mrb[0].mxu0
      %v1641 = vadd.f32 0.0, %v1640
      %v1642 = vpop.f32.mrb[0].mxu0
      %1643 = vmatprep.mubr.f32.mxu0 0.0
      %1644 = vmatmul.mubr.f32.gmra.mrb[0].mxu0 %v1557
      %v1645 = vpop.f32.mrb[0].mxu0
      %v1646 = vadd.f32 0.0, %v1645
      %v1647 = vpop.f32.mrb[0].mxu0
      %1648 = vmatprep.mubr.f32.mxu0 0.0
      %1649 = vmatmul.mubr.f32.gmra.mrb[0].mxu0 %v1559
      %v1650 = vpop.f32.mrb[0].mxu0
      %v1651 = vadd.f32 0.0, %v1650
      %v1652 = vpop.f32.mrb[0].mxu0
      %1653 = vdwg.mxu0
      %v1654 = vmul.f32 %v1636, 0.35355338
      %v1655 = vmul.f32 %v1641, 0.35355338
      %v1656 = vmul.f32 %v1646, 0.35355338
      %v1657 = vmul.f32 %v1651, 0.35355338
      %v1658 = vadd.f32 %v1654, %v527
      %v1659 = vadd.f32 %v1655, %v528
      %v1660 = vadd.f32 %v1656, %v529
      %v1661 = vadd.f32 %v1657, %v530
      %v1662 = vsel %vm531, %v1658, -inf
      %1663 = vmax.xlane.f32.xlu0 %v1662
      %v1664 = vpop.xlane.xlu0 %1663
      %v1665 = vsel %vm531, %v1659, -inf
      %1666 = vmax.xlane.f32.xlu0 %v1665
      %v1667 = vpop.xlane.xlu0 %1666
      %v1668 = vsel %vm531, %v1660, -inf
      %1669 = vmax.xlane.f32.xlu0 %v1668
      %v1670 = vpop.xlane.xlu0 %1669
      %v1671 = vsel %vm531, %v1661, -inf
      %1672 = vmax.xlane.f32.xlu0 %v1671
      %v1673 = vpop.xlane.xlu0 %1672
      %v1674 = vsub.f32 %v1658, %v1664
      %v1675 = vsub.f32 %v1659, %v1667
      %v1676 = vsub.f32 %v1660, %v1670
      %v1677 = vsub.f32 %v1661, %v1673
      %v1678 = vmul.f32 %v1674, 1.442695
      %v1679 = vpow.pop %v1678
      %v1680 = vmul.f32 %v1675, 1.442695
      %v1681 = vpow.pop %v1680
      %v1682 = vmul.f32 %v1676, 1.442695
      %v1683 = vpow.pop %v1682
      %v1684 = vmul.f32 %v1677, 1.442695
      %v1685 = vpow.pop %v1684
      %v1686 = vsel %vm531, %v1679, 0.0
      %1687 = vadd.xlane.f32.xlu0 %v1686
      %v1688 = vpop.xlane.xlu0 %1687
      %v1689 = vsel %vm531, %v1681, 0.0
      %1690 = vadd.xlane.f32.xlu0 %v1689
      %v1691 = vpop.xlane.xlu0 %1690
      %v1692 = vsel %vm531, %v1683, 0.0
      %1693 = vadd.xlane.f32.xlu0 %v1692
      %v1694 = vpop.xlane.xlu0 %1693
      %v1695 = vsel %vm531, %v1685, 0.0
      %1696 = vadd.xlane.f32.xlu0 %v1695
      %v1697 = vpop.xlane.xlu0 %1696
      %v1698 = vrcp.pop %v1688
      %v1699 = vmul.f32 %v1679, %v1698
      %v1700 = vrcp.pop %v1691
      %v1701 = vmul.f32 %v1681, %v1700
      %v1702 = vrcp.pop %v1694
      %v1703 = vmul.f32 %v1683, %v1702
      %v1704 = vrcp.pop %v1697
      %v1705 = vmul.f32 %v1685, %v1704
      %1706 = vrot.lane.b32.xlu0 %v688, 40
      %v1707 = vpop.permute.xlu0 %1706
      %1708 = vrot.lane.b32.xlu0 %v693, 40
      %v1709 = vpop.permute.xlu0 %1708
      %1710 = vrot.lane.b32.xlu0 %v698, 40
      %v1711 = vpop.permute.xlu0 %1710
      %1712 = vrot.lane.b32.xlu0 %v703, 40
      %v1713 = vpop.permute.xlu0 %1712
      %v1719 = vsel %vm531, %v1699, 0
      %v1722 = vsel %vm531, %v1701, 0
      %v1725 = vsel %vm531, %v1703, 0
      %v1728 = vsel %vm531, %v1705, 0
      %1730 = vmatprep.subr.mxu0 0.0
      %1731 = vmatpush1.msra.mxu0 %v1707
      %1732 = vmatprep.subr.mxu0 0.0
      %1733 = vmatpush1.msra.mxu0 %v1709
      %1734 = vmatprep.subr.mxu0 0.0
      %1735 = vmatpush1.msra.mxu0 %v1711
      %1736 = vmatprep.subr.mxu0 0.0
      %1737 = vmatpush1.msra.mxu0 %v1713
      %1738 = vmatprep.subr.mxu0 0.0
      %1739 = vmatpush1.msra.mxu0 0.0
      %1740 = vmatprep.subr.mxu0 0.0
      %1741 = vmatpush1.msra.mxu0 0.0
      %1742 = vmatprep.subr.mxu0 0.0
      %1743 = vmatpush1.msra.mxu0 0.0
      %1744 = vmatprep.subr.mxu0 0.0
      %1745 = vmatpush1.msra.mxu0 0.0
      %1746 = vmatprep.subr.mxu0 0.0
      %1747 = vmatpush1.msra.mxu0 0.0
      %1748 = vmatprep.subr.mxu0 0.0
      %1749 = vmatpush1.msra.mxu0 0.0
      %1750 = vmatprep.subr.mxu0 0.0
      %1751 = vmatpush1.msra.mxu0 0.0
      %1752 = vmatprep.subr.mxu0 0.0
      %1753 = vmatpush1.msra.mxu0 0.0
      %1754 = vmatprep.subr.mxu0 0.0
      %1755 = vmatpush1.msra.mxu0 0.0
      %1756 = vmatprep.subr.mxu0 0.0
      %1757 = vmatpush1.msra.mxu0 0.0
      %1758 = vmatprep.subr.mxu0 0.0
      %1759 = vmatpush1.msra.mxu0 0.0
      %1760 = vmatprep.subr.mxu0 0.0
      %1761 = vmatpush1.msra.mxu0 0.0
      %1762 = vmatprep.subr.mxu0 0.0
      %1763 = vmatpush1.msra.mxu0 0.0
      %1764 = vmatprep.subr.mxu0 0.0
      %1765 = vmatpush1.msra.mxu0 0.0
      %1766 = vmatprep.subr.mxu0 0.0
      %1767 = vmatpush1.msra.mxu0 0.0
      %1768 = vmatprep.subr.mxu0 0.0
      %1769 = vmatpush1.msra.mxu0 0.0
      %1770 = vmatprep.subr.mxu0 0.0
      %1771 = vmatpush1.msra.mxu0 0.0
      %1772 = vmatprep.subr.mxu0 0.0
      %1773 = vmatpush1.msra.mxu0 0.0
      %1774 = vmatprep.subr.mxu0 0.0
      %1775 = vmatpush1.msra.mxu0 0.0
      %1776 = vmatprep.subr.mxu0 0.0
      %1777 = vmatpush1.msra.mxu0 0.0
      %1778 = vmatprep.subr.mxu0 0.0
      %1779 = vmatpush1.msra.mxu0 0.0
      %1780 = vmatprep.subr.mxu0 0.0
      %1781 = vmatpush1.msra.mxu0 0.0
      %1782 = vmatprep.subr.mxu0 0.0
      %1783 = vmatpush1.msra.mxu0 0.0
      %1784 = vmatprep.subr.mxu0 0.0
      %1785 = vmatpush1.msra.mxu0 0.0
      %1786 = vmatprep.subr.mxu0 0.0
      %1787 = vmatpush1.msra.mxu0 0.0
      %1788 = vmatprep.subr.mxu0 0.0
      %1789 = vmatpush1.msra.mxu0 0.0
      %1790 = vmatprep.subr.mxu0 0.0
      %1791 = vmatpush1.msra.mxu0 0.0
      %1792 = vmatprep.subr.mxu0 0.0
      %1793 = vmatpush1.msra.mxu0 0.0
      %1794 = vmatprep.mubr.f32.mxu0 0.0
      %1795 = vmatmul.mubr.f32.gmra.mrb[0].mxu0 %v1719
      %v1796 = vpop.f32.mrb[0].mxu0
      %v1797 = vadd.f32 0.0, %v1796
      %v1798 = vpop.f32.mrb[0].mxu0
      %1799 = vmatprep.mubr.f32.mxu0 0.0
      %1800 = vmatmul.mubr.f32.gmra.mrb[0].mxu0 %v1722
      %v1801 = vpop.f32.mrb[0].mxu0
      %v1802 = vadd.f32 0.0, %v1801
      %v1803 = vpop.f32.mrb[0].mxu0
      %1804 = vmatprep.mubr.f32.mxu0 0.0
      %1805 = vmatmul.mubr.f32.gmra.mrb[0].mxu0 %v1725
      %v1806 = vpop.f32.mrb[0].mxu0
      %v1807 = vadd.f32 0.0, %v1806
      %v1808 = vpop.f32.mrb[0].mxu0
      %1809 = vmatprep.mubr.f32.mxu0 0.0
      %1810 = vmatmul.mubr.f32.gmra.mrb[0].mxu0 %v1728
      %v1811 = vpop.f32.mrb[0].mxu0
      %v1812 = vadd.f32 0.0, %v1811
      %v1813 = vpop.f32.mrb[0].mxu0
      %1814 = vdwg.mxu0
      %1819 = vrot.lane.b32.xlu0 %v1241, 8
      %v1820 = vpop.permute.xlu0 %1819
      %1821 = vrot.lane.b32.xlu0 %v1246, 8
      %v1822 = vpop.permute.xlu0 %1821
      %1823 = vrot.lane.b32.xlu0 %v1251, 8
      %v1824 = vpop.permute.xlu0 %1823
      %1825 = vrot.lane.b32.xlu0 %v1256, 8
      %v1826 = vpop.permute.xlu0 %1825
      %1835 = vrot.lane.b32.xlu0 %v1519, 16
      %v1836 = vpop.permute.xlu0 %1835
      %1837 = vrot.lane.b32.xlu0 %v1524, 16
      %v1838 = vpop.permute.xlu0 %1837
      %1839 = vrot.lane.b32.xlu0 %v1529, 16
      %v1840 = vpop.permute.xlu0 %1839
      %1841 = vrot.lane.b32.xlu0 %v1534, 16
      %v1842 = vpop.permute.xlu0 %1841
      %1851 = vrot.lane.b32.xlu0 %v1797, 24
      %v1852 = vpop.permute.xlu0 %1851
      %1853 = vrot.lane.b32.xlu0 %v1802, 24
      %v1854 = vpop.permute.xlu0 %1853
      %1855 = vrot.lane.b32.xlu0 %v1807, 24
      %v1856 = vpop.permute.xlu0 %1855
      %1857 = vrot.lane.b32.xlu0 %v1812, 24
      %v1858 = vpop.permute.xlu0 %1857
      %v1863 = vsel %vm718, %v963, %v1820
      %v1864 = vsel %vm718, %v968, %v1822
      %v1865 = vsel %vm718, %v973, %v1824
      %v1866 = vsel %vm718, %v978, %v1826
      %vm1867 = vcmask 130048
      %v1868 = vsel %vm1867, %v1863, %v1836
      %v1869 = vsel %vm1867, %v1864, %v1838
      %v1870 = vsel %vm1867, %v1865, %v1840
      %v1871 = vsel %vm1867, %v1866, %v1842
      %vm1872 = vcmask 195584
      %v1873 = vsel %vm1872, %v1868, %v1852
      %v1874 = vsel %vm1872, %v1869, %v1854
      %v1875 = vsel %vm1872, %v1870, %v1856
      %v1876 = vsel %vm1872, %v1871, %v1858
      %v1877 = vld [vmem:[%s5] sm:$0xff]
      %v1878 = vld [vmem:[%s5 + $0x8] sm:$0xff]
      %v1879 = vld [vmem:[%s5 + $0x10] sm:$0xff]
      %v1880 = vld [vmem:[%s5 + $0x18] sm:$0xff]
      %v1882 = vsel %vm531, %v1873, 0
      %v1885 = vsel %vm531, %v1874, 0
      %v1888 = vsel %vm531, %v1875, 0
      %v1891 = vsel %vm531, %v1876, 0
      %1893 = vmatprep.subr.mxu0 0.0
      %1894 = vmatpush1.msra.mxu0 %v1877
      %1895 = vmatprep.subr.mxu0 0.0
      %1896 = vmatpush1.msra.mxu0 %v1878
      %1897 = vmatprep.subr.mxu0 0.0
      %1898 = vmatpush1.msra.mxu0 %v1879
      %1899 = vmatprep.subr.mxu0 0.0
      %1900 = vmatpush1.msra.mxu0 %v1880
      %1901 = vmatprep.subr.mxu0 0.0
      %1902 = vmatpush1.msra.mxu0 0.0
      %1903 = vmatprep.subr.mxu0 0.0
      %1904 = vmatpush1.msra.mxu0 0.0
      %1905 = vmatprep.subr.mxu0 0.0
      %1906 = vmatpush1.msra.mxu0 0.0
      %1907 = vmatprep.subr.mxu0 0.0
      %1908 = vmatpush1.msra.mxu0 0.0
      %1909 = vmatprep.subr.mxu0 0.0
      %1910 = vmatpush1.msra.mxu0 0.0
      %1911 = vmatprep.subr.mxu0 0.0
      %1912 = vmatpush1.msra.mxu0 0.0
      %1913 = vmatprep.subr.mxu0 0.0
      %1914 = vmatpush1.msra.mxu0 0.0
      %1915 = vmatprep.subr.mxu0 0.0
      %1916 = vmatpush1.msra.mxu0 0.0
      %1917 = vmatprep.subr.mxu0 0.0
      %1918 = vmatpush1.msra.mxu0 0.0
      %1919 = vmatprep.subr.mxu0 0.0
      %1920 = vmatpush1.msra.mxu0 0.0
      %1921 = vmatprep.subr.mxu0 0.0
      %1922 = vmatpush1.msra.mxu0 0.0
      %1923 = vmatprep.subr.mxu0 0.0
      %1924 = vmatpush1.msra.mxu0 0.0
      %1925 = vmatprep.subr.mxu0 0.0
      %1926 = vmatpush1.msra.mxu0 0.0
      %1927 = vmatprep.subr.mxu0 0.0
      %1928 = vmatpush1.msra.mxu0 0.0
      %1929 = vmatprep.subr.mxu0 0.0
      %1930 = vmatpush1.msra.mxu0 0.0
      %1931 = vmatprep.subr.mxu0 0.0
      %1932 = vmatpush1.msra.mxu0 0.0
      %1933 = vmatprep.subr.mxu0 0.0
      %1934 = vmatpush1.msra.mxu0 0.0
      %1935 = vmatprep.subr.mxu0 0.0
      %1936 = vmatpush1.msra.mxu0 0.0
      %1937 = vmatprep.subr.mxu0 0.0
      %1938 = vmatpush1.msra.mxu0 0.0
      %1939 = vmatprep.subr.mxu0 0.0
      %1940 = vmatpush1.msra.mxu0 0.0
      %1941 = vmatprep.subr.mxu0 0.0
      %1942 = vmatpush1.msra.mxu0 0.0
      %1943 = vmatprep.subr.mxu0 0.0
      %1944 = vmatpush1.msra.mxu0 0.0
      %1945 = vmatprep.subr.mxu0 0.0
      %1946 = vmatpush1.msra.mxu0 0.0
      %1947 = vmatprep.subr.mxu0 0.0
      %1948 = vmatpush1.msra.mxu0 0.0
      %1949 = vmatprep.subr.mxu0 0.0
      %1950 = vmatpush1.msra.mxu0 0.0
      %1951 = vmatprep.subr.mxu0 0.0
      %1952 = vmatpush1.msra.mxu0 0.0
      %1953 = vmatprep.subr.mxu0 0.0
      %1954 = vmatpush1.msra.mxu0 0.0
      %1955 = vmatprep.subr.mxu0 0.0
      %1956 = vmatpush1.msra.mxu0 0.0
      %1957 = vmatprep.mubr.f32.mxu0 0.0
      %1958 = vmatmul.mubr.f32.gmra.mrb[0].mxu0 %v1882
      %v1959 = vpop.f32.mrb[0].mxu0
      %v1960 = vadd.f32 0.0, %v1959
      %v1961 = vpop.f32.mrb[0].mxu0
      %1962 = vmatprep.mubr.f32.mxu0 0.0
      %1963 = vmatmul.mubr.f32.gmra.mrb[0].mxu0 %v1885
      %v1964 = vpop.f32.mrb[0].mxu0
      %v1965 = vadd.f32 0.0, %v1964
      %v1966 = vpop.f32.mrb[0].mxu0
      %1967 = vmatprep.mubr.f32.mxu0 0.0
      %1968 = vmatmul.mubr.f32.gmra.mrb[0].mxu0 %v1888
      %v1969 = vpop.f32.mrb[0].mxu0
      %v1970 = vadd.f32 0.0, %v1969
      %v1971 = vpop.f32.mrb[0].mxu0
      %1972 = vmatprep.mubr.f32.mxu0 0.0
      %1973 = vmatmul.mubr.f32.gmra.mrb[0].mxu0 %v1891
      %v1974 = vpop.f32.mrb[0].mxu0
      %v1975 = vadd.f32 0.0, %v1974
      %v1976 = vpop.f32.mrb[0].mxu0
      %1977 = vdwg.mxu0
      %v1978 = vadd.f32 %v503, %v1960
      %v1979 = vadd.f32 %v504, %v1965
      %v1980 = vadd.f32 %v505, %v1970
      %v1981 = vadd.f32 %v506, %v1975
      %v1982 = vlaneseq
      %v1983 = vshrl.u32 %v1982, 7
      %v1984 = vsub.s32 3, %v1983
      %v1985 = vrot.slane %v367, %v1984
      %v1986 = vadd.f32 %v1978, %v1985
      %v1987 = vadd.f32 %v1979, %v1985
      %v1988 = vadd.f32 %v1980, %v1985
      %v1989 = vadd.f32 %v1981, %v1985
      %v1990 = vsel %vm531, %v1986, 0.0
      %1991 = vadd.xlane.f32.xlu0 %v1990
      %v1992 = vpop.xlane.xlu0 %1991
      %v1993 = vsel %vm531, %v1987, 0.0
      %1994 = vadd.xlane.f32.xlu0 %v1993
      %v1995 = vpop.xlane.xlu0 %1994
      %v1996 = vsel %vm531, %v1988, 0.0
      %1997 = vadd.xlane.f32.xlu0 %v1996
      %v1998 = vpop.xlane.xlu0 %1997
      %v1999 = vsel %vm531, %v1989, 0.0
      %2000 = vadd.xlane.f32.xlu0 %v1999
      %v2001 = vpop.xlane.xlu0 %2000
      %v2002 = vmul.f32 %v1992, %v544
      %v2003 = vmul.f32 %v1995, %v544
      %v2004 = vmul.f32 %v1998, %v544
      %v2005 = vmul.f32 %v2001, %v544
      %v2006 = vsub.f32 %v1986, %v2002
      %v2007 = vsub.f32 %v1987, %v2003
      %v2008 = vsub.f32 %v1988, %v2004
      %v2009 = vsub.f32 %v1989, %v2005
      %v2010 = vmul.f32 %v2006, %v2006
      %v2011 = vmul.f32 %v2007, %v2007
      %v2012 = vmul.f32 %v2008, %v2008
      %v2013 = vmul.f32 %v2009, %v2009
      %v2014 = vsel %vm531, %v2010, 0.0
      %2015 = vadd.xlane.f32.xlu0 %v2014
      %v2016 = vpop.xlane.xlu0 %2015
      %v2017 = vsel %vm531, %v2011, 0.0
      %2018 = vadd.xlane.f32.xlu0 %v2017
      %v2019 = vpop.xlane.xlu0 %2018
      %v2020 = vsel %vm531, %v2012, 0.0
      %2021 = vadd.xlane.f32.xlu0 %v2020
      %v2022 = vpop.xlane.xlu0 %2021
      %v2023 = vsel %vm531, %v2013, 0.0
      %2024 = vadd.xlane.f32.xlu0 %v2023
      %v2025 = vpop.xlane.xlu0 %2024
      %v2026 = vmul.f32 %v2016, %v544
      %v2027 = vmul.f32 %v2019, %v544
      %v2028 = vmul.f32 %v2022, %v544
      %v2029 = vmul.f32 %v2025, %v544
      %v2030 = vadd.f32 %v2026, 1e-05
      %v2031 = vadd.f32 %v2027, 1e-05
      %v2032 = vadd.f32 %v2028, 1e-05
      %v2033 = vadd.f32 %v2029, 1e-05
      %v2034 = vrsqrt.pop %v2030
      %v2035 = vrsqrt.pop %v2031
      %v2036 = vrsqrt.pop %v2032
      %v2037 = vrsqrt.pop %v2033
      %v2038 = vmul.f32 %v2006, %v2034
      %v2039 = vmul.f32 %v2007, %v2035
      %v2040 = vmul.f32 %v2008, %v2036
      %v2041 = vmul.f32 %v2009, %v2037
      %v2042 = vlaneseq
      %v2043 = vshrl.u32 %v2042, 7
      %v2044 = vsub.s32 4, %v2043
      %v2045 = vrot.slane %v367, %v2044
      %v2046 = vmul.f32 %v2038, %v2045
      %v2047 = vmul.f32 %v2039, %v2045
      %v2048 = vmul.f32 %v2040, %v2045
      %v2049 = vmul.f32 %v2041, %v2045
      %v2050 = vlaneseq
      %v2051 = vshrl.u32 %v2050, 7
      %v2052 = vsub.s32 5, %v2051
      %v2053 = vrot.slane %v367, %v2052
      %v2054 = vadd.f32 %v2046, %v2053
      %v2055 = vadd.f32 %v2047, %v2053
      %v2056 = vadd.f32 %v2048, %v2053
      %v2057 = vadd.f32 %v2049, %v2053
      %v2058 = vld [vmem:[%s6] sm:$0xff]
      %v2059 = vld [vmem:[%s6 + $0x8] sm:$0xff]
      %v2060 = vld [vmem:[%s6 + $0x10] sm:$0xff]
      %v2061 = vld [vmem:[%s6 + $0x18] sm:$0xff]
      %v2062 = vlaneseq
      %v2063 = vshrl.u32 %v2062, 7
      %v2064 = vsub.s32 6, %v2063
      %v2065 = vrot.slane %v367, %v2064
      %v2067 = vsel %vm531, %v2054, 0
      %v2070 = vsel %vm531, %v2055, 0
      %v2073 = vsel %vm531, %v2056, 0
      %v2076 = vsel %vm531, %v2057, 0
      %2078 = vmatprep.subr.mxu0 0.0
      %2079 = vmatpush1.msra.mxu0 %v2058
      %2080 = vmatprep.subr.mxu0 0.0
      %2081 = vmatpush1.msra.mxu0 %v2059
      %2082 = vmatprep.subr.mxu0 0.0
      %2083 = vmatpush1.msra.mxu0 %v2060
      %2084 = vmatprep.subr.mxu0 0.0
      %2085 = vmatpush1.msra.mxu0 %v2061
      %2086 = vmatprep.subr.mxu0 0.0
      %2087 = vmatpush1.msra.mxu0 0.0
      %2088 = vmatprep.subr.mxu0 0.0
      %2089 = vmatpush1.msra.mxu0 0.0
      %2090 = vmatprep.subr.mxu0 0.0
      %2091 = vmatpush1.msra.mxu0 0.0
      %2092 = vmatprep.subr.mxu0 0.0
      %2093 = vmatpush1.msra.mxu0 0.0
      %2094 = vmatprep.subr.mxu0 0.0
      %2095 = vmatpush1.msra.mxu0 0.0
      %2096 = vmatprep.subr.mxu0 0.0
      %2097 = vmatpush1.msra.mxu0 0.0
      %2098 = vmatprep.subr.mxu0 0.0
      %2099 = vmatpush1.msra.mxu0 0.0
      %2100 = vmatprep.subr.mxu0 0.0
      %2101 = vmatpush1.msra.mxu0 0.0
      %2102 = vmatprep.subr.mxu0 0.0
      %2103 = vmatpush1.msra.mxu0 0.0
      %2104 = vmatprep.subr.mxu0 0.0
      %2105 = vmatpush1.msra.mxu0 0.0
      %2106 = vmatprep.subr.mxu0 0.0
      %2107 = vmatpush1.msra.mxu0 0.0
      %2108 = vmatprep.subr.mxu0 0.0
      %2109 = vmatpush1.msra.mxu0 0.0
      %2110 = vmatprep.subr.mxu0 0.0
      %2111 = vmatpush1.msra.mxu0 0.0
      %2112 = vmatprep.subr.mxu0 0.0
      %2113 = vmatpush1.msra.mxu0 0.0
      %2114 = vmatprep.subr.mxu0 0.0
      %2115 = vmatpush1.msra.mxu0 0.0
      %2116 = vmatprep.subr.mxu0 0.0
      %2117 = vmatpush1.msra.mxu0 0.0
      %2118 = vmatprep.subr.mxu0 0.0
      %2119 = vmatpush1.msra.mxu0 0.0
      %2120 = vmatprep.subr.mxu0 0.0
      %2121 = vmatpush1.msra.mxu0 0.0
      %2122 = vmatprep.subr.mxu0 0.0
      %2123 = vmatpush1.msra.mxu0 0.0
      %2124 = vmatprep.subr.mxu0 0.0
      %2125 = vmatpush1.msra.mxu0 0.0
      %2126 = vmatprep.subr.mxu0 0.0
      %2127 = vmatpush1.msra.mxu0 0.0
      %2128 = vmatprep.subr.mxu0 0.0
      %2129 = vmatpush1.msra.mxu0 0.0
      %2130 = vmatprep.subr.mxu0 0.0
      %2131 = vmatpush1.msra.mxu0 0.0
      %2132 = vmatprep.subr.mxu0 0.0
      %2133 = vmatpush1.msra.mxu0 0.0
      %2134 = vmatprep.subr.mxu0 0.0
      %2135 = vmatpush1.msra.mxu0 0.0
      %2136 = vmatprep.subr.mxu0 0.0
      %2137 = vmatpush1.msra.mxu0 0.0
      %2138 = vmatprep.subr.mxu0 0.0
      %2139 = vmatpush1.msra.mxu0 0.0
      %2140 = vmatprep.subr.mxu0 0.0
      %2141 = vmatpush1.msra.mxu0 0.0
      %2142 = vmatprep.mubr.f32.mxu0 0.0
      %2143 = vmatmul.mubr.f32.gmra.mrb[0].mxu0 %v2067
      %v2144 = vpop.f32.mrb[0].mxu0
      %v2145 = vadd.f32 %v2065, %v2144
      %v2146 = vpop.f32.mrb[0].mxu0
      %2147 = vmatprep.mubr.f32.mxu0 0.0
      %2148 = vmatmul.mubr.f32.gmra.mrb[0].mxu0 %v2070
      %v2149 = vpop.f32.mrb[0].mxu0
      %v2150 = vadd.f32 %v2065, %v2149
      %v2151 = vpop.f32.mrb[0].mxu0
      %2152 = vmatprep.mubr.f32.mxu0 0.0
      %2153 = vmatmul.mubr.f32.gmra.mrb[0].mxu0 %v2073
      %v2154 = vpop.f32.mrb[0].mxu0
      %v2155 = vadd.f32 %v2065, %v2154
      %v2156 = vpop.f32.mrb[0].mxu0
      %2157 = vmatprep.mubr.f32.mxu0 0.0
      %2158 = vmatmul.mubr.f32.gmra.mrb[0].mxu0 %v2076
      %v2159 = vpop.f32.mrb[0].mxu0
      %v2160 = vadd.f32 %v2065, %v2159
      %v2161 = vpop.f32.mrb[0].mxu0
      %2162 = vdwg.mxu0
      %v2163 = vmul.f32 %v2145, 0.5
      %v2164 = vmul.f32 %v2150, 0.5
      %v2165 = vmul.f32 %v2155, 0.5
      %v2166 = vmul.f32 %v2160, 0.5
      %v2167 = vmul.f32 %v2145, 0.044715
      %v2168 = vmul.f32 %v2150, 0.044715
      %v2169 = vmul.f32 %v2155, 0.044715
      %v2170 = vmul.f32 %v2160, 0.044715
      %v2171 = vmul.f32 %v2167, %v2145
      %v2172 = vmul.f32 %v2168, %v2150
      %v2173 = vmul.f32 %v2169, %v2155
      %v2174 = vmul.f32 %v2170, %v2160
      %v2175 = vmul.f32 %v2171, %v2145
      %v2176 = vmul.f32 %v2172, %v2150
      %v2177 = vmul.f32 %v2173, %v2155
      %v2178 = vmul.f32 %v2174, %v2160
      %v2179 = vadd.f32 %v2145, %v2175
      %v2180 = vadd.f32 %v2150, %v2176
      %v2181 = vadd.f32 %v2155, %v2177
      %v2182 = vadd.f32 %v2160, %v2178
      %v2183 = vmul.f32 %v2179, 0.7978846
      %v2184 = vmul.f32 %v2180, 0.7978846
      %v2185 = vmul.f32 %v2181, 0.7978846
      %v2186 = vmul.f32 %v2182, 0.7978846
      %v2187 = vtanh.pop %v2183
      %v2188 = vtanh.pop %v2184
      %v2189 = vtanh.pop %v2185
      %v2190 = vtanh.pop %v2186
      %v2191 = vadd.f32 %v2187, 1.0
      %v2192 = vadd.f32 %v2188, 1.0
      %v2193 = vadd.f32 %v2189, 1.0
      %v2194 = vadd.f32 %v2190, 1.0
      %v2195 = vmul.f32 %v2163, %v2191
      %v2196 = vmul.f32 %v2164, %v2192
      %v2197 = vmul.f32 %v2165, %v2193
      %v2198 = vmul.f32 %v2166, %v2194
      %v2199 = vld [vmem:[%s7] sm:$0xff]
      %v2200 = vld [vmem:[%s7 + $0x8] sm:$0xff]
      %v2201 = vld [vmem:[%s7 + $0x10] sm:$0xff]
      %v2202 = vld [vmem:[%s7 + $0x18] sm:$0xff]
      %v2203 = vld [vmem:[%s7 + $0x20] sm:$0xff]
      %v2204 = vld [vmem:[%s7 + $0x28] sm:$0xff]
      %v2205 = vld [vmem:[%s7 + $0x30] sm:$0xff]
      %v2206 = vld [vmem:[%s7 + $0x38] sm:$0xff]
      %vm2207 = vcmask 523264
      %v2209 = vsel %vm2207, %v2195, 0
      %v2212 = vsel %vm2207, %v2196, 0
      %v2215 = vsel %vm2207, %v2197, 0
      %v2218 = vsel %vm2207, %v2198, 0
      %2220 = vmatprep.subr.mxu0 0.0
      %2221 = vmatpush1.msra.mxu0 %v2199
      %2222 = vmatprep.subr.mxu0 0.0
      %2223 = vmatpush1.msra.mxu0 %v2200
      %2224 = vmatprep.subr.mxu0 0.0
      %2225 = vmatpush1.msra.mxu0 %v2201
      %2226 = vmatprep.subr.mxu0 0.0
      %2227 = vmatpush1.msra.mxu0 %v2202
      %2228 = vmatprep.subr.mxu0 0.0
      %2229 = vmatpush1.msra.mxu0 %v2203
      %2230 = vmatprep.subr.mxu0 0.0
      %2231 = vmatpush1.msra.mxu0 %v2204
      %2232 = vmatprep.subr.mxu0 0.0
      %2233 = vmatpush1.msra.mxu0 %v2205
      %2234 = vmatprep.subr.mxu0 0.0
      %2235 = vmatpush1.msra.mxu0 %v2206
      %2236 = vmatprep.subr.mxu0 0.0
      %2237 = vmatpush1.msra.mxu0 0.0
      %2238 = vmatprep.subr.mxu0 0.0
      %2239 = vmatpush1.msra.mxu0 0.0
      %2240 = vmatprep.subr.mxu0 0.0
      %2241 = vmatpush1.msra.mxu0 0.0
      %2242 = vmatprep.subr.mxu0 0.0
      %2243 = vmatpush1.msra.mxu0 0.0
      %2244 = vmatprep.subr.mxu0 0.0
      %2245 = vmatpush1.msra.mxu0 0.0
      %2246 = vmatprep.subr.mxu0 0.0
      %2247 = vmatpush1.msra.mxu0 0.0
      %2248 = vmatprep.subr.mxu0 0.0
      %2249 = vmatpush1.msra.mxu0 0.0
      %2250 = vmatprep.subr.mxu0 0.0
      %2251 = vmatpush1.msra.mxu0 0.0
      %2252 = vmatprep.subr.mxu0 0.0
      %2253 = vmatpush1.msra.mxu0 0.0
      %2254 = vmatprep.subr.mxu0 0.0
      %2255 = vmatpush1.msra.mxu0 0.0
      %2256 = vmatprep.subr.mxu0 0.0
      %2257 = vmatpush1.msra.mxu0 0.0
      %2258 = vmatprep.subr.mxu0 0.0
      %2259 = vmatpush1.msra.mxu0 0.0
      %2260 = vmatprep.subr.mxu0 0.0
      %2261 = vmatpush1.msra.mxu0 0.0
      %2262 = vmatprep.subr.mxu0 0.0
      %2263 = vmatpush1.msra.mxu0 0.0
      %2264 = vmatprep.subr.mxu0 0.0
      %2265 = vmatpush1.msra.mxu0 0.0
      %2266 = vmatprep.subr.mxu0 0.0
      %2267 = vmatpush1.msra.mxu0 0.0
      %2268 = vmatprep.subr.mxu0 0.0
      %2269 = vmatpush1.msra.mxu0 0.0
      %2270 = vmatprep.subr.mxu0 0.0
      %2271 = vmatpush1.msra.mxu0 0.0
      %2272 = vmatprep.subr.mxu0 0.0
      %2273 = vmatpush1.msra.mxu0 0.0
      %2274 = vmatprep.subr.mxu0 0.0
      %2275 = vmatpush1.msra.mxu0 0.0
      %2276 = vmatprep.subr.mxu0 0.0
      %2277 = vmatpush1.msra.mxu0 0.0
      %2278 = vmatprep.subr.mxu0 0.0
      %2279 = vmatpush1.msra.mxu0 0.0
      %2280 = vmatprep.subr.mxu0 0.0
      %2281 = vmatpush1.msra.mxu0 0.0
      %2282 = vmatprep.subr.mxu0 0.0
      %2283 = vmatpush1.msra.mxu0 0.0
      %2284 = vmatprep.mubr.f32.mxu0 0.0
      %2285 = vmatmul.mubr.f32.gmra.mrb[0].mxu0 %v2209
      %v2286 = vpop.f32.mrb[0].mxu0
      %v2287 = vadd.f32 0.0, %v2286
      %v2288 = vpop.f32.mrb[0].mxu0
      %2289 = vmatprep.mubr.f32.mxu0 0.0
      %2290 = vmatmul.mubr.f32.gmra.mrb[0].mxu0 %v2212
      %v2291 = vpop.f32.mrb[0].mxu0
      %v2292 = vadd.f32 0.0, %v2291
      %v2293 = vpop.f32.mrb[0].mxu0
      %2294 = vmatprep.mubr.f32.mxu0 0.0
      %2295 = vmatmul.mubr.f32.gmra.mrb[0].mxu0 %v2215
      %v2296 = vpop.f32.mrb[0].mxu0
      %v2297 = vadd.f32 0.0, %v2296
      %v2298 = vpop.f32.mrb[0].mxu0
      %2299 = vmatprep.mubr.f32.mxu0 0.0
      %2300 = vmatmul.mubr.f32.gmra.mrb[0].mxu0 %v2218
      %v2301 = vpop.f32.mrb[0].mxu0
      %v2302 = vadd.f32 0.0, %v2301
      %v2303 = vpop.f32.mrb[0].mxu0
      %2304 = vdwg.mxu0
      %v2305 = vadd.f32 %v1986, %v2287
      %v2306 = vadd.f32 %v1987, %v2292
      %v2307 = vadd.f32 %v1988, %v2297
      %v2308 = vadd.f32 %v1989, %v2302
      %v2309 = vlaneseq
      %v2310 = vshrl.u32 %v2309, 7
      %v2311 = vsub.s32 7, %v2310
      %v2312 = vrot.slane %v367, %v2311
      %v2313 = vadd.f32 %v2305, %v2312
      %v2314 = vadd.f32 %v2306, %v2312
      %v2315 = vadd.f32 %v2307, %v2312
      %v2316 = vadd.f32 %v2308, %v2312
      %v2317 = vsel %vm531, %v2313, 0.0
      %2318 = vadd.xlane.f32.xlu0 %v2317
      %v2319 = vpop.xlane.xlu0 %2318
      %v2320 = vsel %vm531, %v2314, 0.0
      %2321 = vadd.xlane.f32.xlu0 %v2320
      %v2322 = vpop.xlane.xlu0 %2321
      %v2323 = vsel %vm531, %v2315, 0.0
      %2324 = vadd.xlane.f32.xlu0 %v2323
      %v2325 = vpop.xlane.xlu0 %2324
      %v2326 = vsel %vm531, %v2316, 0.0
      %2327 = vadd.xlane.f32.xlu0 %v2326
      %v2328 = vpop.xlane.xlu0 %2327
      %v2329 = vmul.f32 %v2319, %v544
      %v2330 = vmul.f32 %v2322, %v544
      %v2331 = vmul.f32 %v2325, %v544
      %v2332 = vmul.f32 %v2328, %v544
      %v2333 = vsub.f32 %v2313, %v2329
      %v2334 = vsub.f32 %v2314, %v2330
      %v2335 = vsub.f32 %v2315, %v2331
      %v2336 = vsub.f32 %v2316, %v2332
      %v2337 = vmul.f32 %v2333, %v2333
      %v2338 = vmul.f32 %v2334, %v2334
      %v2339 = vmul.f32 %v2335, %v2335
      %v2340 = vmul.f32 %v2336, %v2336
      %v2341 = vsel %vm531, %v2337, 0.0
      %2342 = vadd.xlane.f32.xlu0 %v2341
      %v2343 = vpop.xlane.xlu0 %2342
      %v2344 = vsel %vm531, %v2338, 0.0
      %2345 = vadd.xlane.f32.xlu0 %v2344
      %v2346 = vpop.xlane.xlu0 %2345
      %v2347 = vsel %vm531, %v2339, 0.0
      %2348 = vadd.xlane.f32.xlu0 %v2347
      %v2349 = vpop.xlane.xlu0 %2348
      %v2350 = vsel %vm531, %v2340, 0.0
      %2351 = vadd.xlane.f32.xlu0 %v2350
      %v2352 = vpop.xlane.xlu0 %2351
      %v2353 = vmul.f32 %v2343, %v544
      %v2354 = vmul.f32 %v2346, %v544
      %v2355 = vmul.f32 %v2349, %v544
      %v2356 = vmul.f32 %v2352, %v544
      %v2357 = vadd.f32 %v2353, 1e-05
      %v2358 = vadd.f32 %v2354, 1e-05
      %v2359 = vadd.f32 %v2355, 1e-05
      %v2360 = vadd.f32 %v2356, 1e-05
      %v2361 = vrsqrt.pop %v2357
      %v2362 = vrsqrt.pop %v2358
      %v2363 = vrsqrt.pop %v2359
      %v2364 = vrsqrt.pop %v2360
      %v2365 = vmul.f32 %v2333, %v2361
      %v2366 = vmul.f32 %v2334, %v2362
      %v2367 = vmul.f32 %v2335, %v2363
      %v2368 = vmul.f32 %v2336, %v2364
      %v2369 = vlaneseq
      %v2370 = vshrl.u32 %v2369, 7
      %v2371 = vsub.s32 0, %v2370
      %v2372 = vrot.slane %v368, %v2371
      %v2373 = vmul.f32 %v2365, %v2372
      %v2374 = vmul.f32 %v2366, %v2372
      %v2375 = vmul.f32 %v2367, %v2372
      %v2376 = vmul.f32 %v2368, %v2372
      %v2377 = vlaneseq
      %v2378 = vshrl.u32 %v2377, 7
      %v2379 = vsub.s32 1, %v2378
      %v2380 = vrot.slane %v368, %v2379
      %v2381 = vadd.f32 %v2373, %v2380
      %v2382 = vadd.f32 %v2374, %v2380
      %v2383 = vadd.f32 %v2375, %v2380
      %v2384 = vadd.f32 %v2376, %v2380
      %s2385 = scalar_lea.vmem %s4, 32
      %v2386 = vld [vmem:[%s2385] sm:$0xff]
      %v2387 = vld [vmem:[%s2385 + $0x8] sm:$0xff]
      %v2388 = vld [vmem:[%s2385 + $0x10] sm:$0xff]
      %v2389 = vld [vmem:[%s2385 + $0x18] sm:$0xff]
      %v2390 = vlaneseq
      %v2391 = vshrl.u32 %v2390, 7
      %v2392 = vsub.s32 2, %v2391
      %v2393 = vrot.slane %v368, %v2392
      %v2395 = vsel %vm531, %v2381, 0
      %v2398 = vsel %vm531, %v2382, 0
      %v2401 = vsel %vm531, %v2383, 0
      %v2404 = vsel %vm531, %v2384, 0
      %2406 = vmatprep.subr.mxu0 0.0
      %2407 = vmatpush1.msra.mxu0 %v2386
      %2408 = vmatprep.subr.mxu0 0.0
      %2409 = vmatpush1.msra.mxu0 %v2387
      %2410 = vmatprep.subr.mxu0 0.0
      %2411 = vmatpush1.msra.mxu0 %v2388
      %2412 = vmatprep.subr.mxu0 0.0
      %2413 = vmatpush1.msra.mxu0 %v2389
      %2414 = vmatprep.subr.mxu0 0.0
      %2415 = vmatpush1.msra.mxu0 0.0
      %2416 = vmatprep.subr.mxu0 0.0
      %2417 = vmatpush1.msra.mxu0 0.0
      %2418 = vmatprep.subr.mxu0 0.0
      %2419 = vmatpush1.msra.mxu0 0.0
      %2420 = vmatprep.subr.mxu0 0.0
      %2421 = vmatpush1.msra.mxu0 0.0
      %2422 = vmatprep.subr.mxu0 0.0
      %2423 = vmatpush1.msra.mxu0 0.0
      %2424 = vmatprep.subr.mxu0 0.0
      %2425 = vmatpush1.msra.mxu0 0.0
      %2426 = vmatprep.subr.mxu0 0.0
      %2427 = vmatpush1.msra.mxu0 0.0
      %2428 = vmatprep.subr.mxu0 0.0
      %2429 = vmatpush1.msra.mxu0 0.0
      %2430 = vmatprep.subr.mxu0 0.0
      %2431 = vmatpush1.msra.mxu0 0.0
      %2432 = vmatprep.subr.mxu0 0.0
      %2433 = vmatpush1.msra.mxu0 0.0
      %2434 = vmatprep.subr.mxu0 0.0
      %2435 = vmatpush1.msra.mxu0 0.0
      %2436 = vmatprep.subr.mxu0 0.0
      %2437 = vmatpush1.msra.mxu0 0.0
      %2438 = vmatprep.subr.mxu0 0.0
      %2439 = vmatpush1.msra.mxu0 0.0
      %2440 = vmatprep.subr.mxu0 0.0
      %2441 = vmatpush1.msra.mxu0 0.0
      %2442 = vmatprep.subr.mxu0 0.0
      %2443 = vmatpush1.msra.mxu0 0.0
      %2444 = vmatprep.subr.mxu0 0.0
      %2445 = vmatpush1.msra.mxu0 0.0
      %2446 = vmatprep.subr.mxu0 0.0
      %2447 = vmatpush1.msra.mxu0 0.0
      %2448 = vmatprep.subr.mxu0 0.0
      %2449 = vmatpush1.msra.mxu0 0.0
      %2450 = vmatprep.subr.mxu0 0.0
      %2451 = vmatpush1.msra.mxu0 0.0
      %2452 = vmatprep.subr.mxu0 0.0
      %2453 = vmatpush1.msra.mxu0 0.0
      %2454 = vmatprep.subr.mxu0 0.0
      %2455 = vmatpush1.msra.mxu0 0.0
      %2456 = vmatprep.subr.mxu0 0.0
      %2457 = vmatpush1.msra.mxu0 0.0
      %2458 = vmatprep.subr.mxu0 0.0
      %2459 = vmatpush1.msra.mxu0 0.0
      %2460 = vmatprep.subr.mxu0 0.0
      %2461 = vmatpush1.msra.mxu0 0.0
      %2462 = vmatprep.subr.mxu0 0.0
      %2463 = vmatpush1.msra.mxu0 0.0
      %2464 = vmatprep.subr.mxu0 0.0
      %2465 = vmatpush1.msra.mxu0 0.0
      %2466 = vmatprep.subr.mxu0 0.0
      %2467 = vmatpush1.msra.mxu0 0.0
      %2468 = vmatprep.subr.mxu0 0.0
      %2469 = vmatpush1.msra.mxu0 0.0
      %2470 = vmatprep.mubr.f32.mxu0 0.0
      %2471 = vmatmul.mubr.f32.gmra.mrb[0].mxu0 %v2395
      %v2472 = vpop.f32.mrb[0].mxu0
      %v2473 = vadd.f32 %v2393, %v2472
      %v2474 = vpop.f32.mrb[0].mxu0
      %2475 = vmatprep.mubr.f32.mxu0 0.0
      %2476 = vmatmul.mubr.f32.gmra.mrb[0].mxu0 %v2398
      %v2477 = vpop.f32.mrb[0].mxu0
      %v2478 = vadd.f32 %v2393, %v2477
      %v2479 = vpop.f32.mrb[0].mxu0
      %2480 = vmatprep.mubr.f32.mxu0 0.0
      %2481 = vmatmul.mubr.f32.gmra.mrb[0].mxu0 %v2401
      %v2482 = vpop.f32.mrb[0].mxu0
      %v2483 = vadd.f32 %v2393, %v2482
      %v2484 = vpop.f32.mrb[0].mxu0
      %2485 = vmatprep.mubr.f32.mxu0 0.0
      %2486 = vmatmul.mubr.f32.gmra.mrb[0].mxu0 %v2404
      %v2487 = vpop.f32.mrb[0].mxu0
      %v2488 = vadd.f32 %v2393, %v2487
      %v2489 = vpop.f32.mrb[0].mxu0
      %2490 = vdwg.mxu0
      %2495 = vrot.lane.b32.xlu0 %v2473, 96
      %v2496 = vpop.permute.xlu0 %2495
      %2497 = vrot.lane.b32.xlu0 %v2478, 96
      %v2498 = vpop.permute.xlu0 %2497
      %2499 = vrot.lane.b32.xlu0 %v2483, 96
      %v2500 = vpop.permute.xlu0 %2499
      %2501 = vrot.lane.b32.xlu0 %v2488, 96
      %v2502 = vpop.permute.xlu0 %2501
      %v2503 = vsel %vm718, %v2473, 0
      %v2505 = vsel %vm718, %v2478, 0
      %v2507 = vsel %vm718, %v2483, 0
      %v2509 = vsel %vm718, %v2488, 0
      %v2511 = vsel %vm718, %v2496, 0
      %v2513 = vsel %vm718, %v2498, 0
      %v2515 = vsel %vm718, %v2500, 0
      %v2517 = vsel %vm718, %v2502, 0
      %2519 = vmatprep.subr.mxu0 0.0
      %2520 = vmatpush1.xpose.msra.mxu0 %v2511
      %2521 = vmatprep.subr.mxu0 0.0
      %2522 = vmatpush1.xpose.msra.mxu0 %v2513
      %2523 = vmatprep.subr.mxu0 0.0
      %2524 = vmatpush1.xpose.msra.mxu0 %v2515
      %2525 = vmatprep.subr.mxu0 0.0
      %2526 = vmatpush1.xpose.msra.mxu0 %v2517
      %2527 = vmatprep.subr.mxu0 0.0
      %2528 = vmatpush1.xpose.msra.mxu0 0.0
      %2529 = vmatprep.subr.mxu0 0.0
      %2530 = vmatpush1.xpose.msra.mxu0 0.0
      %2531 = vmatprep.subr.mxu0 0.0
      %2532 = vmatpush1.xpose.msra.mxu0 0.0
      %2533 = vmatprep.subr.mxu0 0.0
      %2534 = vmatpush1.xpose.msra.mxu0 0.0
      %2535 = vmatprep.subr.mxu0 0.0
      %2536 = vmatpush1.xpose.msra.mxu0 0.0
      %2537 = vmatprep.subr.mxu0 0.0
      %2538 = vmatpush1.xpose.msra.mxu0 0.0
      %2539 = vmatprep.subr.mxu0 0.0
      %2540 = vmatpush1.xpose.msra.mxu0 0.0
      %2541 = vmatprep.subr.mxu0 0.0
      %2542 = vmatpush1.xpose.msra.mxu0 0.0
      %2543 = vmatprep.subr.mxu0 0.0
      %2544 = vmatpush1.xpose.msra.mxu0 0.0
      %2545 = vmatprep.subr.mxu0 0.0
      %2546 = vmatpush1.xpose.msra.mxu0 0.0
      %2547 = vmatprep.subr.mxu0 0.0
      %2548 = vmatpush1.xpose.msra.mxu0 0.0
      %2549 = vmatprep.subr.mxu0 0.0
      %2550 = vmatpush1.xpose.msra.mxu0 0.0
      %2551 = vmatprep.subr.mxu0 0.0
      %2552 = vmatpush1.xpose.msra.mxu0 0.0
      %2553 = vmatprep.subr.mxu0 0.0
      %2554 = vmatpush1.xpose.msra.mxu0 0.0
      %2555 = vmatprep.subr.mxu0 0.0
      %2556 = vmatpush1.xpose.msra.mxu0 0.0
      %2557 = vmatprep.subr.mxu0 0.0
      %2558 = vmatpush1.xpose.msra.mxu0 0.0
      %2559 = vmatprep.subr.mxu0 0.0
      %2560 = vmatpush1.xpose.msra.mxu0 0.0
      %2561 = vmatprep.subr.mxu0 0.0
      %2562 = vmatpush1.xpose.msra.mxu0 0.0
      %2563 = vmatprep.subr.mxu0 0.0
      %2564 = vmatpush1.xpose.msra.mxu0 0.0
      %2565 = vmatprep.subr.mxu0 0.0
      %2566 = vmatpush1.xpose.msra.mxu0 0.0
      %2567 = vmatprep.subr.mxu0 0.0
      %2568 = vmatpush1.xpose.msra.mxu0 0.0
      %2569 = vmatprep.subr.mxu0 0.0
      %2570 = vmatpush1.xpose.msra.mxu0 0.0
      %2571 = vmatprep.subr.mxu0 0.0
      %2572 = vmatpush1.xpose.msra.mxu0 0.0
      %2573 = vmatprep.subr.mxu0 0.0
      %2574 = vmatpush1.xpose.msra.mxu0 0.0
      %2575 = vmatprep.subr.mxu0 0.0
      %2576 = vmatpush1.xpose.msra.mxu0 0.0
      %2577 = vmatprep.subr.mxu0 0.0
      %2578 = vmatpush1.xpose.msra.mxu0 0.0
      %2579 = vmatprep.subr.mxu0 0.0
      %2580 = vmatpush1.xpose.msra.mxu0 0.0
      %2581 = vmatprep.subr.mxu0 0.0
      %2582 = vmatpush1.xpose.msra.mxu0 0.0
      %2583 = vmatprep.mubr.f32.mxu0 0.0
      %2584 = vmatmul.mubr.f32.gmra.mrb[0].mxu0 %v2503
      %v2585 = vpop.f32.mrb[0].mxu0
      %v2586 = vadd.f32 0.0, %v2585
      %v2587 = vpop.f32.mrb[0].mxu0
      %2588 = vmatprep.mubr.f32.mxu0 0.0
      %2589 = vmatmul.mubr.f32.gmra.mrb[0].mxu0 %v2505
      %v2590 = vpop.f32.mrb[0].mxu0
      %v2591 = vadd.f32 0.0, %v2590
      %v2592 = vpop.f32.mrb[0].mxu0
      %2593 = vmatprep.mubr.f32.mxu0 0.0
      %2594 = vmatmul.mubr.f32.gmra.mrb[0].mxu0 %v2507
      %v2595 = vpop.f32.mrb[0].mxu0
      %v2596 = vadd.f32 0.0, %v2595
      %v2597 = vpop.f32.mrb[0].mxu0
      %2598 = vmatprep.mubr.f32.mxu0 0.0
      %2599 = vmatmul.mubr.f32.gmra.mrb[0].mxu0 %v2509
      %v2600 = vpop.f32.mrb[0].mxu0
      %v2601 = vadd.f32 0.0, %v2600
      %v2602 = vpop.f32.mrb[0].mxu0
      %2603 = vdwg.mxu0
      %v2604 = vmul.f32 %v2586, 0.35355338
      %v2605 = vmul.f32 %v2591, 0.35355338
      %v2606 = vmul.f32 %v2596, 0.35355338
      %v2607 = vmul.f32 %v2601, 0.35355338
      %v2608 = vadd.f32 %v2604, %v527
      %v2609 = vadd.f32 %v2605, %v528
      %v2610 = vadd.f32 %v2606, %v529
      %v2611 = vadd.f32 %v2607, %v530
      %v2612 = vsel %vm531, %v2608, -inf
      %2613 = vmax.xlane.f32.xlu0 %v2612
      %v2614 = vpop.xlane.xlu0 %2613
      %v2615 = vsel %vm531, %v2609, -inf
      %2616 = vmax.xlane.f32.xlu0 %v2615
      %v2617 = vpop.xlane.xlu0 %2616
      %v2618 = vsel %vm531, %v2610, -inf
      %2619 = vmax.xlane.f32.xlu0 %v2618
      %v2620 = vpop.xlane.xlu0 %2619
      %v2621 = vsel %vm531, %v2611, -inf
      %2622 = vmax.xlane.f32.xlu0 %v2621
      %v2623 = vpop.xlane.xlu0 %2622
      %v2624 = vsub.f32 %v2608, %v2614
      %v2625 = vsub.f32 %v2609, %v2617
      %v2626 = vsub.f32 %v2610, %v2620
      %v2627 = vsub.f32 %v2611, %v2623
      %v2628 = vmul.f32 %v2624, 1.442695
      %v2629 = vpow.pop %v2628
      %v2630 = vmul.f32 %v2625, 1.442695
      %v2631 = vpow.pop %v2630
      %v2632 = vmul.f32 %v2626, 1.442695
      %v2633 = vpow.pop %v2632
      %v2634 = vmul.f32 %v2627, 1.442695
      %v2635 = vpow.pop %v2634
      %v2636 = vsel %vm531, %v2629, 0.0
      %2637 = vadd.xlane.f32.xlu0 %v2636
      %v2638 = vpop.xlane.xlu0 %2637
      %v2639 = vsel %vm531, %v2631, 0.0
      %2640 = vadd.xlane.f32.xlu0 %v2639
      %v2641 = vpop.xlane.xlu0 %2640
      %v2642 = vsel %vm531, %v2633, 0.0
      %2643 = vadd.xlane.f32.xlu0 %v2642
      %v2644 = vpop.xlane.xlu0 %2643
      %v2645 = vsel %vm531, %v2635, 0.0
      %2646 = vadd.xlane.f32.xlu0 %v2645
      %v2647 = vpop.xlane.xlu0 %2646
      %v2648 = vrcp.pop %v2638
      %v2649 = vmul.f32 %v2629, %v2648
      %v2650 = vrcp.pop %v2641
      %v2651 = vmul.f32 %v2631, %v2650
      %v2652 = vrcp.pop %v2644
      %v2653 = vmul.f32 %v2633, %v2652
      %v2654 = vrcp.pop %v2647
      %v2655 = vmul.f32 %v2635, %v2654
      %2656 = vrot.lane.b32.xlu0 %v2473, 64
      %v2657 = vpop.permute.xlu0 %2656
      %2658 = vrot.lane.b32.xlu0 %v2478, 64
      %v2659 = vpop.permute.xlu0 %2658
      %2660 = vrot.lane.b32.xlu0 %v2483, 64
      %v2661 = vpop.permute.xlu0 %2660
      %2662 = vrot.lane.b32.xlu0 %v2488, 64
      %v2663 = vpop.permute.xlu0 %2662
      %v2669 = vsel %vm531, %v2649, 0
      %v2672 = vsel %vm531, %v2651, 0
      %v2675 = vsel %vm531, %v2653, 0
      %v2678 = vsel %vm531, %v2655, 0
      %2680 = vmatprep.subr.mxu0 0.0
      %2681 = vmatpush1.msra.mxu0 %v2657
      %2682 = vmatprep.subr.mxu0 0.0
      %2683 = vmatpush1.msra.mxu0 %v2659
      %2684 = vmatprep.subr.mxu0 0.0
      %2685 = vmatpush1.msra.mxu0 %v2661
      %2686 = vmatprep.subr.mxu0 0.0
      %2687 = vmatpush1.msra.mxu0 %v2663
      %2688 = vmatprep.subr.mxu0 0.0
      %2689 = vmatpush1.msra.mxu0 0.0
      %2690 = vmatprep.subr.mxu0 0.0
      %2691 = vmatpush1.msra.mxu0 0.0
      %2692 = vmatprep.subr.mxu0 0.0
      %2693 = vmatpush1.msra.mxu0 0.0
      %2694 = vmatprep.subr.mxu0 0.0
      %2695 = vmatpush1.msra.mxu0 0.0
      %2696 = vmatprep.subr.mxu0 0.0
      %2697 = vmatpush1.msra.mxu0 0.0
      %2698 = vmatprep.subr.mxu0 0.0
      %2699 = vmatpush1.msra.mxu0 0.0
      %2700 = vmatprep.subr.mxu0 0.0
      %2701 = vmatpush1.msra.mxu0 0.0
      %2702 = vmatprep.subr.mxu0 0.0
      %2703 = vmatpush1.msra.mxu0 0.0
      %2704 = vmatprep.subr.mxu0 0.0
      %2705 = vmatpush1.msra.mxu0 0.0
      %2706 = vmatprep.subr.mxu0 0.0
      %2707 = vmatpush1.msra.mxu0 0.0
      %2708 = vmatprep.subr.mxu0 0.0
      %2709 = vmatpush1.msra.mxu0 0.0
      %2710 = vmatprep.subr.mxu0 0.0
      %2711 = vmatpush1.msra.mxu0 0.0
      %2712 = vmatprep.subr.mxu0 0.0
      %2713 = vmatpush1.msra.mxu0 0.0
      %2714 = vmatprep.subr.mxu0 0.0
      %2715 = vmatpush1.msra.mxu0 0.0
      %2716 = vmatprep.subr.mxu0 0.0
      %2717 = vmatpush1.msra.mxu0 0.0
      %2718 = vmatprep.subr.mxu0 0.0
      %2719 = vmatpush1.msra.mxu0 0.0
      %2720 = vmatprep.subr.mxu0 0.0
      %2721 = vmatpush1.msra.mxu0 0.0
      %2722 = vmatprep.subr.mxu0 0.0
      %2723 = vmatpush1.msra.mxu0 0.0
      %2724 = vmatprep.subr.mxu0 0.0
      %2725 = vmatpush1.msra.mxu0 0.0
      %2726 = vmatprep.subr.mxu0 0.0
      %2727 = vmatpush1.msra.mxu0 0.0
      %2728 = vmatprep.subr.mxu0 0.0
      %2729 = vmatpush1.msra.mxu0 0.0
      %2730 = vmatprep.subr.mxu0 0.0
      %2731 = vmatpush1.msra.mxu0 0.0
      %2732 = vmatprep.subr.mxu0 0.0
      %2733 = vmatpush1.msra.mxu0 0.0
      %2734 = vmatprep.subr.mxu0 0.0
      %2735 = vmatpush1.msra.mxu0 0.0
      %2736 = vmatprep.subr.mxu0 0.0
      %2737 = vmatpush1.msra.mxu0 0.0
      %2738 = vmatprep.subr.mxu0 0.0
      %2739 = vmatpush1.msra.mxu0 0.0
      %2740 = vmatprep.subr.mxu0 0.0
      %2741 = vmatpush1.msra.mxu0 0.0
      %2742 = vmatprep.subr.mxu0 0.0
      %2743 = vmatpush1.msra.mxu0 0.0
      %2744 = vmatprep.mubr.f32.mxu0 0.0
      %2745 = vmatmul.mubr.f32.gmra.mrb[0].mxu0 %v2669
      %v2746 = vpop.f32.mrb[0].mxu0
      %v2747 = vadd.f32 0.0, %v2746
      %v2748 = vpop.f32.mrb[0].mxu0
      %2749 = vmatprep.mubr.f32.mxu0 0.0
      %2750 = vmatmul.mubr.f32.gmra.mrb[0].mxu0 %v2672
      %v2751 = vpop.f32.mrb[0].mxu0
      %v2752 = vadd.f32 0.0, %v2751
      %v2753 = vpop.f32.mrb[0].mxu0
      %2754 = vmatprep.mubr.f32.mxu0 0.0
      %2755 = vmatmul.mubr.f32.gmra.mrb[0].mxu0 %v2675
      %v2756 = vpop.f32.mrb[0].mxu0
      %v2757 = vadd.f32 0.0, %v2756
      %v2758 = vpop.f32.mrb[0].mxu0
      %2759 = vmatprep.mubr.f32.mxu0 0.0
      %2760 = vmatmul.mubr.f32.gmra.mrb[0].mxu0 %v2678
      %v2761 = vpop.f32.mrb[0].mxu0
      %v2762 = vadd.f32 0.0, %v2761
      %v2763 = vpop.f32.mrb[0].mxu0
      %2764 = vdwg.mxu0
      %2765 = vrot.lane.b32.xlu0 %v2473, 120
      %v2766 = vpop.permute.xlu0 %2765
      %2767 = vrot.lane.b32.xlu0 %v2478, 120
      %v2768 = vpop.permute.xlu0 %2767
      %2769 = vrot.lane.b32.xlu0 %v2483, 120
      %v2770 = vpop.permute.xlu0 %2769
      %2771 = vrot.lane.b32.xlu0 %v2488, 120
      %v2772 = vpop.permute.xlu0 %2771
      %2773 = vrot.lane.b32.xlu0 %v2473, 88
      %v2774 = vpop.permute.xlu0 %2773
      %2775 = vrot.lane.b32.xlu0 %v2478, 88
      %v2776 = vpop.permute.xlu0 %2775
      %2777 = vrot.lane.b32.xlu0 %v2483, 88
      %v2778 = vpop.permute.xlu0 %2777
      %2779 = vrot.lane.b32.xlu0 %v2488, 88
      %v2780 = vpop.permute.xlu0 %2779
      %v2781 = vsel %vm718, %v2766, 0
      %v2783 = vsel %vm718, %v2768, 0
      %v2785 = vsel %vm718, %v2770, 0
      %v2787 = vsel %vm718, %v2772, 0
      %v2789 = vsel %vm718, %v2774, 0
      %v2791 = vsel %vm718, %v2776, 0
      %v2793 = vsel %vm718, %v2778, 0
      %v2795 = vsel %vm718, %v2780, 0
      %2797 = vmatprep.subr.mxu0 0.0
      %2798 = vmatpush1.xpose.msra.mxu0 %v2789
      %2799 = vmatprep.subr.mxu0 0.0
      %2800 = vmatpush1.xpose.msra.mxu0 %v2791
      %2801 = vmatprep.subr.mxu0 0.0
      %2802 = vmatpush1.xpose.msra.mxu0 %v2793
      %2803 = vmatprep.subr.mxu0 0.0
      %2804 = vmatpush1.xpose.msra.mxu0 %v2795
      %2805 = vmatprep.subr.mxu0 0.0
      %2806 = vmatpush1.xpose.msra.mxu0 0.0
      %2807 = vmatprep.subr.mxu0 0.0
      %2808 = vmatpush1.xpose.msra.mxu0 0.0
      %2809 = vmatprep.subr.mxu0 0.0
      %2810 = vmatpush1.xpose.msra.mxu0 0.0
      %2811 = vmatprep.subr.mxu0 0.0
      %2812 = vmatpush1.xpose.msra.mxu0 0.0
      %2813 = vmatprep.subr.mxu0 0.0
      %2814 = vmatpush1.xpose.msra.mxu0 0.0
      %2815 = vmatprep.subr.mxu0 0.0
      %2816 = vmatpush1.xpose.msra.mxu0 0.0
      %2817 = vmatprep.subr.mxu0 0.0
      %2818 = vmatpush1.xpose.msra.mxu0 0.0
      %2819 = vmatprep.subr.mxu0 0.0
      %2820 = vmatpush1.xpose.msra.mxu0 0.0
      %2821 = vmatprep.subr.mxu0 0.0
      %2822 = vmatpush1.xpose.msra.mxu0 0.0
      %2823 = vmatprep.subr.mxu0 0.0
      %2824 = vmatpush1.xpose.msra.mxu0 0.0
      %2825 = vmatprep.subr.mxu0 0.0
      %2826 = vmatpush1.xpose.msra.mxu0 0.0
      %2827 = vmatprep.subr.mxu0 0.0
      %2828 = vmatpush1.xpose.msra.mxu0 0.0
      %2829 = vmatprep.subr.mxu0 0.0
      %2830 = vmatpush1.xpose.msra.mxu0 0.0
      %2831 = vmatprep.subr.mxu0 0.0
      %2832 = vmatpush1.xpose.msra.mxu0 0.0
      %2833 = vmatprep.subr.mxu0 0.0
      %2834 = vmatpush1.xpose.msra.mxu0 0.0
      %2835 = vmatprep.subr.mxu0 0.0
      %2836 = vmatpush1.xpose.msra.mxu0 0.0
      %2837 = vmatprep.subr.mxu0 0.0
      %2838 = vmatpush1.xpose.msra.mxu0 0.0
      %2839 = vmatprep.subr.mxu0 0.0
      %2840 = vmatpush1.xpose.msra.mxu0 0.0
      %2841 = vmatprep.subr.mxu0 0.0
      %2842 = vmatpush1.xpose.msra.mxu0 0.0
      %2843 = vmatprep.subr.mxu0 0.0
      %2844 = vmatpush1.xpose.msra.mxu0 0.0
      %2845 = vmatprep.subr.mxu0 0.0
      %2846 = vmatpush1.xpose.msra.mxu0 0.0
      %2847 = vmatprep.subr.mxu0 0.0
      %2848 = vmatpush1.xpose.msra.mxu0 0.0
      %2849 = vmatprep.subr.mxu0 0.0
      %2850 = vmatpush1.xpose.msra.mxu0 0.0
      %2851 = vmatprep.subr.mxu0 0.0
      %2852 = vmatpush1.xpose.msra.mxu0 0.0
      %2853 = vmatprep.subr.mxu0 0.0
      %2854 = vmatpush1.xpose.msra.mxu0 0.0
      %2855 = vmatprep.subr.mxu0 0.0
      %2856 = vmatpush1.xpose.msra.mxu0 0.0
      %2857 = vmatprep.subr.mxu0 0.0
      %2858 = vmatpush1.xpose.msra.mxu0 0.0
      %2859 = vmatprep.subr.mxu0 0.0
      %2860 = vmatpush1.xpose.msra.mxu0 0.0
      %2861 = vmatprep.mubr.f32.mxu0 0.0
      %2862 = vmatmul.mubr.f32.gmra.mrb[0].mxu0 %v2781
      %v2863 = vpop.f32.mrb[0].mxu0
      %v2864 = vadd.f32 0.0, %v2863
      %v2865 = vpop.f32.mrb[0].mxu0
      %2866 = vmatprep.mubr.f32.mxu0 0.0
      %2867 = vmatmul.mubr.f32.gmra.mrb[0].mxu0 %v2783
      %v2868 = vpop.f32.mrb[0].mxu0
      %v2869 = vadd.f32 0.0, %v2868
      %v2870 = vpop.f32.mrb[0].mxu0
      %2871 = vmatprep.mubr.f32.mxu0 0.0
      %2872 = vmatmul.mubr.f32.gmra.mrb[0].mxu0 %v2785
      %v2873 = vpop.f32.mrb[0].mxu0
      %v2874 = vadd.f32 0.0, %v2873
      %v2875 = vpop.f32.mrb[0].mxu0
      %2876 = vmatprep.mubr.f32.mxu0 0.0
      %2877 = vmatmul.mubr.f32.gmra.mrb[0].mxu0 %v2787
      %v2878 = vpop.f32.mrb[0].mxu0
      %v2879 = vadd.f32 0.0, %v2878
      %v2880 = vpop.f32.mrb[0].mxu0
      %2881 = vdwg.mxu0
      %v2882 = vmul.f32 %v2864, 0.35355338
      %v2883 = vmul.f32 %v2869, 0.35355338
      %v2884 = vmul.f32 %v2874, 0.35355338
      %v2885 = vmul.f32 %v2879, 0.35355338
      %v2886 = vadd.f32 %v2882, %v527
      %v2887 = vadd.f32 %v2883, %v528
      %v2888 = vadd.f32 %v2884, %v529
      %v2889 = vadd.f32 %v2885, %v530
      %v2890 = vsel %vm531, %v2886, -inf
      %2891 = vmax.xlane.f32.xlu0 %v2890
      %v2892 = vpop.xlane.xlu0 %2891
      %v2893 = vsel %vm531, %v2887, -inf
      %2894 = vmax.xlane.f32.xlu0 %v2893
      %v2895 = vpop.xlane.xlu0 %2894
      %v2896 = vsel %vm531, %v2888, -inf
      %2897 = vmax.xlane.f32.xlu0 %v2896
      %v2898 = vpop.xlane.xlu0 %2897
      %v2899 = vsel %vm531, %v2889, -inf
      %2900 = vmax.xlane.f32.xlu0 %v2899
      %v2901 = vpop.xlane.xlu0 %2900
      %v2902 = vsub.f32 %v2886, %v2892
      %v2903 = vsub.f32 %v2887, %v2895
      %v2904 = vsub.f32 %v2888, %v2898
      %v2905 = vsub.f32 %v2889, %v2901
      %v2906 = vmul.f32 %v2902, 1.442695
      %v2907 = vpow.pop %v2906
      %v2908 = vmul.f32 %v2903, 1.442695
      %v2909 = vpow.pop %v2908
      %v2910 = vmul.f32 %v2904, 1.442695
      %v2911 = vpow.pop %v2910
      %v2912 = vmul.f32 %v2905, 1.442695
      %v2913 = vpow.pop %v2912
      %v2914 = vsel %vm531, %v2907, 0.0
      %2915 = vadd.xlane.f32.xlu0 %v2914
      %v2916 = vpop.xlane.xlu0 %2915
      %v2917 = vsel %vm531, %v2909, 0.0
      %2918 = vadd.xlane.f32.xlu0 %v2917
      %v2919 = vpop.xlane.xlu0 %2918
      %v2920 = vsel %vm531, %v2911, 0.0
      %2921 = vadd.xlane.f32.xlu0 %v2920
      %v2922 = vpop.xlane.xlu0 %2921
      %v2923 = vsel %vm531, %v2913, 0.0
      %2924 = vadd.xlane.f32.xlu0 %v2923
      %v2925 = vpop.xlane.xlu0 %2924
      %v2926 = vrcp.pop %v2916
      %v2927 = vmul.f32 %v2907, %v2926
      %v2928 = vrcp.pop %v2919
      %v2929 = vmul.f32 %v2909, %v2928
      %v2930 = vrcp.pop %v2922
      %v2931 = vmul.f32 %v2911, %v2930
      %v2932 = vrcp.pop %v2925
      %v2933 = vmul.f32 %v2913, %v2932
      %2934 = vrot.lane.b32.xlu0 %v2473, 56
      %v2935 = vpop.permute.xlu0 %2934
      %2936 = vrot.lane.b32.xlu0 %v2478, 56
      %v2937 = vpop.permute.xlu0 %2936
      %2938 = vrot.lane.b32.xlu0 %v2483, 56
      %v2939 = vpop.permute.xlu0 %2938
      %2940 = vrot.lane.b32.xlu0 %v2488, 56
      %v2941 = vpop.permute.xlu0 %2940
      %v2947 = vsel %vm531, %v2927, 0
      %v2950 = vsel %vm531, %v2929, 0
      %v2953 = vsel %vm531, %v2931, 0
      %v2956 = vsel %vm531, %v2933, 0
      %2958 = vmatprep.subr.mxu0 0.0
      %2959 = vmatpush1.msra.mxu0 %v2935
      %2960 = vmatprep.subr.mxu0 0.0
      %2961 = vmatpush1.msra.mxu0 %v2937
      %2962 = vmatprep.subr.mxu0 0.0
      %2963 = vmatpush1.msra.mxu0 %v2939
      %2964 = vmatprep.subr.mxu0 0.0
      %2965 = vmatpush1.msra.mxu0 %v2941
      %2966 = vmatprep.subr.mxu0 0.0
      %2967 = vmatpush1.msra.mxu0 0.0
      %2968 = vmatprep.subr.mxu0 0.0
      %2969 = vmatpush1.msra.mxu0 0.0
      %2970 = vmatprep.subr.mxu0 0.0
      %2971 = vmatpush1.msra.mxu0 0.0
      %2972 = vmatprep.subr.mxu0 0.0
      %2973 = vmatpush1.msra.mxu0 0.0
      %2974 = vmatprep.subr.mxu0 0.0
      %2975 = vmatpush1.msra.mxu0 0.0
      %2976 = vmatprep.subr.mxu0 0.0
      %2977 = vmatpush1.msra.mxu0 0.0
      %2978 = vmatprep.subr.mxu0 0.0
      %2979 = vmatpush1.msra.mxu0 0.0
      %2980 = vmatprep.subr.mxu0 0.0
      %2981 = vmatpush1.msra.mxu0 0.0
      %2982 = vmatprep.subr.mxu0 0.0
      %2983 = vmatpush1.msra.mxu0 0.0
      %2984 = vmatprep.subr.mxu0 0.0
      %2985 = vmatpush1.msra.mxu0 0.0
      %2986 = vmatprep.subr.mxu0 0.0
      %2987 = vmatpush1.msra.mxu0 0.0
      %2988 = vmatprep.subr.mxu0 0.0
      %2989 = vmatpush1.msra.mxu0 0.0
      %2990 = vmatprep.subr.mxu0 0.0
      %2991 = vmatpush1.msra.mxu0 0.0
      %2992 = vmatprep.subr.mxu0 0.0
      %2993 = vmatpush1.msra.mxu0 0.0
      %2994 = vmatprep.subr.mxu0 0.0
      %2995 = vmatpush1.msra.mxu0 0.0
      %2996 = vmatprep.subr.mxu0 0.0
      %2997 = vmatpush1.msra.mxu0 0.0
      %2998 = vmatprep.subr.mxu0 0.0
      %2999 = vmatpush1.msra.mxu0 0.0
      %3000 = vmatprep.subr.mxu0 0.0
      %3001 = vmatpush1.msra.mxu0 0.0
      %3002 = vmatprep.subr.mxu0 0.0
      %3003 = vmatpush1.msra.mxu0 0.0
      %3004 = vmatprep.subr.mxu0 0.0
      %3005 = vmatpush1.msra.mxu0 0.0
      %3006 = vmatprep.subr.mxu0 0.0
      %3007 = vmatpush1.msra.mxu0 0.0
      %3008 = vmatprep.subr.mxu0 0.0
      %3009 = vmatpush1.msra.mxu0 0.0
      %3010 = vmatprep.subr.mxu0 0.0
      %3011 = vmatpush1.msra.mxu0 0.0
      %3012 = vmatprep.subr.mxu0 0.0
      %3013 = vmatpush1.msra.mxu0 0.0
      %3014 = vmatprep.subr.mxu0 0.0
      %3015 = vmatpush1.msra.mxu0 0.0
      %3016 = vmatprep.subr.mxu0 0.0
      %3017 = vmatpush1.msra.mxu0 0.0
      %3018 = vmatprep.subr.mxu0 0.0
      %3019 = vmatpush1.msra.mxu0 0.0
      %3020 = vmatprep.subr.mxu0 0.0
      %3021 = vmatpush1.msra.mxu0 0.0
      %3022 = vmatprep.mubr.f32.mxu0 0.0
      %3023 = vmatmul.mubr.f32.gmra.mrb[0].mxu0 %v2947
      %v3024 = vpop.f32.mrb[0].mxu0
      %v3025 = vadd.f32 0.0, %v3024
      %v3026 = vpop.f32.mrb[0].mxu0
      %3027 = vmatprep.mubr.f32.mxu0 0.0
      %3028 = vmatmul.mubr.f32.gmra.mrb[0].mxu0 %v2950
      %v3029 = vpop.f32.mrb[0].mxu0
      %v3030 = vadd.f32 0.0, %v3029
      %v3031 = vpop.f32.mrb[0].mxu0
      %3032 = vmatprep.mubr.f32.mxu0 0.0
      %3033 = vmatmul.mubr.f32.gmra.mrb[0].mxu0 %v2953
      %v3034 = vpop.f32.mrb[0].mxu0
      %v3035 = vadd.f32 0.0, %v3034
      %v3036 = vpop.f32.mrb[0].mxu0
      %3037 = vmatprep.mubr.f32.mxu0 0.0
      %3038 = vmatmul.mubr.f32.gmra.mrb[0].mxu0 %v2956
      %v3039 = vpop.f32.mrb[0].mxu0
      %v3040 = vadd.f32 0.0, %v3039
      %v3041 = vpop.f32.mrb[0].mxu0
      %3042 = vdwg.mxu0
      %3043 = vrot.lane.b32.xlu0 %v2473, 112
      %v3044 = vpop.permute.xlu0 %3043
      %3045 = vrot.lane.b32.xlu0 %v2478, 112
      %v3046 = vpop.permute.xlu0 %3045
      %3047 = vrot.lane.b32.xlu0 %v2483, 112
      %v3048 = vpop.permute.xlu0 %3047
      %3049 = vrot.lane.b32.xlu0 %v2488, 112
      %v3050 = vpop.permute.xlu0 %3049
      %3051 = vrot.lane.b32.xlu0 %v2473, 80
      %v3052 = vpop.permute.xlu0 %3051
      %3053 = vrot.lane.b32.xlu0 %v2478, 80
      %v3054 = vpop.permute.xlu0 %3053
      %3055 = vrot.lane.b32.xlu0 %v2483, 80
      %v3056 = vpop.permute.xlu0 %3055
      %3057 = vrot.lane.b32.xlu0 %v2488, 80
      %v3058 = vpop.permute.xlu0 %3057
      %v3059 = vsel %vm718, %v3044, 0
      %v3061 = vsel %vm718, %v3046, 0
      %v3063 = vsel %vm718, %v3048, 0
      %v3065 = vsel %vm718, %v3050, 0
      %v3067 = vsel %vm718, %v3052, 0
      %v3069 = vsel %vm718, %v3054, 0
      %v3071 = vsel %vm718, %v3056, 0
      %v3073 = vsel %vm718, %v3058, 0
      %3075 = vmatprep.subr.mxu0 0.0
      %3076 = vmatpush1.xpose.msra.mxu0 %v3067
      %3077 = vmatprep.subr.mxu0 0.0
      %3078 = vmatpush1.xpose.msra.mxu0 %v3069
      %3079 = vmatprep.subr.mxu0 0.0
      %3080 = vmatpush1.xpose.msra.mxu0 %v3071
      %3081 = vmatprep.subr.mxu0 0.0
      %3082 = vmatpush1.xpose.msra.mxu0 %v3073
      %3083 = vmatprep.subr.mxu0 0.0
      %3084 = vmatpush1.xpose.msra.mxu0 0.0
      %3085 = vmatprep.subr.mxu0 0.0
      %3086 = vmatpush1.xpose.msra.mxu0 0.0
      %3087 = vmatprep.subr.mxu0 0.0
      %3088 = vmatpush1.xpose.msra.mxu0 0.0
      %3089 = vmatprep.subr.mxu0 0.0
      %3090 = vmatpush1.xpose.msra.mxu0 0.0
      %3091 = vmatprep.subr.mxu0 0.0
      %3092 = vmatpush1.xpose.msra.mxu0 0.0
      %3093 = vmatprep.subr.mxu0 0.0
      %3094 = vmatpush1.xpose.msra.mxu0 0.0
      %3095 = vmatprep.subr.mxu0 0.0
      %3096 = vmatpush1.xpose.msra.mxu0 0.0
      %3097 = vmatprep.subr.mxu0 0.0
      %3098 = vmatpush1.xpose.msra.mxu0 0.0
      %3099 = vmatprep.subr.mxu0 0.0
      %3100 = vmatpush1.xpose.msra.mxu0 0.0
      %3101 = vmatprep.subr.mxu0 0.0
      %3102 = vmatpush1.xpose.msra.mxu0 0.0
      %3103 = vmatprep.subr.mxu0 0.0
      %3104 = vmatpush1.xpose.msra.mxu0 0.0
      %3105 = vmatprep.subr.mxu0 0.0
      %3106 = vmatpush1.xpose.msra.mxu0 0.0
      %3107 = vmatprep.subr.mxu0 0.0
      %3108 = vmatpush1.xpose.msra.mxu0 0.0
      %3109 = vmatprep.subr.mxu0 0.0
      %3110 = vmatpush1.xpose.msra.mxu0 0.0
      %3111 = vmatprep.subr.mxu0 0.0
      %3112 = vmatpush1.xpose.msra.mxu0 0.0
      %3113 = vmatprep.subr.mxu0 0.0
      %3114 = vmatpush1.xpose.msra.mxu0 0.0
      %3115 = vmatprep.subr.mxu0 0.0
      %3116 = vmatpush1.xpose.msra.mxu0 0.0
      %3117 = vmatprep.subr.mxu0 0.0
      %3118 = vmatpush1.xpose.msra.mxu0 0.0
      %3119 = vmatprep.subr.mxu0 0.0
      %3120 = vmatpush1.xpose.msra.mxu0 0.0
      %3121 = vmatprep.subr.mxu0 0.0
      %3122 = vmatpush1.xpose.msra.mxu0 0.0
      %3123 = vmatprep.subr.mxu0 0.0
      %3124 = vmatpush1.xpose.msra.mxu0 0.0
      %3125 = vmatprep.subr.mxu0 0.0
      %3126 = vmatpush1.xpose.msra.mxu0 0.0
      %3127 = vmatprep.subr.mxu0 0.0
      %3128 = vmatpush1.xpose.msra.mxu0 0.0
      %3129 = vmatprep.subr.mxu0 0.0
      %3130 = vmatpush1.xpose.msra.mxu0 0.0
      %3131 = vmatprep.subr.mxu0 0.0
      %3132 = vmatpush1.xpose.msra.mxu0 0.0
      %3133 = vmatprep.subr.mxu0 0.0
      %3134 = vmatpush1.xpose.msra.mxu0 0.0
      %3135 = vmatprep.subr.mxu0 0.0
      %3136 = vmatpush1.xpose.msra.mxu0 0.0
      %3137 = vmatprep.subr.mxu0 0.0
      %3138 = vmatpush1.xpose.msra.mxu0 0.0
      %3139 = vmatprep.mubr.f32.mxu0 0.0
      %3140 = vmatmul.mubr.f32.gmra.mrb[0].mxu0 %v3059
      %v3141 = vpop.f32.mrb[0].mxu0
      %v3142 = vadd.f32 0.0, %v3141
      %v3143 = vpop.f32.mrb[0].mxu0
      %3144 = vmatprep.mubr.f32.mxu0 0.0
      %3145 = vmatmul.mubr.f32.gmra.mrb[0].mxu0 %v3061
      %v3146 = vpop.f32.mrb[0].mxu0
      %v3147 = vadd.f32 0.0, %v3146
      %v3148 = vpop.f32.mrb[0].mxu0
      %3149 = vmatprep.mubr.f32.mxu0 0.0
      %3150 = vmatmul.mubr.f32.gmra.mrb[0].mxu0 %v3063
      %v3151 = vpop.f32.mrb[0].mxu0
      %v3152 = vadd.f32 0.0, %v3151
      %v3153 = vpop.f32.mrb[0].mxu0
      %3154 = vmatprep.mubr.f32.mxu0 0.0
      %3155 = vmatmul.mubr.f32.gmra.mrb[0].mxu0 %v3065
      %v3156 = vpop.f32.mrb[0].mxu0
      %v3157 = vadd.f32 0.0, %v3156
      %v3158 = vpop.f32.mrb[0].mxu0
      %3159 = vdwg.mxu0
      %v3160 = vmul.f32 %v3142, 0.35355338
      %v3161 = vmul.f32 %v3147, 0.35355338
      %v3162 = vmul.f32 %v3152, 0.35355338
      %v3163 = vmul.f32 %v3157, 0.35355338
      %v3164 = vadd.f32 %v3160, %v527
      %v3165 = vadd.f32 %v3161, %v528
      %v3166 = vadd.f32 %v3162, %v529
      %v3167 = vadd.f32 %v3163, %v530
      %v3168 = vsel %vm531, %v3164, -inf
      %3169 = vmax.xlane.f32.xlu0 %v3168
      %v3170 = vpop.xlane.xlu0 %3169
      %v3171 = vsel %vm531, %v3165, -inf
      %3172 = vmax.xlane.f32.xlu0 %v3171
      %v3173 = vpop.xlane.xlu0 %3172
      %v3174 = vsel %vm531, %v3166, -inf
      %3175 = vmax.xlane.f32.xlu0 %v3174
      %v3176 = vpop.xlane.xlu0 %3175
      %v3177 = vsel %vm531, %v3167, -inf
      %3178 = vmax.xlane.f32.xlu0 %v3177
      %v3179 = vpop.xlane.xlu0 %3178
      %v3180 = vsub.f32 %v3164, %v3170
      %v3181 = vsub.f32 %v3165, %v3173
      %v3182 = vsub.f32 %v3166, %v3176
      %v3183 = vsub.f32 %v3167, %v3179
      %v3184 = vmul.f32 %v3180, 1.442695
      %v3185 = vpow.pop %v3184
      %v3186 = vmul.f32 %v3181, 1.442695
      %v3187 = vpow.pop %v3186
      %v3188 = vmul.f32 %v3182, 1.442695
      %v3189 = vpow.pop %v3188
      %v3190 = vmul.f32 %v3183, 1.442695
      %v3191 = vpow.pop %v3190
      %v3192 = vsel %vm531, %v3185, 0.0
      %3193 = vadd.xlane.f32.xlu0 %v3192
      %v3194 = vpop.xlane.xlu0 %3193
      %v3195 = vsel %vm531, %v3187, 0.0
      %3196 = vadd.xlane.f32.xlu0 %v3195
      %v3197 = vpop.xlane.xlu0 %3196
      %v3198 = vsel %vm531, %v3189, 0.0
      %3199 = vadd.xlane.f32.xlu0 %v3198
      %v3200 = vpop.xlane.xlu0 %3199
      %v3201 = vsel %vm531, %v3191, 0.0
      %3202 = vadd.xlane.f32.xlu0 %v3201
      %v3203 = vpop.xlane.xlu0 %3202
      %v3204 = vrcp.pop %v3194
      %v3205 = vmul.f32 %v3185, %v3204
      %v3206 = vrcp.pop %v3197
      %v3207 = vmul.f32 %v3187, %v3206
      %v3208 = vrcp.pop %v3200
      %v3209 = vmul.f32 %v3189, %v3208
      %v3210 = vrcp.pop %v3203
      %v3211 = vmul.f32 %v3191, %v3210
      %3212 = vrot.lane.b32.xlu0 %v2473, 48
      %v3213 = vpop.permute.xlu0 %3212
      %3214 = vrot.lane.b32.xlu0 %v2478, 48
      %v3215 = vpop.permute.xlu0 %3214
      %3216 = vrot.lane.b32.xlu0 %v2483, 48
      %v3217 = vpop.permute.xlu0 %3216
      %3218 = vrot.lane.b32.xlu0 %v2488, 48
      %v3219 = vpop.permute.xlu0 %3218
      %v3225 = vsel %vm531, %v3205, 0
      %v3228 = vsel %vm531, %v3207, 0
      %v3231 = vsel %vm531, %v3209, 0
      %v3234 = vsel %vm531, %v3211, 0
      %3236 = vmatprep.subr.mxu0 0.0
      %3237 = vmatpush1.msra.mxu0 %v3213
      %3238 = vmatprep.subr.mxu0 0.0
      %3239 = vmatpush1.msra.mxu0 %v3215
      %3240 = vmatprep.subr.mxu0 0.0
      %3241 = vmatpush1.msra.mxu0 %v3217
      %3242 = vmatprep.subr.mxu0 0.0
      %3243 = vmatpush1.msra.mxu0 %v3219
      %3244 = vmatprep.subr.mxu0 0.0
      %3245 = vmatpush1.msra.mxu0 0.0
      %3246 = vmatprep.subr.mxu0 0.0
      %3247 = vmatpush1.msra.mxu0 0.0
      %3248 = vmatprep.subr.mxu0 0.0
      %3249 = vmatpush1.msra.mxu0 0.0
      %3250 = vmatprep.subr.mxu0 0.0
      %3251 = vmatpush1.msra.mxu0 0.0
      %3252 = vmatprep.subr.mxu0 0.0
      %3253 = vmatpush1.msra.mxu0 0.0
      %3254 = vmatprep.subr.mxu0 0.0
      %3255 = vmatpush1.msra.mxu0 0.0
      %3256 = vmatprep.subr.mxu0 0.0
      %3257 = vmatpush1.msra.mxu0 0.0
      %3258 = vmatprep.subr.mxu0 0.0
      %3259 = vmatpush1.msra.mxu0 0.0
      %3260 = vmatprep.subr.mxu0 0.0
      %3261 = vmatpush1.msra.mxu0 0.0
      %3262 = vmatprep.subr.mxu0 0.0
      %3263 = vmatpush1.msra.mxu0 0.0
      %3264 = vmatprep.subr.mxu0 0.0
      %3265 = vmatpush1.msra.mxu0 0.0
      %3266 = vmatprep.subr.mxu0 0.0
      %3267 = vmatpush1.msra.mxu0 0.0
      %3268 = vmatprep.subr.mxu0 0.0
      %3269 = vmatpush1.msra.mxu0 0.0
      %3270 = vmatprep.subr.mxu0 0.0
      %3271 = vmatpush1.msra.mxu0 0.0
      %3272 = vmatprep.subr.mxu0 0.0
      %3273 = vmatpush1.msra.mxu0 0.0
      %3274 = vmatprep.subr.mxu0 0.0
      %3275 = vmatpush1.msra.mxu0 0.0
      %3276 = vmatprep.subr.mxu0 0.0
      %3277 = vmatpush1.msra.mxu0 0.0
      %3278 = vmatprep.subr.mxu0 0.0
      %3279 = vmatpush1.msra.mxu0 0.0
      %3280 = vmatprep.subr.mxu0 0.0
      %3281 = vmatpush1.msra.mxu0 0.0
      %3282 = vmatprep.subr.mxu0 0.0
      %3283 = vmatpush1.msra.mxu0 0.0
      %3284 = vmatprep.subr.mxu0 0.0
      %3285 = vmatpush1.msra.mxu0 0.0
      %3286 = vmatprep.subr.mxu0 0.0
      %3287 = vmatpush1.msra.mxu0 0.0
      %3288 = vmatprep.subr.mxu0 0.0
      %3289 = vmatpush1.msra.mxu0 0.0
      %3290 = vmatprep.subr.mxu0 0.0
      %3291 = vmatpush1.msra.mxu0 0.0
      %3292 = vmatprep.subr.mxu0 0.0
      %3293 = vmatpush1.msra.mxu0 0.0
      %3294 = vmatprep.subr.mxu0 0.0
      %3295 = vmatpush1.msra.mxu0 0.0
      %3296 = vmatprep.subr.mxu0 0.0
      %3297 = vmatpush1.msra.mxu0 0.0
      %3298 = vmatprep.subr.mxu0 0.0
      %3299 = vmatpush1.msra.mxu0 0.0
      %3300 = vmatprep.mubr.f32.mxu0 0.0
      %3301 = vmatmul.mubr.f32.gmra.mrb[0].mxu0 %v3225
      %v3302 = vpop.f32.mrb[0].mxu0
      %v3303 = vadd.f32 0.0, %v3302
      %v3304 = vpop.f32.mrb[0].mxu0
      %3305 = vmatprep.mubr.f32.mxu0 0.0
      %3306 = vmatmul.mubr.f32.gmra.mrb[0].mxu0 %v3228
      %v3307 = vpop.f32.mrb[0].mxu0
      %v3308 = vadd.f32 0.0, %v3307
      %v3309 = vpop.f32.mrb[0].mxu0
      %3310 = vmatprep.mubr.f32.mxu0 0.0
      %3311 = vmatmul.mubr.f32.gmra.mrb[0].mxu0 %v3231
      %v3312 = vpop.f32.mrb[0].mxu0
      %v3313 = vadd.f32 0.0, %v3312
      %v3314 = vpop.f32.mrb[0].mxu0
      %3315 = vmatprep.mubr.f32.mxu0 0.0
      %3316 = vmatmul.mubr.f32.gmra.mrb[0].mxu0 %v3234
      %v3317 = vpop.f32.mrb[0].mxu0
      %v3318 = vadd.f32 0.0, %v3317
      %v3319 = vpop.f32.mrb[0].mxu0
      %3320 = vdwg.mxu0
      %3321 = vrot.lane.b32.xlu0 %v2473, 104
      %v3322 = vpop.permute.xlu0 %3321
      %3323 = vrot.lane.b32.xlu0 %v2478, 104
      %v3324 = vpop.permute.xlu0 %3323
      %3325 = vrot.lane.b32.xlu0 %v2483, 104
      %v3326 = vpop.permute.xlu0 %3325
      %3327 = vrot.lane.b32.xlu0 %v2488, 104
      %v3328 = vpop.permute.xlu0 %3327
      %3329 = vrot.lane.b32.xlu0 %v2473, 72
      %v3330 = vpop.permute.xlu0 %3329
      %3331 = vrot.lane.b32.xlu0 %v2478, 72
      %v3332 = vpop.permute.xlu0 %3331
      %3333 = vrot.lane.b32.xlu0 %v2483, 72
      %v3334 = vpop.permute.xlu0 %3333
      %3335 = vrot.lane.b32.xlu0 %v2488, 72
      %v3336 = vpop.permute.xlu0 %3335
      %v3337 = vsel %vm718, %v3322, 0
      %v3339 = vsel %vm718, %v3324, 0
      %v3341 = vsel %vm718, %v3326, 0
      %v3343 = vsel %vm718, %v3328, 0
      %v3345 = vsel %vm718, %v3330, 0
      %v3347 = vsel %vm718, %v3332, 0
      %v3349 = vsel %vm718, %v3334, 0
      %v3351 = vsel %vm718, %v3336, 0
      %3353 = vmatprep.subr.mxu0 0.0
      %3354 = vmatpush1.xpose.msra.mxu0 %v3345
      %3355 = vmatprep.subr.mxu0 0.0
      %3356 = vmatpush1.xpose.msra.mxu0 %v3347
      %3357 = vmatprep.subr.mxu0 0.0
      %3358 = vmatpush1.xpose.msra.mxu0 %v3349
      %3359 = vmatprep.subr.mxu0 0.0
      %3360 = vmatpush1.xpose.msra.mxu0 %v3351
      %3361 = vmatprep.subr.mxu0 0.0
      %3362 = vmatpush1.xpose.msra.mxu0 0.0
      %3363 = vmatprep.subr.mxu0 0.0
      %3364 = vmatpush1.xpose.msra.mxu0 0.0
      %3365 = vmatprep.subr.mxu0 0.0
      %3366 = vmatpush1.xpose.msra.mxu0 0.0
      %3367 = vmatprep.subr.mxu0 0.0
      %3368 = vmatpush1.xpose.msra.mxu0 0.0
      %3369 = vmatprep.subr.mxu0 0.0
      %3370 = vmatpush1.xpose.msra.mxu0 0.0
      %3371 = vmatprep.subr.mxu0 0.0
      %3372 = vmatpush1.xpose.msra.mxu0 0.0
      %3373 = vmatprep.subr.mxu0 0.0
      %3374 = vmatpush1.xpose.msra.mxu0 0.0
      %3375 = vmatprep.subr.mxu0 0.0
      %3376 = vmatpush1.xpose.msra.mxu0 0.0
      %3377 = vmatprep.subr.mxu0 0.0
      %3378 = vmatpush1.xpose.msra.mxu0 0.0
      %3379 = vmatprep.subr.mxu0 0.0
      %3380 = vmatpush1.xpose.msra.mxu0 0.0
      %3381 = vmatprep.subr.mxu0 0.0
      %3382 = vmatpush1.xpose.msra.mxu0 0.0
      %3383 = vmatprep.subr.mxu0 0.0
      %3384 = vmatpush1.xpose.msra.mxu0 0.0
      %3385 = vmatprep.subr.mxu0 0.0
      %3386 = vmatpush1.xpose.msra.mxu0 0.0
      %3387 = vmatprep.subr.mxu0 0.0
      %3388 = vmatpush1.xpose.msra.mxu0 0.0
      %3389 = vmatprep.subr.mxu0 0.0
      %3390 = vmatpush1.xpose.msra.mxu0 0.0
      %3391 = vmatprep.subr.mxu0 0.0
      %3392 = vmatpush1.xpose.msra.mxu0 0.0
      %3393 = vmatprep.subr.mxu0 0.0
      %3394 = vmatpush1.xpose.msra.mxu0 0.0
      %3395 = vmatprep.subr.mxu0 0.0
      %3396 = vmatpush1.xpose.msra.mxu0 0.0
      %3397 = vmatprep.subr.mxu0 0.0
      %3398 = vmatpush1.xpose.msra.mxu0 0.0
      %3399 = vmatprep.subr.mxu0 0.0
      %3400 = vmatpush1.xpose.msra.mxu0 0.0
      %3401 = vmatprep.subr.mxu0 0.0
      %3402 = vmatpush1.xpose.msra.mxu0 0.0
      %3403 = vmatprep.subr.mxu0 0.0
      %3404 = vmatpush1.xpose.msra.mxu0 0.0
      %3405 = vmatprep.subr.mxu0 0.0
      %3406 = vmatpush1.xpose.msra.mxu0 0.0
      %3407 = vmatprep.subr.mxu0 0.0
      %3408 = vmatpush1.xpose.msra.mxu0 0.0
      %3409 = vmatprep.subr.mxu0 0.0
      %3410 = vmatpush1.xpose.msra.mxu0 0.0
      %3411 = vmatprep.subr.mxu0 0.0
      %3412 = vmatpush1.xpose.msra.mxu0 0.0
      %3413 = vmatprep.subr.mxu0 0.0
      %3414 = vmatpush1.xpose.msra.mxu0 0.0
      %3415 = vmatprep.subr.mxu0 0.0
      %3416 = vmatpush1.xpose.msra.mxu0 0.0
      %3417 = vmatprep.mubr.f32.mxu0 0.0
      %3418 = vmatmul.mubr.f32.gmra.mrb[0].mxu0 %v3337
      %v3419 = vpop.f32.mrb[0].mxu0
      %v3420 = vadd.f32 0.0, %v3419
      %v3421 = vpop.f32.mrb[0].mxu0
      %3422 = vmatprep.mubr.f32.mxu0 0.0
      %3423 = vmatmul.mubr.f32.gmra.mrb[0].mxu0 %v3339
      %v3424 = vpop.f32.mrb[0].mxu0
      %v3425 = vadd.f32 0.0, %v3424
      %v3426 = vpop.f32.mrb[0].mxu0
      %3427 = vmatprep.mubr.f32.mxu0 0.0
      %3428 = vmatmul.mubr.f32.gmra.mrb[0].mxu0 %v3341
      %v3429 = vpop.f32.mrb[0].mxu0
      %v3430 = vadd.f32 0.0, %v3429
      %v3431 = vpop.f32.mrb[0].mxu0
      %3432 = vmatprep.mubr.f32.mxu0 0.0
      %3433 = vmatmul.mubr.f32.gmra.mrb[0].mxu0 %v3343
      %v3434 = vpop.f32.mrb[0].mxu0
      %v3435 = vadd.f32 0.0, %v3434
      %v3436 = vpop.f32.mrb[0].mxu0
      %3437 = vdwg.mxu0
      %v3438 = vmul.f32 %v3420, 0.35355338
      %v3439 = vmul.f32 %v3425, 0.35355338
      %v3440 = vmul.f32 %v3430, 0.35355338
      %v3441 = vmul.f32 %v3435, 0.35355338
      %v3442 = vadd.f32 %v3438, %v527
      %v3443 = vadd.f32 %v3439, %v528
      %v3444 = vadd.f32 %v3440, %v529
      %v3445 = vadd.f32 %v3441, %v530
      %v3446 = vsel %vm531, %v3442, -inf
      %3447 = vmax.xlane.f32.xlu0 %v3446
      %v3448 = vpop.xlane.xlu0 %3447
      %v3449 = vsel %vm531, %v3443, -inf
      %3450 = vmax.xlane.f32.xlu0 %v3449
      %v3451 = vpop.xlane.xlu0 %3450
      %v3452 = vsel %vm531, %v3444, -inf
      %3453 = vmax.xlane.f32.xlu0 %v3452
      %v3454 = vpop.xlane.xlu0 %3453
      %v3455 = vsel %vm531, %v3445, -inf
      %3456 = vmax.xlane.f32.xlu0 %v3455
      %v3457 = vpop.xlane.xlu0 %3456
      %v3458 = vsub.f32 %v3442, %v3448
      %v3459 = vsub.f32 %v3443, %v3451
      %v3460 = vsub.f32 %v3444, %v3454
      %v3461 = vsub.f32 %v3445, %v3457
      %v3462 = vmul.f32 %v3458, 1.442695
      %v3463 = vpow.pop %v3462
      %v3464 = vmul.f32 %v3459, 1.442695
      %v3465 = vpow.pop %v3464
      %v3466 = vmul.f32 %v3460, 1.442695
      %v3467 = vpow.pop %v3466
      %v3468 = vmul.f32 %v3461, 1.442695
      %v3469 = vpow.pop %v3468
      %v3470 = vsel %vm531, %v3463, 0.0
      %3471 = vadd.xlane.f32.xlu0 %v3470
      %v3472 = vpop.xlane.xlu0 %3471
      %v3473 = vsel %vm531, %v3465, 0.0
      %3474 = vadd.xlane.f32.xlu0 %v3473
      %v3475 = vpop.xlane.xlu0 %3474
      %v3476 = vsel %vm531, %v3467, 0.0
      %3477 = vadd.xlane.f32.xlu0 %v3476
      %v3478 = vpop.xlane.xlu0 %3477
      %v3479 = vsel %vm531, %v3469, 0.0
      %3480 = vadd.xlane.f32.xlu0 %v3479
      %v3481 = vpop.xlane.xlu0 %3480
      %v3482 = vrcp.pop %v3472
      %v3483 = vmul.f32 %v3463, %v3482
      %v3484 = vrcp.pop %v3475
      %v3485 = vmul.f32 %v3465, %v3484
      %v3486 = vrcp.pop %v3478
      %v3487 = vmul.f32 %v3467, %v3486
      %v3488 = vrcp.pop %v3481
      %v3489 = vmul.f32 %v3469, %v3488
      %3490 = vrot.lane.b32.xlu0 %v2473, 40
      %v3491 = vpop.permute.xlu0 %3490
      %3492 = vrot.lane.b32.xlu0 %v2478, 40
      %v3493 = vpop.permute.xlu0 %3492
      %3494 = vrot.lane.b32.xlu0 %v2483, 40
      %v3495 = vpop.permute.xlu0 %3494
      %3496 = vrot.lane.b32.xlu0 %v2488, 40
      %v3497 = vpop.permute.xlu0 %3496
      %v3503 = vsel %vm531, %v3483, 0
      %v3506 = vsel %vm531, %v3485, 0
      %v3509 = vsel %vm531, %v3487, 0
      %v3512 = vsel %vm531, %v3489, 0
      %3514 = vmatprep.subr.mxu0 0.0
      %3515 = vmatpush1.msra.mxu0 %v3491
      %3516 = vmatprep.subr.mxu0 0.0
      %3517 = vmatpush1.msra.mxu0 %v3493
      %3518 = vmatprep.subr.mxu0 0.0
      %3519 = vmatpush1.msra.mxu0 %v3495
      %3520 = vmatprep.subr.mxu0 0.0
      %3521 = vmatpush1.msra.mxu0 %v3497
      %3522 = vmatprep.subr.mxu0 0.0
      %3523 = vmatpush1.msra.mxu0 0.0
      %3524 = vmatprep.subr.mxu0 0.0
      %3525 = vmatpush1.msra.mxu0 0.0
      %3526 = vmatprep.subr.mxu0 0.0
      %3527 = vmatpush1.msra.mxu0 0.0
      %3528 = vmatprep.subr.mxu0 0.0
      %3529 = vmatpush1.msra.mxu0 0.0
      %3530 = vmatprep.subr.mxu0 0.0
      %3531 = vmatpush1.msra.mxu0 0.0
      %3532 = vmatprep.subr.mxu0 0.0
      %3533 = vmatpush1.msra.mxu0 0.0
      %3534 = vmatprep.subr.mxu0 0.0
      %3535 = vmatpush1.msra.mxu0 0.0
      %3536 = vmatprep.subr.mxu0 0.0
      %3537 = vmatpush1.msra.mxu0 0.0
      %3538 = vmatprep.subr.mxu0 0.0
      %3539 = vmatpush1.msra.mxu0 0.0
      %3540 = vmatprep.subr.mxu0 0.0
      %3541 = vmatpush1.msra.mxu0 0.0
      %3542 = vmatprep.subr.mxu0 0.0
      %3543 = vmatpush1.msra.mxu0 0.0
      %3544 = vmatprep.subr.mxu0 0.0
      %3545 = vmatpush1.msra.mxu0 0.0
      %3546 = vmatprep.subr.mxu0 0.0
      %3547 = vmatpush1.msra.mxu0 0.0
      %3548 = vmatprep.subr.mxu0 0.0
      %3549 = vmatpush1.msra.mxu0 0.0
      %3550 = vmatprep.subr.mxu0 0.0
      %3551 = vmatpush1.msra.mxu0 0.0
      %3552 = vmatprep.subr.mxu0 0.0
      %3553 = vmatpush1.msra.mxu0 0.0
      %3554 = vmatprep.subr.mxu0 0.0
      %3555 = vmatpush1.msra.mxu0 0.0
      %3556 = vmatprep.subr.mxu0 0.0
      %3557 = vmatpush1.msra.mxu0 0.0
      %3558 = vmatprep.subr.mxu0 0.0
      %3559 = vmatpush1.msra.mxu0 0.0
      %3560 = vmatprep.subr.mxu0 0.0
      %3561 = vmatpush1.msra.mxu0 0.0
      %3562 = vmatprep.subr.mxu0 0.0
      %3563 = vmatpush1.msra.mxu0 0.0
      %3564 = vmatprep.subr.mxu0 0.0
      %3565 = vmatpush1.msra.mxu0 0.0
      %3566 = vmatprep.subr.mxu0 0.0
      %3567 = vmatpush1.msra.mxu0 0.0
      %3568 = vmatprep.subr.mxu0 0.0
      %3569 = vmatpush1.msra.mxu0 0.0
      %3570 = vmatprep.subr.mxu0 0.0
      %3571 = vmatpush1.msra.mxu0 0.0
      %3572 = vmatprep.subr.mxu0 0.0
      %3573 = vmatpush1.msra.mxu0 0.0
      %3574 = vmatprep.subr.mxu0 0.0
      %3575 = vmatpush1.msra.mxu0 0.0
      %3576 = vmatprep.subr.mxu0 0.0
      %3577 = vmatpush1.msra.mxu0 0.0
      %3578 = vmatprep.mubr.f32.mxu0 0.0
      %3579 = vmatmul.mubr.f32.gmra.mrb[0].mxu0 %v3503
      %v3580 = vpop.f32.mrb[0].mxu0
      %v3581 = vadd.f32 0.0, %v3580
      %v3582 = vpop.f32.mrb[0].mxu0
      %3583 = vmatprep.mubr.f32.mxu0 0.0
      %3584 = vmatmul.mubr.f32.gmra.mrb[0].mxu0 %v3506
      %v3585 = vpop.f32.mrb[0].mxu0
      %v3586 = vadd.f32 0.0, %v3585
      %v3587 = vpop.f32.mrb[0].mxu0
      %3588 = vmatprep.mubr.f32.mxu0 0.0
      %3589 = vmatmul.mubr.f32.gmra.mrb[0].mxu0 %v3509
      %v3590 = vpop.f32.mrb[0].mxu0
      %v3591 = vadd.f32 0.0, %v3590
      %v3592 = vpop.f32.mrb[0].mxu0
      %3593 = vmatprep.mubr.f32.mxu0 0.0
      %3594 = vmatmul.mubr.f32.gmra.mrb[0].mxu0 %v3512
      %v3595 = vpop.f32.mrb[0].mxu0
      %v3596 = vadd.f32 0.0, %v3595
      %v3597 = vpop.f32.mrb[0].mxu0
      %3598 = vdwg.mxu0
      %3603 = vrot.lane.b32.xlu0 %v3025, 8
      %v3604 = vpop.permute.xlu0 %3603
      %3605 = vrot.lane.b32.xlu0 %v3030, 8
      %v3606 = vpop.permute.xlu0 %3605
      %3607 = vrot.lane.b32.xlu0 %v3035, 8
      %v3608 = vpop.permute.xlu0 %3607
      %3609 = vrot.lane.b32.xlu0 %v3040, 8
      %v3610 = vpop.permute.xlu0 %3609
      %3619 = vrot.lane.b32.xlu0 %v3303, 16
      %v3620 = vpop.permute.xlu0 %3619
      %3621 = vrot.lane.b32.xlu0 %v3308, 16
      %v3622 = vpop.permute.xlu0 %3621
      %3623 = vrot.lane.b32.xlu0 %v3313, 16
      %v3624 = vpop.permute.xlu0 %3623
      %3625 = vrot.lane.b32.xlu0 %v3318, 16
      %v3626 = vpop.permute.xlu0 %3625
      %3635 = vrot.lane.b32.xlu0 %v3581, 24
      %v3636 = vpop.permute.xlu0 %3635
      %3637 = vrot.lane.b32.xlu0 %v3586, 24
      %v3638 = vpop.permute.xlu0 %3637
      %3639 = vrot.lane.b32.xlu0 %v3591, 24
      %v3640 = vpop.permute.xlu0 %3639
      %3641 = vrot.lane.b32.xlu0 %v3596, 24
      %v3642 = vpop.permute.xlu0 %3641
      %v3647 = vsel %vm718, %v2747, %v3604
      %v3648 = vsel %vm718, %v2752, %v3606
      %v3649 = vsel %vm718, %v2757, %v3608
      %v3650 = vsel %vm718, %v2762, %v3610
      %v3651 = vsel %vm1867, %v3647, %v3620
      %v3652 = vsel %vm1867, %v3648, %v3622
      %v3653 = vsel %vm1867, %v3649, %v3624
      %v3654 = vsel %vm1867, %v3650, %v3626
      %v3655 = vsel %vm1872, %v3651, %v3636
      %v3656 = vsel %vm1872, %v3652, %v3638
      %v3657 = vsel %vm1872, %v3653, %v3640
      %v3658 = vsel %vm1872, %v3654, %v3642
      %s3659 = scalar_lea.vmem %s5, 32
      %v3660 = vld [vmem:[%s3659] sm:$0xff]
      %v3661 = vld [vmem:[%s3659 + $0x8] sm:$0xff]
      %v3662 = vld [vmem:[%s3659 + $0x10] sm:$0xff]
      %v3663 = vld [vmem:[%s3659 + $0x18] sm:$0xff]
      %v3665 = vsel %vm531, %v3655, 0
      %v3668 = vsel %vm531, %v3656, 0
      %v3671 = vsel %vm531, %v3657, 0
      %v3674 = vsel %vm531, %v3658, 0
      %3676 = vmatprep.subr.mxu0 0.0
      %3677 = vmatpush1.msra.mxu0 %v3660
      %3678 = vmatprep.subr.mxu0 0.0
      %3679 = vmatpush1.msra.mxu0 %v3661
      %3680 = vmatprep.subr.mxu0 0.0
      %3681 = vmatpush1.msra.mxu0 %v3662
      %3682 = vmatprep.subr.mxu0 0.0
      %3683 = vmatpush1.msra.mxu0 %v3663
      %3684 = vmatprep.subr.mxu0 0.0
      %3685 = vmatpush1.msra.mxu0 0.0
      %3686 = vmatprep.subr.mxu0 0.0
      %3687 = vmatpush1.msra.mxu0 0.0
      %3688 = vmatprep.subr.mxu0 0.0
      %3689 = vmatpush1.msra.mxu0 0.0
      %3690 = vmatprep.subr.mxu0 0.0
      %3691 = vmatpush1.msra.mxu0 0.0
      %3692 = vmatprep.subr.mxu0 0.0
      %3693 = vmatpush1.msra.mxu0 0.0
      %3694 = vmatprep.subr.mxu0 0.0
      %3695 = vmatpush1.msra.mxu0 0.0
      %3696 = vmatprep.subr.mxu0 0.0
      %3697 = vmatpush1.msra.mxu0 0.0
      %3698 = vmatprep.subr.mxu0 0.0
      %3699 = vmatpush1.msra.mxu0 0.0
      %3700 = vmatprep.subr.mxu0 0.0
      %3701 = vmatpush1.msra.mxu0 0.0
      %3702 = vmatprep.subr.mxu0 0.0
      %3703 = vmatpush1.msra.mxu0 0.0
      %3704 = vmatprep.subr.mxu0 0.0
      %3705 = vmatpush1.msra.mxu0 0.0
      %3706 = vmatprep.subr.mxu0 0.0
      %3707 = vmatpush1.msra.mxu0 0.0
      %3708 = vmatprep.subr.mxu0 0.0
      %3709 = vmatpush1.msra.mxu0 0.0
      %3710 = vmatprep.subr.mxu0 0.0
      %3711 = vmatpush1.msra.mxu0 0.0
      %3712 = vmatprep.subr.mxu0 0.0
      %3713 = vmatpush1.msra.mxu0 0.0
      %3714 = vmatprep.subr.mxu0 0.0
      %3715 = vmatpush1.msra.mxu0 0.0
      %3716 = vmatprep.subr.mxu0 0.0
      %3717 = vmatpush1.msra.mxu0 0.0
      %3718 = vmatprep.subr.mxu0 0.0
      %3719 = vmatpush1.msra.mxu0 0.0
      %3720 = vmatprep.subr.mxu0 0.0
      %3721 = vmatpush1.msra.mxu0 0.0
      %3722 = vmatprep.subr.mxu0 0.0
      %3723 = vmatpush1.msra.mxu0 0.0
      %3724 = vmatprep.subr.mxu0 0.0
      %3725 = vmatpush1.msra.mxu0 0.0
      %3726 = vmatprep.subr.mxu0 0.0
      %3727 = vmatpush1.msra.mxu0 0.0
      %3728 = vmatprep.subr.mxu0 0.0
      %3729 = vmatpush1.msra.mxu0 0.0
      %3730 = vmatprep.subr.mxu0 0.0
      %3731 = vmatpush1.msra.mxu0 0.0
      %3732 = vmatprep.subr.mxu0 0.0
      %3733 = vmatpush1.msra.mxu0 0.0
      %3734 = vmatprep.subr.mxu0 0.0
      %3735 = vmatpush1.msra.mxu0 0.0
      %3736 = vmatprep.subr.mxu0 0.0
      %3737 = vmatpush1.msra.mxu0 0.0
      %3738 = vmatprep.subr.mxu0 0.0
      %3739 = vmatpush1.msra.mxu0 0.0
      %3740 = vmatprep.mubr.f32.mxu0 0.0
      %3741 = vmatmul.mubr.f32.gmra.mrb[0].mxu0 %v3665
      %v3742 = vpop.f32.mrb[0].mxu0
      %v3743 = vadd.f32 0.0, %v3742
      %v3744 = vpop.f32.mrb[0].mxu0
      %3745 = vmatprep.mubr.f32.mxu0 0.0
      %3746 = vmatmul.mubr.f32.gmra.mrb[0].mxu0 %v3668
      %v3747 = vpop.f32.mrb[0].mxu0
      %v3748 = vadd.f32 0.0, %v3747
      %v3749 = vpop.f32.mrb[0].mxu0
      %3750 = vmatprep.mubr.f32.mxu0 0.0
      %3751 = vmatmul.mubr.f32.gmra.mrb[0].mxu0 %v3671
      %v3752 = vpop.f32.mrb[0].mxu0
      %v3753 = vadd.f32 0.0, %v3752
      %v3754 = vpop.f32.mrb[0].mxu0
      %3755 = vmatprep.mubr.f32.mxu0 0.0
      %3756 = vmatmul.mubr.f32.gmra.mrb[0].mxu0 %v3674
      %v3757 = vpop.f32.mrb[0].mxu0
      %v3758 = vadd.f32 0.0, %v3757
      %v3759 = vpop.f32.mrb[0].mxu0
      %3760 = vdwg.mxu0
      %v3761 = vadd.f32 %v2313, %v3743
      %v3762 = vadd.f32 %v2314, %v3748
      %v3763 = vadd.f32 %v2315, %v3753
      %v3764 = vadd.f32 %v2316, %v3758
      %v3765 = vlaneseq
      %v3766 = vshrl.u32 %v3765, 7
      %v3767 = vsub.s32 3, %v3766
      %v3768 = vrot.slane %v368, %v3767
      %v3769 = vadd.f32 %v3761, %v3768
      %v3770 = vadd.f32 %v3762, %v3768
      %v3771 = vadd.f32 %v3763, %v3768
      %v3772 = vadd.f32 %v3764, %v3768
      %v3773 = vsel %vm531, %v3769, 0.0
      %3774 = vadd.xlane.f32.xlu0 %v3773
      %v3775 = vpop.xlane.xlu0 %3774
      %v3776 = vsel %vm531, %v3770, 0.0
      %3777 = vadd.xlane.f32.xlu0 %v3776
      %v3778 = vpop.xlane.xlu0 %3777
      %v3779 = vsel %vm531, %v3771, 0.0
      %3780 = vadd.xlane.f32.xlu0 %v3779
      %v3781 = vpop.xlane.xlu0 %3780
      %v3782 = vsel %vm531, %v3772, 0.0
      %3783 = vadd.xlane.f32.xlu0 %v3782
      %v3784 = vpop.xlane.xlu0 %3783
      %v3785 = vmul.f32 %v3775, %v544
      %v3786 = vmul.f32 %v3778, %v544
      %v3787 = vmul.f32 %v3781, %v544
      %v3788 = vmul.f32 %v3784, %v544
      %v3789 = vsub.f32 %v3769, %v3785
      %v3790 = vsub.f32 %v3770, %v3786
      %v3791 = vsub.f32 %v3771, %v3787
      %v3792 = vsub.f32 %v3772, %v3788
      %v3793 = vmul.f32 %v3789, %v3789
      %v3794 = vmul.f32 %v3790, %v3790
      %v3795 = vmul.f32 %v3791, %v3791
      %v3796 = vmul.f32 %v3792, %v3792
      %v3797 = vsel %vm531, %v3793, 0.0
      %3798 = vadd.xlane.f32.xlu0 %v3797
      %v3799 = vpop.xlane.xlu0 %3798
      %v3800 = vsel %vm531, %v3794, 0.0
      %3801 = vadd.xlane.f32.xlu0 %v3800
      %v3802 = vpop.xlane.xlu0 %3801
      %v3803 = vsel %vm531, %v3795, 0.0
      %3804 = vadd.xlane.f32.xlu0 %v3803
      %v3805 = vpop.xlane.xlu0 %3804
      %v3806 = vsel %vm531, %v3796, 0.0
      %3807 = vadd.xlane.f32.xlu0 %v3806
      %v3808 = vpop.xlane.xlu0 %3807
      %v3809 = vmul.f32 %v3799, %v544
      %v3810 = vmul.f32 %v3802, %v544
      %v3811 = vmul.f32 %v3805, %v544
      %v3812 = vmul.f32 %v3808, %v544
      %v3813 = vadd.f32 %v3809, 1e-05
      %v3814 = vadd.f32 %v3810, 1e-05
      %v3815 = vadd.f32 %v3811, 1e-05
      %v3816 = vadd.f32 %v3812, 1e-05
      %v3817 = vrsqrt.pop %v3813
      %v3818 = vrsqrt.pop %v3814
      %v3819 = vrsqrt.pop %v3815
      %v3820 = vrsqrt.pop %v3816
      %v3821 = vmul.f32 %v3789, %v3817
      %v3822 = vmul.f32 %v3790, %v3818
      %v3823 = vmul.f32 %v3791, %v3819
      %v3824 = vmul.f32 %v3792, %v3820
      %v3825 = vlaneseq
      %v3826 = vshrl.u32 %v3825, 7
      %v3827 = vsub.s32 4, %v3826
      %v3828 = vrot.slane %v368, %v3827
      %v3829 = vmul.f32 %v3821, %v3828
      %v3830 = vmul.f32 %v3822, %v3828
      %v3831 = vmul.f32 %v3823, %v3828
      %v3832 = vmul.f32 %v3824, %v3828
      %v3833 = vlaneseq
      %v3834 = vshrl.u32 %v3833, 7
      %v3835 = vsub.s32 5, %v3834
      %v3836 = vrot.slane %v368, %v3835
      %v3837 = vadd.f32 %v3829, %v3836
      %v3838 = vadd.f32 %v3830, %v3836
      %v3839 = vadd.f32 %v3831, %v3836
      %v3840 = vadd.f32 %v3832, %v3836
      %s3841 = scalar_lea.vmem %s6, 32
      %v3842 = vld [vmem:[%s3841] sm:$0xff]
      %v3843 = vld [vmem:[%s3841 + $0x8] sm:$0xff]
      %v3844 = vld [vmem:[%s3841 + $0x10] sm:$0xff]
      %v3845 = vld [vmem:[%s3841 + $0x18] sm:$0xff]
      %v3846 = vlaneseq
      %v3847 = vshrl.u32 %v3846, 7
      %v3848 = vsub.s32 6, %v3847
      %v3849 = vrot.slane %v368, %v3848
      %v3851 = vsel %vm531, %v3837, 0
      %v3854 = vsel %vm531, %v3838, 0
      %v3857 = vsel %vm531, %v3839, 0
      %v3860 = vsel %vm531, %v3840, 0
      %3862 = vmatprep.subr.mxu0 0.0
      %3863 = vmatpush1.msra.mxu0 %v3842
      %3864 = vmatprep.subr.mxu0 0.0
      %3865 = vmatpush1.msra.mxu0 %v3843
      %3866 = vmatprep.subr.mxu0 0.0
      %3867 = vmatpush1.msra.mxu0 %v3844
      %3868 = vmatprep.subr.mxu0 0.0
      %3869 = vmatpush1.msra.mxu0 %v3845
      %3870 = vmatprep.subr.mxu0 0.0
      %3871 = vmatpush1.msra.mxu0 0.0
      %3872 = vmatprep.subr.mxu0 0.0
      %3873 = vmatpush1.msra.mxu0 0.0
      %3874 = vmatprep.subr.mxu0 0.0
      %3875 = vmatpush1.msra.mxu0 0.0
      %3876 = vmatprep.subr.mxu0 0.0
      %3877 = vmatpush1.msra.mxu0 0.0
      %3878 = vmatprep.subr.mxu0 0.0
      %3879 = vmatpush1.msra.mxu0 0.0
      %3880 = vmatprep.subr.mxu0 0.0
      %3881 = vmatpush1.msra.mxu0 0.0
      %3882 = vmatprep.subr.mxu0 0.0
      %3883 = vmatpush1.msra.mxu0 0.0
      %3884 = vmatprep.subr.mxu0 0.0
      %3885 = vmatpush1.msra.mxu0 0.0
      %3886 = vmatprep.subr.mxu0 0.0
      %3887 = vmatpush1.msra.mxu0 0.0
      %3888 = vmatprep.subr.mxu0 0.0
      %3889 = vmatpush1.msra.mxu0 0.0
      %3890 = vmatprep.subr.mxu0 0.0
      %3891 = vmatpush1.msra.mxu0 0.0
      %3892 = vmatprep.subr.mxu0 0.0
      %3893 = vmatpush1.msra.mxu0 0.0
      %3894 = vmatprep.subr.mxu0 0.0
      %3895 = vmatpush1.msra.mxu0 0.0
      %3896 = vmatprep.subr.mxu0 0.0
      %3897 = vmatpush1.msra.mxu0 0.0
      %3898 = vmatprep.subr.mxu0 0.0
      %3899 = vmatpush1.msra.mxu0 0.0
      %3900 = vmatprep.subr.mxu0 0.0
      %3901 = vmatpush1.msra.mxu0 0.0
      %3902 = vmatprep.subr.mxu0 0.0
      %3903 = vmatpush1.msra.mxu0 0.0
      %3904 = vmatprep.subr.mxu0 0.0
      %3905 = vmatpush1.msra.mxu0 0.0
      %3906 = vmatprep.subr.mxu0 0.0
      %3907 = vmatpush1.msra.mxu0 0.0
      %3908 = vmatprep.subr.mxu0 0.0
      %3909 = vmatpush1.msra.mxu0 0.0
      %3910 = vmatprep.subr.mxu0 0.0
      %3911 = vmatpush1.msra.mxu0 0.0
      %3912 = vmatprep.subr.mxu0 0.0
      %3913 = vmatpush1.msra.mxu0 0.0
      %3914 = vmatprep.subr.mxu0 0.0
      %3915 = vmatpush1.msra.mxu0 0.0
      %3916 = vmatprep.subr.mxu0 0.0
      %3917 = vmatpush1.msra.mxu0 0.0
      %3918 = vmatprep.subr.mxu0 0.0
      %3919 = vmatpush1.msra.mxu0 0.0
      %3920 = vmatprep.subr.mxu0 0.0
      %3921 = vmatpush1.msra.mxu0 0.0
      %3922 = vmatprep.subr.mxu0 0.0
      %3923 = vmatpush1.msra.mxu0 0.0
      %3924 = vmatprep.subr.mxu0 0.0
      %3925 = vmatpush1.msra.mxu0 0.0
      %3926 = vmatprep.mubr.f32.mxu0 0.0
      %3927 = vmatmul.mubr.f32.gmra.mrb[0].mxu0 %v3851
      %v3928 = vpop.f32.mrb[0].mxu0
      %v3929 = vadd.f32 %v3849, %v3928
      %v3930 = vpop.f32.mrb[0].mxu0
      %3931 = vmatprep.mubr.f32.mxu0 0.0
      %3932 = vmatmul.mubr.f32.gmra.mrb[0].mxu0 %v3854
      %v3933 = vpop.f32.mrb[0].mxu0
      %v3934 = vadd.f32 %v3849, %v3933
      %v3935 = vpop.f32.mrb[0].mxu0
      %3936 = vmatprep.mubr.f32.mxu0 0.0
      %3937 = vmatmul.mubr.f32.gmra.mrb[0].mxu0 %v3857
      %v3938 = vpop.f32.mrb[0].mxu0
      %v3939 = vadd.f32 %v3849, %v3938
      %v3940 = vpop.f32.mrb[0].mxu0
      %3941 = vmatprep.mubr.f32.mxu0 0.0
      %3942 = vmatmul.mubr.f32.gmra.mrb[0].mxu0 %v3860
      %v3943 = vpop.f32.mrb[0].mxu0
      %v3944 = vadd.f32 %v3849, %v3943
      %v3945 = vpop.f32.mrb[0].mxu0
      %3946 = vdwg.mxu0
      %v3947 = vmul.f32 %v3929, 0.5
      %v3948 = vmul.f32 %v3934, 0.5
      %v3949 = vmul.f32 %v3939, 0.5
      %v3950 = vmul.f32 %v3944, 0.5
      %v3951 = vmul.f32 %v3929, 0.044715
      %v3952 = vmul.f32 %v3934, 0.044715
      %v3953 = vmul.f32 %v3939, 0.044715
      %v3954 = vmul.f32 %v3944, 0.044715
      %v3955 = vmul.f32 %v3951, %v3929
      %v3956 = vmul.f32 %v3952, %v3934
      %v3957 = vmul.f32 %v3953, %v3939
      %v3958 = vmul.f32 %v3954, %v3944
      %v3959 = vmul.f32 %v3955, %v3929
      %v3960 = vmul.f32 %v3956, %v3934
      %v3961 = vmul.f32 %v3957, %v3939
      %v3962 = vmul.f32 %v3958, %v3944
      %v3963 = vadd.f32 %v3929, %v3959
      %v3964 = vadd.f32 %v3934, %v3960
      %v3965 = vadd.f32 %v3939, %v3961
      %v3966 = vadd.f32 %v3944, %v3962
      %v3967 = vmul.f32 %v3963, 0.7978846
      %v3968 = vmul.f32 %v3964, 0.7978846
      %v3969 = vmul.f32 %v3965, 0.7978846
      %v3970 = vmul.f32 %v3966, 0.7978846
      %v3971 = vtanh.pop %v3967
      %v3972 = vtanh.pop %v3968
      %v3973 = vtanh.pop %v3969
      %v3974 = vtanh.pop %v3970
      %v3975 = vadd.f32 %v3971, 1.0
      %v3976 = vadd.f32 %v3972, 1.0
      %v3977 = vadd.f32 %v3973, 1.0
      %v3978 = vadd.f32 %v3974, 1.0
      %v3979 = vmul.f32 %v3947, %v3975
      %v3980 = vmul.f32 %v3948, %v3976
      %v3981 = vmul.f32 %v3949, %v3977
      %v3982 = vmul.f32 %v3950, %v3978
      %s3983 = scalar_lea.vmem %s7, 64
      %v3984 = vld [vmem:[%s3983] sm:$0xff]
      %v3985 = vld [vmem:[%s3983 + $0x8] sm:$0xff]
      %v3986 = vld [vmem:[%s3983 + $0x10] sm:$0xff]
      %v3987 = vld [vmem:[%s3983 + $0x18] sm:$0xff]
      %v3988 = vld [vmem:[%s3983 + $0x20] sm:$0xff]
      %v3989 = vld [vmem:[%s3983 + $0x28] sm:$0xff]
      %v3990 = vld [vmem:[%s3983 + $0x30] sm:$0xff]
      %v3991 = vld [vmem:[%s3983 + $0x38] sm:$0xff]
      %v3993 = vsel %vm2207, %v3979, 0
      %v3996 = vsel %vm2207, %v3980, 0
      %v3999 = vsel %vm2207, %v3981, 0
      %v4002 = vsel %vm2207, %v3982, 0
      %4004 = vmatprep.subr.mxu0 0.0
      %4005 = vmatpush1.msra.mxu0 %v3984
      %4006 = vmatprep.subr.mxu0 0.0
      %4007 = vmatpush1.msra.mxu0 %v3985
      %4008 = vmatprep.subr.mxu0 0.0
      %4009 = vmatpush1.msra.mxu0 %v3986
      %4010 = vmatprep.subr.mxu0 0.0
      %4011 = vmatpush1.msra.mxu0 %v3987
      %4012 = vmatprep.subr.mxu0 0.0
      %4013 = vmatpush1.msra.mxu0 %v3988
      %4014 = vmatprep.subr.mxu0 0.0
      %4015 = vmatpush1.msra.mxu0 %v3989
      %4016 = vmatprep.subr.mxu0 0.0
      %4017 = vmatpush1.msra.mxu0 %v3990
      %4018 = vmatprep.subr.mxu0 0.0
      %4019 = vmatpush1.msra.mxu0 %v3991
      %4020 = vmatprep.subr.mxu0 0.0
      %4021 = vmatpush1.msra.mxu0 0.0
      %4022 = vmatprep.subr.mxu0 0.0
      %4023 = vmatpush1.msra.mxu0 0.0
      %4024 = vmatprep.subr.mxu0 0.0
      %4025 = vmatpush1.msra.mxu0 0.0
      %4026 = vmatprep.subr.mxu0 0.0
      %4027 = vmatpush1.msra.mxu0 0.0
      %4028 = vmatprep.subr.mxu0 0.0
      %4029 = vmatpush1.msra.mxu0 0.0
      %4030 = vmatprep.subr.mxu0 0.0
      %4031 = vmatpush1.msra.mxu0 0.0
      %4032 = vmatprep.subr.mxu0 0.0
      %4033 = vmatpush1.msra.mxu0 0.0
      %4034 = vmatprep.subr.mxu0 0.0
      %4035 = vmatpush1.msra.mxu0 0.0
      %4036 = vmatprep.subr.mxu0 0.0
      %4037 = vmatpush1.msra.mxu0 0.0
      %4038 = vmatprep.subr.mxu0 0.0
      %4039 = vmatpush1.msra.mxu0 0.0
      %4040 = vmatprep.subr.mxu0 0.0
      %4041 = vmatpush1.msra.mxu0 0.0
      %4042 = vmatprep.subr.mxu0 0.0
      %4043 = vmatpush1.msra.mxu0 0.0
      %4044 = vmatprep.subr.mxu0 0.0
      %4045 = vmatpush1.msra.mxu0 0.0
      %4046 = vmatprep.subr.mxu0 0.0
      %4047 = vmatpush1.msra.mxu0 0.0
      %4048 = vmatprep.subr.mxu0 0.0
      %4049 = vmatpush1.msra.mxu0 0.0
      %4050 = vmatprep.subr.mxu0 0.0
      %4051 = vmatpush1.msra.mxu0 0.0
      %4052 = vmatprep.subr.mxu0 0.0
      %4053 = vmatpush1.msra.mxu0 0.0
      %4054 = vmatprep.subr.mxu0 0.0
      %4055 = vmatpush1.msra.mxu0 0.0
      %4056 = vmatprep.subr.mxu0 0.0
      %4057 = vmatpush1.msra.mxu0 0.0
      %4058 = vmatprep.subr.mxu0 0.0
      %4059 = vmatpush1.msra.mxu0 0.0
      %4060 = vmatprep.subr.mxu0 0.0
      %4061 = vmatpush1.msra.mxu0 0.0
      %4062 = vmatprep.subr.mxu0 0.0
      %4063 = vmatpush1.msra.mxu0 0.0
      %4064 = vmatprep.subr.mxu0 0.0
      %4065 = vmatpush1.msra.mxu0 0.0
      %4066 = vmatprep.subr.mxu0 0.0
      %4067 = vmatpush1.msra.mxu0 0.0
      %4068 = vmatprep.mubr.f32.mxu0 0.0
      %4069 = vmatmul.mubr.f32.gmra.mrb[0].mxu0 %v3993
      %v4070 = vpop.f32.mrb[0].mxu0
      %v4071 = vadd.f32 0.0, %v4070
      %v4072 = vpop.f32.mrb[0].mxu0
      %4073 = vmatprep.mubr.f32.mxu0 0.0
      %4074 = vmatmul.mubr.f32.gmra.mrb[0].mxu0 %v3996
      %v4075 = vpop.f32.mrb[0].mxu0
      %v4076 = vadd.f32 0.0, %v4075
      %v4077 = vpop.f32.mrb[0].mxu0
      %4078 = vmatprep.mubr.f32.mxu0 0.0
      %4079 = vmatmul.mubr.f32.gmra.mrb[0].mxu0 %v3999
      %v4080 = vpop.f32.mrb[0].mxu0
      %v4081 = vadd.f32 0.0, %v4080
      %v4082 = vpop.f32.mrb[0].mxu0
      %4083 = vmatprep.mubr.f32.mxu0 0.0
      %4084 = vmatmul.mubr.f32.gmra.mrb[0].mxu0 %v4002
      %v4085 = vpop.f32.mrb[0].mxu0
      %v4086 = vadd.f32 0.0, %v4085
      %v4087 = vpop.f32.mrb[0].mxu0
      %4088 = vdwg.mxu0
      %v4089 = vadd.f32 %v3769, %v4071
      %v4090 = vadd.f32 %v3770, %v4076
      %v4091 = vadd.f32 %v3771, %v4081
      %v4092 = vadd.f32 %v3772, %v4086
      %v4093 = vlaneseq
      %v4094 = vshrl.u32 %v4093, 7
      %v4095 = vsub.s32 7, %v4094
      %v4096 = vrot.slane %v368, %v4095
      %v4097 = vadd.f32 %v4089, %v4096
      %v4098 = vadd.f32 %v4090, %v4096
      %v4099 = vadd.f32 %v4091, %v4096
      %v4100 = vadd.f32 %v4092, %v4096
      %v4101 = vsel %vm531, %v4099, 0.0
      %4102 = vadd.xlane.f32.xlu0 %v4101
      %v4103 = vpop.xlane.xlu0 %4102
      %v4104 = vsel %vm531, %v4100, 0.0
      %4105 = vadd.xlane.f32.xlu0 %v4104
      %v4106 = vpop.xlane.xlu0 %4105
      %v4107 = vmul.f32 %v4103, %v544
      %v4108 = vmul.f32 %v4106, %v544
      %v4109 = vsub.f32 %v4099, %v4107
      %v4110 = vsub.f32 %v4100, %v4108
      %v4111 = vmul.f32 %v4109, %v4109
      %v4112 = vmul.f32 %v4110, %v4110
      %v4113 = vsel %vm531, %v4111, 0.0
      %4114 = vadd.xlane.f32.xlu0 %v4113
      %v4115 = vpop.xlane.xlu0 %4114
      %v4116 = vsel %vm531, %v4112, 0.0
      %4117 = vadd.xlane.f32.xlu0 %v4116
      %v4118 = vpop.xlane.xlu0 %4117
      %v4119 = vmul.f32 %v4115, %v544
      %v4120 = vmul.f32 %v4118, %v544
      %v4121 = vadd.f32 %v4119, 1e-05
      %v4122 = vadd.f32 %v4120, 1e-05
      %v4123 = vrsqrt.pop %v4121
      %v4124 = vrsqrt.pop %v4122
      %v4125 = vmul.f32 %v4109, %v4123
      %v4126 = vmul.f32 %v4110, %v4124
      %v4127 = vadd.f32 %v4125, 0.0
      %v4128 = vadd.f32 %v4126, 0.0
      %v4129 = vsel %vm531, %v4097, 0.0
      %4130 = vadd.xlane.f32.xlu0 %v4129
      %v4131 = vpop.xlane.xlu0 %4130
      %v4132 = vsel %vm531, %v4098, 0.0
      %4133 = vadd.xlane.f32.xlu0 %v4132
      %v4134 = vpop.xlane.xlu0 %4133
      %v4135 = vmul.f32 %v4131, %v544
      %v4136 = vmul.f32 %v4134, %v544
      %v4137 = vsub.f32 %v4097, %v4135
      %v4138 = vsub.f32 %v4098, %v4136
      %v4139 = vmul.f32 %v4137, %v4137
      %v4140 = vmul.f32 %v4138, %v4138
      %v4141 = vsel %vm531, %v4139, 0.0
      %4142 = vadd.xlane.f32.xlu0 %v4141
      %v4143 = vpop.xlane.xlu0 %4142
      %v4144 = vsel %vm531, %v4140, 0.0
      %4145 = vadd.xlane.f32.xlu0 %v4144
      %v4146 = vpop.xlane.xlu0 %4145
      %v4147 = vmul.f32 %v4143, %v544
      %v4148 = vmul.f32 %v4146, %v544
      %v4149 = vadd.f32 %v4147, 1e-05
      %v4150 = vadd.f32 %v4148, 1e-05
      %v4151 = vrsqrt.pop %v4149
      %v4152 = vrsqrt.pop %v4150
      %v4153 = vmul.f32 %v4137, %v4151
      %v4154 = vmul.f32 %v4138, %v4152
      %v4155 = vlaneseq
      %v4156 = vshrl.u32 %v4155, 7
      %v4157 = vsub.s32 0, %v4156
      %v4158 = vrot.slane %v369, %v4157
      %v4159 = vmul.f32 %v4153, %v4158
      %v4160 = vmul.f32 %v4154, %v4158
      %v4161 = vmul.f32 %v4125, %v4158
      %v4162 = vmul.f32 %v4126, %v4158
      %v4163 = vlaneseq
      %v4164 = vshrl.u32 %v4163, 7
      %v4165 = vsub.s32 1, %v4164
      %v4166 = vrot.slane %v369, %v4165
      %v4167 = vadd.f32 %v4159, %v4166
      %v4168 = vadd.f32 %v4160, %v4166
      %v4169 = vadd.f32 %v4161, %v4166
      %v4170 = vadd.f32 %v4162, %v4166
      %s4171 = scalar_lea.vmem %s4, 64
      %v4172 = vld [vmem:[%s4171] sm:$0xff]
      %v4173 = vld [vmem:[%s4171 + $0x8] sm:$0xff]
      %v4174 = vld [vmem:[%s4171 + $0x10] sm:$0xff]
      %v4175 = vld [vmem:[%s4171 + $0x18] sm:$0xff]
      %v4176 = vlaneseq
      %v4177 = vshrl.u32 %v4176, 7
      %v4178 = vsub.s32 2, %v4177
      %v4179 = vrot.slane %v369, %v4178
      %v4181 = vsel %vm531, %v4167, 0
      %v4184 = vsel %vm531, %v4168, 0
      %v4187 = vsel %vm531, %v4169, 0
      %v4190 = vsel %vm531, %v4170, 0
      %4192 = vmatprep.subr.mxu0 0.0
      %4193 = vmatpush1.msra.mxu0 %v4172
      %4194 = vmatprep.subr.mxu0 0.0
      %4195 = vmatpush1.msra.mxu0 %v4173
      %4196 = vmatprep.subr.mxu0 0.0
      %4197 = vmatpush1.msra.mxu0 %v4174
      %4198 = vmatprep.subr.mxu0 0.0
      %4199 = vmatpush1.msra.mxu0 %v4175
      %4200 = vmatprep.subr.mxu0 0.0
      %4201 = vmatpush1.msra.mxu0 0.0
      %4202 = vmatprep.subr.mxu0 0.0
      %4203 = vmatpush1.msra.mxu0 0.0
      %4204 = vmatprep.subr.mxu0 0.0
      %4205 = vmatpush1.msra.mxu0 0.0
      %4206 = vmatprep.subr.mxu0 0.0
      %4207 = vmatpush1.msra.mxu0 0.0
      %4208 = vmatprep.subr.mxu0 0.0
      %4209 = vmatpush1.msra.mxu0 0.0
      %4210 = vmatprep.subr.mxu0 0.0
      %4211 = vmatpush1.msra.mxu0 0.0
      %4212 = vmatprep.subr.mxu0 0.0
      %4213 = vmatpush1.msra.mxu0 0.0
      %4214 = vmatprep.subr.mxu0 0.0
      %4215 = vmatpush1.msra.mxu0 0.0
      %4216 = vmatprep.subr.mxu0 0.0
      %4217 = vmatpush1.msra.mxu0 0.0
      %4218 = vmatprep.subr.mxu0 0.0
      %4219 = vmatpush1.msra.mxu0 0.0
      %4220 = vmatprep.subr.mxu0 0.0
      %4221 = vmatpush1.msra.mxu0 0.0
      %4222 = vmatprep.subr.mxu0 0.0
      %4223 = vmatpush1.msra.mxu0 0.0
      %4224 = vmatprep.subr.mxu0 0.0
      %4225 = vmatpush1.msra.mxu0 0.0
      %4226 = vmatprep.subr.mxu0 0.0
      %4227 = vmatpush1.msra.mxu0 0.0
      %4228 = vmatprep.subr.mxu0 0.0
      %4229 = vmatpush1.msra.mxu0 0.0
      %4230 = vmatprep.subr.mxu0 0.0
      %4231 = vmatpush1.msra.mxu0 0.0
      %4232 = vmatprep.subr.mxu0 0.0
      %4233 = vmatpush1.msra.mxu0 0.0
      %4234 = vmatprep.subr.mxu0 0.0
      %4235 = vmatpush1.msra.mxu0 0.0
      %4236 = vmatprep.subr.mxu0 0.0
      %4237 = vmatpush1.msra.mxu0 0.0
      %4238 = vmatprep.subr.mxu0 0.0
      %4239 = vmatpush1.msra.mxu0 0.0
      %4240 = vmatprep.subr.mxu0 0.0
      %4241 = vmatpush1.msra.mxu0 0.0
      %4242 = vmatprep.subr.mxu0 0.0
      %4243 = vmatpush1.msra.mxu0 0.0
      %4244 = vmatprep.subr.mxu0 0.0
      %4245 = vmatpush1.msra.mxu0 0.0
      %4246 = vmatprep.subr.mxu0 0.0
      %4247 = vmatpush1.msra.mxu0 0.0
      %4248 = vmatprep.subr.mxu0 0.0
      %4249 = vmatpush1.msra.mxu0 0.0
      %4250 = vmatprep.subr.mxu0 0.0
      %4251 = vmatpush1.msra.mxu0 0.0
      %4252 = vmatprep.subr.mxu0 0.0
      %4253 = vmatpush1.msra.mxu0 0.0
      %4254 = vmatprep.subr.mxu0 0.0
      %4255 = vmatpush1.msra.mxu0 0.0
      %4256 = vmatprep.mubr.f32.mxu0 0.0
      %4257 = vmatmul.mubr.f32.gmra.mrb[0].mxu0 %v4181
      %v4258 = vpop.f32.mrb[0].mxu0
      %v4259 = vadd.f32 %v4179, %v4258
      %v4260 = vpop.f32.mrb[0].mxu0
      %4261 = vmatprep.mubr.f32.mxu0 0.0
      %4262 = vmatmul.mubr.f32.gmra.mrb[0].mxu0 %v4184
      %v4263 = vpop.f32.mrb[0].mxu0
      %v4264 = vadd.f32 %v4179, %v4263
      %v4265 = vpop.f32.mrb[0].mxu0
      %4266 = vmatprep.mubr.f32.mxu0 0.0
      %4267 = vmatmul.mubr.f32.gmra.mrb[0].mxu0 %v4187
      %v4268 = vpop.f32.mrb[0].mxu0
      %v4269 = vadd.f32 %v4179, %v4268
      %v4270 = vpop.f32.mrb[0].mxu0
      %4271 = vmatprep.mubr.f32.mxu0 0.0
      %4272 = vmatmul.mubr.f32.gmra.mrb[0].mxu0 %v4190
      %v4273 = vpop.f32.mrb[0].mxu0
      %v4274 = vadd.f32 %v4179, %v4273
      %v4275 = vpop.f32.mrb[0].mxu0
      %4276 = vdwg.mxu0
      %4281 = vrot.lane.b32.xlu0 %v4259, 96
      %v4282 = vpop.permute.xlu0 %4281
      %4283 = vrot.lane.b32.xlu0 %v4264, 96
      %v4284 = vpop.permute.xlu0 %4283
      %4285 = vrot.lane.b32.xlu0 %v4269, 96
      %v4286 = vpop.permute.xlu0 %4285
      %4287 = vrot.lane.b32.xlu0 %v4274, 96
      %v4288 = vpop.permute.xlu0 %4287
      %v4289 = vsel %vm718, %v4259, 0
      %v4291 = vsel %vm718, %v4264, 0
      %v4293 = vsel %vm718, %v4269, 0
      %v4295 = vsel %vm718, %v4274, 0
      %v4297 = vsel %vm718, %v4282, 0
      %v4299 = vsel %vm718, %v4284, 0
      %v4301 = vsel %vm718, %v4286, 0
      %v4303 = vsel %vm718, %v4288, 0
      %4305 = vmatprep.subr.mxu0 0.0
      %4306 = vmatpush1.xpose.msra.mxu0 %v4297
      %4307 = vmatprep.subr.mxu0 0.0
      %4308 = vmatpush1.xpose.msra.mxu0 %v4299
      %4309 = vmatprep.subr.mxu0 0.0
      %4310 = vmatpush1.xpose.msra.mxu0 %v4301
      %4311 = vmatprep.subr.mxu0 0.0
      %4312 = vmatpush1.xpose.msra.mxu0 %v4303
      %4313 = vmatprep.subr.mxu0 0.0
      %4314 = vmatpush1.xpose.msra.mxu0 0.0
      %4315 = vmatprep.subr.mxu0 0.0
      %4316 = vmatpush1.xpose.msra.mxu0 0.0
      %4317 = vmatprep.subr.mxu0 0.0
      %4318 = vmatpush1.xpose.msra.mxu0 0.0
      %4319 = vmatprep.subr.mxu0 0.0
      %4320 = vmatpush1.xpose.msra.mxu0 0.0
      %4321 = vmatprep.subr.mxu0 0.0
      %4322 = vmatpush1.xpose.msra.mxu0 0.0
      %4323 = vmatprep.subr.mxu0 0.0
      %4324 = vmatpush1.xpose.msra.mxu0 0.0
      %4325 = vmatprep.subr.mxu0 0.0
      %4326 = vmatpush1.xpose.msra.mxu0 0.0
      %4327 = vmatprep.subr.mxu0 0.0
      %4328 = vmatpush1.xpose.msra.mxu0 0.0
      %4329 = vmatprep.subr.mxu0 0.0
      %4330 = vmatpush1.xpose.msra.mxu0 0.0
      %4331 = vmatprep.subr.mxu0 0.0
      %4332 = vmatpush1.xpose.msra.mxu0 0.0
      %4333 = vmatprep.subr.mxu0 0.0
      %4334 = vmatpush1.xpose.msra.mxu0 0.0
      %4335 = vmatprep.subr.mxu0 0.0
      %4336 = vmatpush1.xpose.msra.mxu0 0.0
      %4337 = vmatprep.subr.mxu0 0.0
      %4338 = vmatpush1.xpose.msra.mxu0 0.0
      %4339 = vmatprep.subr.mxu0 0.0
      %4340 = vmatpush1.xpose.msra.mxu0 0.0
      %4341 = vmatprep.subr.mxu0 0.0
      %4342 = vmatpush1.xpose.msra.mxu0 0.0
      %4343 = vmatprep.subr.mxu0 0.0
      %4344 = vmatpush1.xpose.msra.mxu0 0.0
      %4345 = vmatprep.subr.mxu0 0.0
      %4346 = vmatpush1.xpose.msra.mxu0 0.0
      %4347 = vmatprep.subr.mxu0 0.0
      %4348 = vmatpush1.xpose.msra.mxu0 0.0
      %4349 = vmatprep.subr.mxu0 0.0
      %4350 = vmatpush1.xpose.msra.mxu0 0.0
      %4351 = vmatprep.subr.mxu0 0.0
      %4352 = vmatpush1.xpose.msra.mxu0 0.0
      %4353 = vmatprep.subr.mxu0 0.0
      %4354 = vmatpush1.xpose.msra.mxu0 0.0
      %4355 = vmatprep.subr.mxu0 0.0
      %4356 = vmatpush1.xpose.msra.mxu0 0.0
      %4357 = vmatprep.subr.mxu0 0.0
      %4358 = vmatpush1.xpose.msra.mxu0 0.0
      %4359 = vmatprep.subr.mxu0 0.0
      %4360 = vmatpush1.xpose.msra.mxu0 0.0
      %4361 = vmatprep.subr.mxu0 0.0
      %4362 = vmatpush1.xpose.msra.mxu0 0.0
      %4363 = vmatprep.subr.mxu0 0.0
      %4364 = vmatpush1.xpose.msra.mxu0 0.0
      %4365 = vmatprep.subr.mxu0 0.0
      %4366 = vmatpush1.xpose.msra.mxu0 0.0
      %4367 = vmatprep.subr.mxu0 0.0
      %4368 = vmatpush1.xpose.msra.mxu0 0.0
      %4369 = vmatprep.mubr.f32.mxu0 0.0
      %4370 = vmatmul.mubr.f32.gmra.mrb[0].mxu0 %v4289
      %v4371 = vpop.f32.mrb[0].mxu0
      %v4372 = vadd.f32 0.0, %v4371
      %v4373 = vpop.f32.mrb[0].mxu0
      %4374 = vmatprep.mubr.f32.mxu0 0.0
      %4375 = vmatmul.mubr.f32.gmra.mrb[0].mxu0 %v4291
      %v4376 = vpop.f32.mrb[0].mxu0
      %v4377 = vadd.f32 0.0, %v4376
      %v4378 = vpop.f32.mrb[0].mxu0
      %4379 = vmatprep.mubr.f32.mxu0 0.0
      %4380 = vmatmul.mubr.f32.gmra.mrb[0].mxu0 %v4293
      %v4381 = vpop.f32.mrb[0].mxu0
      %v4382 = vadd.f32 0.0, %v4381
      %v4383 = vpop.f32.mrb[0].mxu0
      %4384 = vmatprep.mubr.f32.mxu0 0.0
      %4385 = vmatmul.mubr.f32.gmra.mrb[0].mxu0 %v4295
      %v4386 = vpop.f32.mrb[0].mxu0
      %v4387 = vadd.f32 0.0, %v4386
      %v4388 = vpop.f32.mrb[0].mxu0
      %4389 = vdwg.mxu0
      %v4390 = vmul.f32 %v4372, 0.35355338
      %v4391 = vmul.f32 %v4377, 0.35355338
      %v4392 = vmul.f32 %v4382, 0.35355338
      %v4393 = vmul.f32 %v4387, 0.35355338
      %v4394 = vadd.f32 %v4390, %v527
      %v4395 = vadd.f32 %v4391, %v528
      %v4396 = vadd.f32 %v4392, %v529
      %v4397 = vadd.f32 %v4393, %v530
      %v4398 = vsel %vm531, %v4394, -inf
      %4399 = vmax.xlane.f32.xlu0 %v4398
      %v4400 = vpop.xlane.xlu0 %4399
      %v4401 = vsel %vm531, %v4395, -inf
      %4402 = vmax.xlane.f32.xlu0 %v4401
      %v4403 = vpop.xlane.xlu0 %4402
      %v4404 = vsel %vm531, %v4396, -inf
      %4405 = vmax.xlane.f32.xlu0 %v4404
      %v4406 = vpop.xlane.xlu0 %4405
      %v4407 = vsel %vm531, %v4397, -inf
      %4408 = vmax.xlane.f32.xlu0 %v4407
      %v4409 = vpop.xlane.xlu0 %4408
      %v4410 = vsub.f32 %v4394, %v4400
      %v4411 = vsub.f32 %v4395, %v4403
      %v4412 = vsub.f32 %v4396, %v4406
      %v4413 = vsub.f32 %v4397, %v4409
      %v4414 = vmul.f32 %v4410, 1.442695
      %v4415 = vpow.pop %v4414
      %v4416 = vmul.f32 %v4411, 1.442695
      %v4417 = vpow.pop %v4416
      %v4418 = vmul.f32 %v4412, 1.442695
      %v4419 = vpow.pop %v4418
      %v4420 = vmul.f32 %v4413, 1.442695
      %v4421 = vpow.pop %v4420
      %v4422 = vsel %vm531, %v4415, 0.0
      %4423 = vadd.xlane.f32.xlu0 %v4422
      %v4424 = vpop.xlane.xlu0 %4423
      %v4425 = vsel %vm531, %v4417, 0.0
      %4426 = vadd.xlane.f32.xlu0 %v4425
      %v4427 = vpop.xlane.xlu0 %4426
      %v4428 = vsel %vm531, %v4419, 0.0
      %4429 = vadd.xlane.f32.xlu0 %v4428
      %v4430 = vpop.xlane.xlu0 %4429
      %v4431 = vsel %vm531, %v4421, 0.0
      %4432 = vadd.xlane.f32.xlu0 %v4431
      %v4433 = vpop.xlane.xlu0 %4432
      %v4434 = vrcp.pop %v4424
      %v4435 = vmul.f32 %v4415, %v4434
      %v4436 = vrcp.pop %v4427
      %v4437 = vmul.f32 %v4417, %v4436
      %v4438 = vrcp.pop %v4430
      %v4439 = vmul.f32 %v4419, %v4438
      %v4440 = vrcp.pop %v4433
      %v4441 = vmul.f32 %v4421, %v4440
      %4442 = vrot.lane.b32.xlu0 %v4259, 64
      %v4443 = vpop.permute.xlu0 %4442
      %4444 = vrot.lane.b32.xlu0 %v4264, 64
      %v4445 = vpop.permute.xlu0 %4444
      %4446 = vrot.lane.b32.xlu0 %v4269, 64
      %v4447 = vpop.permute.xlu0 %4446
      %4448 = vrot.lane.b32.xlu0 %v4274, 64
      %v4449 = vpop.permute.xlu0 %4448
      %v4455 = vsel %vm531, %v4435, 0
      %v4458 = vsel %vm531, %v4437, 0
      %v4461 = vsel %vm531, %v4439, 0
      %v4464 = vsel %vm531, %v4441, 0
      %4466 = vmatprep.subr.mxu0 0.0
      %4467 = vmatpush1.msra.mxu0 %v4443
      %4468 = vmatprep.subr.mxu0 0.0
      %4469 = vmatpush1.msra.mxu0 %v4445
      %4470 = vmatprep.subr.mxu0 0.0
      %4471 = vmatpush1.msra.mxu0 %v4447
      %4472 = vmatprep.subr.mxu0 0.0
      %4473 = vmatpush1.msra.mxu0 %v4449
      %4474 = vmatprep.subr.mxu0 0.0
      %4475 = vmatpush1.msra.mxu0 0.0
      %4476 = vmatprep.subr.mxu0 0.0
      %4477 = vmatpush1.msra.mxu0 0.0
      %4478 = vmatprep.subr.mxu0 0.0
      %4479 = vmatpush1.msra.mxu0 0.0
      %4480 = vmatprep.subr.mxu0 0.0
      %4481 = vmatpush1.msra.mxu0 0.0
      %4482 = vmatprep.subr.mxu0 0.0
      %4483 = vmatpush1.msra.mxu0 0.0
      %4484 = vmatprep.subr.mxu0 0.0
      %4485 = vmatpush1.msra.mxu0 0.0
      %4486 = vmatprep.subr.mxu0 0.0
      %4487 = vmatpush1.msra.mxu0 0.0
      %4488 = vmatprep.subr.mxu0 0.0
      %4489 = vmatpush1.msra.mxu0 0.0
      %4490 = vmatprep.subr.mxu0 0.0
      %4491 = vmatpush1.msra.mxu0 0.0
      %4492 = vmatprep.subr.mxu0 0.0
      %4493 = vmatpush1.msra.mxu0 0.0
      %4494 = vmatprep.subr.mxu0 0.0
      %4495 = vmatpush1.msra.mxu0 0.0
      %4496 = vmatprep.subr.mxu0 0.0
      %4497 = vmatpush1.msra.mxu0 0.0
      %4498 = vmatprep.subr.mxu0 0.0
      %4499 = vmatpush1.msra.mxu0 0.0
      %4500 = vmatprep.subr.mxu0 0.0
      %4501 = vmatpush1.msra.mxu0 0.0
      %4502 = vmatprep.subr.mxu0 0.0
      %4503 = vmatpush1.msra.mxu0 0.0
      %4504 = vmatprep.subr.mxu0 0.0
      %4505 = vmatpush1.msra.mxu0 0.0
      %4506 = vmatprep.subr.mxu0 0.0
      %4507 = vmatpush1.msra.mxu0 0.0
      %4508 = vmatprep.subr.mxu0 0.0
      %4509 = vmatpush1.msra.mxu0 0.0
      %4510 = vmatprep.subr.mxu0 0.0
      %4511 = vmatpush1.msra.mxu0 0.0
      %4512 = vmatprep.subr.mxu0 0.0
      %4513 = vmatpush1.msra.mxu0 0.0
      %4514 = vmatprep.subr.mxu0 0.0
      %4515 = vmatpush1.msra.mxu0 0.0
      %4516 = vmatprep.subr.mxu0 0.0
      %4517 = vmatpush1.msra.mxu0 0.0
      %4518 = vmatprep.subr.mxu0 0.0
      %4519 = vmatpush1.msra.mxu0 0.0
      %4520 = vmatprep.subr.mxu0 0.0
      %4521 = vmatpush1.msra.mxu0 0.0
      %4522 = vmatprep.subr.mxu0 0.0
      %4523 = vmatpush1.msra.mxu0 0.0
      %4524 = vmatprep.subr.mxu0 0.0
      %4525 = vmatpush1.msra.mxu0 0.0
      %4526 = vmatprep.subr.mxu0 0.0
      %4527 = vmatpush1.msra.mxu0 0.0
      %4528 = vmatprep.subr.mxu0 0.0
      %4529 = vmatpush1.msra.mxu0 0.0
      %4530 = vmatprep.mubr.f32.mxu0 0.0
      %4531 = vmatmul.mubr.f32.gmra.mrb[0].mxu0 %v4455
      %v4532 = vpop.f32.mrb[0].mxu0
      %v4533 = vadd.f32 0.0, %v4532
      %v4534 = vpop.f32.mrb[0].mxu0
      %4535 = vmatprep.mubr.f32.mxu0 0.0
      %4536 = vmatmul.mubr.f32.gmra.mrb[0].mxu0 %v4458
      %v4537 = vpop.f32.mrb[0].mxu0
      %v4538 = vadd.f32 0.0, %v4537
      %v4539 = vpop.f32.mrb[0].mxu0
      %4540 = vmatprep.mubr.f32.mxu0 0.0
      %4541 = vmatmul.mubr.f32.gmra.mrb[0].mxu0 %v4461
      %v4542 = vpop.f32.mrb[0].mxu0
      %v4543 = vadd.f32 0.0, %v4542
      %v4544 = vpop.f32.mrb[0].mxu0
      %4545 = vmatprep.mubr.f32.mxu0 0.0
      %4546 = vmatmul.mubr.f32.gmra.mrb[0].mxu0 %v4464
      %v4547 = vpop.f32.mrb[0].mxu0
      %v4548 = vadd.f32 0.0, %v4547
      %v4549 = vpop.f32.mrb[0].mxu0
      %4550 = vdwg.mxu0
      %4551 = vrot.lane.b32.xlu0 %v4259, 120
      %v4552 = vpop.permute.xlu0 %4551
      %4553 = vrot.lane.b32.xlu0 %v4264, 120
      %v4554 = vpop.permute.xlu0 %4553
      %4555 = vrot.lane.b32.xlu0 %v4269, 120
      %v4556 = vpop.permute.xlu0 %4555
      %4557 = vrot.lane.b32.xlu0 %v4274, 120
      %v4558 = vpop.permute.xlu0 %4557
      %4559 = vrot.lane.b32.xlu0 %v4259, 88
      %v4560 = vpop.permute.xlu0 %4559
      %4561 = vrot.lane.b32.xlu0 %v4264, 88
      %v4562 = vpop.permute.xlu0 %4561
      %4563 = vrot.lane.b32.xlu0 %v4269, 88
      %v4564 = vpop.permute.xlu0 %4563
      %4565 = vrot.lane.b32.xlu0 %v4274, 88
      %v4566 = vpop.permute.xlu0 %4565
      %v4567 = vsel %vm718, %v4552, 0
      %v4569 = vsel %vm718, %v4554, 0
      %v4571 = vsel %vm718, %v4556, 0
      %v4573 = vsel %vm718, %v4558, 0
      %v4575 = vsel %vm718, %v4560, 0
      %v4577 = vsel %vm718, %v4562, 0
      %v4579 = vsel %vm718, %v4564, 0
      %v4581 = vsel %vm718, %v4566, 0
      %4583 = vmatprep.subr.mxu0 0.0
      %4584 = vmatpush1.xpose.msra.mxu0 %v4575
      %4585 = vmatprep.subr.mxu0 0.0
      %4586 = vmatpush1.xpose.msra.mxu0 %v4577
      %4587 = vmatprep.subr.mxu0 0.0
      %4588 = vmatpush1.xpose.msra.mxu0 %v4579
      %4589 = vmatprep.subr.mxu0 0.0
      %4590 = vmatpush1.xpose.msra.mxu0 %v4581
      %4591 = vmatprep.subr.mxu0 0.0
      %4592 = vmatpush1.xpose.msra.mxu0 0.0
      %4593 = vmatprep.subr.mxu0 0.0
      %4594 = vmatpush1.xpose.msra.mxu0 0.0
      %4595 = vmatprep.subr.mxu0 0.0
      %4596 = vmatpush1.xpose.msra.mxu0 0.0
      %4597 = vmatprep.subr.mxu0 0.0
      %4598 = vmatpush1.xpose.msra.mxu0 0.0
      %4599 = vmatprep.subr.mxu0 0.0
      %4600 = vmatpush1.xpose.msra.mxu0 0.0
      %4601 = vmatprep.subr.mxu0 0.0
      %4602 = vmatpush1.xpose.msra.mxu0 0.0
      %4603 = vmatprep.subr.mxu0 0.0
      %4604 = vmatpush1.xpose.msra.mxu0 0.0
      %4605 = vmatprep.subr.mxu0 0.0
      %4606 = vmatpush1.xpose.msra.mxu0 0.0
      %4607 = vmatprep.subr.mxu0 0.0
      %4608 = vmatpush1.xpose.msra.mxu0 0.0
      %4609 = vmatprep.subr.mxu0 0.0
      %4610 = vmatpush1.xpose.msra.mxu0 0.0
      %4611 = vmatprep.subr.mxu0 0.0
      %4612 = vmatpush1.xpose.msra.mxu0 0.0
      %4613 = vmatprep.subr.mxu0 0.0
      %4614 = vmatpush1.xpose.msra.mxu0 0.0
      %4615 = vmatprep.subr.mxu0 0.0
      %4616 = vmatpush1.xpose.msra.mxu0 0.0
      %4617 = vmatprep.subr.mxu0 0.0
      %4618 = vmatpush1.xpose.msra.mxu0 0.0
      %4619 = vmatprep.subr.mxu0 0.0
      %4620 = vmatpush1.xpose.msra.mxu0 0.0
      %4621 = vmatprep.subr.mxu0 0.0
      %4622 = vmatpush1.xpose.msra.mxu0 0.0
      %4623 = vmatprep.subr.mxu0 0.0
      %4624 = vmatpush1.xpose.msra.mxu0 0.0
      %4625 = vmatprep.subr.mxu0 0.0
      %4626 = vmatpush1.xpose.msra.mxu0 0.0
      %4627 = vmatprep.subr.mxu0 0.0
      %4628 = vmatpush1.xpose.msra.mxu0 0.0
      %4629 = vmatprep.subr.mxu0 0.0
      %4630 = vmatpush1.xpose.msra.mxu0 0.0
      %4631 = vmatprep.subr.mxu0 0.0
      %4632 = vmatpush1.xpose.msra.mxu0 0.0
      %4633 = vmatprep.subr.mxu0 0.0
      %4634 = vmatpush1.xpose.msra.mxu0 0.0
      %4635 = vmatprep.subr.mxu0 0.0
      %4636 = vmatpush1.xpose.msra.mxu0 0.0
      %4637 = vmatprep.subr.mxu0 0.0
      %4638 = vmatpush1.xpose.msra.mxu0 0.0
      %4639 = vmatprep.subr.mxu0 0.0
      %4640 = vmatpush1.xpose.msra.mxu0 0.0
      %4641 = vmatprep.subr.mxu0 0.0
      %4642 = vmatpush1.xpose.msra.mxu0 0.0
      %4643 = vmatprep.subr.mxu0 0.0
      %4644 = vmatpush1.xpose.msra.mxu0 0.0
      %4645 = vmatprep.subr.mxu0 0.0
      %4646 = vmatpush1.xpose.msra.mxu0 0.0
      %4647 = vmatprep.mubr.f32.mxu0 0.0
      %4648 = vmatmul.mubr.f32.gmra.mrb[0].mxu0 %v4567
      %v4649 = vpop.f32.mrb[0].mxu0
      %v4650 = vadd.f32 0.0, %v4649
      %v4651 = vpop.f32.mrb[0].mxu0
      %4652 = vmatprep.mubr.f32.mxu0 0.0
      %4653 = vmatmul.mubr.f32.gmra.mrb[0].mxu0 %v4569
      %v4654 = vpop.f32.mrb[0].mxu0
      %v4655 = vadd.f32 0.0, %v4654
      %v4656 = vpop.f32.mrb[0].mxu0
      %4657 = vmatprep.mubr.f32.mxu0 0.0
      %4658 = vmatmul.mubr.f32.gmra.mrb[0].mxu0 %v4571
      %v4659 = vpop.f32.mrb[0].mxu0
      %v4660 = vadd.f32 0.0, %v4659
      %v4661 = vpop.f32.mrb[0].mxu0
      %4662 = vmatprep.mubr.f32.mxu0 0.0
      %4663 = vmatmul.mubr.f32.gmra.mrb[0].mxu0 %v4573
      %v4664 = vpop.f32.mrb[0].mxu0
      %v4665 = vadd.f32 0.0, %v4664
      %v4666 = vpop.f32.mrb[0].mxu0
      %4667 = vdwg.mxu0
      %v4668 = vmul.f32 %v4650, 0.35355338
      %v4669 = vmul.f32 %v4655, 0.35355338
      %v4670 = vmul.f32 %v4660, 0.35355338
      %v4671 = vmul.f32 %v4665, 0.35355338
      %v4672 = vadd.f32 %v4668, %v527
      %v4673 = vadd.f32 %v4669, %v528
      %v4674 = vadd.f32 %v4670, %v529
      %v4675 = vadd.f32 %v4671, %v530
      %v4676 = vsel %vm531, %v4672, -inf
      %4677 = vmax.xlane.f32.xlu0 %v4676
      %v4678 = vpop.xlane.xlu0 %4677
      %v4679 = vsel %vm531, %v4673, -inf
      %4680 = vmax.xlane.f32.xlu0 %v4679
      %v4681 = vpop.xlane.xlu0 %4680
      %v4682 = vsel %vm531, %v4674, -inf
      %4683 = vmax.xlane.f32.xlu0 %v4682
      %v4684 = vpop.xlane.xlu0 %4683
      %v4685 = vsel %vm531, %v4675, -inf
      %4686 = vmax.xlane.f32.xlu0 %v4685
      %v4687 = vpop.xlane.xlu0 %4686
      %v4688 = vsub.f32 %v4672, %v4678
      %v4689 = vsub.f32 %v4673, %v4681
      %v4690 = vsub.f32 %v4674, %v4684
      %v4691 = vsub.f32 %v4675, %v4687
      %v4692 = vmul.f32 %v4688, 1.442695
      %v4693 = vpow.pop %v4692
      %v4694 = vmul.f32 %v4689, 1.442695
      %v4695 = vpow.pop %v4694
      %v4696 = vmul.f32 %v4690, 1.442695
      %v4697 = vpow.pop %v4696
      %v4698 = vmul.f32 %v4691, 1.442695
      %v4699 = vpow.pop %v4698
      %v4700 = vsel %vm531, %v4693, 0.0
      %4701 = vadd.xlane.f32.xlu0 %v4700
      %v4702 = vpop.xlane.xlu0 %4701
      %v4703 = vsel %vm531, %v4695, 0.0
      %4704 = vadd.xlane.f32.xlu0 %v4703
      %v4705 = vpop.xlane.xlu0 %4704
      %v4706 = vsel %vm531, %v4697, 0.0
      %4707 = vadd.xlane.f32.xlu0 %v4706
      %v4708 = vpop.xlane.xlu0 %4707
      %v4709 = vsel %vm531, %v4699, 0.0
      %4710 = vadd.xlane.f32.xlu0 %v4709
      %v4711 = vpop.xlane.xlu0 %4710
      %v4712 = vrcp.pop %v4702
      %v4713 = vmul.f32 %v4693, %v4712
      %v4714 = vrcp.pop %v4705
      %v4715 = vmul.f32 %v4695, %v4714
      %v4716 = vrcp.pop %v4708
      %v4717 = vmul.f32 %v4697, %v4716
      %v4718 = vrcp.pop %v4711
      %v4719 = vmul.f32 %v4699, %v4718
      %4720 = vrot.lane.b32.xlu0 %v4259, 56
      %v4721 = vpop.permute.xlu0 %4720
      %4722 = vrot.lane.b32.xlu0 %v4264, 56
      %v4723 = vpop.permute.xlu0 %4722
      %4724 = vrot.lane.b32.xlu0 %v4269, 56
      %v4725 = vpop.permute.xlu0 %4724
      %4726 = vrot.lane.b32.xlu0 %v4274, 56
      %v4727 = vpop.permute.xlu0 %4726
      %v4733 = vsel %vm531, %v4713, 0
      %v4736 = vsel %vm531, %v4715, 0
      %v4739 = vsel %vm531, %v4717, 0
      %v4742 = vsel %vm531, %v4719, 0
      %4744 = vmatprep.subr.mxu0 0.0
      %4745 = vmatpush1.msra.mxu0 %v4721
      %4746 = vmatprep.subr.mxu0 0.0
      %4747 = vmatpush1.msra.mxu0 %v4723
      %4748 = vmatprep.subr.mxu0 0.0
      %4749 = vmatpush1.msra.mxu0 %v4725
      %4750 = vmatprep.subr.mxu0 0.0
      %4751 = vmatpush1.msra.mxu0 %v4727
      %4752 = vmatprep.subr.mxu0 0.0
      %4753 = vmatpush1.msra.mxu0 0.0
      %4754 = vmatprep.subr.mxu0 0.0
      %4755 = vmatpush1.msra.mxu0 0.0
      %4756 = vmatprep.subr.mxu0 0.0
      %4757 = vmatpush1.msra.mxu0 0.0
      %4758 = vmatprep.subr.mxu0 0.0
      %4759 = vmatpush1.msra.mxu0 0.0
      %4760 = vmatprep.subr.mxu0 0.0
      %4761 = vmatpush1.msra.mxu0 0.0
      %4762 = vmatprep.subr.mxu0 0.0
      %4763 = vmatpush1.msra.mxu0 0.0
      %4764 = vmatprep.subr.mxu0 0.0
      %4765 = vmatpush1.msra.mxu0 0.0
      %4766 = vmatprep.subr.mxu0 0.0
      %4767 = vmatpush1.msra.mxu0 0.0
      %4768 = vmatprep.subr.mxu0 0.0
      %4769 = vmatpush1.msra.mxu0 0.0
      %4770 = vmatprep.subr.mxu0 0.0
      %4771 = vmatpush1.msra.mxu0 0.0
      %4772 = vmatprep.subr.mxu0 0.0
      %4773 = vmatpush1.msra.mxu0 0.0
      %4774 = vmatprep.subr.mxu0 0.0
      %4775 = vmatpush1.msra.mxu0 0.0
      %4776 = vmatprep.subr.mxu0 0.0
      %4777 = vmatpush1.msra.mxu0 0.0
      %4778 = vmatprep.subr.mxu0 0.0
      %4779 = vmatpush1.msra.mxu0 0.0
      %4780 = vmatprep.subr.mxu0 0.0
      %4781 = vmatpush1.msra.mxu0 0.0
      %4782 = vmatprep.subr.mxu0 0.0
      %4783 = vmatpush1.msra.mxu0 0.0
      %4784 = vmatprep.subr.mxu0 0.0
      %4785 = vmatpush1.msra.mxu0 0.0
      %4786 = vmatprep.subr.mxu0 0.0
      %4787 = vmatpush1.msra.mxu0 0.0
      %4788 = vmatprep.subr.mxu0 0.0
      %4789 = vmatpush1.msra.mxu0 0.0
      %4790 = vmatprep.subr.mxu0 0.0
      %4791 = vmatpush1.msra.mxu0 0.0
      %4792 = vmatprep.subr.mxu0 0.0
      %4793 = vmatpush1.msra.mxu0 0.0
      %4794 = vmatprep.subr.mxu0 0.0
      %4795 = vmatpush1.msra.mxu0 0.0
      %4796 = vmatprep.subr.mxu0 0.0
      %4797 = vmatpush1.msra.mxu0 0.0
      %4798 = vmatprep.subr.mxu0 0.0
      %4799 = vmatpush1.msra.mxu0 0.0
      %4800 = vmatprep.subr.mxu0 0.0
      %4801 = vmatpush1.msra.mxu0 0.0
      %4802 = vmatprep.subr.mxu0 0.0
      %4803 = vmatpush1.msra.mxu0 0.0
      %4804 = vmatprep.subr.mxu0 0.0
      %4805 = vmatpush1.msra.mxu0 0.0
      %4806 = vmatprep.subr.mxu0 0.0
      %4807 = vmatpush1.msra.mxu0 0.0
      %4808 = vmatprep.mubr.f32.mxu0 0.0
      %4809 = vmatmul.mubr.f32.gmra.mrb[0].mxu0 %v4733
      %v4810 = vpop.f32.mrb[0].mxu0
      %v4811 = vadd.f32 0.0, %v4810
      %v4812 = vpop.f32.mrb[0].mxu0
      %4813 = vmatprep.mubr.f32.mxu0 0.0
      %4814 = vmatmul.mubr.f32.gmra.mrb[0].mxu0 %v4736
      %v4815 = vpop.f32.mrb[0].mxu0
      %v4816 = vadd.f32 0.0, %v4815
      %v4817 = vpop.f32.mrb[0].mxu0
      %4818 = vmatprep.mubr.f32.mxu0 0.0
      %4819 = vmatmul.mubr.f32.gmra.mrb[0].mxu0 %v4739
      %v4820 = vpop.f32.mrb[0].mxu0
      %v4821 = vadd.f32 0.0, %v4820
      %v4822 = vpop.f32.mrb[0].mxu0
      %4823 = vmatprep.mubr.f32.mxu0 0.0
      %4824 = vmatmul.mubr.f32.gmra.mrb[0].mxu0 %v4742
      %v4825 = vpop.f32.mrb[0].mxu0
      %v4826 = vadd.f32 0.0, %v4825
      %v4827 = vpop.f32.mrb[0].mxu0
      %4828 = vdwg.mxu0
      %4829 = vrot.lane.b32.xlu0 %v4259, 112
      %v4830 = vpop.permute.xlu0 %4829
      %4831 = vrot.lane.b32.xlu0 %v4264, 112
      %v4832 = vpop.permute.xlu0 %4831
      %4833 = vrot.lane.b32.xlu0 %v4269, 112
      %v4834 = vpop.permute.xlu0 %4833
      %4835 = vrot.lane.b32.xlu0 %v4274, 112
      %v4836 = vpop.permute.xlu0 %4835
      %4837 = vrot.lane.b32.xlu0 %v4259, 80
      %v4838 = vpop.permute.xlu0 %4837
      %4839 = vrot.lane.b32.xlu0 %v4264, 80
      %v4840 = vpop.permute.xlu0 %4839
      %4841 = vrot.lane.b32.xlu0 %v4269, 80
      %v4842 = vpop.permute.xlu0 %4841
      %4843 = vrot.lane.b32.xlu0 %v4274, 80
      %v4844 = vpop.permute.xlu0 %4843
      %v4845 = vsel %vm718, %v4830, 0
      %v4847 = vsel %vm718, %v4832, 0
      %v4849 = vsel %vm718, %v4834, 0
      %v4851 = vsel %vm718, %v4836, 0
      %v4853 = vsel %vm718, %v4838, 0
      %v4855 = vsel %vm718, %v4840, 0
      %v4857 = vsel %vm718, %v4842, 0
      %v4859 = vsel %vm718, %v4844, 0
      %4861 = vmatprep.subr.mxu0 0.0
      %4862 = vmatpush1.xpose.msra.mxu0 %v4853
      %4863 = vmatprep.subr.mxu0 0.0
      %4864 = vmatpush1.xpose.msra.mxu0 %v4855
      %4865 = vmatprep.subr.mxu0 0.0
      %4866 = vmatpush1.xpose.msra.mxu0 %v4857
      %4867 = vmatprep.subr.mxu0 0.0
      %4868 = vmatpush1.xpose.msra.mxu0 %v4859
      %4869 = vmatprep.subr.mxu0 0.0
      %4870 = vmatpush1.xpose.msra.mxu0 0.0
      %4871 = vmatprep.subr.mxu0 0.0
      %4872 = vmatpush1.xpose.msra.mxu0 0.0
      %4873 = vmatprep.subr.mxu0 0.0
      %4874 = vmatpush1.xpose.msra.mxu0 0.0
      %4875 = vmatprep.subr.mxu0 0.0
      %4876 = vmatpush1.xpose.msra.mxu0 0.0
      %4877 = vmatprep.subr.mxu0 0.0
      %4878 = vmatpush1.xpose.msra.mxu0 0.0
      %4879 = vmatprep.subr.mxu0 0.0
      %4880 = vmatpush1.xpose.msra.mxu0 0.0
      %4881 = vmatprep.subr.mxu0 0.0
      %4882 = vmatpush1.xpose.msra.mxu0 0.0
      %4883 = vmatprep.subr.mxu0 0.0
      %4884 = vmatpush1.xpose.msra.mxu0 0.0
      %4885 = vmatprep.subr.mxu0 0.0
      %4886 = vmatpush1.xpose.msra.mxu0 0.0
      %4887 = vmatprep.subr.mxu0 0.0
      %4888 = vmatpush1.xpose.msra.mxu0 0.0
      %4889 = vmatprep.subr.mxu0 0.0
      %4890 = vmatpush1.xpose.msra.mxu0 0.0
      %4891 = vmatprep.subr.mxu0 0.0
      %4892 = vmatpush1.xpose.msra.mxu0 0.0
      %4893 = vmatprep.subr.mxu0 0.0
      %4894 = vmatpush1.xpose.msra.mxu0 0.0
      %4895 = vmatprep.subr.mxu0 0.0
      %4896 = vmatpush1.xpose.msra.mxu0 0.0
      %4897 = vmatprep.subr.mxu0 0.0
      %4898 = vmatpush1.xpose.msra.mxu0 0.0
      %4899 = vmatprep.subr.mxu0 0.0
      %4900 = vmatpush1.xpose.msra.mxu0 0.0
      %4901 = vmatprep.subr.mxu0 0.0
      %4902 = vmatpush1.xpose.msra.mxu0 0.0
      %4903 = vmatprep.subr.mxu0 0.0
      %4904 = vmatpush1.xpose.msra.mxu0 0.0
      %4905 = vmatprep.subr.mxu0 0.0
      %4906 = vmatpush1.xpose.msra.mxu0 0.0
      %4907 = vmatprep.subr.mxu0 0.0
      %4908 = vmatpush1.xpose.msra.mxu0 0.0
      %4909 = vmatprep.subr.mxu0 0.0
      %4910 = vmatpush1.xpose.msra.mxu0 0.0
      %4911 = vmatprep.subr.mxu0 0.0
      %4912 = vmatpush1.xpose.msra.mxu0 0.0
      %4913 = vmatprep.subr.mxu0 0.0
      %4914 = vmatpush1.xpose.msra.mxu0 0.0
      %4915 = vmatprep.subr.mxu0 0.0
      %4916 = vmatpush1.xpose.msra.mxu0 0.0
      %4917 = vmatprep.subr.mxu0 0.0
      %4918 = vmatpush1.xpose.msra.mxu0 0.0
      %4919 = vmatprep.subr.mxu0 0.0
      %4920 = vmatpush1.xpose.msra.mxu0 0.0
      %4921 = vmatprep.subr.mxu0 0.0
      %4922 = vmatpush1.xpose.msra.mxu0 0.0
      %4923 = vmatprep.subr.mxu0 0.0
      %4924 = vmatpush1.xpose.msra.mxu0 0.0
      %4925 = vmatprep.mubr.f32.mxu0 0.0
      %4926 = vmatmul.mubr.f32.gmra.mrb[0].mxu0 %v4845
      %v4927 = vpop.f32.mrb[0].mxu0
      %v4928 = vadd.f32 0.0, %v4927
      %v4929 = vpop.f32.mrb[0].mxu0
      %4930 = vmatprep.mubr.f32.mxu0 0.0
      %4931 = vmatmul.mubr.f32.gmra.mrb[0].mxu0 %v4847
      %v4932 = vpop.f32.mrb[0].mxu0
      %v4933 = vadd.f32 0.0, %v4932
      %v4934 = vpop.f32.mrb[0].mxu0
      %4935 = vmatprep.mubr.f32.mxu0 0.0
      %4936 = vmatmul.mubr.f32.gmra.mrb[0].mxu0 %v4849
      %v4937 = vpop.f32.mrb[0].mxu0
      %v4938 = vadd.f32 0.0, %v4937
      %v4939 = vpop.f32.mrb[0].mxu0
      %4940 = vmatprep.mubr.f32.mxu0 0.0
      %4941 = vmatmul.mubr.f32.gmra.mrb[0].mxu0 %v4851
      %v4942 = vpop.f32.mrb[0].mxu0
      %v4943 = vadd.f32 0.0, %v4942
      %v4944 = vpop.f32.mrb[0].mxu0
      %4945 = vdwg.mxu0
      %v4946 = vmul.f32 %v4928, 0.35355338
      %v4947 = vmul.f32 %v4933, 0.35355338
      %v4948 = vmul.f32 %v4938, 0.35355338
      %v4949 = vmul.f32 %v4943, 0.35355338
      %v4950 = vadd.f32 %v4946, %v527
      %v4951 = vadd.f32 %v4947, %v528
      %v4952 = vadd.f32 %v4948, %v529
      %v4953 = vadd.f32 %v4949, %v530
      %v4954 = vsel %vm531, %v4950, -inf
      %4955 = vmax.xlane.f32.xlu0 %v4954
      %v4956 = vpop.xlane.xlu0 %4955
      %v4957 = vsel %vm531, %v4951, -inf
      %4958 = vmax.xlane.f32.xlu0 %v4957
      %v4959 = vpop.xlane.xlu0 %4958
      %v4960 = vsel %vm531, %v4952, -inf
      %4961 = vmax.xlane.f32.xlu0 %v4960
      %v4962 = vpop.xlane.xlu0 %4961
      %v4963 = vsel %vm531, %v4953, -inf
      %4964 = vmax.xlane.f32.xlu0 %v4963
      %v4965 = vpop.xlane.xlu0 %4964
      %v4966 = vsub.f32 %v4950, %v4956
      %v4967 = vsub.f32 %v4951, %v4959
      %v4968 = vsub.f32 %v4952, %v4962
      %v4969 = vsub.f32 %v4953, %v4965
      %v4970 = vmul.f32 %v4966, 1.442695
      %v4971 = vpow.pop %v4970
      %v4972 = vmul.f32 %v4967, 1.442695
      %v4973 = vpow.pop %v4972
      %v4974 = vmul.f32 %v4968, 1.442695
      %v4975 = vpow.pop %v4974
      %v4976 = vmul.f32 %v4969, 1.442695
      %v4977 = vpow.pop %v4976
      %v4978 = vsel %vm531, %v4971, 0.0
      %4979 = vadd.xlane.f32.xlu0 %v4978
      %v4980 = vpop.xlane.xlu0 %4979
      %v4981 = vsel %vm531, %v4973, 0.0
      %4982 = vadd.xlane.f32.xlu0 %v4981
      %v4983 = vpop.xlane.xlu0 %4982
      %v4984 = vsel %vm531, %v4975, 0.0
      %4985 = vadd.xlane.f32.xlu0 %v4984
      %v4986 = vpop.xlane.xlu0 %4985
      %v4987 = vsel %vm531, %v4977, 0.0
      %4988 = vadd.xlane.f32.xlu0 %v4987
      %v4989 = vpop.xlane.xlu0 %4988
      %v4990 = vrcp.pop %v4980
      %v4991 = vmul.f32 %v4971, %v4990
      %v4992 = vrcp.pop %v4983
      %v4993 = vmul.f32 %v4973, %v4992
      %v4994 = vrcp.pop %v4986
      %v4995 = vmul.f32 %v4975, %v4994
      %v4996 = vrcp.pop %v4989
      %v4997 = vmul.f32 %v4977, %v4996
      %4998 = vrot.lane.b32.xlu0 %v4259, 48
      %v4999 = vpop.permute.xlu0 %4998
      %5000 = vrot.lane.b32.xlu0 %v4264, 48
      %v5001 = vpop.permute.xlu0 %5000
      %5002 = vrot.lane.b32.xlu0 %v4269, 48
      %v5003 = vpop.permute.xlu0 %5002
      %5004 = vrot.lane.b32.xlu0 %v4274, 48
      %v5005 = vpop.permute.xlu0 %5004
      %v5011 = vsel %vm531, %v4991, 0
      %v5014 = vsel %vm531, %v4993, 0
      %v5017 = vsel %vm531, %v4995, 0
      %v5020 = vsel %vm531, %v4997, 0
      %5022 = vmatprep.subr.mxu0 0.0
      %5023 = vmatpush1.msra.mxu0 %v4999
      %5024 = vmatprep.subr.mxu0 0.0
      %5025 = vmatpush1.msra.mxu0 %v5001
      %5026 = vmatprep.subr.mxu0 0.0
      %5027 = vmatpush1.msra.mxu0 %v5003
      %5028 = vmatprep.subr.mxu0 0.0
      %5029 = vmatpush1.msra.mxu0 %v5005
      %5030 = vmatprep.subr.mxu0 0.0
      %5031 = vmatpush1.msra.mxu0 0.0
      %5032 = vmatprep.subr.mxu0 0.0
      %5033 = vmatpush1.msra.mxu0 0.0
      %5034 = vmatprep.subr.mxu0 0.0
      %5035 = vmatpush1.msra.mxu0 0.0
      %5036 = vmatprep.subr.mxu0 0.0
      %5037 = vmatpush1.msra.mxu0 0.0
      %5038 = vmatprep.subr.mxu0 0.0
      %5039 = vmatpush1.msra.mxu0 0.0
      %5040 = vmatprep.subr.mxu0 0.0
      %5041 = vmatpush1.msra.mxu0 0.0
      %5042 = vmatprep.subr.mxu0 0.0
      %5043 = vmatpush1.msra.mxu0 0.0
      %5044 = vmatprep.subr.mxu0 0.0
      %5045 = vmatpush1.msra.mxu0 0.0
      %5046 = vmatprep.subr.mxu0 0.0
      %5047 = vmatpush1.msra.mxu0 0.0
      %5048 = vmatprep.subr.mxu0 0.0
      %5049 = vmatpush1.msra.mxu0 0.0
      %5050 = vmatprep.subr.mxu0 0.0
      %5051 = vmatpush1.msra.mxu0 0.0
      %5052 = vmatprep.subr.mxu0 0.0
      %5053 = vmatpush1.msra.mxu0 0.0
      %5054 = vmatprep.subr.mxu0 0.0
      %5055 = vmatpush1.msra.mxu0 0.0
      %5056 = vmatprep.subr.mxu0 0.0
      %5057 = vmatpush1.msra.mxu0 0.0
      %5058 = vmatprep.subr.mxu0 0.0
      %5059 = vmatpush1.msra.mxu0 0.0
      %5060 = vmatprep.subr.mxu0 0.0
      %5061 = vmatpush1.msra.mxu0 0.0
      %5062 = vmatprep.subr.mxu0 0.0
      %5063 = vmatpush1.msra.mxu0 0.0
      %5064 = vmatprep.subr.mxu0 0.0
      %5065 = vmatpush1.msra.mxu0 0.0
      %5066 = vmatprep.subr.mxu0 0.0
      %5067 = vmatpush1.msra.mxu0 0.0
      %5068 = vmatprep.subr.mxu0 0.0
      %5069 = vmatpush1.msra.mxu0 0.0
      %5070 = vmatprep.subr.mxu0 0.0
      %5071 = vmatpush1.msra.mxu0 0.0
      %5072 = vmatprep.subr.mxu0 0.0
      %5073 = vmatpush1.msra.mxu0 0.0
      %5074 = vmatprep.subr.mxu0 0.0
      %5075 = vmatpush1.msra.mxu0 0.0
      %5076 = vmatprep.subr.mxu0 0.0
      %5077 = vmatpush1.msra.mxu0 0.0
      %5078 = vmatprep.subr.mxu0 0.0
      %5079 = vmatpush1.msra.mxu0 0.0
      %5080 = vmatprep.subr.mxu0 0.0
      %5081 = vmatpush1.msra.mxu0 0.0
      %5082 = vmatprep.subr.mxu0 0.0
      %5083 = vmatpush1.msra.mxu0 0.0
      %5084 = vmatprep.subr.mxu0 0.0
      %5085 = vmatpush1.msra.mxu0 0.0
      %5086 = vmatprep.mubr.f32.mxu0 0.0
      %5087 = vmatmul.mubr.f32.gmra.mrb[0].mxu0 %v5011
      %v5088 = vpop.f32.mrb[0].mxu0
      %v5089 = vadd.f32 0.0, %v5088
      %v5090 = vpop.f32.mrb[0].mxu0
      %5091 = vmatprep.mubr.f32.mxu0 0.0
      %5092 = vmatmul.mubr.f32.gmra.mrb[0].mxu0 %v5014
      %v5093 = vpop.f32.mrb[0].mxu0
      %v5094 = vadd.f32 0.0, %v5093
      %v5095 = vpop.f32.mrb[0].mxu0
      %5096 = vmatprep.mubr.f32.mxu0 0.0
      %5097 = vmatmul.mubr.f32.gmra.mrb[0].mxu0 %v5017
      %v5098 = vpop.f32.mrb[0].mxu0
      %v5099 = vadd.f32 0.0, %v5098
      %v5100 = vpop.f32.mrb[0].mxu0
      %5101 = vmatprep.mubr.f32.mxu0 0.0
      %5102 = vmatmul.mubr.f32.gmra.mrb[0].mxu0 %v5020
      %v5103 = vpop.f32.mrb[0].mxu0
      %v5104 = vadd.f32 0.0, %v5103
      %v5105 = vpop.f32.mrb[0].mxu0
      %5106 = vdwg.mxu0
      %5107 = vrot.lane.b32.xlu0 %v4259, 104
      %v5108 = vpop.permute.xlu0 %5107
      %5109 = vrot.lane.b32.xlu0 %v4264, 104
      %v5110 = vpop.permute.xlu0 %5109
      %5111 = vrot.lane.b32.xlu0 %v4269, 104
      %v5112 = vpop.permute.xlu0 %5111
      %5113 = vrot.lane.b32.xlu0 %v4274, 104
      %v5114 = vpop.permute.xlu0 %5113
      %5115 = vrot.lane.b32.xlu0 %v4259, 72
      %v5116 = vpop.permute.xlu0 %5115
      %5117 = vrot.lane.b32.xlu0 %v4264, 72
      %v5118 = vpop.permute.xlu0 %5117
      %5119 = vrot.lane.b32.xlu0 %v4269, 72
      %v5120 = vpop.permute.xlu0 %5119
      %5121 = vrot.lane.b32.xlu0 %v4274, 72
      %v5122 = vpop.permute.xlu0 %5121
      %v5123 = vsel %vm718, %v5108, 0
      %v5125 = vsel %vm718, %v5110, 0
      %v5127 = vsel %vm718, %v5112, 0
      %v5129 = vsel %vm718, %v5114, 0
      %v5131 = vsel %vm718, %v5116, 0
      %v5133 = vsel %vm718, %v5118, 0
      %v5135 = vsel %vm718, %v5120, 0
      %v5137 = vsel %vm718, %v5122, 0
      %5139 = vmatprep.subr.mxu0 0.0
      %5140 = vmatpush1.xpose.msra.mxu0 %v5131
      %5141 = vmatprep.subr.mxu0 0.0
      %5142 = vmatpush1.xpose.msra.mxu0 %v5133
      %5143 = vmatprep.subr.mxu0 0.0
      %5144 = vmatpush1.xpose.msra.mxu0 %v5135
      %5145 = vmatprep.subr.mxu0 0.0
      %5146 = vmatpush1.xpose.msra.mxu0 %v5137
      %5147 = vmatprep.subr.mxu0 0.0
      %5148 = vmatpush1.xpose.msra.mxu0 0.0
      %5149 = vmatprep.subr.mxu0 0.0
      %5150 = vmatpush1.xpose.msra.mxu0 0.0
      %5151 = vmatprep.subr.mxu0 0.0
      %5152 = vmatpush1.xpose.msra.mxu0 0.0
      %5153 = vmatprep.subr.mxu0 0.0
      %5154 = vmatpush1.xpose.msra.mxu0 0.0
      %5155 = vmatprep.subr.mxu0 0.0
      %5156 = vmatpush1.xpose.msra.mxu0 0.0
      %5157 = vmatprep.subr.mxu0 0.0
      %5158 = vmatpush1.xpose.msra.mxu0 0.0
      %5159 = vmatprep.subr.mxu0 0.0
      %5160 = vmatpush1.xpose.msra.mxu0 0.0
      %5161 = vmatprep.subr.mxu0 0.0
      %5162 = vmatpush1.xpose.msra.mxu0 0.0
      %5163 = vmatprep.subr.mxu0 0.0
      %5164 = vmatpush1.xpose.msra.mxu0 0.0
      %5165 = vmatprep.subr.mxu0 0.0
      %5166 = vmatpush1.xpose.msra.mxu0 0.0
      %5167 = vmatprep.subr.mxu0 0.0
      %5168 = vmatpush1.xpose.msra.mxu0 0.0
      %5169 = vmatprep.subr.mxu0 0.0
      %5170 = vmatpush1.xpose.msra.mxu0 0.0
      %5171 = vmatprep.subr.mxu0 0.0
      %5172 = vmatpush1.xpose.msra.mxu0 0.0
      %5173 = vmatprep.subr.mxu0 0.0
      %5174 = vmatpush1.xpose.msra.mxu0 0.0
      %5175 = vmatprep.subr.mxu0 0.0
      %5176 = vmatpush1.xpose.msra.mxu0 0.0
      %5177 = vmatprep.subr.mxu0 0.0
      %5178 = vmatpush1.xpose.msra.mxu0 0.0
      %5179 = vmatprep.subr.mxu0 0.0
      %5180 = vmatpush1.xpose.msra.mxu0 0.0
      %5181 = vmatprep.subr.mxu0 0.0
      %5182 = vmatpush1.xpose.msra.mxu0 0.0
      %5183 = vmatprep.subr.mxu0 0.0
      %5184 = vmatpush1.xpose.msra.mxu0 0.0
      %5185 = vmatprep.subr.mxu0 0.0
      %5186 = vmatpush1.xpose.msra.mxu0 0.0
      %5187 = vmatprep.subr.mxu0 0.0
      %5188 = vmatpush1.xpose.msra.mxu0 0.0
      %5189 = vmatprep.subr.mxu0 0.0
      %5190 = vmatpush1.xpose.msra.mxu0 0.0
      %5191 = vmatprep.subr.mxu0 0.0
      %5192 = vmatpush1.xpose.msra.mxu0 0.0
      %5193 = vmatprep.subr.mxu0 0.0
      %5194 = vmatpush1.xpose.msra.mxu0 0.0
      %5195 = vmatprep.subr.mxu0 0.0
      %5196 = vmatpush1.xpose.msra.mxu0 0.0
      %5197 = vmatprep.subr.mxu0 0.0
      %5198 = vmatpush1.xpose.msra.mxu0 0.0
      %5199 = vmatprep.subr.mxu0 0.0
      %5200 = vmatpush1.xpose.msra.mxu0 0.0
      %5201 = vmatprep.subr.mxu0 0.0
      %5202 = vmatpush1.xpose.msra.mxu0 0.0
      %5203 = vmatprep.mubr.f32.mxu0 0.0
      %5204 = vmatmul.mubr.f32.gmra.mrb[0].mxu0 %v5123
      %v5205 = vpop.f32.mrb[0].mxu0
      %v5206 = vadd.f32 0.0, %v5205
      %v5207 = vpop.f32.mrb[0].mxu0
      %5208 = vmatprep.mubr.f32.mxu0 0.0
      %5209 = vmatmul.mubr.f32.gmra.mrb[0].mxu0 %v5125
      %v5210 = vpop.f32.mrb[0].mxu0
      %v5211 = vadd.f32 0.0, %v5210
      %v5212 = vpop.f32.mrb[0].mxu0
      %5213 = vmatprep.mubr.f32.mxu0 0.0
      %5214 = vmatmul.mubr.f32.gmra.mrb[0].mxu0 %v5127
      %v5215 = vpop.f32.mrb[0].mxu0
      %v5216 = vadd.f32 0.0, %v5215
      %v5217 = vpop.f32.mrb[0].mxu0
      %5218 = vmatprep.mubr.f32.mxu0 0.0
      %5219 = vmatmul.mubr.f32.gmra.mrb[0].mxu0 %v5129
      %v5220 = vpop.f32.mrb[0].mxu0
      %v5221 = vadd.f32 0.0, %v5220
      %v5222 = vpop.f32.mrb[0].mxu0
      %5223 = vdwg.mxu0
      %v5224 = vmul.f32 %v5206, 0.35355338
      %v5225 = vmul.f32 %v5211, 0.35355338
      %v5226 = vmul.f32 %v5216, 0.35355338
      %v5227 = vmul.f32 %v5221, 0.35355338
      %v5228 = vadd.f32 %v5224, %v527
      %v5229 = vadd.f32 %v5225, %v528
      %v5230 = vadd.f32 %v5226, %v529
      %v5231 = vadd.f32 %v5227, %v530
      %v5232 = vsel %vm531, %v5228, -inf
      %5233 = vmax.xlane.f32.xlu0 %v5232
      %v5234 = vpop.xlane.xlu0 %5233
      %v5235 = vsel %vm531, %v5229, -inf
      %5236 = vmax.xlane.f32.xlu0 %v5235
      %v5237 = vpop.xlane.xlu0 %5236
      %v5238 = vsel %vm531, %v5230, -inf
      %5239 = vmax.xlane.f32.xlu0 %v5238
      %v5240 = vpop.xlane.xlu0 %5239
      %v5241 = vsel %vm531, %v5231, -inf
      %5242 = vmax.xlane.f32.xlu0 %v5241
      %v5243 = vpop.xlane.xlu0 %5242
      %v5244 = vsub.f32 %v5228, %v5234
      %v5245 = vsub.f32 %v5229, %v5237
      %v5246 = vsub.f32 %v5230, %v5240
      %v5247 = vsub.f32 %v5231, %v5243
      %v5248 = vmul.f32 %v5244, 1.442695
      %v5249 = vpow.pop %v5248
      %v5250 = vmul.f32 %v5245, 1.442695
      %v5251 = vpow.pop %v5250
      %v5252 = vmul.f32 %v5246, 1.442695
      %v5253 = vpow.pop %v5252
      %v5254 = vmul.f32 %v5247, 1.442695
      %v5255 = vpow.pop %v5254
      %v5256 = vsel %vm531, %v5249, 0.0
      %5257 = vadd.xlane.f32.xlu0 %v5256
      %v5258 = vpop.xlane.xlu0 %5257
      %v5259 = vsel %vm531, %v5251, 0.0
      %5260 = vadd.xlane.f32.xlu0 %v5259
      %v5261 = vpop.xlane.xlu0 %5260
      %v5262 = vsel %vm531, %v5253, 0.0
      %5263 = vadd.xlane.f32.xlu0 %v5262
      %v5264 = vpop.xlane.xlu0 %5263
      %v5265 = vsel %vm531, %v5255, 0.0
      %5266 = vadd.xlane.f32.xlu0 %v5265
      %v5267 = vpop.xlane.xlu0 %5266
      %v5268 = vrcp.pop %v5258
      %v5269 = vmul.f32 %v5249, %v5268
      %v5270 = vrcp.pop %v5261
      %v5271 = vmul.f32 %v5251, %v5270
      %v5272 = vrcp.pop %v5264
      %v5273 = vmul.f32 %v5253, %v5272
      %v5274 = vrcp.pop %v5267
      %v5275 = vmul.f32 %v5255, %v5274
      %5276 = vrot.lane.b32.xlu0 %v4259, 40
      %v5277 = vpop.permute.xlu0 %5276
      %5278 = vrot.lane.b32.xlu0 %v4264, 40
      %v5279 = vpop.permute.xlu0 %5278
      %5280 = vrot.lane.b32.xlu0 %v4269, 40
      %v5281 = vpop.permute.xlu0 %5280
      %5282 = vrot.lane.b32.xlu0 %v4274, 40
      %v5283 = vpop.permute.xlu0 %5282
      %v5289 = vsel %vm531, %v5269, 0
      %v5292 = vsel %vm531, %v5271, 0
      %v5295 = vsel %vm531, %v5273, 0
      %v5298 = vsel %vm531, %v5275, 0
      %5300 = vmatprep.subr.mxu0 0.0
      %5301 = vmatpush1.msra.mxu0 %v5277
      %5302 = vmatprep.subr.mxu0 0.0
      %5303 = vmatpush1.msra.mxu0 %v5279
      %5304 = vmatprep.subr.mxu0 0.0
      %5305 = vmatpush1.msra.mxu0 %v5281
      %5306 = vmatprep.subr.mxu0 0.0
      %5307 = vmatpush1.msra.mxu0 %v5283
      %5308 = vmatprep.subr.mxu0 0.0
      %5309 = vmatpush1.msra.mxu0 0.0
      %5310 = vmatprep.subr.mxu0 0.0
      %5311 = vmatpush1.msra.mxu0 0.0
      %5312 = vmatprep.subr.mxu0 0.0
      %5313 = vmatpush1.msra.mxu0 0.0
      %5314 = vmatprep.subr.mxu0 0.0
      %5315 = vmatpush1.msra.mxu0 0.0
      %5316 = vmatprep.subr.mxu0 0.0
      %5317 = vmatpush1.msra.mxu0 0.0
      %5318 = vmatprep.subr.mxu0 0.0
      %5319 = vmatpush1.msra.mxu0 0.0
      %5320 = vmatprep.subr.mxu0 0.0
      %5321 = vmatpush1.msra.mxu0 0.0
      %5322 = vmatprep.subr.mxu0 0.0
      %5323 = vmatpush1.msra.mxu0 0.0
      %5324 = vmatprep.subr.mxu0 0.0
      %5325 = vmatpush1.msra.mxu0 0.0
      %5326 = vmatprep.subr.mxu0 0.0
      %5327 = vmatpush1.msra.mxu0 0.0
      %5328 = vmatprep.subr.mxu0 0.0
      %5329 = vmatpush1.msra.mxu0 0.0
      %5330 = vmatprep.subr.mxu0 0.0
      %5331 = vmatpush1.msra.mxu0 0.0
      %5332 = vmatprep.subr.mxu0 0.0
      %5333 = vmatpush1.msra.mxu0 0.0
      %5334 = vmatprep.subr.mxu0 0.0
      %5335 = vmatpush1.msra.mxu0 0.0
      %5336 = vmatprep.subr.mxu0 0.0
      %5337 = vmatpush1.msra.mxu0 0.0
      %5338 = vmatprep.subr.mxu0 0.0
      %5339 = vmatpush1.msra.mxu0 0.0
      %5340 = vmatprep.subr.mxu0 0.0
      %5341 = vmatpush1.msra.mxu0 0.0
      %5342 = vmatprep.subr.mxu0 0.0
      %5343 = vmatpush1.msra.mxu0 0.0
      %5344 = vmatprep.subr.mxu0 0.0
      %5345 = vmatpush1.msra.mxu0 0.0
      %5346 = vmatprep.subr.mxu0 0.0
      %5347 = vmatpush1.msra.mxu0 0.0
      %5348 = vmatprep.subr.mxu0 0.0
      %5349 = vmatpush1.msra.mxu0 0.0
      %5350 = vmatprep.subr.mxu0 0.0
      %5351 = vmatpush1.msra.mxu0 0.0
      %5352 = vmatprep.subr.mxu0 0.0
      %5353 = vmatpush1.msra.mxu0 0.0
      %5354 = vmatprep.subr.mxu0 0.0
      %5355 = vmatpush1.msra.mxu0 0.0
      %5356 = vmatprep.subr.mxu0 0.0
      %5357 = vmatpush1.msra.mxu0 0.0
      %5358 = vmatprep.subr.mxu0 0.0
      %5359 = vmatpush1.msra.mxu0 0.0
      %5360 = vmatprep.subr.mxu0 0.0
      %5361 = vmatpush1.msra.mxu0 0.0
      %5362 = vmatprep.subr.mxu0 0.0
      %5363 = vmatpush1.msra.mxu0 0.0
      %5364 = vmatprep.mubr.f32.mxu0 0.0
      %5365 = vmatmul.mubr.f32.gmra.mrb[0].mxu0 %v5289
      %v5366 = vpop.f32.mrb[0].mxu0
      %v5367 = vadd.f32 0.0, %v5366
      %v5368 = vpop.f32.mrb[0].mxu0
      %5369 = vmatprep.mubr.f32.mxu0 0.0
      %5370 = vmatmul.mubr.f32.gmra.mrb[0].mxu0 %v5292
      %v5371 = vpop.f32.mrb[0].mxu0
      %v5372 = vadd.f32 0.0, %v5371
      %v5373 = vpop.f32.mrb[0].mxu0
      %5374 = vmatprep.mubr.f32.mxu0 0.0
      %5375 = vmatmul.mubr.f32.gmra.mrb[0].mxu0 %v5295
      %v5376 = vpop.f32.mrb[0].mxu0
      %v5377 = vadd.f32 0.0, %v5376
      %v5378 = vpop.f32.mrb[0].mxu0
      %5379 = vmatprep.mubr.f32.mxu0 0.0
      %5380 = vmatmul.mubr.f32.gmra.mrb[0].mxu0 %v5298
      %v5381 = vpop.f32.mrb[0].mxu0
      %v5382 = vadd.f32 0.0, %v5381
      %v5383 = vpop.f32.mrb[0].mxu0
      %5384 = vdwg.mxu0
      %5389 = vrot.lane.b32.xlu0 %v4811, 8
      %v5390 = vpop.permute.xlu0 %5389
      %5391 = vrot.lane.b32.xlu0 %v4816, 8
      %v5392 = vpop.permute.xlu0 %5391
      %5393 = vrot.lane.b32.xlu0 %v4821, 8
      %v5394 = vpop.permute.xlu0 %5393
      %5395 = vrot.lane.b32.xlu0 %v4826, 8
      %v5396 = vpop.permute.xlu0 %5395
      %5405 = vrot.lane.b32.xlu0 %v5089, 16
      %v5406 = vpop.permute.xlu0 %5405
      %5407 = vrot.lane.b32.xlu0 %v5094, 16
      %v5408 = vpop.permute.xlu0 %5407
      %5409 = vrot.lane.b32.xlu0 %v5099, 16
      %v5410 = vpop.permute.xlu0 %5409
      %5411 = vrot.lane.b32.xlu0 %v5104, 16
      %v5412 = vpop.permute.xlu0 %5411
      %5421 = vrot.lane.b32.xlu0 %v5367, 24
      %v5422 = vpop.permute.xlu0 %5421
      %5423 = vrot.lane.b32.xlu0 %v5372, 24
      %v5424 = vpop.permute.xlu0 %5423
      %5425 = vrot.lane.b32.xlu0 %v5377, 24
      %v5426 = vpop.permute.xlu0 %5425
      %5427 = vrot.lane.b32.xlu0 %v5382, 24
      %v5428 = vpop.permute.xlu0 %5427
      %v5433 = vsel %vm718, %v4533, %v5390
      %v5434 = vsel %vm718, %v4538, %v5392
      %v5435 = vsel %vm718, %v4543, %v5394
      %v5436 = vsel %vm718, %v4548, %v5396
      %v5437 = vsel %vm1867, %v5433, %v5406
      %v5438 = vsel %vm1867, %v5434, %v5408
      %v5439 = vsel %vm1867, %v5435, %v5410
      %v5440 = vsel %vm1867, %v5436, %v5412
      %v5441 = vsel %vm1872, %v5437, %v5422
      %v5442 = vsel %vm1872, %v5438, %v5424
      %v5443 = vsel %vm1872, %v5439, %v5426
      %v5444 = vsel %vm1872, %v5440, %v5428
      %s5445 = scalar_lea.vmem %s5, 64
      %v5446 = vld [vmem:[%s5445] sm:$0xff]
      %v5447 = vld [vmem:[%s5445 + $0x8] sm:$0xff]
      %v5448 = vld [vmem:[%s5445 + $0x10] sm:$0xff]
      %v5449 = vld [vmem:[%s5445 + $0x18] sm:$0xff]
      %v5451 = vsel %vm531, %v5441, 0
      %v5454 = vsel %vm531, %v5442, 0
      %v5457 = vsel %vm531, %v5443, 0
      %v5460 = vsel %vm531, %v5444, 0
      %5462 = vmatprep.subr.mxu0 0.0
      %5463 = vmatpush1.msra.mxu0 %v5446
      %5464 = vmatprep.subr.mxu0 0.0
      %5465 = vmatpush1.msra.mxu0 %v5447
      %5466 = vmatprep.subr.mxu0 0.0
      %5467 = vmatpush1.msra.mxu0 %v5448
      %5468 = vmatprep.subr.mxu0 0.0
      %5469 = vmatpush1.msra.mxu0 %v5449
      %5470 = vmatprep.subr.mxu0 0.0
      %5471 = vmatpush1.msra.mxu0 0.0
      %5472 = vmatprep.subr.mxu0 0.0
      %5473 = vmatpush1.msra.mxu0 0.0
      %5474 = vmatprep.subr.mxu0 0.0
      %5475 = vmatpush1.msra.mxu0 0.0
      %5476 = vmatprep.subr.mxu0 0.0
      %5477 = vmatpush1.msra.mxu0 0.0
      %5478 = vmatprep.subr.mxu0 0.0
      %5479 = vmatpush1.msra.mxu0 0.0
      %5480 = vmatprep.subr.mxu0 0.0
      %5481 = vmatpush1.msra.mxu0 0.0
      %5482 = vmatprep.subr.mxu0 0.0
      %5483 = vmatpush1.msra.mxu0 0.0
      %5484 = vmatprep.subr.mxu0 0.0
      %5485 = vmatpush1.msra.mxu0 0.0
      %5486 = vmatprep.subr.mxu0 0.0
      %5487 = vmatpush1.msra.mxu0 0.0
      %5488 = vmatprep.subr.mxu0 0.0
      %5489 = vmatpush1.msra.mxu0 0.0
      %5490 = vmatprep.subr.mxu0 0.0
      %5491 = vmatpush1.msra.mxu0 0.0
      %5492 = vmatprep.subr.mxu0 0.0
      %5493 = vmatpush1.msra.mxu0 0.0
      %5494 = vmatprep.subr.mxu0 0.0
      %5495 = vmatpush1.msra.mxu0 0.0
      %5496 = vmatprep.subr.mxu0 0.0
      %5497 = vmatpush1.msra.mxu0 0.0
      %5498 = vmatprep.subr.mxu0 0.0
      %5499 = vmatpush1.msra.mxu0 0.0
      %5500 = vmatprep.subr.mxu0 0.0
      %5501 = vmatpush1.msra.mxu0 0.0
      %5502 = vmatprep.subr.mxu0 0.0
      %5503 = vmatpush1.msra.mxu0 0.0
      %5504 = vmatprep.subr.mxu0 0.0
      %5505 = vmatpush1.msra.mxu0 0.0
      %5506 = vmatprep.subr.mxu0 0.0
      %5507 = vmatpush1.msra.mxu0 0.0
      %5508 = vmatprep.subr.mxu0 0.0
      %5509 = vmatpush1.msra.mxu0 0.0
      %5510 = vmatprep.subr.mxu0 0.0
      %5511 = vmatpush1.msra.mxu0 0.0
      %5512 = vmatprep.subr.mxu0 0.0
      %5513 = vmatpush1.msra.mxu0 0.0
      %5514 = vmatprep.subr.mxu0 0.0
      %5515 = vmatpush1.msra.mxu0 0.0
      %5516 = vmatprep.subr.mxu0 0.0
      %5517 = vmatpush1.msra.mxu0 0.0
      %5518 = vmatprep.subr.mxu0 0.0
      %5519 = vmatpush1.msra.mxu0 0.0
      %5520 = vmatprep.subr.mxu0 0.0
      %5521 = vmatpush1.msra.mxu0 0.0
      %5522 = vmatprep.subr.mxu0 0.0
      %5523 = vmatpush1.msra.mxu0 0.0
      %5524 = vmatprep.subr.mxu0 0.0
      %5525 = vmatpush1.msra.mxu0 0.0
      %5526 = vmatprep.mubr.f32.mxu0 0.0
      %5527 = vmatmul.mubr.f32.gmra.mrb[0].mxu0 %v5451
      %v5528 = vpop.f32.mrb[0].mxu0
      %v5529 = vadd.f32 0.0, %v5528
      %v5530 = vpop.f32.mrb[0].mxu0
      %5531 = vmatprep.mubr.f32.mxu0 0.0
      %5532 = vmatmul.mubr.f32.gmra.mrb[0].mxu0 %v5454
      %v5533 = vpop.f32.mrb[0].mxu0
      %v5534 = vadd.f32 0.0, %v5533
      %v5535 = vpop.f32.mrb[0].mxu0
      %5536 = vmatprep.mubr.f32.mxu0 0.0
      %5537 = vmatmul.mubr.f32.gmra.mrb[0].mxu0 %v5457
      %v5538 = vpop.f32.mrb[0].mxu0
      %v5539 = vadd.f32 0.0, %v5538
      %v5540 = vpop.f32.mrb[0].mxu0
      %5541 = vmatprep.mubr.f32.mxu0 0.0
      %5542 = vmatmul.mubr.f32.gmra.mrb[0].mxu0 %v5460
      %v5543 = vpop.f32.mrb[0].mxu0
      %v5544 = vadd.f32 0.0, %v5543
      %v5545 = vpop.f32.mrb[0].mxu0
      %5546 = vdwg.mxu0
      %v5547 = vadd.f32 %v4097, %v5529
      %v5548 = vadd.f32 %v4098, %v5534
      %v5549 = vadd.f32 %v4099, %v5539
      %v5550 = vadd.f32 %v4100, %v5544
      %v5551 = vlaneseq
      %v5552 = vshrl.u32 %v5551, 7
      %v5553 = vsub.s32 3, %v5552
      %v5554 = vrot.slane %v369, %v5553
      %v5555 = vadd.f32 %v5547, %v5554
      %v5556 = vadd.f32 %v5548, %v5554
      %v5557 = vadd.f32 %v5549, %v5554
      %v5558 = vadd.f32 %v5550, %v5554
      %v5559 = vsel %vm531, %v5555, 0.0
      %5560 = vadd.xlane.f32.xlu0 %v5559
      %v5561 = vpop.xlane.xlu0 %5560
      %v5562 = vsel %vm531, %v5556, 0.0
      %5563 = vadd.xlane.f32.xlu0 %v5562
      %v5564 = vpop.xlane.xlu0 %5563
      %v5565 = vsel %vm531, %v5557, 0.0
      %5566 = vadd.xlane.f32.xlu0 %v5565
      %v5567 = vpop.xlane.xlu0 %5566
      %v5568 = vsel %vm531, %v5558, 0.0
      %5569 = vadd.xlane.f32.xlu0 %v5568
      %v5570 = vpop.xlane.xlu0 %5569
      %v5571 = vmul.f32 %v5561, %v544
      %v5572 = vmul.f32 %v5564, %v544
      %v5573 = vmul.f32 %v5567, %v544
      %v5574 = vmul.f32 %v5570, %v544
      %v5575 = vsub.f32 %v5555, %v5571
      %v5576 = vsub.f32 %v5556, %v5572
      %v5577 = vsub.f32 %v5557, %v5573
      %v5578 = vsub.f32 %v5558, %v5574
      %v5579 = vmul.f32 %v5575, %v5575
      %v5580 = vmul.f32 %v5576, %v5576
      %v5581 = vmul.f32 %v5577, %v5577
      %v5582 = vmul.f32 %v5578, %v5578
      %v5583 = vsel %vm531, %v5579, 0.0
      %5584 = vadd.xlane.f32.xlu0 %v5583
      %v5585 = vpop.xlane.xlu0 %5584
      %v5586 = vsel %vm531, %v5580, 0.0
      %5587 = vadd.xlane.f32.xlu0 %v5586
      %v5588 = vpop.xlane.xlu0 %5587
      %v5589 = vsel %vm531, %v5581, 0.0
      %5590 = vadd.xlane.f32.xlu0 %v5589
      %v5591 = vpop.xlane.xlu0 %5590
      %v5592 = vsel %vm531, %v5582, 0.0
      %5593 = vadd.xlane.f32.xlu0 %v5592
      %v5594 = vpop.xlane.xlu0 %5593
      %v5595 = vmul.f32 %v5585, %v544
      %v5596 = vmul.f32 %v5588, %v544
      %v5597 = vmul.f32 %v5591, %v544
      %v5598 = vmul.f32 %v5594, %v544
      %v5599 = vadd.f32 %v5595, 1e-05
      %v5600 = vadd.f32 %v5596, 1e-05
      %v5601 = vadd.f32 %v5597, 1e-05
      %v5602 = vadd.f32 %v5598, 1e-05
      %v5603 = vrsqrt.pop %v5599
      %v5604 = vrsqrt.pop %v5600
      %v5605 = vrsqrt.pop %v5601
      %v5606 = vrsqrt.pop %v5602
      %v5607 = vmul.f32 %v5575, %v5603
      %v5608 = vmul.f32 %v5576, %v5604
      %v5609 = vmul.f32 %v5577, %v5605
      %v5610 = vmul.f32 %v5578, %v5606
      %v5611 = vlaneseq
      %v5612 = vshrl.u32 %v5611, 7
      %v5613 = vsub.s32 4, %v5612
      %v5614 = vrot.slane %v369, %v5613
      %v5615 = vmul.f32 %v5607, %v5614
      %v5616 = vmul.f32 %v5608, %v5614
      %v5617 = vmul.f32 %v5609, %v5614
      %v5618 = vmul.f32 %v5610, %v5614
      %v5619 = vlaneseq
      %v5620 = vshrl.u32 %v5619, 7
      %v5621 = vsub.s32 5, %v5620
      %v5622 = vrot.slane %v369, %v5621
      %v5623 = vadd.f32 %v5615, %v5622
      %v5624 = vadd.f32 %v5616, %v5622
      %v5625 = vadd.f32 %v5617, %v5622
      %v5626 = vadd.f32 %v5618, %v5622
      %s5627 = scalar_lea.vmem %s6, 64
      %v5628 = vld [vmem:[%s5627] sm:$0xff]
      %v5629 = vld [vmem:[%s5627 + $0x8] sm:$0xff]
      %v5630 = vld [vmem:[%s5627 + $0x10] sm:$0xff]
      %v5631 = vld [vmem:[%s5627 + $0x18] sm:$0xff]
      %v5632 = vlaneseq
      %v5633 = vshrl.u32 %v5632, 7
      %v5634 = vsub.s32 6, %v5633
      %v5635 = vrot.slane %v369, %v5634
      %v5637 = vsel %vm531, %v5623, 0
      %v5640 = vsel %vm531, %v5624, 0
      %v5643 = vsel %vm531, %v5625, 0
      %v5646 = vsel %vm531, %v5626, 0
      %5648 = vmatprep.subr.mxu0 0.0
      %5649 = vmatpush1.msra.mxu0 %v5628
      %5650 = vmatprep.subr.mxu0 0.0
      %5651 = vmatpush1.msra.mxu0 %v5629
      %5652 = vmatprep.subr.mxu0 0.0
      %5653 = vmatpush1.msra.mxu0 %v5630
      %5654 = vmatprep.subr.mxu0 0.0
      %5655 = vmatpush1.msra.mxu0 %v5631
      %5656 = vmatprep.subr.mxu0 0.0
      %5657 = vmatpush1.msra.mxu0 0.0
      %5658 = vmatprep.subr.mxu0 0.0
      %5659 = vmatpush1.msra.mxu0 0.0
      %5660 = vmatprep.subr.mxu0 0.0
      %5661 = vmatpush1.msra.mxu0 0.0
      %5662 = vmatprep.subr.mxu0 0.0
      %5663 = vmatpush1.msra.mxu0 0.0
      %5664 = vmatprep.subr.mxu0 0.0
      %5665 = vmatpush1.msra.mxu0 0.0
      %5666 = vmatprep.subr.mxu0 0.0
      %5667 = vmatpush1.msra.mxu0 0.0
      %5668 = vmatprep.subr.mxu0 0.0
      %5669 = vmatpush1.msra.mxu0 0.0
      %5670 = vmatprep.subr.mxu0 0.0
      %5671 = vmatpush1.msra.mxu0 0.0
      %5672 = vmatprep.subr.mxu0 0.0
      %5673 = vmatpush1.msra.mxu0 0.0
      %5674 = vmatprep.subr.mxu0 0.0
      %5675 = vmatpush1.msra.mxu0 0.0
      %5676 = vmatprep.subr.mxu0 0.0
      %5677 = vmatpush1.msra.mxu0 0.0
      %5678 = vmatprep.subr.mxu0 0.0
      %5679 = vmatpush1.msra.mxu0 0.0
      %5680 = vmatprep.subr.mxu0 0.0
      %5681 = vmatpush1.msra.mxu0 0.0
      %5682 = vmatprep.subr.mxu0 0.0
      %5683 = vmatpush1.msra.mxu0 0.0
      %5684 = vmatprep.subr.mxu0 0.0
      %5685 = vmatpush1.msra.mxu0 0.0
      %5686 = vmatprep.subr.mxu0 0.0
      %5687 = vmatpush1.msra.mxu0 0.0
      %5688 = vmatprep.subr.mxu0 0.0
      %5689 = vmatpush1.msra.mxu0 0.0
      %5690 = vmatprep.subr.mxu0 0.0
      %5691 = vmatpush1.msra.mxu0 0.0
      %5692 = vmatprep.subr.mxu0 0.0
      %5693 = vmatpush1.msra.mxu0 0.0
      %5694 = vmatprep.subr.mxu0 0.0
      %5695 = vmatpush1.msra.mxu0 0.0
      %5696 = vmatprep.subr.mxu0 0.0
      %5697 = vmatpush1.msra.mxu0 0.0
      %5698 = vmatprep.subr.mxu0 0.0
      %5699 = vmatpush1.msra.mxu0 0.0
      %5700 = vmatprep.subr.mxu0 0.0
      %5701 = vmatpush1.msra.mxu0 0.0
      %5702 = vmatprep.subr.mxu0 0.0
      %5703 = vmatpush1.msra.mxu0 0.0
      %5704 = vmatprep.subr.mxu0 0.0
      %5705 = vmatpush1.msra.mxu0 0.0
      %5706 = vmatprep.subr.mxu0 0.0
      %5707 = vmatpush1.msra.mxu0 0.0
      %5708 = vmatprep.subr.mxu0 0.0
      %5709 = vmatpush1.msra.mxu0 0.0
      %5710 = vmatprep.subr.mxu0 0.0
      %5711 = vmatpush1.msra.mxu0 0.0
      %5712 = vmatprep.mubr.f32.mxu0 0.0
      %5713 = vmatmul.mubr.f32.gmra.mrb[0].mxu0 %v5637
      %v5714 = vpop.f32.mrb[0].mxu0
      %v5715 = vadd.f32 %v5635, %v5714
      %v5716 = vpop.f32.mrb[0].mxu0
      %5717 = vmatprep.mubr.f32.mxu0 0.0
      %5718 = vmatmul.mubr.f32.gmra.mrb[0].mxu0 %v5640
      %v5719 = vpop.f32.mrb[0].mxu0
      %v5720 = vadd.f32 %v5635, %v5719
      %v5721 = vpop.f32.mrb[0].mxu0
      %5722 = vmatprep.mubr.f32.mxu0 0.0
      %5723 = vmatmul.mubr.f32.gmra.mrb[0].mxu0 %v5643
      %v5724 = vpop.f32.mrb[0].mxu0
      %v5725 = vadd.f32 %v5635, %v5724
      %v5726 = vpop.f32.mrb[0].mxu0
      %5727 = vmatprep.mubr.f32.mxu0 0.0
      %5728 = vmatmul.mubr.f32.gmra.mrb[0].mxu0 %v5646
      %v5729 = vpop.f32.mrb[0].mxu0
      %v5730 = vadd.f32 %v5635, %v5729
      %v5731 = vpop.f32.mrb[0].mxu0
      %5732 = vdwg.mxu0
      %v5733 = vmul.f32 %v5715, 0.5
      %v5734 = vmul.f32 %v5720, 0.5
      %v5735 = vmul.f32 %v5725, 0.5
      %v5736 = vmul.f32 %v5730, 0.5
      %v5737 = vmul.f32 %v5715, 0.044715
      %v5738 = vmul.f32 %v5720, 0.044715
      %v5739 = vmul.f32 %v5725, 0.044715
      %v5740 = vmul.f32 %v5730, 0.044715
      %v5741 = vmul.f32 %v5737, %v5715
      %v5742 = vmul.f32 %v5738, %v5720
      %v5743 = vmul.f32 %v5739, %v5725
      %v5744 = vmul.f32 %v5740, %v5730
      %v5745 = vmul.f32 %v5741, %v5715
      %v5746 = vmul.f32 %v5742, %v5720
      %v5747 = vmul.f32 %v5743, %v5725
      %v5748 = vmul.f32 %v5744, %v5730
      %v5749 = vadd.f32 %v5715, %v5745
      %v5750 = vadd.f32 %v5720, %v5746
      %v5751 = vadd.f32 %v5725, %v5747
      %v5752 = vadd.f32 %v5730, %v5748
      %v5753 = vmul.f32 %v5749, 0.7978846
      %v5754 = vmul.f32 %v5750, 0.7978846
      %v5755 = vmul.f32 %v5751, 0.7978846
      %v5756 = vmul.f32 %v5752, 0.7978846
      %v5757 = vtanh.pop %v5753
      %v5758 = vtanh.pop %v5754
      %v5759 = vtanh.pop %v5755
      %v5760 = vtanh.pop %v5756
      %v5761 = vadd.f32 %v5757, 1.0
      %v5762 = vadd.f32 %v5758, 1.0
      %v5763 = vadd.f32 %v5759, 1.0
      %v5764 = vadd.f32 %v5760, 1.0
      %v5765 = vmul.f32 %v5733, %v5761
      %v5766 = vmul.f32 %v5734, %v5762
      %v5767 = vmul.f32 %v5735, %v5763
      %v5768 = vmul.f32 %v5736, %v5764
      %s5769 = scalar_lea.vmem %s7, 128
      %v5770 = vld [vmem:[%s5769] sm:$0xff]
      %v5771 = vld [vmem:[%s5769 + $0x8] sm:$0xff]
      %v5772 = vld [vmem:[%s5769 + $0x10] sm:$0xff]
      %v5773 = vld [vmem:[%s5769 + $0x18] sm:$0xff]
      %v5774 = vld [vmem:[%s5769 + $0x20] sm:$0xff]
      %v5775 = vld [vmem:[%s5769 + $0x28] sm:$0xff]
      %v5776 = vld [vmem:[%s5769 + $0x30] sm:$0xff]
      %v5777 = vld [vmem:[%s5769 + $0x38] sm:$0xff]
      %v5779 = vsel %vm2207, %v5765, 0
      %v5782 = vsel %vm2207, %v5766, 0
      %v5785 = vsel %vm2207, %v5767, 0
      %v5788 = vsel %vm2207, %v5768, 0
      %5790 = vmatprep.subr.mxu0 0.0
      %5791 = vmatpush1.msra.mxu0 %v5770
      %5792 = vmatprep.subr.mxu0 0.0
      %5793 = vmatpush1.msra.mxu0 %v5771
      %5794 = vmatprep.subr.mxu0 0.0
      %5795 = vmatpush1.msra.mxu0 %v5772
      %5796 = vmatprep.subr.mxu0 0.0
      %5797 = vmatpush1.msra.mxu0 %v5773
      %5798 = vmatprep.subr.mxu0 0.0
      %5799 = vmatpush1.msra.mxu0 %v5774
      %5800 = vmatprep.subr.mxu0 0.0
      %5801 = vmatpush1.msra.mxu0 %v5775
      %5802 = vmatprep.subr.mxu0 0.0
      %5803 = vmatpush1.msra.mxu0 %v5776
      %5804 = vmatprep.subr.mxu0 0.0
      %5805 = vmatpush1.msra.mxu0 %v5777
      %5806 = vmatprep.subr.mxu0 0.0
      %5807 = vmatpush1.msra.mxu0 0.0
      %5808 = vmatprep.subr.mxu0 0.0
      %5809 = vmatpush1.msra.mxu0 0.0
      %5810 = vmatprep.subr.mxu0 0.0
      %5811 = vmatpush1.msra.mxu0 0.0
      %5812 = vmatprep.subr.mxu0 0.0
      %5813 = vmatpush1.msra.mxu0 0.0
      %5814 = vmatprep.subr.mxu0 0.0
      %5815 = vmatpush1.msra.mxu0 0.0
      %5816 = vmatprep.subr.mxu0 0.0
      %5817 = vmatpush1.msra.mxu0 0.0
      %5818 = vmatprep.subr.mxu0 0.0
      %5819 = vmatpush1.msra.mxu0 0.0
      %5820 = vmatprep.subr.mxu0 0.0
      %5821 = vmatpush1.msra.mxu0 0.0
      %5822 = vmatprep.subr.mxu0 0.0
      %5823 = vmatpush1.msra.mxu0 0.0
      %5824 = vmatprep.subr.mxu0 0.0
      %5825 = vmatpush1.msra.mxu0 0.0
      %5826 = vmatprep.subr.mxu0 0.0
      %5827 = vmatpush1.msra.mxu0 0.0
      %5828 = vmatprep.subr.mxu0 0.0
      %5829 = vmatpush1.msra.mxu0 0.0
      %5830 = vmatprep.subr.mxu0 0.0
      %5831 = vmatpush1.msra.mxu0 0.0
      %5832 = vmatprep.subr.mxu0 0.0
      %5833 = vmatpush1.msra.mxu0 0.0
      %5834 = vmatprep.subr.mxu0 0.0
      %5835 = vmatpush1.msra.mxu0 0.0
      %5836 = vmatprep.subr.mxu0 0.0
      %5837 = vmatpush1.msra.mxu0 0.0
      %5838 = vmatprep.subr.mxu0 0.0
      %5839 = vmatpush1.msra.mxu0 0.0
      %5840 = vmatprep.subr.mxu0 0.0
      %5841 = vmatpush1.msra.mxu0 0.0
      %5842 = vmatprep.subr.mxu0 0.0
      %5843 = vmatpush1.msra.mxu0 0.0
      %5844 = vmatprep.subr.mxu0 0.0
      %5845 = vmatpush1.msra.mxu0 0.0
      %5846 = vmatprep.subr.mxu0 0.0
      %5847 = vmatpush1.msra.mxu0 0.0
      %5848 = vmatprep.subr.mxu0 0.0
      %5849 = vmatpush1.msra.mxu0 0.0
      %5850 = vmatprep.subr.mxu0 0.0
      %5851 = vmatpush1.msra.mxu0 0.0
      %5852 = vmatprep.subr.mxu0 0.0
      %5853 = vmatpush1.msra.mxu0 0.0
      %5854 = vmatprep.mubr.f32.mxu0 0.0
      %5855 = vmatmul.mubr.f32.gmra.mrb[0].mxu0 %v5779
      %v5856 = vpop.f32.mrb[0].mxu0
      %v5857 = vadd.f32 0.0, %v5856
      %v5858 = vpop.f32.mrb[0].mxu0
      %5859 = vmatprep.mubr.f32.mxu0 0.0
      %5860 = vmatmul.mubr.f32.gmra.mrb[0].mxu0 %v5782
      %v5861 = vpop.f32.mrb[0].mxu0
      %v5862 = vadd.f32 0.0, %v5861
      %v5863 = vpop.f32.mrb[0].mxu0
      %5864 = vmatprep.mubr.f32.mxu0 0.0
      %5865 = vmatmul.mubr.f32.gmra.mrb[0].mxu0 %v5785
      %v5866 = vpop.f32.mrb[0].mxu0
      %v5867 = vadd.f32 0.0, %v5866
      %v5868 = vpop.f32.mrb[0].mxu0
      %5869 = vmatprep.mubr.f32.mxu0 0.0
      %5870 = vmatmul.mubr.f32.gmra.mrb[0].mxu0 %v5788
      %v5871 = vpop.f32.mrb[0].mxu0
      %v5872 = vadd.f32 0.0, %v5871
      %v5873 = vpop.f32.mrb[0].mxu0
      %5874 = vdwg.mxu0
      %v5875 = vadd.f32 %v5555, %v5857
      %v5876 = vadd.f32 %v5556, %v5862
      %v5877 = vadd.f32 %v5557, %v5867
      %v5878 = vadd.f32 %v5558, %v5872
      %v5879 = vlaneseq
      %v5880 = vshrl.u32 %v5879, 7
      %v5881 = vsub.s32 7, %v5880
      %v5882 = vrot.slane %v369, %v5881
      %v5883 = vadd.f32 %v5875, %v5882
      %v5884 = vadd.f32 %v5876, %v5882
      %v5885 = vadd.f32 %v5877, %v5882
      %v5886 = vadd.f32 %v5878, %v5882
      %v5887 = vsel %vm531, %v5885, 0.0
      %5888 = vadd.xlane.f32.xlu0 %v5887
      %v5889 = vpop.xlane.xlu0 %5888
      %v5890 = vsel %vm531, %v5886, 0.0
      %5891 = vadd.xlane.f32.xlu0 %v5890
      %v5892 = vpop.xlane.xlu0 %5891
      %v5893 = vmul.f32 %v5889, %v544
      %v5894 = vmul.f32 %v5892, %v544
      %v5895 = vsub.f32 %v5885, %v5893
      %v5896 = vsub.f32 %v5886, %v5894
      %v5897 = vmul.f32 %v5895, %v5895
      %v5898 = vmul.f32 %v5896, %v5896
      %v5899 = vsel %vm531, %v5897, 0.0
      %5900 = vadd.xlane.f32.xlu0 %v5899
      %v5901 = vpop.xlane.xlu0 %5900
      %v5902 = vsel %vm531, %v5898, 0.0
      %5903 = vadd.xlane.f32.xlu0 %v5902
      %v5904 = vpop.xlane.xlu0 %5903
      %v5905 = vmul.f32 %v5901, %v544
      %v5906 = vmul.f32 %v5904, %v544
      %v5907 = vadd.f32 %v5905, 1e-05
      %v5908 = vadd.f32 %v5906, 1e-05
      %v5909 = vrsqrt.pop %v5907
      %v5910 = vrsqrt.pop %v5908
      %v5911 = vmul.f32 %v5895, %v5909
      %v5912 = vmul.f32 %v5896, %v5910
      %v5913 = vadd.f32 %v4127, %v5911
      %v5914 = vadd.f32 %v4128, %v5912
      %v5915 = vsel %vm531, %v5883, 0.0
      %5916 = vadd.xlane.f32.xlu0 %v5915
      %v5917 = vpop.xlane.xlu0 %5916
      %v5918 = vsel %vm531, %v5884, 0.0
      %5919 = vadd.xlane.f32.xlu0 %v5918
      %v5920 = vpop.xlane.xlu0 %5919
      %v5921 = vmul.f32 %v5917, %v544
      %v5922 = vmul.f32 %v5920, %v544
      %v5923 = vsub.f32 %v5883, %v5921
      %v5924 = vsub.f32 %v5884, %v5922
      %v5925 = vmul.f32 %v5923, %v5923
      %v5926 = vmul.f32 %v5924, %v5924
      %v5927 = vsel %vm531, %v5925, 0.0
      %5928 = vadd.xlane.f32.xlu0 %v5927
      %v5929 = vpop.xlane.xlu0 %5928
      %v5930 = vsel %vm531, %v5926, 0.0
      %5931 = vadd.xlane.f32.xlu0 %v5930
      %v5932 = vpop.xlane.xlu0 %5931
      %v5933 = vmul.f32 %v5929, %v544
      %v5934 = vmul.f32 %v5932, %v544
      %v5935 = vadd.f32 %v5933, 1e-05
      %v5936 = vadd.f32 %v5934, 1e-05
      %v5937 = vrsqrt.pop %v5935
      %v5938 = vrsqrt.pop %v5936
      %v5939 = vmul.f32 %v5923, %v5937
      %v5940 = vmul.f32 %v5924, %v5938
      %v5941 = vlaneseq
      %v5942 = vshrl.u32 %v5941, 7
      %v5943 = vsub.s32 2, %v5942
      %v5944 = vrot.slane %v366, %v5943
      %v5945 = vmul.f32 %v5939, %v5944
      %v5946 = vmul.f32 %v5940, %v5944
      %v5947 = vlaneseq
      %v5948 = vshrl.u32 %v5947, 7
      %v5949 = vsub.s32 3, %v5948
      %v5950 = vrot.slane %v366, %v5949
      %v5951 = vadd.f32 %v5945, %v5950
      %v5952 = vadd.f32 %v5946, %v5950
      %v5953 = vlaneseq
      %v5954 = vshrl.u32 %v5953, 7
      %v5955 = vsub.s32 4, %v5954
      %v5956 = vrot.slane %v366, %v5955
      %v5958 = vsel %vm531, %v5951, 0
      %v5961 = vsel %vm531, %v5952, 0
      %5963 = vmatprep.subr.mxu0 0.0
      %5964 = vmatpush1.msra.mxu0 %v373
      %5965 = vmatprep.subr.mxu0 0.0
      %5966 = vmatpush1.msra.mxu0 %v374
      %5967 = vmatprep.subr.mxu0 0.0
      %5968 = vmatpush1.msra.mxu0 %v375
      %5969 = vmatprep.subr.mxu0 0.0
      %5970 = vmatpush1.msra.mxu0 %v376
      %5971 = vmatprep.subr.mxu0 0.0
      %5972 = vmatpush1.msra.mxu0 0.0
      %5973 = vmatprep.subr.mxu0 0.0
      %5974 = vmatpush1.msra.mxu0 0.0
      %5975 = vmatprep.subr.mxu0 0.0
      %5976 = vmatpush1.msra.mxu0 0.0
      %5977 = vmatprep.subr.mxu0 0.0
      %5978 = vmatpush1.msra.mxu0 0.0
      %5979 = vmatprep.subr.mxu0 0.0
      %5980 = vmatpush1.msra.mxu0 0.0
      %5981 = vmatprep.subr.mxu0 0.0
      %5982 = vmatpush1.msra.mxu0 0.0
      %5983 = vmatprep.subr.mxu0 0.0
      %5984 = vmatpush1.msra.mxu0 0.0
      %5985 = vmatprep.subr.mxu0 0.0
      %5986 = vmatpush1.msra.mxu0 0.0
      %5987 = vmatprep.subr.mxu0 0.0
      %5988 = vmatpush1.msra.mxu0 0.0
      %5989 = vmatprep.subr.mxu0 0.0
      %5990 = vmatpush1.msra.mxu0 0.0
      %5991 = vmatprep.subr.mxu0 0.0
      %5992 = vmatpush1.msra.mxu0 0.0
      %5993 = vmatprep.subr.mxu0 0.0
      %5994 = vmatpush1.msra.mxu0 0.0
      %5995 = vmatprep.subr.mxu0 0.0
      %5996 = vmatpush1.msra.mxu0 0.0
      %5997 = vmatprep.subr.mxu0 0.0
      %5998 = vmatpush1.msra.mxu0 0.0
      %5999 = vmatprep.subr.mxu0 0.0
      %6000 = vmatpush1.msra.mxu0 0.0
      %6001 = vmatprep.subr.mxu0 0.0
      %6002 = vmatpush1.msra.mxu0 0.0
      %6003 = vmatprep.subr.mxu0 0.0
      %6004 = vmatpush1.msra.mxu0 0.0
      %6005 = vmatprep.subr.mxu0 0.0
      %6006 = vmatpush1.msra.mxu0 0.0
      %6007 = vmatprep.subr.mxu0 0.0
      %6008 = vmatpush1.msra.mxu0 0.0
      %6009 = vmatprep.subr.mxu0 0.0
      %6010 = vmatpush1.msra.mxu0 0.0
      %6011 = vmatprep.subr.mxu0 0.0
      %6012 = vmatpush1.msra.mxu0 0.0
      %6013 = vmatprep.subr.mxu0 0.0
      %6014 = vmatpush1.msra.mxu0 0.0
      %6015 = vmatprep.subr.mxu0 0.0
      %6016 = vmatpush1.msra.mxu0 0.0
      %6017 = vmatprep.subr.mxu0 0.0
      %6018 = vmatpush1.msra.mxu0 0.0
      %6019 = vmatprep.subr.mxu0 0.0
      %6020 = vmatpush1.msra.mxu0 0.0
      %6021 = vmatprep.subr.mxu0 0.0
      %6022 = vmatpush1.msra.mxu0 0.0
      %6023 = vmatprep.subr.mxu0 0.0
      %6024 = vmatpush1.msra.mxu0 0.0
      %6025 = vmatprep.subr.mxu0 0.0
      %6026 = vmatpush1.msra.mxu0 0.0
      %6027 = vmatprep.mubr.f32.mxu0 0.0
      %6028 = vmatmul.mubr.f32.gmra.mrb[0].mxu0 %v5958
      %v6029 = vpop.f32.mrb[0].mxu0
      %v6030 = vadd.f32 %v5956, %v6029
      %v6031 = vpop.f32.mrb[0].mxu0
      %6032 = vmatprep.mubr.f32.mxu0 0.0
      %6033 = vmatmul.mubr.f32.gmra.mrb[0].mxu0 %v5961
      %v6034 = vpop.f32.mrb[0].mxu0
      %v6035 = vadd.f32 %v5956, %v6034
      %v6036 = vpop.f32.mrb[0].mxu0
      %6037 = vdwg.mxu0
      %6038 = vst.msk [vmem:[%s360] sm:$0xff] %vm531, %v6030
      %6039 = vst.msk [vmem:[%s360 + $0x8] sm:$0xff] %vm531, %v6035
      %v6040 = vmul.f32 %v5913, 0.5
      %v6041 = vmul.f32 %v5914, 0.5
      %v6042 = vsel %vm531, %v6040, 0.0
      %6043 = vadd.xlane.f32.xlu0 %v6042
      %v6044 = vpop.xlane.xlu0 %6043
      %v6045 = vsel %vm531, %v6041, 0.0
      %6046 = vadd.xlane.f32.xlu0 %v6045
      %v6047 = vpop.xlane.xlu0 %6046
      %v6048 = vmul.f32 %v6044, %v544
      %v6049 = vmul.f32 %v6047, %v544
      %v6050 = vsub.f32 %v6040, %v6048
      %v6051 = vsub.f32 %v6041, %v6049
      %v6052 = vmul.f32 %v6050, %v6050
      %v6053 = vmul.f32 %v6051, %v6051
      %v6054 = vsel %vm531, %v6052, 0.0
      %6055 = vadd.xlane.f32.xlu0 %v6054
      %v6056 = vpop.xlane.xlu0 %6055
      %v6057 = vsel %vm531, %v6053, 0.0
      %6058 = vadd.xlane.f32.xlu0 %v6057
      %v6059 = vpop.xlane.xlu0 %6058
      %v6060 = vmul.f32 %v6056, %v544
      %v6061 = vmul.f32 %v6059, %v544
      %v6062 = vadd.f32 %v6060, 1e-05
      %v6063 = vadd.f32 %v6061, 1e-05
      %v6064 = vrsqrt.pop %v6062
      %v6065 = vrsqrt.pop %v6063
      %v6066 = vmul.f32 %v6050, %v6064
      %v6067 = vmul.f32 %v6051, %v6065
      %6068 = vst.msk [vmem:[%s365] sm:$0xff] %vm531, %v6066
      %6069 = vst.msk [vmem:[%s365 + $0x8] sm:$0xff] %vm531, %v6067
      %p6070 = scmp.lt.s32.totalorder %s21, 1
      %s6071 = scalar_select %p6070, %s21, 1
      %s6072 = smul.addr %s6071, 2
      %s6073 = smul.addr %s6072, 8
      %s6074 = scalar_lea.vmem %s8, %s6073
      %p6075 = scmp.lt.s32.totalorder %s21, 1
      %s6076 = scalar_select %p6075, %s21, 1
      %s6077 = smul.addr %s6076, 2
      %s6078 = smul.addr %s6077, 8
      %s6079 = scalar_lea.vmem %s9, %s6078
      // Predicated region
      $region53: #{skeleton2vec_forward.1} parent=51 // pred_check
        %p6080 = pneg %p217
      $region54: #{skeleton2vec_forward.1} parent=51 // pred_check_branch
        %6082 = sbr.rel (%p6080) target = $region56
      $region55: #{skeleton2vec_forward.1} parent=51 // pred_region
        _
      $region56: #{skeleton2vec_forward.1} parent=51 // pred_fallthru
        _
      // Predicated region
      $region57: #{skeleton2vec_forward.1} parent=51 // pred_check
        %p6083 = pneg %p243
      $region58: #{skeleton2vec_forward.1} parent=51 // pred_check_branch
        %6085 = sbr.rel (%p6083) target = $region60
      $region59: #{skeleton2vec_forward.1} parent=51 // pred_region
        _
      $region60: #{skeleton2vec_forward.1} parent=51 // pred_fallthru
        _
    $region52: #{skeleton2vec_forward.1} parent=5 // pred_fallthru
      _
    %p6086 = scmp.le.s32.totalorder 2, %s16
    // Predicated region
    $region61: #{skeleton2vec_forward.1} parent=5 // pred_check
      %p6087 = pneg %p6086
    $region62: #{skeleton2vec_forward.1} parent=5 // pred_check_branch
      %6089 = sbr.rel (%p6087) target = $region64
    $region63: #{skeleton2vec_forward.1} parent=5 // pred_region
      %s6090 = ssub.s32 %s16, 2
      // Predicated region
      $region65: #{skeleton2vec_forward.1} parent=63 // pred_check
        %p6091 = pneg %p223
      $region66: #{skeleton2vec_forward.1} parent=63 // pred_check_branch
        %6093 = sbr.rel (%p6091) target = $region68
      $region67: #{skeleton2vec_forward.1} parent=63 // pred_region
        %p6094 = scmp.lt.s32.totalorder %s22, 1
        %s6095 = scalar_select %p6094, %s22, 1
        %s6096 = smul.addr %s6095, 2
        %s6097 = smul.addr %s6096, 8
        %s6098 = scalar_lea.vmem %s8, %s6097
      $region68: #{skeleton2vec_forward.1} parent=63 // pred_fallthru
        _
      // Predicated region
      $region69: #{skeleton2vec_forward.1} parent=63 // pred_check
        %p6099 = pneg %p249
      $region70: #{skeleton2vec_forward.1} parent=63 // pred_check_branch
        %6101 = sbr.rel (%p6099) target = $region72
      $region71: #{skeleton2vec_forward.1} parent=63 // pred_region
        %p6102 = scmp.lt.s32.totalorder %s22, 1
        %s6103 = scalar_select %p6102, %s22, 1
        %s6104 = smul.addr %s6103, 2
        %s6105 = smul.addr %s6104, 8
        %s6106 = scalar_lea.vmem %s9, %s6105
      $region72: #{skeleton2vec_forward.1} parent=63 // pred_fallthru
        _
    $region64: #{skeleton2vec_forward.1} parent=5 // pred_fallthru
      _
  $region6: #{skeleton2vec_forward.1} parent=0 // loop_footer
    %s20 = sadd.s32 1, %s16
  $region7: #{skeleton2vec_forward.1} parent=0 // loop_footer_branch
    %15 = sbr.rel target = $region3
  $region8: #{skeleton2vec_forward.1} parent=0 // loop_exit
    _

</llo_original>
